<compile_context>
chip_gen: v7x
topology: tpu7x:2x2x1
jax: 0.10.0
libtpu: 0.0.40
codegen_flags: <defaults>
</compile_context>

<pallas_src>
import functools

import jax
import jax.numpy as jnp
from jax.experimental import pallas as pl
from jax.experimental.pallas import tpu as pltpu


# ------------------------------- fused kernel --------------------------------
def mspa_kernel(x_ref, wc_ref, bi_ref, w1_ref, b1_ref, w2_ref, b2_ref,
                tap_ref, mp_ref, out_ref, xcol_ref, *, H, W, nums, n_img):
    C = w2_ref.shape[0]          # width (channels per branch)
    hidden = w1_ref.shape[0]     # width // reduction
    HW = H * W
    NB = n_img
    f32 = jnp.float32

    # 3x3 tap shifts; tap t = (dy+1)*3 + (dx+1) matches the (tap-major, cin-minor)
    # column layout of the pre-reshaped conv-weight slab.
    shifts = [dy * W + dx for dy in (-1, 0, 1) for dx in (-1, 0, 1)]

    sig = []                                        # per-branch sigmoid(attn), (C, NB)
    for b in range(nums):
        # ---- Res2Net chaining + im2col staging into the shared VMEM scratch ----
        for img in range(NB):
            sp_in = x_ref[img, b * C:(b + 1) * C, :].astype(f32)            # (C, HW)
            if b > 0:   # previous branch output was already written through to out_ref
                sp_in = sp_in + out_ref[img, (b - 1) * C:b * C, :].astype(f32)
            for t, d in enumerate(shifts):
                if d == 0:
                    tapped = sp_in
                else:
                    # flat-spatial shifted conv: roll + zero-pad / cross-image mask
                    tapped = (pltpu.roll(sp_in, shift=(-d) % HW, axis=1)
                              * tap_ref[t])                                  # (1, HW) mask
                xcol_ref[t * C:(t + 1) * C, img * HW:(img + 1) * HW] = (
                    tapped.astype(xcol_ref.dtype))

        # ---- conv3x3 (+ folded BN scale) as one MXU matmul over all NB images ----
        y = jnp.dot(wc_ref[b], xcol_ref[...], preferred_element_type=f32)   # (C, NB*HW)
        y = y + bi_ref[b]                                                    # BN bias

        # write-through: the branch output lands in its final output slab immediately
        for img in range(NB):
            out_ref[img, b * C:(b + 1) * C, :] = (
                y[:, img * HW:(img + 1) * HW].astype(out_ref.dtype))

        # ---- SPR pooling (avg-pool1 + 2x2 adaptive avg-pool2) as one MXU matmul ----
        pooled = jnp.dot(y, mp_ref[...], preferred_element_type=f32)         # (C, 5*NB)

        # regroup (C, 5*NB) -> (5C, NB) with tiny 0/1 selection matmuls
        # (column k*NB+img -> row k*C+c, column img; keeps all lane offsets aligned)
        gr = jax.lax.broadcasted_iota(jnp.int32, (5 * NB, NB), 0)
        gc = jax.lax.broadcasted_iota(jnp.int32, (5 * NB, NB), 1)
        v_b = jnp.concatenate(
            [jnp.dot(pooled, (gr == k * NB + gc).astype(f32),
                     preferred_element_type=f32) for k in range(5)],
            axis=0)                                                           # (5C, NB)

        # ---- SPR attention FC stack, lane-batched over the NB images ----
        h = jnp.maximum(jnp.dot(w1_ref[...], v_b, preferred_element_type=f32)
                        + b1_ref[...], 0.0)                                   # (hidden, NB)
        if hidden >= 8:
            a = jnp.dot(w2_ref[...], h, preferred_element_type=f32)
        else:   # tiny hidden: lane-batched broadcast accumulate instead of a K<8 matmul
            a = w2_ref[:, 0:1] * h[0:1, :]
            for j in range(1, hidden):
                a = a + w2_ref[:, j:j + 1] * h[j:j + 1, :]
        a = a + b2_ref[...]
        sig.append(1.0 / (1.0 + jnp.exp(-a)))                                 # (C, NB)

    # ---- softmax over branches of the sigmoid outputs (no max-subtraction needed:
    #      sigmoid outputs lie in (0, 1)) ----
    e = [jnp.exp(s) for s in sig]
    denom = e[0]
    for b in range(1, nums):
        denom = denom + e[b]
    inv = 1.0 / denom                                                         # (C, NB)

    # ---- in-place re-weighting of the already-stored branch slabs ----
    lane = jax.lax.broadcasted_iota(jnp.int32, (1, NB), 1)
    for b in range(nums):
        wgt = e[b] * inv                                                      # (C, NB)
        for img in range(NB):
            if NB == 1:
                wcol = wgt
            else:   # extract column `img` with a masked lane reduction (aligned ops only)
                wcol = jnp.sum(wgt * (lane == img).astype(f32), axis=1, keepdims=True)
            blk = out_ref[img, b * C:(b + 1) * C, :].astype(f32)
            out_ref[img, b * C:(b + 1) * C, :] = (blk * wcol).astype(out_ref.dtype)


# --------------------------- host-side constant builders ----------------------
def _build_tapmask(H, W):
    """(9, 1, HW) validity masks for the 9 3x3 taps under 'same' zero padding."""
    HW = H * W
    pos = jnp.arange(HW)
    row, col = pos // W, pos % W
    rows = []
    for dy in (-1, 0, 1):
        for dx in (-1, 0, 1):
            valid = ((row + dy >= 0) & (row + dy < H) &
                     (col + dx >= 0) & (col + dx < W))
            rows.append(valid.astype(jnp.float32))
    return jnp.stack(rows, axis=0).reshape(9, 1, HW)


def _build_mpool(H, W, n_img):
    """(NB*HW, 5*NB) pooling matrix: column k*NB + img is pool k of image img, pools
    ordered [global-avg, quad(0,0), quad(0,1), quad(1,0), quad(1,1)]."""
    HW = H * W
    H2, W2 = H // 2, W // 2
    pos = jnp.arange(HW)
    row, col = pos // W, pos % W
    cols = [jnp.full((HW,), 1.0 / HW, jnp.float32)]
    for qy in (0, 1):
        for qx in (0, 1):
            m = ((row // H2 == qy) & (col // W2 == qx)).astype(jnp.float32)
            cols.append(m / float(H2 * W2))
    per_img = jnp.stack(cols, axis=1)                              # (HW, 5)
    eye = jnp.eye(n_img, dtype=jnp.float32)                        # (NB, NB)
    return jnp.einsum("pk,ij->ipkj", per_img, eye).reshape(n_img * HW, 5 * n_img)


def _pick_imgs_per_block(B, HW, cap=4):
    """>=2 images per step when possible (streams more MXU work per step, amortizes
    per-step overhead); also try to keep >=2 grid steps so both v7x TCs get work."""
    if HW % 128 != 0:          # per-image lane slabs must stay 128-aligned
        return 1
    divs = [d for d in range(1, min(B, cap) + 1) if B % d == 0]
    good = [d for d in divs if d >= 2 and B // d >= 2]
    return max(good) if good else max(divs)


# ------------------------------ wrapper / params ------------------------------
def init_params(key, width, scale=3, reduction=16):
    C = width
    hidden = max(C // reduction, 1)
    ks = jax.random.split(key, 9)
    return dict(
        conv_w=0.1 * jax.random.normal(ks[0], (scale, C, C, 3, 3), jnp.float32),  # OIHW
        bn_gamma=1.0 + 0.1 * jax.random.normal(ks[1], (scale, C), jnp.float32),
        bn_beta=0.05 * jax.random.normal(ks[2], (scale, C), jnp.float32),
        bn_mean=0.1 * jax.random.normal(ks[3], (scale, C), jnp.float32),
        bn_var=1.0 + 0.1 * jnp.abs(jax.random.normal(ks[4], (scale, C), jnp.float32)),
        fc1_w=0.1 * jax.random.normal(ks[5], (hidden, 5 * C), jnp.float32),
        fc1_b=0.05 * jax.random.normal(ks[6], (hidden,), jnp.float32),
        fc2_w=0.1 * jax.random.normal(ks[7], (C, hidden), jnp.float32),
        fc2_b=0.05 * jax.random.normal(ks[8], (C,), jnp.float32),
    )


def prepare_kernel_params(p, eps=1e-5):
    S, C = p["bn_gamma"].shape
    hidden = p["fc1_w"].shape[0]
    # conv weights -> lane-dense im2col slab (S, Cout, 9*Cin), tap-major / cin-minor cols
    wc = jnp.transpose(p["conv_w"], (0, 1, 3, 4, 2)).reshape(S, C, 9 * C)
    # fold BN (eval): scale into the conv weights, keep only the bias for the kernel
    scale_f = p["bn_gamma"] / jnp.sqrt(p["bn_var"] + eps)          # (S, C)
    bias_f = p["bn_beta"] - p["bn_mean"] * scale_f
    wc = wc * scale_f[:, :, None]
    # fc1 columns reordered to [p1(C) | quad0(C) | quad1(C) | quad2(C) | quad3(C)]
    w1_p1 = p["fc1_w"][:, :C]
    w1_p2 = p["fc1_w"][:, C:].reshape(hidden, C, 4).transpose(0, 2, 1).reshape(hidden, 4 * C)
    return dict(
        wc=wc,
        bias=bias_f.reshape(S, C, 1),
        w1=jnp.concatenate([w1_p1, w1_p2], axis=1),
        b1=p["fc1_b"].reshape(hidden, 1),
        w2=p["fc2_w"],
        b2=p["fc2_b"].reshape(C, 1),
    )


def mspa_forward(x_nchw, kp, *, imgs_per_block=None, use_bf16_mxu=False):
    B, Ctot, H, W = x_nchw.shape
    S, C, _ = kp["wc"].shape
    assert Ctot == S * C and H % 2 == 0 and W % 2 == 0
    assert C % 8 == 0, "width must be a multiple of 8 for aligned channel slabs"
    HW = H * W
    hidden = kp["w1"].shape[0]

    NB = imgs_per_block or _pick_imgs_per_block(B, HW)
    assert B % NB == 0 and (NB == 1 or HW % 128 == 0)
    steps = B // NB

    # optional bf16 MXU operands (f32 accumulation) for v6e/v7x; default f32 keeps the
    # 2e-3 check vs the f32 reference comfortably.
    mxu_dtype = jnp.bfloat16 if use_bf16_mxu else jnp.float32
    wc = kp["wc"].astype(mxu_dtype)

    x2 = x_nchw.reshape(B, Ctot, HW)            # free reshape; no transpose, no pad
    tapmask = _build_tapmask(H, W)              # (9, 1, HW)
    mpool = _build_mpool(H, W, NB)              # (NB*HW, 5*NB)

    kernel = functools.partial(mspa_kernel, H=H, W=W, nums=S, n_img=NB)

    flops = int(B * S * 2 * C * (9 * C + 5) * HW)
    cost = pl.CostEstimate(
        flops=flops, transcendentals=int(2 * B * S * C),
        bytes_accessed=int(4 * 2 * x2.size + 4 * mpool.size
                           + wc.size * wc.dtype.itemsize))

    # per-step VMEM footprint: double-buffered x/out blocks + im2col scratch + params
    # (mpool is lane-padded to 128 in VMEM); raise the scoped limit when it gets close.
    itm = 2 if use_bf16_mxu else 4
    vmem_need = (4 * NB * Ctot * HW * x2.dtype.itemsize          # x + out, double-buffered
                 + 9 * C * NB * HW * itm                         # im2col scratch
                 + NB * HW * 128 * 4                             # mpool (lane-padded)
                 + wc.size * itm + 9 * HW * 4 + 6 * S * C * 4)
    cp_kwargs = dict(dimension_semantics=("parallel",))
    if vmem_need > 24 * 1024 * 1024:
        # TODO(synk): beyond ~64 MiB (v7x) the spatial-split path is required instead.
        cp_kwargs["vmem_limit_bytes"] = int(min(64 * 1024 * 1024, 2 * vmem_need))

    out = pl.pallas_call(
        kernel,
        out_shape=jax.ShapeDtypeStruct((B, Ctot, HW), x_nchw.dtype),
        grid=(steps,),
        in_specs=[
            pl.BlockSpec((NB, Ctot, HW), lambda n: (n, 0, 0)),     # x
            pl.BlockSpec((S, C, 9 * C), lambda n: (0, 0, 0)),      # conv weights (BN folded)
            pl.BlockSpec((S, C, 1), lambda n: (0, 0, 0)),          # BN bias
            pl.BlockSpec((hidden, 5 * C), lambda n: (0, 0)),       # fc1 w (reordered)
            pl.BlockSpec((hidden, 1), lambda n: (0, 0)),           # fc1 b
            pl.BlockSpec((C, hidden), lambda n: (0, 0)),           # fc2 w
            pl.BlockSpec((C, 1), lambda n: (0, 0)),                # fc2 b
            pl.BlockSpec((9, 1, HW), lambda n: (0, 0, 0)),         # tap validity masks
            pl.BlockSpec((NB * HW, 5 * NB), lambda n: (0, 0)),     # pooling matrix
        ],
        out_specs=pl.BlockSpec((NB, Ctot, HW), lambda n: (n, 0, 0)),
        scratch_shapes=[pltpu.VMEM((9 * C, NB * HW), mxu_dtype)],  # shared im2col buffer
        compiler_params=pltpu.CompilerParams(**cp_kwargs),
        cost_estimate=cost,
    )(x2, wc, kp["bias"], kp["w1"], kp["b1"], kp["w2"], kp["b2"], tapmask, mpool)
    return out.reshape(B, Ctot, H, W)


# ----------------------------- pure-JAX reference -----------------------------
def mspa_ref(x, p, eps=1e-5):
    B, Ctot, H, W = x.shape
    S, C = p["bn_gamma"].shape
    outs = []
    sp = None
    for i in range(S):
        xi = x[:, i * C:(i + 1) * C]
        sp_in = xi if i == 0 else sp + xi
        y = jax.lax.conv_general_dilated(
            sp_in, p["conv_w"][i], (1, 1), "SAME",
            dimension_numbers=("NCHW", "OIHW", "NCHW"),
            precision=jax.lax.Precision.HIGHEST)
        y = (y - p["bn_mean"][i][None, :, None, None]) / jnp.sqrt(
            p["bn_var"][i][None, :, None, None] + eps)
        y = y * p["bn_gamma"][i][None, :, None, None] + p["bn_beta"][i][None, :, None, None]
        outs.append(y)
        sp = y
    logits = []
    for i in range(S):
        y = outs[i]
        p1 = jnp.mean(y, axis=(2, 3))                                        # (B, C)
        p2 = jnp.mean(y.reshape(B, C, 2, H // 2, 2, W // 2), axis=(3, 5))    # (B, C, 2, 2)
        v = jnp.concatenate([p1, p2.reshape(B, 4 * C)], axis=1)              # (B, 5C)
        h = jnp.maximum(v @ p["fc1_w"].T + p["fc1_b"], 0.0)
        a = jax.nn.sigmoid(h @ p["fc2_w"].T + p["fc2_b"])                    # (B, C)
        logits.append(a)
    att = jax.nn.softmax(jnp.stack(logits, axis=1), axis=1)                  # (B, S, C)
    feats = jnp.stack(outs, axis=1)                                          # (B, S, C, H, W)
    return (feats * att[:, :, :, None, None]).reshape(B, S * C, H, W)


if __name__ == "__main__":
    key = jax.random.PRNGKey(0)
    k_x, k_p = jax.random.split(key)

    # width must be >= reduction(16) so SPRModule's fc1 has >= 1 hidden channel
    B, width, scale, H, W = 2, 16, 3, 16, 16
    x = jax.random.normal(k_x, (B, width * scale, H, W), jnp.float32)
    raw = init_params(k_p, width=width, scale=scale)
    kp = prepare_kernel_params(raw)

    out = mspa_forward(x, kp)
    out = jax.block_until_ready(out)

    ref = mspa_ref(x, raw)
    assert out.shape == x.shape
    max_err = float(jnp.max(jnp.abs(out - ref)))
    assert jnp.allclose(out, ref, rtol=2e-3, atol=2e-3), max_err

    print("KERNEL_OK")
</pallas_src>

<mosaic_0001>
module attributes {stable_mosaic.version = 11 : i64} {
  func.func @mspa_kernel(%arg0: i32, %arg1: memref<2x48x256xf32, #tpu.memory_space<vmem>>, %arg2: memref<3x16x144xf32, #tpu.memory_space<vmem>>, %arg3: memref<3x16x1xf32, #tpu.memory_space<vmem>>, %arg4: memref<1x80xf32, #tpu.memory_space<vmem>>, %arg5: memref<1x1xf32, #tpu.memory_space<vmem>>, %arg6: memref<16x1xf32, #tpu.memory_space<vmem>>, %arg7: memref<16x1xf32, #tpu.memory_space<vmem>>, %arg8: memref<9x1x256xf32, #tpu.memory_space<vmem>>, %arg9: memref<512x10xf32, #tpu.memory_space<vmem>>, %arg10: memref<2x48x256xf32, #tpu.memory_space<vmem>>, %arg11: memref<144x512xf32, #tpu.memory_space<vmem>>) attributes {dimension_semantics = [#tpu.dimension_semantics<parallel>], iteration_bounds = array<i64: 1>, scalar_prefetch = 0 : i64, scratch_operands = 1 : i64, tpu.core_type = #tpu.core_type<tc>, window_params = [{transform_indices = @transform_0, window_bounds = array<i64: 2, 48, 256>}, {pipeline_mode = #tpu.pipeline_mode<synchronous>, transform_indices = @transform_1, window_bounds = array<i64: 3, 16, 144>}, {pipeline_mode = #tpu.pipeline_mode<synchronous>, transform_indices = @transform_2, window_bounds = array<i64: 3, 16, 1>}, {pipeline_mode = #tpu.pipeline_mode<synchronous>, transform_indices = @transform_3, window_bounds = array<i64: 1, 80>}, {pipeline_mode = #tpu.pipeline_mode<synchronous>, transform_indices = @transform_4, window_bounds = array<i64: 1, 1>}, {pipeline_mode = #tpu.pipeline_mode<synchronous>, transform_indices = @transform_5, window_bounds = array<i64: 16, 1>}, {pipeline_mode = #tpu.pipeline_mode<synchronous>, transform_indices = @transform_6, window_bounds = array<i64: 16, 1>}, {pipeline_mode = #tpu.pipeline_mode<synchronous>, transform_indices = @transform_7, window_bounds = array<i64: 9, 1, 256>}, {pipeline_mode = #tpu.pipeline_mode<synchronous>, transform_indices = @transform_8, window_bounds = array<i64: 512, 10>}, {transform_indices = @transform_9, window_bounds = array<i64: 2, 48, 256>}]} {
    %c0 = arith.constant 0 : index
    %c0_0 = arith.constant 0 : index
    %c0_1 = arith.constant 0 : index
    %0 = vector.load %arg1[%c0, %c0_0, %c0_1] : memref<2x48x256xf32, #tpu.memory_space<vmem>>, vector<1x16x256xf32>
    %1 = vector.shape_cast %0 : vector<1x16x256xf32> to vector<16x256xf32>
    %c17_i32 = arith.constant 17 : i32
    %2 = tpu.dynamic_rotate %1 by %c17_i32 dim 1 : vector<16x256xf32>, i32 -> vector<16x256xf32>
    %c0_2 = arith.constant 0 : index
    %c0_3 = arith.constant 0 : index
    %c0_4 = arith.constant 0 : index
    %3 = vector.load %arg8[%c0_2, %c0_3, %c0_4] : memref<9x1x256xf32, #tpu.memory_space<vmem>>, vector<1x1x256xf32>
    %4 = vector.shape_cast %3 : vector<1x1x256xf32> to vector<1x256xf32>
    %5 = vector.broadcast %4 : vector<1x256xf32> to vector<16x256xf32>
    %6 = arith.mulf %2, %5 : vector<16x256xf32>
    %c0_5 = arith.constant 0 : index
    %c0_6 = arith.constant 0 : index
    %7 = vector.load %arg11[%c0_5, %c0_6] : memref<144x512xf32, #tpu.memory_space<vmem>>, vector<16x256xf32>
    tpu.vector_store %arg11[%c0_5, %c0_6], %6 {strides = array<i32>} : memref<144x512xf32, #tpu.memory_space<vmem>>, vector<16x256xf32>,
    %c16_i32 = arith.constant 16 : i32
    %8 = tpu.dynamic_rotate %1 by %c16_i32 dim 1 : vector<16x256xf32>, i32 -> vector<16x256xf32>
    %c1 = arith.constant 1 : index
    %c0_7 = arith.constant 0 : index
    %c0_8 = arith.constant 0 : index
    %9 = vector.load %arg8[%c1, %c0_7, %c0_8] : memref<9x1x256xf32, #tpu.memory_space<vmem>>, vector<1x1x256xf32>
    %10 = vector.shape_cast %9 : vector<1x1x256xf32> to vector<1x256xf32>
    %11 = vector.broadcast %10 : vector<1x256xf32> to vector<16x256xf32>
    %12 = arith.mulf %8, %11 : vector<16x256xf32>
    %c16 = arith.constant 16 : index
    %c0_9 = arith.constant 0 : index
    %13 = vector.load %arg11[%c16, %c0_9] : memref<144x512xf32, #tpu.memory_space<vmem>>, vector<16x256xf32>
    tpu.vector_store %arg11[%c16, %c0_9], %12 {strides = array<i32>} : memref<144x512xf32, #tpu.memory_space<vmem>>, vector<16x256xf32>,
    %c15_i32 = arith.constant 15 : i32
    %14 = tpu.dynamic_rotate %1 by %c15_i32 dim 1 : vector<16x256xf32>, i32 -> vector<16x256xf32>
    %c2 = arith.constant 2 : index
    %c0_10 = arith.constant 0 : index
    %c0_11 = arith.constant 0 : index
    %15 = vector.load %arg8[%c2, %c0_10, %c0_11] : memref<9x1x256xf32, #tpu.memory_space<vmem>>, vector<1x1x256xf32>
    %16 = vector.shape_cast %15 : vector<1x1x256xf32> to vector<1x256xf32>
    %17 = vector.broadcast %16 : vector<1x256xf32> to vector<16x256xf32>
    %18 = arith.mulf %14, %17 : vector<16x256xf32>
    %c32 = arith.constant 32 : index
    %c0_12 = arith.constant 0 : index
    %19 = vector.load %arg11[%c32, %c0_12] : memref<144x512xf32, #tpu.memory_space<vmem>>, vector<16x256xf32>
    tpu.vector_store %arg11[%c32, %c0_12], %18 {strides = array<i32>} : memref<144x512xf32, #tpu.memory_space<vmem>>, vector<16x256xf32>,
    %c1_i32 = arith.constant 1 : i32
    %20 = tpu.dynamic_rotate %1 by %c1_i32 dim 1 : vector<16x256xf32>, i32 -> vector<16x256xf32>
    %c3 = arith.constant 3 : index
    %c0_13 = arith.constant 0 : index
    %c0_14 = arith.constant 0 : index
    %21 = vector.load %arg8[%c3, %c0_13, %c0_14] : memref<9x1x256xf32, #tpu.memory_space<vmem>>, vector<1x1x256xf32>
    %22 = vector.shape_cast %21 : vector<1x1x256xf32> to vector<1x256xf32>
    %23 = vector.broadcast %22 : vector<1x256xf32> to vector<16x256xf32>
    %24 = arith.mulf %20, %23 : vector<16x256xf32>
    %c48 = arith.constant 48 : index
    %c0_15 = arith.constant 0 : index
    %25 = vector.load %arg11[%c48, %c0_15] : memref<144x512xf32, #tpu.memory_space<vmem>>, vector<16x256xf32>
    tpu.vector_store %arg11[%c48, %c0_15], %24 {strides = array<i32>} : memref<144x512xf32, #tpu.memory_space<vmem>>, vector<16x256xf32>,
    %c64 = arith.constant 64 : index
    %c0_16 = arith.constant 0 : index
    %26 = vector.load %arg11[%c64, %c0_16] : memref<144x512xf32, #tpu.memory_space<vmem>>, vector<16x256xf32>
    tpu.vector_store %arg11[%c64, %c0_16], %1 {strides = array<i32>} : memref<144x512xf32, #tpu.memory_space<vmem>>, vector<16x256xf32>,
    %c255_i32 = arith.constant 255 : i32
    %27 = tpu.dynamic_rotate %1 by %c255_i32 dim 1 : vector<16x256xf32>, i32 -> vector<16x256xf32>
    %c5 = arith.constant 5 : index
    %c0_17 = arith.constant 0 : index
    %c0_18 = arith.constant 0 : index
    %28 = vector.load %arg8[%c5, %c0_17, %c0_18] : memref<9x1x256xf32, #tpu.memory_space<vmem>>, vector<1x1x256xf32>
    %29 = vector.shape_cast %28 : vector<1x1x256xf32> to vector<1x256xf32>
    %30 = vector.broadcast %29 : vector<1x256xf32> to vector<16x256xf32>
    %31 = arith.mulf %27, %30 : vector<16x256xf32>
    %c80 = arith.constant 80 : index
    %c0_19 = arith.constant 0 : index
    %32 = vector.load %arg11[%c80, %c0_19] : memref<144x512xf32, #tpu.memory_space<vmem>>, vector<16x256xf32>
    tpu.vector_store %arg11[%c80, %c0_19], %31 {strides = array<i32>} : memref<144x512xf32, #tpu.memory_space<vmem>>, vector<16x256xf32>,
    %c241_i32 = arith.constant 241 : i32
    %33 = tpu.dynamic_rotate %1 by %c241_i32 dim 1 : vector<16x256xf32>, i32 -> vector<16x256xf32>
    %c6 = arith.constant 6 : index
    %c0_20 = arith.constant 0 : index
    %c0_21 = arith.constant 0 : index
    %34 = vector.load %arg8[%c6, %c0_20, %c0_21] : memref<9x1x256xf32, #tpu.memory_space<vmem>>, vector<1x1x256xf32>
    %35 = vector.shape_cast %34 : vector<1x1x256xf32> to vector<1x256xf32>
    %36 = vector.broadcast %35 : vector<1x256xf32> to vector<16x256xf32>
    %37 = arith.mulf %33, %36 : vector<16x256xf32>
    %c96 = arith.constant 96 : index
    %c0_22 = arith.constant 0 : index
    %38 = vector.load %arg11[%c96, %c0_22] : memref<144x512xf32, #tpu.memory_space<vmem>>, vector<16x256xf32>
    tpu.vector_store %arg11[%c96, %c0_22], %37 {strides = array<i32>} : memref<144x512xf32, #tpu.memory_space<vmem>>, vector<16x256xf32>,
    %c240_i32 = arith.constant 240 : i32
    %39 = tpu.dynamic_rotate %1 by %c240_i32 dim 1 : vector<16x256xf32>, i32 -> vector<16x256xf32>
    %c7 = arith.constant 7 : index
    %c0_23 = arith.constant 0 : index
    %c0_24 = arith.constant 0 : index
    %40 = vector.load %arg8[%c7, %c0_23, %c0_24] : memref<9x1x256xf32, #tpu.memory_space<vmem>>, vector<1x1x256xf32>
    %41 = vector.shape_cast %40 : vector<1x1x256xf32> to vector<1x256xf32>
    %42 = vector.broadcast %41 : vector<1x256xf32> to vector<16x256xf32>
    %43 = arith.mulf %39, %42 : vector<16x256xf32>
    %c112 = arith.constant 112 : index
    %c0_25 = arith.constant 0 : index
    %44 = vector.load %arg11[%c112, %c0_25] : memref<144x512xf32, #tpu.memory_space<vmem>>, vector<16x256xf32>
    tpu.vector_store %arg11[%c112, %c0_25], %43 {strides = array<i32>} : memref<144x512xf32, #tpu.memory_space<vmem>>, vector<16x256xf32>,
    %c239_i32 = arith.constant 239 : i32
    %45 = tpu.dynamic_rotate %1 by %c239_i32 dim 1 : vector<16x256xf32>, i32 -> vector<16x256xf32>
    %c8 = arith.constant 8 : index
    %c0_26 = arith.constant 0 : index
    %c0_27 = arith.constant 0 : index
    %46 = vector.load %arg8[%c8, %c0_26, %c0_27] : memref<9x1x256xf32, #tpu.memory_space<vmem>>, vector<1x1x256xf32>
    %47 = vector.shape_cast %46 : vector<1x1x256xf32> to vector<1x256xf32>
    %48 = vector.broadcast %47 : vector<1x256xf32> to vector<16x256xf32>
    %49 = arith.mulf %45, %48 : vector<16x256xf32>
    %c128 = arith.constant 128 : index
    %c0_28 = arith.constant 0 : index
    %50 = vector.load %arg11[%c128, %c0_28] : memref<144x512xf32, #tpu.memory_space<vmem>>, vector<16x256xf32>
    tpu.vector_store %arg11[%c128, %c0_28], %49 {strides = array<i32>} : memref<144x512xf32, #tpu.memory_space<vmem>>, vector<16x256xf32>,
    %c1_29 = arith.constant 1 : index
    %c0_30 = arith.constant 0 : index
    %c0_31 = arith.constant 0 : index
    %51 = vector.load %arg1[%c1_29, %c0_30, %c0_31] : memref<2x48x256xf32, #tpu.memory_space<vmem>>, vector<1x16x256xf32>
    %52 = vector.shape_cast %51 : vector<1x16x256xf32> to vector<16x256xf32>
    %c17_i32_32 = arith.constant 17 : i32
    %53 = tpu.dynamic_rotate %52 by %c17_i32_32 dim 1 : vector<16x256xf32>, i32 -> vector<16x256xf32>
    %c0_33 = arith.constant 0 : index
    %c0_34 = arith.constant 0 : index
    %c0_35 = arith.constant 0 : index
    %54 = vector.load %arg8[%c0_33, %c0_34, %c0_35] : memref<9x1x256xf32, #tpu.memory_space<vmem>>, vector<1x1x256xf32>
    %55 = vector.shape_cast %54 : vector<1x1x256xf32> to vector<1x256xf32>
    %56 = vector.broadcast %55 : vector<1x256xf32> to vector<16x256xf32>
    %57 = arith.mulf %53, %56 : vector<16x256xf32>
    %c0_36 = arith.constant 0 : index
    %c256 = arith.constant 256 : index
    %58 = vector.load %arg11[%c0_36, %c256] : memref<144x512xf32, #tpu.memory_space<vmem>>, vector<16x256xf32>
    tpu.vector_store %arg11[%c0_36, %c256], %57 {strides = array<i32>} : memref<144x512xf32, #tpu.memory_space<vmem>>, vector<16x256xf32>,
    %c16_i32_37 = arith.constant 16 : i32
    %59 = tpu.dynamic_rotate %52 by %c16_i32_37 dim 1 : vector<16x256xf32>, i32 -> vector<16x256xf32>
    %c1_38 = arith.constant 1 : index
    %c0_39 = arith.constant 0 : index
    %c0_40 = arith.constant 0 : index
    %60 = vector.load %arg8[%c1_38, %c0_39, %c0_40] : memref<9x1x256xf32, #tpu.memory_space<vmem>>, vector<1x1x256xf32>
    %61 = vector.shape_cast %60 : vector<1x1x256xf32> to vector<1x256xf32>
    %62 = vector.broadcast %61 : vector<1x256xf32> to vector<16x256xf32>
    %63 = arith.mulf %59, %62 : vector<16x256xf32>
    %c16_41 = arith.constant 16 : index
    %c256_42 = arith.constant 256 : index
    %64 = vector.load %arg11[%c16_41, %c256_42] : memref<144x512xf32, #tpu.memory_space<vmem>>, vector<16x256xf32>
    tpu.vector_store %arg11[%c16_41, %c256_42], %63 {strides = array<i32>} : memref<144x512xf32, #tpu.memory_space<vmem>>, vector<16x256xf32>,
    %c15_i32_43 = arith.constant 15 : i32
    %65 = tpu.dynamic_rotate %52 by %c15_i32_43 dim 1 : vector<16x256xf32>, i32 -> vector<16x256xf32>
    %c2_44 = arith.constant 2 : index
    %c0_45 = arith.constant 0 : index
    %c0_46 = arith.constant 0 : index
    %66 = vector.load %arg8[%c2_44, %c0_45, %c0_46] : memref<9x1x256xf32, #tpu.memory_space<vmem>>, vector<1x1x256xf32>
    %67 = vector.shape_cast %66 : vector<1x1x256xf32> to vector<1x256xf32>
    %68 = vector.broadcast %67 : vector<1x256xf32> to vector<16x256xf32>
    %69 = arith.mulf %65, %68 : vector<16x256xf32>
    %c32_47 = arith.constant 32 : index
    %c256_48 = arith.constant 256 : index
    %70 = vector.load %arg11[%c32_47, %c256_48] : memref<144x512xf32, #tpu.memory_space<vmem>>, vector<16x256xf32>
    tpu.vector_store %arg11[%c32_47, %c256_48], %69 {strides = array<i32>} : memref<144x512xf32, #tpu.memory_space<vmem>>, vector<16x256xf32>,
    %c1_i32_49 = arith.constant 1 : i32
    %71 = tpu.dynamic_rotate %52 by %c1_i32_49 dim 1 : vector<16x256xf32>, i32 -> vector<16x256xf32>
    %c3_50 = arith.constant 3 : index
    %c0_51 = arith.constant 0 : index
    %c0_52 = arith.constant 0 : index
    %72 = vector.load %arg8[%c3_50, %c0_51, %c0_52] : memref<9x1x256xf32, #tpu.memory_space<vmem>>, vector<1x1x256xf32>
    %73 = vector.shape_cast %72 : vector<1x1x256xf32> to vector<1x256xf32>
    %74 = vector.broadcast %73 : vector<1x256xf32> to vector<16x256xf32>
    %75 = arith.mulf %71, %74 : vector<16x256xf32>
    %c48_53 = arith.constant 48 : index
    %c256_54 = arith.constant 256 : index
    %76 = vector.load %arg11[%c48_53, %c256_54] : memref<144x512xf32, #tpu.memory_space<vmem>>, vector<16x256xf32>
    tpu.vector_store %arg11[%c48_53, %c256_54], %75 {strides = array<i32>} : memref<144x512xf32, #tpu.memory_space<vmem>>, vector<16x256xf32>,
    %c64_55 = arith.constant 64 : index
    %c256_56 = arith.constant 256 : index
    %77 = vector.load %arg11[%c64_55, %c256_56] : memref<144x512xf32, #tpu.memory_space<vmem>>, vector<16x256xf32>
    tpu.vector_store %arg11[%c64_55, %c256_56], %52 {strides = array<i32>} : memref<144x512xf32, #tpu.memory_space<vmem>>, vector<16x256xf32>,
    %c255_i32_57 = arith.constant 255 : i32
    %78 = tpu.dynamic_rotate %52 by %c255_i32_57 dim 1 : vector<16x256xf32>, i32 -> vector<16x256xf32>
    %c5_58 = arith.constant 5 : index
    %c0_59 = arith.constant 0 : index
    %c0_60 = arith.constant 0 : index
    %79 = vector.load %arg8[%c5_58, %c0_59, %c0_60] : memref<9x1x256xf32, #tpu.memory_space<vmem>>, vector<1x1x256xf32>
    %80 = vector.shape_cast %79 : vector<1x1x256xf32> to vector<1x256xf32>
    %81 = vector.broadcast %80 : vector<1x256xf32> to vector<16x256xf32>
    %82 = arith.mulf %78, %81 : vector<16x256xf32>
    %c80_61 = arith.constant 80 : index
    %c256_62 = arith.constant 256 : index
    %83 = vector.load %arg11[%c80_61, %c256_62] : memref<144x512xf32, #tpu.memory_space<vmem>>, vector<16x256xf32>
    tpu.vector_store %arg11[%c80_61, %c256_62], %82 {strides = array<i32>} : memref<144x512xf32, #tpu.memory_space<vmem>>, vector<16x256xf32>,
    %c241_i32_63 = arith.constant 241 : i32
    %84 = tpu.dynamic_rotate %52 by %c241_i32_63 dim 1 : vector<16x256xf32>, i32 -> vector<16x256xf32>
    %c6_64 = arith.constant 6 : index
    %c0_65 = arith.constant 0 : index
    %c0_66 = arith.constant 0 : index
    %85 = vector.load %arg8[%c6_64, %c0_65, %c0_66] : memref<9x1x256xf32, #tpu.memory_space<vmem>>, vector<1x1x256xf32>
    %86 = vector.shape_cast %85 : vector<1x1x256xf32> to vector<1x256xf32>
    %87 = vector.broadcast %86 : vector<1x256xf32> to vector<16x256xf32>
    %88 = arith.mulf %84, %87 : vector<16x256xf32>
    %c96_67 = arith.constant 96 : index
    %c256_68 = arith.constant 256 : index
    %89 = vector.load %arg11[%c96_67, %c256_68] : memref<144x512xf32, #tpu.memory_space<vmem>>, vector<16x256xf32>
    tpu.vector_store %arg11[%c96_67, %c256_68], %88 {strides = array<i32>} : memref<144x512xf32, #tpu.memory_space<vmem>>, vector<16x256xf32>,
    %c240_i32_69 = arith.constant 240 : i32
    %90 = tpu.dynamic_rotate %52 by %c240_i32_69 dim 1 : vector<16x256xf32>, i32 -> vector<16x256xf32>
    %c7_70 = arith.constant 7 : index
    %c0_71 = arith.constant 0 : index
    %c0_72 = arith.constant 0 : index
    %91 = vector.load %arg8[%c7_70, %c0_71, %c0_72] : memref<9x1x256xf32, #tpu.memory_space<vmem>>, vector<1x1x256xf32>
    %92 = vector.shape_cast %91 : vector<1x1x256xf32> to vector<1x256xf32>
    %93 = vector.broadcast %92 : vector<1x256xf32> to vector<16x256xf32>
    %94 = arith.mulf %90, %93 : vector<16x256xf32>
    %c112_73 = arith.constant 112 : index
    %c256_74 = arith.constant 256 : index
    %95 = vector.load %arg11[%c112_73, %c256_74] : memref<144x512xf32, #tpu.memory_space<vmem>>, vector<16x256xf32>
    tpu.vector_store %arg11[%c112_73, %c256_74], %94 {strides = array<i32>} : memref<144x512xf32, #tpu.memory_space<vmem>>, vector<16x256xf32>,
    %c239_i32_75 = arith.constant 239 : i32
    %96 = tpu.dynamic_rotate %52 by %c239_i32_75 dim 1 : vector<16x256xf32>, i32 -> vector<16x256xf32>
    %c8_76 = arith.constant 8 : index
    %c0_77 = arith.constant 0 : index
    %c0_78 = arith.constant 0 : index
    %97 = vector.load %arg8[%c8_76, %c0_77, %c0_78] : memref<9x1x256xf32, #tpu.memory_space<vmem>>, vector<1x1x256xf32>
    %98 = vector.shape_cast %97 : vector<1x1x256xf32> to vector<1x256xf32>
    %99 = vector.broadcast %98 : vector<1x256xf32> to vector<16x256xf32>
    %100 = arith.mulf %96, %99 : vector<16x256xf32>
    %c128_79 = arith.constant 128 : index
    %c256_80 = arith.constant 256 : index
    %101 = vector.load %arg11[%c128_79, %c256_80] : memref<144x512xf32, #tpu.memory_space<vmem>>, vector<16x256xf32>
    tpu.vector_store %arg11[%c128_79, %c256_80], %100 {strides = array<i32>} : memref<144x512xf32, #tpu.memory_space<vmem>>, vector<16x256xf32>,
    %c0_81 = arith.constant 0 : index
    %c0_82 = arith.constant 0 : index
    %c0_83 = arith.constant 0 : index
    %102 = vector.load %arg2[%c0_81, %c0_82, %c0_83] : memref<3x16x144xf32, #tpu.memory_space<vmem>>, vector<1x16x144xf32>
    %103 = vector.shape_cast %102 : vector<1x16x144xf32> to vector<16x144xf32>
    %c0_84 = arith.constant 0 : index
    %c0_85 = arith.constant 0 : index
    %104 = vector.load %arg11[%c0_84, %c0_85] : memref<144x512xf32, #tpu.memory_space<vmem>>, vector<144x512xf32>
    %cst = arith.constant dense<0.000000e+00> : vector<16x512xf32>
    %105 = tpu.matmul %103, %104, %cst {dimension_numbers = #tpu.dot_dimension_numbers<[1], [0], [0], [1], [0, 0, 1, 1], [], []>} : vector<16x144xf32>, vector<144x512xf32>, vector<16x512xf32> -> vector<16x512xf32>
    %c0_86 = arith.constant 0 : index
    %c0_87 = arith.constant 0 : index
    %c0_88 = arith.constant 0 : index
    %106 = vector.load %arg3[%c0_86, %c0_87, %c0_88] : memref<3x16x1xf32, #tpu.memory_space<vmem>>, vector<1x16x1xf32>
    %107 = vector.shape_cast %106 : vector<1x16x1xf32> to vector<16x1xf32>
    %108 = vector.broadcast %107 : vector<16x1xf32> to vector<16x512xf32>
    %109 = arith.addf %105, %108 : vector<16x512xf32>
    %110 = vector.extract_strided_slice %109 {offsets = [0, 0], sizes = [16, 256], strides = [1, 1]} : vector<16x512xf32> to vector<16x256xf32>
    %c0_89 = arith.constant 0 : index
    %c0_90 = arith.constant 0 : index
    %c0_91 = arith.constant 0 : index
    %111 = vector.load %arg10[%c0_89, %c0_90, %c0_91] : memref<2x48x256xf32, #tpu.memory_space<vmem>>, vector<1x16x256xf32>
    %112 = vector.shape_cast %111 : vector<1x16x256xf32> to vector<16x256xf32>
    %113 = vector.shape_cast %110 : vector<16x256xf32> to vector<1x16x256xf32>
    tpu.vector_store %arg10[%c0_89, %c0_90, %c0_91], %113 {strides = array<i32>} : memref<2x48x256xf32, #tpu.memory_space<vmem>>, vector<1x16x256xf32>,
    %114 = vector.extract_strided_slice %109 {offsets = [0, 256], sizes = [16, 256], strides = [1, 1]} : vector<16x512xf32> to vector<16x256xf32>
    %c1_92 = arith.constant 1 : index
    %c0_93 = arith.constant 0 : index
    %c0_94 = arith.constant 0 : index
    %115 = vector.load %arg10[%c1_92, %c0_93, %c0_94] : memref<2x48x256xf32, #tpu.memory_space<vmem>>, vector<1x16x256xf32>
    %116 = vector.shape_cast %115 : vector<1x16x256xf32> to vector<16x256xf32>
    %117 = vector.shape_cast %114 : vector<16x256xf32> to vector<1x16x256xf32>
    tpu.vector_store %arg10[%c1_92, %c0_93, %c0_94], %117 {strides = array<i32>} : memref<2x48x256xf32, #tpu.memory_space<vmem>>, vector<1x16x256xf32>,
    %c0_95 = arith.constant 0 : index
    %c0_96 = arith.constant 0 : index
    %118 = vector.load %arg9[%c0_95, %c0_96] : memref<512x10xf32, #tpu.memory_space<vmem>>, vector<512x10xf32>
    %cst_97 = arith.constant dense<0.000000e+00> : vector<16x10xf32>
    %119 = tpu.matmul %109, %118, %cst_97 {dimension_numbers = #tpu.dot_dimension_numbers<[1], [0], [0], [1], [0, 0, 1, 1], [], []>} : vector<16x512xf32>, vector<512x10xf32>, vector<16x10xf32> -> vector<16x10xf32>
    %120 = tpu.iota {dimensions = array<i32: 0>} : vector<10x2xi32>
    %121 = tpu.iota {dimensions = array<i32: 1>} : vector<10x2xi32>
    %c0_i32 = arith.constant 0 : i32
    %122 = vector.broadcast %c0_i32 : i32 to vector<10x2xi32>
    %123 = arith.addi %122, %121 : vector<10x2xi32>
    %124 = arith.cmpi eq, %120, %123 : vector<10x2xi32>
    %125 = arith.extui %124 : vector<10x2xi1> to vector<10x2xi32>
    %126 = arith.sitofp %125 : vector<10x2xi32> to vector<10x2xf32>
    %cst_98 = arith.constant dense<0.000000e+00> : vector<16x2xf32>
    %127 = tpu.matmul %119, %126, %cst_98 {dimension_numbers = #tpu.dot_dimension_numbers<[1], [0], [0], [1], [0, 0, 1, 1], [], []>} : vector<16x10xf32>, vector<10x2xf32>, vector<16x2xf32> -> vector<16x2xf32>
    %c2_i32 = arith.constant 2 : i32
    %128 = vector.broadcast %c2_i32 : i32 to vector<10x2xi32>
    %129 = arith.addi %128, %121 : vector<10x2xi32>
    %130 = arith.cmpi eq, %120, %129 : vector<10x2xi32>
    %131 = arith.extui %130 : vector<10x2xi1> to vector<10x2xi32>
    %132 = arith.sitofp %131 : vector<10x2xi32> to vector<10x2xf32>
    %cst_99 = arith.constant dense<0.000000e+00> : vector<16x2xf32>
    %133 = tpu.matmul %119, %132, %cst_99 {dimension_numbers = #tpu.dot_dimension_numbers<[1], [0], [0], [1], [0, 0, 1, 1], [], []>} : vector<16x10xf32>, vector<10x2xf32>, vector<16x2xf32> -> vector<16x2xf32>
    %c4_i32 = arith.constant 4 : i32
    %134 = vector.broadcast %c4_i32 : i32 to vector<10x2xi32>
    %135 = arith.addi %134, %121 : vector<10x2xi32>
    %136 = arith.cmpi eq, %120, %135 : vector<10x2xi32>
    %137 = arith.extui %136 : vector<10x2xi1> to vector<10x2xi32>
    %138 = arith.sitofp %137 : vector<10x2xi32> to vector<10x2xf32>
    %cst_100 = arith.constant dense<0.000000e+00> : vector<16x2xf32>
    %139 = tpu.matmul %119, %138, %cst_100 {dimension_numbers = #tpu.dot_dimension_numbers<[1], [0], [0], [1], [0, 0, 1, 1], [], []>} : vector<16x10xf32>, vector<10x2xf32>, vector<16x2xf32> -> vector<16x2xf32>
    %c6_i32 = arith.constant 6 : i32
    %140 = vector.broadcast %c6_i32 : i32 to vector<10x2xi32>
    %141 = arith.addi %140, %121 : vector<10x2xi32>
    %142 = arith.cmpi eq, %120, %141 : vector<10x2xi32>
    %143 = arith.extui %142 : vector<10x2xi1> to vector<10x2xi32>
    %144 = arith.sitofp %143 : vector<10x2xi32> to vector<10x2xf32>
    %cst_101 = arith.constant dense<0.000000e+00> : vector<16x2xf32>
    %145 = tpu.matmul %119, %144, %cst_101 {dimension_numbers = #tpu.dot_dimension_numbers<[1], [0], [0], [1], [0, 0, 1, 1], [], []>} : vector<16x10xf32>, vector<10x2xf32>, vector<16x2xf32> -> vector<16x2xf32>
    %c8_i32 = arith.constant 8 : i32
    %146 = vector.broadcast %c8_i32 : i32 to vector<10x2xi32>
    %147 = arith.addi %146, %121 : vector<10x2xi32>
    %148 = arith.cmpi eq, %120, %147 : vector<10x2xi32>
    %149 = arith.extui %148 : vector<10x2xi1> to vector<10x2xi32>
    %150 = arith.sitofp %149 : vector<10x2xi32> to vector<10x2xf32>
    %cst_102 = arith.constant dense<0.000000e+00> : vector<16x2xf32>
    %151 = tpu.matmul %119, %150, %cst_102 {dimension_numbers = #tpu.dot_dimension_numbers<[1], [0], [0], [1], [0, 0, 1, 1], [], []>} : vector<16x10xf32>, vector<10x2xf32>, vector<16x2xf32> -> vector<16x2xf32>
    %152 = tpu.concatenate %127, %133, %139, %145, %151 in 0 : vector<16x2xf32>, vector<16x2xf32>, vector<16x2xf32>, vector<16x2xf32>, vector<16x2xf32> -> vector<80x2xf32>
    %c0_103 = arith.constant 0 : index
    %c0_104 = arith.constant 0 : index
    %153 = vector.load %arg4[%c0_103, %c0_104] : memref<1x80xf32, #tpu.memory_space<vmem>>, vector<1x80xf32>
    %cst_105 = arith.constant dense<0.000000e+00> : vector<1x2xf32>
    %154 = tpu.matmul %153, %152, %cst_105 {dimension_numbers = #tpu.dot_dimension_numbers<[1], [0], [0], [1], [0, 0, 1, 1], [], []>} : vector<1x80xf32>, vector<80x2xf32>, vector<1x2xf32> -> vector<1x2xf32>
    %c0_106 = arith.constant 0 : index
    %c0_107 = arith.constant 0 : index
    %155 = vector.load %arg5[%c0_106, %c0_107] : memref<1x1xf32, #tpu.memory_space<vmem>>, vector<1x1xf32>
    %156 = vector.broadcast %155 : vector<1x1xf32> to vector<1x2xf32>
    %157 = arith.addf %154, %156 : vector<1x2xf32>
    %cst_108 = arith.constant 0.000000e+00 : f32
    %158 = vector.broadcast %cst_108 : f32 to vector<1x2xf32>
    %159 = arith.maximumf %157, %158 : vector<1x2xf32>
    %c0_109 = arith.constant 0 : index
    %c0_110 = arith.constant 0 : index
    %160 = vector.load %arg6[%c0_109, %c0_110] : memref<16x1xf32, #tpu.memory_space<vmem>>, vector<16x1xf32>
    %161 = vector.broadcast %160 : vector<16x1xf32> to vector<16x2xf32>
    %162 = vector.broadcast %159 : vector<1x2xf32> to vector<16x2xf32>
    %163 = arith.mulf %161, %162 : vector<16x2xf32>
    %c0_111 = arith.constant 0 : index
    %c0_112 = arith.constant 0 : index
    %164 = vector.load %arg7[%c0_111, %c0_112] : memref<16x1xf32, #tpu.memory_space<vmem>>, vector<16x1xf32>
    %165 = vector.broadcast %164 : vector<16x1xf32> to vector<16x2xf32>
    %166 = arith.addf %163, %165 : vector<16x2xf32>
    %cst_113 = arith.constant 0.000000e+00 : f32
    %167 = vector.broadcast %cst_113 : f32 to vector<16x2xf32>
    %168 = arith.subf %167, %166 : vector<16x2xf32>
    %169 = math.exp %168 : vector<16x2xf32>
    %cst_114 = arith.constant 1.000000e+00 : f32
    %170 = vector.broadcast %cst_114 : f32 to vector<16x2xf32>
    %171 = arith.addf %170, %169 : vector<16x2xf32>
    %cst_115 = arith.constant 1.000000e+00 : f32
    %172 = vector.broadcast %cst_115 : f32 to vector<16x2xf32>
    %173 = arith.divf %172, %171 : vector<16x2xf32>
    %c0_116 = arith.constant 0 : index
    %c16_117 = arith.constant 16 : index
    %c0_118 = arith.constant 0 : index
    %174 = vector.load %arg1[%c0_116, %c16_117, %c0_118] : memref<2x48x256xf32, #tpu.memory_space<vmem>>, vector<1x16x256xf32>
    %175 = vector.shape_cast %174 : vector<1x16x256xf32> to vector<16x256xf32>
    %c0_119 = arith.constant 0 : index
    %c0_120 = arith.constant 0 : index
    %c0_121 = arith.constant 0 : index
    %176 = vector.load %arg10[%c0_119, %c0_120, %c0_121] : memref<2x48x256xf32, #tpu.memory_space<vmem>>, vector<1x16x256xf32>
    %177 = vector.shape_cast %176 : vector<1x16x256xf32> to vector<16x256xf32>
    %178 = arith.addf %175, %177 : vector<16x256xf32>
    %c17_i32_122 = arith.constant 17 : i32
    %179 = tpu.dynamic_rotate %178 by %c17_i32_122 dim 1 : vector<16x256xf32>, i32 -> vector<16x256xf32>
    %c0_123 = arith.constant 0 : index
    %c0_124 = arith.constant 0 : index
    %c0_125 = arith.constant 0 : index
    %180 = vector.load %arg8[%c0_123, %c0_124, %c0_125] : memref<9x1x256xf32, #tpu.memory_space<vmem>>, vector<1x1x256xf32>
    %181 = vector.shape_cast %180 : vector<1x1x256xf32> to vector<1x256xf32>
    %182 = vector.broadcast %181 : vector<1x256xf32> to vector<16x256xf32>
    %183 = arith.mulf %179, %182 : vector<16x256xf32>
    %c0_126 = arith.constant 0 : index
    %c0_127 = arith.constant 0 : index
    %184 = vector.load %arg11[%c0_126, %c0_127] : memref<144x512xf32, #tpu.memory_space<vmem>>, vector<16x256xf32>
    tpu.vector_store %arg11[%c0_126, %c0_127], %183 {strides = array<i32>} : memref<144x512xf32, #tpu.memory_space<vmem>>, vector<16x256xf32>,
    %c16_i32_128 = arith.constant 16 : i32
    %185 = tpu.dynamic_rotate %178 by %c16_i32_128 dim 1 : vector<16x256xf32>, i32 -> vector<16x256xf32>
    %c1_129 = arith.constant 1 : index
    %c0_130 = arith.constant 0 : index
    %c0_131 = arith.constant 0 : index
    %186 = vector.load %arg8[%c1_129, %c0_130, %c0_131] : memref<9x1x256xf32, #tpu.memory_space<vmem>>, vector<1x1x256xf32>
    %187 = vector.shape_cast %186 : vector<1x1x256xf32> to vector<1x256xf32>
    %188 = vector.broadcast %187 : vector<1x256xf32> to vector<16x256xf32>
    %189 = arith.mulf %185, %188 : vector<16x256xf32>
    %c16_132 = arith.constant 16 : index
    %c0_133 = arith.constant 0 : index
    %190 = vector.load %arg11[%c16_132, %c0_133] : memref<144x512xf32, #tpu.memory_space<vmem>>, vector<16x256xf32>
    tpu.vector_store %arg11[%c16_132, %c0_133], %189 {strides = array<i32>} : memref<144x512xf32, #tpu.memory_space<vmem>>, vector<16x256xf32>,
    %c15_i32_134 = arith.constant 15 : i32
    %191 = tpu.dynamic_rotate %178 by %c15_i32_134 dim 1 : vector<16x256xf32>, i32 -> vector<16x256xf32>
    %c2_135 = arith.constant 2 : index
    %c0_136 = arith.constant 0 : index
    %c0_137 = arith.constant 0 : index
    %192 = vector.load %arg8[%c2_135, %c0_136, %c0_137] : memref<9x1x256xf32, #tpu.memory_space<vmem>>, vector<1x1x256xf32>
    %193 = vector.shape_cast %192 : vector<1x1x256xf32> to vector<1x256xf32>
    %194 = vector.broadcast %193 : vector<1x256xf32> to vector<16x256xf32>
    %195 = arith.mulf %191, %194 : vector<16x256xf32>
    %c32_138 = arith.constant 32 : index
    %c0_139 = arith.constant 0 : index
    %196 = vector.load %arg11[%c32_138, %c0_139] : memref<144x512xf32, #tpu.memory_space<vmem>>, vector<16x256xf32>
    tpu.vector_store %arg11[%c32_138, %c0_139], %195 {strides = array<i32>} : memref<144x512xf32, #tpu.memory_space<vmem>>, vector<16x256xf32>,
    %c1_i32_140 = arith.constant 1 : i32
    %197 = tpu.dynamic_rotate %178 by %c1_i32_140 dim 1 : vector<16x256xf32>, i32 -> vector<16x256xf32>
    %c3_141 = arith.constant 3 : index
    %c0_142 = arith.constant 0 : index
    %c0_143 = arith.constant 0 : index
    %198 = vector.load %arg8[%c3_141, %c0_142, %c0_143] : memref<9x1x256xf32, #tpu.memory_space<vmem>>, vector<1x1x256xf32>
    %199 = vector.shape_cast %198 : vector<1x1x256xf32> to vector<1x256xf32>
    %200 = vector.broadcast %199 : vector<1x256xf32> to vector<16x256xf32>
    %201 = arith.mulf %197, %200 : vector<16x256xf32>
    %c48_144 = arith.constant 48 : index
    %c0_145 = arith.constant 0 : index
    %202 = vector.load %arg11[%c48_144, %c0_145] : memref<144x512xf32, #tpu.memory_space<vmem>>, vector<16x256xf32>
    tpu.vector_store %arg11[%c48_144, %c0_145], %201 {strides = array<i32>} : memref<144x512xf32, #tpu.memory_space<vmem>>, vector<16x256xf32>,
    %c64_146 = arith.constant 64 : index
    %c0_147 = arith.constant 0 : index
    %203 = vector.load %arg11[%c64_146, %c0_147] : memref<144x512xf32, #tpu.memory_space<vmem>>, vector<16x256xf32>
    tpu.vector_store %arg11[%c64_146, %c0_147], %178 {strides = array<i32>} : memref<144x512xf32, #tpu.memory_space<vmem>>, vector<16x256xf32>,
    %c255_i32_148 = arith.constant 255 : i32
    %204 = tpu.dynamic_rotate %178 by %c255_i32_148 dim 1 : vector<16x256xf32>, i32 -> vector<16x256xf32>
    %c5_149 = arith.constant 5 : index
    %c0_150 = arith.constant 0 : index
    %c0_151 = arith.constant 0 : index
    %205 = vector.load %arg8[%c5_149, %c0_150, %c0_151] : memref<9x1x256xf32, #tpu.memory_space<vmem>>, vector<1x1x256xf32>
    %206 = vector.shape_cast %205 : vector<1x1x256xf32> to vector<1x256xf32>
    %207 = vector.broadcast %206 : vector<1x256xf32> to vector<16x256xf32>
    %208 = arith.mulf %204, %207 : vector<16x256xf32>
    %c80_152 = arith.constant 80 : index
    %c0_153 = arith.constant 0 : index
    %209 = vector.load %arg11[%c80_152, %c0_153] : memref<144x512xf32, #tpu.memory_space<vmem>>, vector<16x256xf32>
    tpu.vector_store %arg11[%c80_152, %c0_153], %208 {strides = array<i32>} : memref<144x512xf32, #tpu.memory_space<vmem>>, vector<16x256xf32>,
    %c241_i32_154 = arith.constant 241 : i32
    %210 = tpu.dynamic_rotate %178 by %c241_i32_154 dim 1 : vector<16x256xf32>, i32 -> vector<16x256xf32>
    %c6_155 = arith.constant 6 : index
    %c0_156 = arith.constant 0 : index
    %c0_157 = arith.constant 0 : index
    %211 = vector.load %arg8[%c6_155, %c0_156, %c0_157] : memref<9x1x256xf32, #tpu.memory_space<vmem>>, vector<1x1x256xf32>
    %212 = vector.shape_cast %211 : vector<1x1x256xf32> to vector<1x256xf32>
    %213 = vector.broadcast %212 : vector<1x256xf32> to vector<16x256xf32>
    %214 = arith.mulf %210, %213 : vector<16x256xf32>
    %c96_158 = arith.constant 96 : index
    %c0_159 = arith.constant 0 : index
    %215 = vector.load %arg11[%c96_158, %c0_159] : memref<144x512xf32, #tpu.memory_space<vmem>>, vector<16x256xf32>
    tpu.vector_store %arg11[%c96_158, %c0_159], %214 {strides = array<i32>} : memref<144x512xf32, #tpu.memory_space<vmem>>, vector<16x256xf32>,
    %c240_i32_160 = arith.constant 240 : i32
    %216 = tpu.dynamic_rotate %178 by %c240_i32_160 dim 1 : vector<16x256xf32>, i32 -> vector<16x256xf32>
    %c7_161 = arith.constant 7 : index
    %c0_162 = arith.constant 0 : index
    %c0_163 = arith.constant 0 : index
    %217 = vector.load %arg8[%c7_161, %c0_162, %c0_163] : memref<9x1x256xf32, #tpu.memory_space<vmem>>, vector<1x1x256xf32>
    %218 = vector.shape_cast %217 : vector<1x1x256xf32> to vector<1x256xf32>
    %219 = vector.broadcast %218 : vector<1x256xf32> to vector<16x256xf32>
    %220 = arith.mulf %216, %219 : vector<16x256xf32>
    %c112_164 = arith.constant 112 : index
    %c0_165 = arith.constant 0 : index
    %221 = vector.load %arg11[%c112_164, %c0_165] : memref<144x512xf32, #tpu.memory_space<vmem>>, vector<16x256xf32>
    tpu.vector_store %arg11[%c112_164, %c0_165], %220 {strides = array<i32>} : memref<144x512xf32, #tpu.memory_space<vmem>>, vector<16x256xf32>,
    %c239_i32_166 = arith.constant 239 : i32
    %222 = tpu.dynamic_rotate %178 by %c239_i32_166 dim 1 : vector<16x256xf32>, i32 -> vector<16x256xf32>
    %c8_167 = arith.constant 8 : index
    %c0_168 = arith.constant 0 : index
    %c0_169 = arith.constant 0 : index
    %223 = vector.load %arg8[%c8_167, %c0_168, %c0_169] : memref<9x1x256xf32, #tpu.memory_space<vmem>>, vector<1x1x256xf32>
    %224 = vector.shape_cast %223 : vector<1x1x256xf32> to vector<1x256xf32>
    %225 = vector.broadcast %224 : vector<1x256xf32> to vector<16x256xf32>
    %226 = arith.mulf %222, %225 : vector<16x256xf32>
    %c128_170 = arith.constant 128 : index
    %c0_171 = arith.constant 0 : index
    %227 = vector.load %arg11[%c128_170, %c0_171] : memref<144x512xf32, #tpu.memory_space<vmem>>, vector<16x256xf32>
    tpu.vector_store %arg11[%c128_170, %c0_171], %226 {strides = array<i32>} : memref<144x512xf32, #tpu.memory_space<vmem>>, vector<16x256xf32>,
    %c1_172 = arith.constant 1 : index
    %c16_173 = arith.constant 16 : index
    %c0_174 = arith.constant 0 : index
    %228 = vector.load %arg1[%c1_172, %c16_173, %c0_174] : memref<2x48x256xf32, #tpu.memory_space<vmem>>, vector<1x16x256xf32>
    %229 = vector.shape_cast %228 : vector<1x16x256xf32> to vector<16x256xf32>
    %c1_175 = arith.constant 1 : index
    %c0_176 = arith.constant 0 : index
    %c0_177 = arith.constant 0 : index
    %230 = vector.load %arg10[%c1_175, %c0_176, %c0_177] : memref<2x48x256xf32, #tpu.memory_space<vmem>>, vector<1x16x256xf32>
    %231 = vector.shape_cast %230 : vector<1x16x256xf32> to vector<16x256xf32>
    %232 = arith.addf %229, %231 : vector<16x256xf32>
    %c17_i32_178 = arith.constant 17 : i32
    %233 = tpu.dynamic_rotate %232 by %c17_i32_178 dim 1 : vector<16x256xf32>, i32 -> vector<16x256xf32>
    %c0_179 = arith.constant 0 : index
    %c0_180 = arith.constant 0 : index
    %c0_181 = arith.constant 0 : index
    %234 = vector.load %arg8[%c0_179, %c0_180, %c0_181] : memref<9x1x256xf32, #tpu.memory_space<vmem>>, vector<1x1x256xf32>
    %235 = vector.shape_cast %234 : vector<1x1x256xf32> to vector<1x256xf32>
    %236 = vector.broadcast %235 : vector<1x256xf32> to vector<16x256xf32>
    %237 = arith.mulf %233, %236 : vector<16x256xf32>
    %c0_182 = arith.constant 0 : index
    %c256_183 = arith.constant 256 : index
    %238 = vector.load %arg11[%c0_182, %c256_183] : memref<144x512xf32, #tpu.memory_space<vmem>>, vector<16x256xf32>
    tpu.vector_store %arg11[%c0_182, %c256_183], %237 {strides = array<i32>} : memref<144x512xf32, #tpu.memory_space<vmem>>, vector<16x256xf32>,
    %c16_i32_184 = arith.constant 16 : i32
    %239 = tpu.dynamic_rotate %232 by %c16_i32_184 dim 1 : vector<16x256xf32>, i32 -> vector<16x256xf32>
    %c1_185 = arith.constant 1 : index
    %c0_186 = arith.constant 0 : index
    %c0_187 = arith.constant 0 : index
    %240 = vector.load %arg8[%c1_185, %c0_186, %c0_187] : memref<9x1x256xf32, #tpu.memory_space<vmem>>, vector<1x1x256xf32>
    %241 = vector.shape_cast %240 : vector<1x1x256xf32> to vector<1x256xf32>
    %242 = vector.broadcast %241 : vector<1x256xf32> to vector<16x256xf32>
    %243 = arith.mulf %239, %242 : vector<16x256xf32>
    %c16_188 = arith.constant 16 : index
    %c256_189 = arith.constant 256 : index
    %244 = vector.load %arg11[%c16_188, %c256_189] : memref<144x512xf32, #tpu.memory_space<vmem>>, vector<16x256xf32>
    tpu.vector_store %arg11[%c16_188, %c256_189], %243 {strides = array<i32>} : memref<144x512xf32, #tpu.memory_space<vmem>>, vector<16x256xf32>,
    %c15_i32_190 = arith.constant 15 : i32
    %245 = tpu.dynamic_rotate %232 by %c15_i32_190 dim 1 : vector<16x256xf32>, i32 -> vector<16x256xf32>
    %c2_191 = arith.constant 2 : index
    %c0_192 = arith.constant 0 : index
    %c0_193 = arith.constant 0 : index
    %246 = vector.load %arg8[%c2_191, %c0_192, %c0_193] : memref<9x1x256xf32, #tpu.memory_space<vmem>>, vector<1x1x256xf32>
    %247 = vector.shape_cast %246 : vector<1x1x256xf32> to vector<1x256xf32>
    %248 = vector.broadcast %247 : vector<1x256xf32> to vector<16x256xf32>
    %249 = arith.mulf %245, %248 : vector<16x256xf32>
    %c32_194 = arith.constant 32 : index
    %c256_195 = arith.constant 256 : index
    %250 = vector.load %arg11[%c32_194, %c256_195] : memref<144x512xf32, #tpu.memory_space<vmem>>, vector<16x256xf32>
    tpu.vector_store %arg11[%c32_194, %c256_195], %249 {strides = array<i32>} : memref<144x512xf32, #tpu.memory_space<vmem>>, vector<16x256xf32>,
    %c1_i32_196 = arith.constant 1 : i32
    %251 = tpu.dynamic_rotate %232 by %c1_i32_196 dim 1 : vector<16x256xf32>, i32 -> vector<16x256xf32>
    %c3_197 = arith.constant 3 : index
    %c0_198 = arith.constant 0 : index
    %c0_199 = arith.constant 0 : index
    %252 = vector.load %arg8[%c3_197, %c0_198, %c0_199] : memref<9x1x256xf32, #tpu.memory_space<vmem>>, vector<1x1x256xf32>
    %253 = vector.shape_cast %252 : vector<1x1x256xf32> to vector<1x256xf32>
    %254 = vector.broadcast %253 : vector<1x256xf32> to vector<16x256xf32>
    %255 = arith.mulf %251, %254 : vector<16x256xf32>
    %c48_200 = arith.constant 48 : index
    %c256_201 = arith.constant 256 : index
    %256 = vector.load %arg11[%c48_200, %c256_201] : memref<144x512xf32, #tpu.memory_space<vmem>>, vector<16x256xf32>
    tpu.vector_store %arg11[%c48_200, %c256_201], %255 {strides = array<i32>} : memref<144x512xf32, #tpu.memory_space<vmem>>, vector<16x256xf32>,
    %c64_202 = arith.constant 64 : index
    %c256_203 = arith.constant 256 : index
    %257 = vector.load %arg11[%c64_202, %c256_203] : memref<144x512xf32, #tpu.memory_space<vmem>>, vector<16x256xf32>
    tpu.vector_store %arg11[%c64_202, %c256_203], %232 {strides = array<i32>} : memref<144x512xf32, #tpu.memory_space<vmem>>, vector<16x256xf32>,
    %c255_i32_204 = arith.constant 255 : i32
    %258 = tpu.dynamic_rotate %232 by %c255_i32_204 dim 1 : vector<16x256xf32>, i32 -> vector<16x256xf32>
    %c5_205 = arith.constant 5 : index
    %c0_206 = arith.constant 0 : index
    %c0_207 = arith.constant 0 : index
    %259 = vector.load %arg8[%c5_205, %c0_206, %c0_207] : memref<9x1x256xf32, #tpu.memory_space<vmem>>, vector<1x1x256xf32>
    %260 = vector.shape_cast %259 : vector<1x1x256xf32> to vector<1x256xf32>
    %261 = vector.broadcast %260 : vector<1x256xf32> to vector<16x256xf32>
    %262 = arith.mulf %258, %261 : vector<16x256xf32>
    %c80_208 = arith.constant 80 : index
    %c256_209 = arith.constant 256 : index
    %263 = vector.load %arg11[%c80_208, %c256_209] : memref<144x512xf32, #tpu.memory_space<vmem>>, vector<16x256xf32>
    tpu.vector_store %arg11[%c80_208, %c256_209], %262 {strides = array<i32>} : memref<144x512xf32, #tpu.memory_space<vmem>>, vector<16x256xf32>,
    %c241_i32_210 = arith.constant 241 : i32
    %264 = tpu.dynamic_rotate %232 by %c241_i32_210 dim 1 : vector<16x256xf32>, i32 -> vector<16x256xf32>
    %c6_211 = arith.constant 6 : index
    %c0_212 = arith.constant 0 : index
    %c0_213 = arith.constant 0 : index
    %265 = vector.load %arg8[%c6_211, %c0_212, %c0_213] : memref<9x1x256xf32, #tpu.memory_space<vmem>>, vector<1x1x256xf32>
    %266 = vector.shape_cast %265 : vector<1x1x256xf32> to vector<1x256xf32>
    %267 = vector.broadcast %266 : vector<1x256xf32> to vector<16x256xf32>
    %268 = arith.mulf %264, %267 : vector<16x256xf32>
    %c96_214 = arith.constant 96 : index
    %c256_215 = arith.constant 256 : index
    %269 = vector.load %arg11[%c96_214, %c256_215] : memref<144x512xf32, #tpu.memory_space<vmem>>, vector<16x256xf32>
    tpu.vector_store %arg11[%c96_214, %c256_215], %268 {strides = array<i32>} : memref<144x512xf32, #tpu.memory_space<vmem>>, vector<16x256xf32>,
    %c240_i32_216 = arith.constant 240 : i32
    %270 = tpu.dynamic_rotate %232 by %c240_i32_216 dim 1 : vector<16x256xf32>, i32 -> vector<16x256xf32>
    %c7_217 = arith.constant 7 : index
    %c0_218 = arith.constant 0 : index
    %c0_219 = arith.constant 0 : index
    %271 = vector.load %arg8[%c7_217, %c0_218, %c0_219] : memref<9x1x256xf32, #tpu.memory_space<vmem>>, vector<1x1x256xf32>
    %272 = vector.shape_cast %271 : vector<1x1x256xf32> to vector<1x256xf32>
    %273 = vector.broadcast %272 : vector<1x256xf32> to vector<16x256xf32>
    %274 = arith.mulf %270, %273 : vector<16x256xf32>
    %c112_220 = arith.constant 112 : index
    %c256_221 = arith.constant 256 : index
    %275 = vector.load %arg11[%c112_220, %c256_221] : memref<144x512xf32, #tpu.memory_space<vmem>>, vector<16x256xf32>
    tpu.vector_store %arg11[%c112_220, %c256_221], %274 {strides = array<i32>} : memref<144x512xf32, #tpu.memory_space<vmem>>, vector<16x256xf32>,
    %c239_i32_222 = arith.constant 239 : i32
    %276 = tpu.dynamic_rotate %232 by %c239_i32_222 dim 1 : vector<16x256xf32>, i32 -> vector<16x256xf32>
    %c8_223 = arith.constant 8 : index
    %c0_224 = arith.constant 0 : index
    %c0_225 = arith.constant 0 : index
    %277 = vector.load %arg8[%c8_223, %c0_224, %c0_225] : memref<9x1x256xf32, #tpu.memory_space<vmem>>, vector<1x1x256xf32>
    %278 = vector.shape_cast %277 : vector<1x1x256xf32> to vector<1x256xf32>
    %279 = vector.broadcast %278 : vector<1x256xf32> to vector<16x256xf32>
    %280 = arith.mulf %276, %279 : vector<16x256xf32>
    %c128_226 = arith.constant 128 : index
    %c256_227 = arith.constant 256 : index
    %281 = vector.load %arg11[%c128_226, %c256_227] : memref<144x512xf32, #tpu.memory_space<vmem>>, vector<16x256xf32>
    tpu.vector_store %arg11[%c128_226, %c256_227], %280 {strides = array<i32>} : memref<144x512xf32, #tpu.memory_space<vmem>>, vector<16x256xf32>,
    %c1_228 = arith.constant 1 : index
    %c0_229 = arith.constant 0 : index
    %c0_230 = arith.constant 0 : index
    %282 = vector.load %arg2[%c1_228, %c0_229, %c0_230] : memref<3x16x144xf32, #tpu.memory_space<vmem>>, vector<1x16x144xf32>
    %283 = vector.shape_cast %282 : vector<1x16x144xf32> to vector<16x144xf32>
    %c0_231 = arith.constant 0 : index
    %c0_232 = arith.constant 0 : index
    %284 = vector.load %arg11[%c0_231, %c0_232] : memref<144x512xf32, #tpu.memory_space<vmem>>, vector<144x512xf32>
    %cst_233 = arith.constant dense<0.000000e+00> : vector<16x512xf32>
    %285 = tpu.matmul %283, %284, %cst_233 {dimension_numbers = #tpu.dot_dimension_numbers<[1], [0], [0], [1], [0, 0, 1, 1], [], []>} : vector<16x144xf32>, vector<144x512xf32>, vector<16x512xf32> -> vector<16x512xf32>
    %c1_234 = arith.constant 1 : index
    %c0_235 = arith.constant 0 : index
    %c0_236 = arith.constant 0 : index
    %286 = vector.load %arg3[%c1_234, %c0_235, %c0_236] : memref<3x16x1xf32, #tpu.memory_space<vmem>>, vector<1x16x1xf32>
    %287 = vector.shape_cast %286 : vector<1x16x1xf32> to vector<16x1xf32>
    %288 = vector.broadcast %287 : vector<16x1xf32> to vector<16x512xf32>
    %289 = arith.addf %285, %288 : vector<16x512xf32>
    %290 = vector.extract_strided_slice %289 {offsets = [0, 0], sizes = [16, 256], strides = [1, 1]} : vector<16x512xf32> to vector<16x256xf32>
    %c0_237 = arith.constant 0 : index
    %c16_238 = arith.constant 16 : index
    %c0_239 = arith.constant 0 : index
    %291 = vector.load %arg10[%c0_237, %c16_238, %c0_239] : memref<2x48x256xf32, #tpu.memory_space<vmem>>, vector<1x16x256xf32>
    %292 = vector.shape_cast %291 : vector<1x16x256xf32> to vector<16x256xf32>
    %293 = vector.shape_cast %290 : vector<16x256xf32> to vector<1x16x256xf32>
    tpu.vector_store %arg10[%c0_237, %c16_238, %c0_239], %293 {strides = array<i32>} : memref<2x48x256xf32, #tpu.memory_space<vmem>>, vector<1x16x256xf32>,
    %294 = vector.extract_strided_slice %289 {offsets = [0, 256], sizes = [16, 256], strides = [1, 1]} : vector<16x512xf32> to vector<16x256xf32>
    %c1_240 = arith.constant 1 : index
    %c16_241 = arith.constant 16 : index
    %c0_242 = arith.constant 0 : index
    %295 = vector.load %arg10[%c1_240, %c16_241, %c0_242] : memref<2x48x256xf32, #tpu.memory_space<vmem>>, vector<1x16x256xf32>
    %296 = vector.shape_cast %295 : vector<1x16x256xf32> to vector<16x256xf32>
    %297 = vector.shape_cast %294 : vector<16x256xf32> to vector<1x16x256xf32>
    tpu.vector_store %arg10[%c1_240, %c16_241, %c0_242], %297 {strides = array<i32>} : memref<2x48x256xf32, #tpu.memory_space<vmem>>, vector<1x16x256xf32>,
    %c0_243 = arith.constant 0 : index
    %c0_244 = arith.constant 0 : index
    %298 = vector.load %arg9[%c0_243, %c0_244] : memref<512x10xf32, #tpu.memory_space<vmem>>, vector<512x10xf32>
    %cst_245 = arith.constant dense<0.000000e+00> : vector<16x10xf32>
    %299 = tpu.matmul %289, %298, %cst_245 {dimension_numbers = #tpu.dot_dimension_numbers<[1], [0], [0], [1], [0, 0, 1, 1], [], []>} : vector<16x512xf32>, vector<512x10xf32>, vector<16x10xf32> -> vector<16x10xf32>
    %300 = tpu.iota {dimensions = array<i32: 0>} : vector<10x2xi32>
    %301 = tpu.iota {dimensions = array<i32: 1>} : vector<10x2xi32>
    %c0_i32_246 = arith.constant 0 : i32
    %302 = vector.broadcast %c0_i32_246 : i32 to vector<10x2xi32>
    %303 = arith.addi %302, %301 : vector<10x2xi32>
    %304 = arith.cmpi eq, %300, %303 : vector<10x2xi32>
    %305 = arith.extui %304 : vector<10x2xi1> to vector<10x2xi32>
    %306 = arith.sitofp %305 : vector<10x2xi32> to vector<10x2xf32>
    %cst_247 = arith.constant dense<0.000000e+00> : vector<16x2xf32>
    %307 = tpu.matmul %299, %306, %cst_247 {dimension_numbers = #tpu.dot_dimension_numbers<[1], [0], [0], [1], [0, 0, 1, 1], [], []>} : vector<16x10xf32>, vector<10x2xf32>, vector<16x2xf32> -> vector<16x2xf32>
    %c2_i32_248 = arith.constant 2 : i32
    %308 = vector.broadcast %c2_i32_248 : i32 to vector<10x2xi32>
    %309 = arith.addi %308, %301 : vector<10x2xi32>
    %310 = arith.cmpi eq, %300, %309 : vector<10x2xi32>
    %311 = arith.extui %310 : vector<10x2xi1> to vector<10x2xi32>
    %312 = arith.sitofp %311 : vector<10x2xi32> to vector<10x2xf32>
    %cst_249 = arith.constant dense<0.000000e+00> : vector<16x2xf32>
    %313 = tpu.matmul %299, %312, %cst_249 {dimension_numbers = #tpu.dot_dimension_numbers<[1], [0], [0], [1], [0, 0, 1, 1], [], []>} : vector<16x10xf32>, vector<10x2xf32>, vector<16x2xf32> -> vector<16x2xf32>
    %c4_i32_250 = arith.constant 4 : i32
    %314 = vector.broadcast %c4_i32_250 : i32 to vector<10x2xi32>
    %315 = arith.addi %314, %301 : vector<10x2xi32>
    %316 = arith.cmpi eq, %300, %315 : vector<10x2xi32>
    %317 = arith.extui %316 : vector<10x2xi1> to vector<10x2xi32>
    %318 = arith.sitofp %317 : vector<10x2xi32> to vector<10x2xf32>
    %cst_251 = arith.constant dense<0.000000e+00> : vector<16x2xf32>
    %319 = tpu.matmul %299, %318, %cst_251 {dimension_numbers = #tpu.dot_dimension_numbers<[1], [0], [0], [1], [0, 0, 1, 1], [], []>} : vector<16x10xf32>, vector<10x2xf32>, vector<16x2xf32> -> vector<16x2xf32>
    %c6_i32_252 = arith.constant 6 : i32
    %320 = vector.broadcast %c6_i32_252 : i32 to vector<10x2xi32>
    %321 = arith.addi %320, %301 : vector<10x2xi32>
    %322 = arith.cmpi eq, %300, %321 : vector<10x2xi32>
    %323 = arith.extui %322 : vector<10x2xi1> to vector<10x2xi32>
    %324 = arith.sitofp %323 : vector<10x2xi32> to vector<10x2xf32>
    %cst_253 = arith.constant dense<0.000000e+00> : vector<16x2xf32>
    %325 = tpu.matmul %299, %324, %cst_253 {dimension_numbers = #tpu.dot_dimension_numbers<[1], [0], [0], [1], [0, 0, 1, 1], [], []>} : vector<16x10xf32>, vector<10x2xf32>, vector<16x2xf32> -> vector<16x2xf32>
    %c8_i32_254 = arith.constant 8 : i32
    %326 = vector.broadcast %c8_i32_254 : i32 to vector<10x2xi32>
    %327 = arith.addi %326, %301 : vector<10x2xi32>
    %328 = arith.cmpi eq, %300, %327 : vector<10x2xi32>
    %329 = arith.extui %328 : vector<10x2xi1> to vector<10x2xi32>
    %330 = arith.sitofp %329 : vector<10x2xi32> to vector<10x2xf32>
    %cst_255 = arith.constant dense<0.000000e+00> : vector<16x2xf32>
    %331 = tpu.matmul %299, %330, %cst_255 {dimension_numbers = #tpu.dot_dimension_numbers<[1], [0], [0], [1], [0, 0, 1, 1], [], []>} : vector<16x10xf32>, vector<10x2xf32>, vector<16x2xf32> -> vector<16x2xf32>
    %332 = tpu.concatenate %307, %313, %319, %325, %331 in 0 : vector<16x2xf32>, vector<16x2xf32>, vector<16x2xf32>, vector<16x2xf32>, vector<16x2xf32> -> vector<80x2xf32>
    %c0_256 = arith.constant 0 : index
    %c0_257 = arith.constant 0 : index
    %333 = vector.load %arg4[%c0_256, %c0_257] : memref<1x80xf32, #tpu.memory_space<vmem>>, vector<1x80xf32>
    %cst_258 = arith.constant dense<0.000000e+00> : vector<1x2xf32>
    %334 = tpu.matmul %333, %332, %cst_258 {dimension_numbers = #tpu.dot_dimension_numbers<[1], [0], [0], [1], [0, 0, 1, 1], [], []>} : vector<1x80xf32>, vector<80x2xf32>, vector<1x2xf32> -> vector<1x2xf32>
    %c0_259 = arith.constant 0 : index
    %c0_260 = arith.constant 0 : index
    %335 = vector.load %arg5[%c0_259, %c0_260] : memref<1x1xf32, #tpu.memory_space<vmem>>, vector<1x1xf32>
    %336 = vector.broadcast %335 : vector<1x1xf32> to vector<1x2xf32>
    %337 = arith.addf %334, %336 : vector<1x2xf32>
    %cst_261 = arith.constant 0.000000e+00 : f32
    %338 = vector.broadcast %cst_261 : f32 to vector<1x2xf32>
    %339 = arith.maximumf %337, %338 : vector<1x2xf32>
    %c0_262 = arith.constant 0 : index
    %c0_263 = arith.constant 0 : index
    %340 = vector.load %arg6[%c0_262, %c0_263] : memref<16x1xf32, #tpu.memory_space<vmem>>, vector<16x1xf32>
    %341 = vector.broadcast %340 : vector<16x1xf32> to vector<16x2xf32>
    %342 = vector.broadcast %339 : vector<1x2xf32> to vector<16x2xf32>
    %343 = arith.mulf %341, %342 : vector<16x2xf32>
    %c0_264 = arith.constant 0 : index
    %c0_265 = arith.constant 0 : index
    %344 = vector.load %arg7[%c0_264, %c0_265] : memref<16x1xf32, #tpu.memory_space<vmem>>, vector<16x1xf32>
    %345 = vector.broadcast %344 : vector<16x1xf32> to vector<16x2xf32>
    %346 = arith.addf %343, %345 : vector<16x2xf32>
    %cst_266 = arith.constant 0.000000e+00 : f32
    %347 = vector.broadcast %cst_266 : f32 to vector<16x2xf32>
    %348 = arith.subf %347, %346 : vector<16x2xf32>
    %349 = math.exp %348 : vector<16x2xf32>
    %cst_267 = arith.constant 1.000000e+00 : f32
    %350 = vector.broadcast %cst_267 : f32 to vector<16x2xf32>
    %351 = arith.addf %350, %349 : vector<16x2xf32>
    %cst_268 = arith.constant 1.000000e+00 : f32
    %352 = vector.broadcast %cst_268 : f32 to vector<16x2xf32>
    %353 = arith.divf %352, %351 : vector<16x2xf32>
    %c0_269 = arith.constant 0 : index
    %c32_270 = arith.constant 32 : index
    %c0_271 = arith.constant 0 : index
    %354 = vector.load %arg1[%c0_269, %c32_270, %c0_271] : memref<2x48x256xf32, #tpu.memory_space<vmem>>, vector<1x16x256xf32>
    %355 = vector.shape_cast %354 : vector<1x16x256xf32> to vector<16x256xf32>
    %c0_272 = arith.constant 0 : index
    %c16_273 = arith.constant 16 : index
    %c0_274 = arith.constant 0 : index
    %356 = vector.load %arg10[%c0_272, %c16_273, %c0_274] : memref<2x48x256xf32, #tpu.memory_space<vmem>>, vector<1x16x256xf32>
    %357 = vector.shape_cast %356 : vector<1x16x256xf32> to vector<16x256xf32>
    %358 = arith.addf %355, %357 : vector<16x256xf32>
    %c17_i32_275 = arith.constant 17 : i32
    %359 = tpu.dynamic_rotate %358 by %c17_i32_275 dim 1 : vector<16x256xf32>, i32 -> vector<16x256xf32>
    %c0_276 = arith.constant 0 : index
    %c0_277 = arith.constant 0 : index
    %c0_278 = arith.constant 0 : index
    %360 = vector.load %arg8[%c0_276, %c0_277, %c0_278] : memref<9x1x256xf32, #tpu.memory_space<vmem>>, vector<1x1x256xf32>
    %361 = vector.shape_cast %360 : vector<1x1x256xf32> to vector<1x256xf32>
    %362 = vector.broadcast %361 : vector<1x256xf32> to vector<16x256xf32>
    %363 = arith.mulf %359, %362 : vector<16x256xf32>
    %c0_279 = arith.constant 0 : index
    %c0_280 = arith.constant 0 : index
    %364 = vector.load %arg11[%c0_279, %c0_280] : memref<144x512xf32, #tpu.memory_space<vmem>>, vector<16x256xf32>
    tpu.vector_store %arg11[%c0_279, %c0_280], %363 {strides = array<i32>} : memref<144x512xf32, #tpu.memory_space<vmem>>, vector<16x256xf32>,
    %c16_i32_281 = arith.constant 16 : i32
    %365 = tpu.dynamic_rotate %358 by %c16_i32_281 dim 1 : vector<16x256xf32>, i32 -> vector<16x256xf32>
    %c1_282 = arith.constant 1 : index
    %c0_283 = arith.constant 0 : index
    %c0_284 = arith.constant 0 : index
    %366 = vector.load %arg8[%c1_282, %c0_283, %c0_284] : memref<9x1x256xf32, #tpu.memory_space<vmem>>, vector<1x1x256xf32>
    %367 = vector.shape_cast %366 : vector<1x1x256xf32> to vector<1x256xf32>
    %368 = vector.broadcast %367 : vector<1x256xf32> to vector<16x256xf32>
    %369 = arith.mulf %365, %368 : vector<16x256xf32>
    %c16_285 = arith.constant 16 : index
    %c0_286 = arith.constant 0 : index
    %370 = vector.load %arg11[%c16_285, %c0_286] : memref<144x512xf32, #tpu.memory_space<vmem>>, vector<16x256xf32>
    tpu.vector_store %arg11[%c16_285, %c0_286], %369 {strides = array<i32>} : memref<144x512xf32, #tpu.memory_space<vmem>>, vector<16x256xf32>,
    %c15_i32_287 = arith.constant 15 : i32
    %371 = tpu.dynamic_rotate %358 by %c15_i32_287 dim 1 : vector<16x256xf32>, i32 -> vector<16x256xf32>
    %c2_288 = arith.constant 2 : index
    %c0_289 = arith.constant 0 : index
    %c0_290 = arith.constant 0 : index
    %372 = vector.load %arg8[%c2_288, %c0_289, %c0_290] : memref<9x1x256xf32, #tpu.memory_space<vmem>>, vector<1x1x256xf32>
    %373 = vector.shape_cast %372 : vector<1x1x256xf32> to vector<1x256xf32>
    %374 = vector.broadcast %373 : vector<1x256xf32> to vector<16x256xf32>
    %375 = arith.mulf %371, %374 : vector<16x256xf32>
    %c32_291 = arith.constant 32 : index
    %c0_292 = arith.constant 0 : index
    %376 = vector.load %arg11[%c32_291, %c0_292] : memref<144x512xf32, #tpu.memory_space<vmem>>, vector<16x256xf32>
    tpu.vector_store %arg11[%c32_291, %c0_292], %375 {strides = array<i32>} : memref<144x512xf32, #tpu.memory_space<vmem>>, vector<16x256xf32>,
    %c1_i32_293 = arith.constant 1 : i32
    %377 = tpu.dynamic_rotate %358 by %c1_i32_293 dim 1 : vector<16x256xf32>, i32 -> vector<16x256xf32>
    %c3_294 = arith.constant 3 : index
    %c0_295 = arith.constant 0 : index
    %c0_296 = arith.constant 0 : index
    %378 = vector.load %arg8[%c3_294, %c0_295, %c0_296] : memref<9x1x256xf32, #tpu.memory_space<vmem>>, vector<1x1x256xf32>
    %379 = vector.shape_cast %378 : vector<1x1x256xf32> to vector<1x256xf32>
    %380 = vector.broadcast %379 : vector<1x256xf32> to vector<16x256xf32>
    %381 = arith.mulf %377, %380 : vector<16x256xf32>
    %c48_297 = arith.constant 48 : index
    %c0_298 = arith.constant 0 : index
    %382 = vector.load %arg11[%c48_297, %c0_298] : memref<144x512xf32, #tpu.memory_space<vmem>>, vector<16x256xf32>
    tpu.vector_store %arg11[%c48_297, %c0_298], %381 {strides = array<i32>} : memref<144x512xf32, #tpu.memory_space<vmem>>, vector<16x256xf32>,
    %c64_299 = arith.constant 64 : index
    %c0_300 = arith.constant 0 : index
    %383 = vector.load %arg11[%c64_299, %c0_300] : memref<144x512xf32, #tpu.memory_space<vmem>>, vector<16x256xf32>
    tpu.vector_store %arg11[%c64_299, %c0_300], %358 {strides = array<i32>} : memref<144x512xf32, #tpu.memory_space<vmem>>, vector<16x256xf32>,
    %c255_i32_301 = arith.constant 255 : i32
    %384 = tpu.dynamic_rotate %358 by %c255_i32_301 dim 1 : vector<16x256xf32>, i32 -> vector<16x256xf32>
    %c5_302 = arith.constant 5 : index
    %c0_303 = arith.constant 0 : index
    %c0_304 = arith.constant 0 : index
    %385 = vector.load %arg8[%c5_302, %c0_303, %c0_304] : memref<9x1x256xf32, #tpu.memory_space<vmem>>, vector<1x1x256xf32>
    %386 = vector.shape_cast %385 : vector<1x1x256xf32> to vector<1x256xf32>
    %387 = vector.broadcast %386 : vector<1x256xf32> to vector<16x256xf32>
    %388 = arith.mulf %384, %387 : vector<16x256xf32>
    %c80_305 = arith.constant 80 : index
    %c0_306 = arith.constant 0 : index
    %389 = vector.load %arg11[%c80_305, %c0_306] : memref<144x512xf32, #tpu.memory_space<vmem>>, vector<16x256xf32>
    tpu.vector_store %arg11[%c80_305, %c0_306], %388 {strides = array<i32>} : memref<144x512xf32, #tpu.memory_space<vmem>>, vector<16x256xf32>,
    %c241_i32_307 = arith.constant 241 : i32
    %390 = tpu.dynamic_rotate %358 by %c241_i32_307 dim 1 : vector<16x256xf32>, i32 -> vector<16x256xf32>
    %c6_308 = arith.constant 6 : index
    %c0_309 = arith.constant 0 : index
    %c0_310 = arith.constant 0 : index
    %391 = vector.load %arg8[%c6_308, %c0_309, %c0_310] : memref<9x1x256xf32, #tpu.memory_space<vmem>>, vector<1x1x256xf32>
    %392 = vector.shape_cast %391 : vector<1x1x256xf32> to vector<1x256xf32>
    %393 = vector.broadcast %392 : vector<1x256xf32> to vector<16x256xf32>
    %394 = arith.mulf %390, %393 : vector<16x256xf32>
    %c96_311 = arith.constant 96 : index
    %c0_312 = arith.constant 0 : index
    %395 = vector.load %arg11[%c96_311, %c0_312] : memref<144x512xf32, #tpu.memory_space<vmem>>, vector<16x256xf32>
    tpu.vector_store %arg11[%c96_311, %c0_312], %394 {strides = array<i32>} : memref<144x512xf32, #tpu.memory_space<vmem>>, vector<16x256xf32>,
    %c240_i32_313 = arith.constant 240 : i32
    %396 = tpu.dynamic_rotate %358 by %c240_i32_313 dim 1 : vector<16x256xf32>, i32 -> vector<16x256xf32>
    %c7_314 = arith.constant 7 : index
    %c0_315 = arith.constant 0 : index
    %c0_316 = arith.constant 0 : index
    %397 = vector.load %arg8[%c7_314, %c0_315, %c0_316] : memref<9x1x256xf32, #tpu.memory_space<vmem>>, vector<1x1x256xf32>
    %398 = vector.shape_cast %397 : vector<1x1x256xf32> to vector<1x256xf32>
    %399 = vector.broadcast %398 : vector<1x256xf32> to vector<16x256xf32>
    %400 = arith.mulf %396, %399 : vector<16x256xf32>
    %c112_317 = arith.constant 112 : index
    %c0_318 = arith.constant 0 : index
    %401 = vector.load %arg11[%c112_317, %c0_318] : memref<144x512xf32, #tpu.memory_space<vmem>>, vector<16x256xf32>
    tpu.vector_store %arg11[%c112_317, %c0_318], %400 {strides = array<i32>} : memref<144x512xf32, #tpu.memory_space<vmem>>, vector<16x256xf32>,
    %c239_i32_319 = arith.constant 239 : i32
    %402 = tpu.dynamic_rotate %358 by %c239_i32_319 dim 1 : vector<16x256xf32>, i32 -> vector<16x256xf32>
    %c8_320 = arith.constant 8 : index
    %c0_321 = arith.constant 0 : index
    %c0_322 = arith.constant 0 : index
    %403 = vector.load %arg8[%c8_320, %c0_321, %c0_322] : memref<9x1x256xf32, #tpu.memory_space<vmem>>, vector<1x1x256xf32>
    %404 = vector.shape_cast %403 : vector<1x1x256xf32> to vector<1x256xf32>
    %405 = vector.broadcast %404 : vector<1x256xf32> to vector<16x256xf32>
    %406 = arith.mulf %402, %405 : vector<16x256xf32>
    %c128_323 = arith.constant 128 : index
    %c0_324 = arith.constant 0 : index
    %407 = vector.load %arg11[%c128_323, %c0_324] : memref<144x512xf32, #tpu.memory_space<vmem>>, vector<16x256xf32>
    tpu.vector_store %arg11[%c128_323, %c0_324], %406 {strides = array<i32>} : memref<144x512xf32, #tpu.memory_space<vmem>>, vector<16x256xf32>,
    %c1_325 = arith.constant 1 : index
    %c32_326 = arith.constant 32 : index
    %c0_327 = arith.constant 0 : index
    %408 = vector.load %arg1[%c1_325, %c32_326, %c0_327] : memref<2x48x256xf32, #tpu.memory_space<vmem>>, vector<1x16x256xf32>
    %409 = vector.shape_cast %408 : vector<1x16x256xf32> to vector<16x256xf32>
    %c1_328 = arith.constant 1 : index
    %c16_329 = arith.constant 16 : index
    %c0_330 = arith.constant 0 : index
    %410 = vector.load %arg10[%c1_328, %c16_329, %c0_330] : memref<2x48x256xf32, #tpu.memory_space<vmem>>, vector<1x16x256xf32>
    %411 = vector.shape_cast %410 : vector<1x16x256xf32> to vector<16x256xf32>
    %412 = arith.addf %409, %411 : vector<16x256xf32>
    %c17_i32_331 = arith.constant 17 : i32
    %413 = tpu.dynamic_rotate %412 by %c17_i32_331 dim 1 : vector<16x256xf32>, i32 -> vector<16x256xf32>
    %c0_332 = arith.constant 0 : index
    %c0_333 = arith.constant 0 : index
    %c0_334 = arith.constant 0 : index
    %414 = vector.load %arg8[%c0_332, %c0_333, %c0_334] : memref<9x1x256xf32, #tpu.memory_space<vmem>>, vector<1x1x256xf32>
    %415 = vector.shape_cast %414 : vector<1x1x256xf32> to vector<1x256xf32>
    %416 = vector.broadcast %415 : vector<1x256xf32> to vector<16x256xf32>
    %417 = arith.mulf %413, %416 : vector<16x256xf32>
    %c0_335 = arith.constant 0 : index
    %c256_336 = arith.constant 256 : index
    %418 = vector.load %arg11[%c0_335, %c256_336] : memref<144x512xf32, #tpu.memory_space<vmem>>, vector<16x256xf32>
    tpu.vector_store %arg11[%c0_335, %c256_336], %417 {strides = array<i32>} : memref<144x512xf32, #tpu.memory_space<vmem>>, vector<16x256xf32>,
    %c16_i32_337 = arith.constant 16 : i32
    %419 = tpu.dynamic_rotate %412 by %c16_i32_337 dim 1 : vector<16x256xf32>, i32 -> vector<16x256xf32>
    %c1_338 = arith.constant 1 : index
    %c0_339 = arith.constant 0 : index
    %c0_340 = arith.constant 0 : index
    %420 = vector.load %arg8[%c1_338, %c0_339, %c0_340] : memref<9x1x256xf32, #tpu.memory_space<vmem>>, vector<1x1x256xf32>
    %421 = vector.shape_cast %420 : vector<1x1x256xf32> to vector<1x256xf32>
    %422 = vector.broadcast %421 : vector<1x256xf32> to vector<16x256xf32>
    %423 = arith.mulf %419, %422 : vector<16x256xf32>
    %c16_341 = arith.constant 16 : index
    %c256_342 = arith.constant 256 : index
    %424 = vector.load %arg11[%c16_341, %c256_342] : memref<144x512xf32, #tpu.memory_space<vmem>>, vector<16x256xf32>
    tpu.vector_store %arg11[%c16_341, %c256_342], %423 {strides = array<i32>} : memref<144x512xf32, #tpu.memory_space<vmem>>, vector<16x256xf32>,
    %c15_i32_343 = arith.constant 15 : i32
    %425 = tpu.dynamic_rotate %412 by %c15_i32_343 dim 1 : vector<16x256xf32>, i32 -> vector<16x256xf32>
    %c2_344 = arith.constant 2 : index
    %c0_345 = arith.constant 0 : index
    %c0_346 = arith.constant 0 : index
    %426 = vector.load %arg8[%c2_344, %c0_345, %c0_346] : memref<9x1x256xf32, #tpu.memory_space<vmem>>, vector<1x1x256xf32>
    %427 = vector.shape_cast %426 : vector<1x1x256xf32> to vector<1x256xf32>
    %428 = vector.broadcast %427 : vector<1x256xf32> to vector<16x256xf32>
    %429 = arith.mulf %425, %428 : vector<16x256xf32>
    %c32_347 = arith.constant 32 : index
    %c256_348 = arith.constant 256 : index
    %430 = vector.load %arg11[%c32_347, %c256_348] : memref<144x512xf32, #tpu.memory_space<vmem>>, vector<16x256xf32>
    tpu.vector_store %arg11[%c32_347, %c256_348], %429 {strides = array<i32>} : memref<144x512xf32, #tpu.memory_space<vmem>>, vector<16x256xf32>,
    %c1_i32_349 = arith.constant 1 : i32
    %431 = tpu.dynamic_rotate %412 by %c1_i32_349 dim 1 : vector<16x256xf32>, i32 -> vector<16x256xf32>
    %c3_350 = arith.constant 3 : index
    %c0_351 = arith.constant 0 : index
    %c0_352 = arith.constant 0 : index
    %432 = vector.load %arg8[%c3_350, %c0_351, %c0_352] : memref<9x1x256xf32, #tpu.memory_space<vmem>>, vector<1x1x256xf32>
    %433 = vector.shape_cast %432 : vector<1x1x256xf32> to vector<1x256xf32>
    %434 = vector.broadcast %433 : vector<1x256xf32> to vector<16x256xf32>
    %435 = arith.mulf %431, %434 : vector<16x256xf32>
    %c48_353 = arith.constant 48 : index
    %c256_354 = arith.constant 256 : index
    %436 = vector.load %arg11[%c48_353, %c256_354] : memref<144x512xf32, #tpu.memory_space<vmem>>, vector<16x256xf32>
    tpu.vector_store %arg11[%c48_353, %c256_354], %435 {strides = array<i32>} : memref<144x512xf32, #tpu.memory_space<vmem>>, vector<16x256xf32>,
    %c64_355 = arith.constant 64 : index
    %c256_356 = arith.constant 256 : index
    %437 = vector.load %arg11[%c64_355, %c256_356] : memref<144x512xf32, #tpu.memory_space<vmem>>, vector<16x256xf32>
    tpu.vector_store %arg11[%c64_355, %c256_356], %412 {strides = array<i32>} : memref<144x512xf32, #tpu.memory_space<vmem>>, vector<16x256xf32>,
    %c255_i32_357 = arith.constant 255 : i32
    %438 = tpu.dynamic_rotate %412 by %c255_i32_357 dim 1 : vector<16x256xf32>, i32 -> vector<16x256xf32>
    %c5_358 = arith.constant 5 : index
    %c0_359 = arith.constant 0 : index
    %c0_360 = arith.constant 0 : index
    %439 = vector.load %arg8[%c5_358, %c0_359, %c0_360] : memref<9x1x256xf32, #tpu.memory_space<vmem>>, vector<1x1x256xf32>
    %440 = vector.shape_cast %439 : vector<1x1x256xf32> to vector<1x256xf32>
    %441 = vector.broadcast %440 : vector<1x256xf32> to vector<16x256xf32>
    %442 = arith.mulf %438, %441 : vector<16x256xf32>
    %c80_361 = arith.constant 80 : index
    %c256_362 = arith.constant 256 : index
    %443 = vector.load %arg11[%c80_361, %c256_362] : memref<144x512xf32, #tpu.memory_space<vmem>>, vector<16x256xf32>
    tpu.vector_store %arg11[%c80_361, %c256_362], %442 {strides = array<i32>} : memref<144x512xf32, #tpu.memory_space<vmem>>, vector<16x256xf32>,
    %c241_i32_363 = arith.constant 241 : i32
    %444 = tpu.dynamic_rotate %412 by %c241_i32_363 dim 1 : vector<16x256xf32>, i32 -> vector<16x256xf32>
    %c6_364 = arith.constant 6 : index
    %c0_365 = arith.constant 0 : index
    %c0_366 = arith.constant 0 : index
    %445 = vector.load %arg8[%c6_364, %c0_365, %c0_366] : memref<9x1x256xf32, #tpu.memory_space<vmem>>, vector<1x1x256xf32>
    %446 = vector.shape_cast %445 : vector<1x1x256xf32> to vector<1x256xf32>
    %447 = vector.broadcast %446 : vector<1x256xf32> to vector<16x256xf32>
    %448 = arith.mulf %444, %447 : vector<16x256xf32>
    %c96_367 = arith.constant 96 : index
    %c256_368 = arith.constant 256 : index
    %449 = vector.load %arg11[%c96_367, %c256_368] : memref<144x512xf32, #tpu.memory_space<vmem>>, vector<16x256xf32>
    tpu.vector_store %arg11[%c96_367, %c256_368], %448 {strides = array<i32>} : memref<144x512xf32, #tpu.memory_space<vmem>>, vector<16x256xf32>,
    %c240_i32_369 = arith.constant 240 : i32
    %450 = tpu.dynamic_rotate %412 by %c240_i32_369 dim 1 : vector<16x256xf32>, i32 -> vector<16x256xf32>
    %c7_370 = arith.constant 7 : index
    %c0_371 = arith.constant 0 : index
    %c0_372 = arith.constant 0 : index
    %451 = vector.load %arg8[%c7_370, %c0_371, %c0_372] : memref<9x1x256xf32, #tpu.memory_space<vmem>>, vector<1x1x256xf32>
    %452 = vector.shape_cast %451 : vector<1x1x256xf32> to vector<1x256xf32>
    %453 = vector.broadcast %452 : vector<1x256xf32> to vector<16x256xf32>
    %454 = arith.mulf %450, %453 : vector<16x256xf32>
    %c112_373 = arith.constant 112 : index
    %c256_374 = arith.constant 256 : index
    %455 = vector.load %arg11[%c112_373, %c256_374] : memref<144x512xf32, #tpu.memory_space<vmem>>, vector<16x256xf32>
    tpu.vector_store %arg11[%c112_373, %c256_374], %454 {strides = array<i32>} : memref<144x512xf32, #tpu.memory_space<vmem>>, vector<16x256xf32>,
    %c239_i32_375 = arith.constant 239 : i32
    %456 = tpu.dynamic_rotate %412 by %c239_i32_375 dim 1 : vector<16x256xf32>, i32 -> vector<16x256xf32>
    %c8_376 = arith.constant 8 : index
    %c0_377 = arith.constant 0 : index
    %c0_378 = arith.constant 0 : index
    %457 = vector.load %arg8[%c8_376, %c0_377, %c0_378] : memref<9x1x256xf32, #tpu.memory_space<vmem>>, vector<1x1x256xf32>
    %458 = vector.shape_cast %457 : vector<1x1x256xf32> to vector<1x256xf32>
    %459 = vector.broadcast %458 : vector<1x256xf32> to vector<16x256xf32>
    %460 = arith.mulf %456, %459 : vector<16x256xf32>
    %c128_379 = arith.constant 128 : index
    %c256_380 = arith.constant 256 : index
    %461 = vector.load %arg11[%c128_379, %c256_380] : memref<144x512xf32, #tpu.memory_space<vmem>>, vector<16x256xf32>
    tpu.vector_store %arg11[%c128_379, %c256_380], %460 {strides = array<i32>} : memref<144x512xf32, #tpu.memory_space<vmem>>, vector<16x256xf32>,
    %c2_381 = arith.constant 2 : index
    %c0_382 = arith.constant 0 : index
    %c0_383 = arith.constant 0 : index
    %462 = vector.load %arg2[%c2_381, %c0_382, %c0_383] : memref<3x16x144xf32, #tpu.memory_space<vmem>>, vector<1x16x144xf32>
    %463 = vector.shape_cast %462 : vector<1x16x144xf32> to vector<16x144xf32>
    %c0_384 = arith.constant 0 : index
    %c0_385 = arith.constant 0 : index
    %464 = vector.load %arg11[%c0_384, %c0_385] : memref<144x512xf32, #tpu.memory_space<vmem>>, vector<144x512xf32>
    %cst_386 = arith.constant dense<0.000000e+00> : vector<16x512xf32>
    %465 = tpu.matmul %463, %464, %cst_386 {dimension_numbers = #tpu.dot_dimension_numbers<[1], [0], [0], [1], [0, 0, 1, 1], [], []>} : vector<16x144xf32>, vector<144x512xf32>, vector<16x512xf32> -> vector<16x512xf32>
    %c2_387 = arith.constant 2 : index
    %c0_388 = arith.constant 0 : index
    %c0_389 = arith.constant 0 : index
    %466 = vector.load %arg3[%c2_387, %c0_388, %c0_389] : memref<3x16x1xf32, #tpu.memory_space<vmem>>, vector<1x16x1xf32>
    %467 = vector.shape_cast %466 : vector<1x16x1xf32> to vector<16x1xf32>
    %468 = vector.broadcast %467 : vector<16x1xf32> to vector<16x512xf32>
    %469 = arith.addf %465, %468 : vector<16x512xf32>
    %470 = vector.extract_strided_slice %469 {offsets = [0, 0], sizes = [16, 256], strides = [1, 1]} : vector<16x512xf32> to vector<16x256xf32>
    %c0_390 = arith.constant 0 : index
    %c32_391 = arith.constant 32 : index
    %c0_392 = arith.constant 0 : index
    %471 = vector.load %arg10[%c0_390, %c32_391, %c0_392] : memref<2x48x256xf32, #tpu.memory_space<vmem>>, vector<1x16x256xf32>
    %472 = vector.shape_cast %471 : vector<1x16x256xf32> to vector<16x256xf32>
    %473 = vector.shape_cast %470 : vector<16x256xf32> to vector<1x16x256xf32>
    tpu.vector_store %arg10[%c0_390, %c32_391, %c0_392], %473 {strides = array<i32>} : memref<2x48x256xf32, #tpu.memory_space<vmem>>, vector<1x16x256xf32>,
    %474 = vector.extract_strided_slice %469 {offsets = [0, 256], sizes = [16, 256], strides = [1, 1]} : vector<16x512xf32> to vector<16x256xf32>
    %c1_393 = arith.constant 1 : index
    %c32_394 = arith.constant 32 : index
    %c0_395 = arith.constant 0 : index
    %475 = vector.load %arg10[%c1_393, %c32_394, %c0_395] : memref<2x48x256xf32, #tpu.memory_space<vmem>>, vector<1x16x256xf32>
    %476 = vector.shape_cast %475 : vector<1x16x256xf32> to vector<16x256xf32>
    %477 = vector.shape_cast %474 : vector<16x256xf32> to vector<1x16x256xf32>
    tpu.vector_store %arg10[%c1_393, %c32_394, %c0_395], %477 {strides = array<i32>} : memref<2x48x256xf32, #tpu.memory_space<vmem>>, vector<1x16x256xf32>,
    %c0_396 = arith.constant 0 : index
    %c0_397 = arith.constant 0 : index
    %478 = vector.load %arg9[%c0_396, %c0_397] : memref<512x10xf32, #tpu.memory_space<vmem>>, vector<512x10xf32>
    %cst_398 = arith.constant dense<0.000000e+00> : vector<16x10xf32>
    %479 = tpu.matmul %469, %478, %cst_398 {dimension_numbers = #tpu.dot_dimension_numbers<[1], [0], [0], [1], [0, 0, 1, 1], [], []>} : vector<16x512xf32>, vector<512x10xf32>, vector<16x10xf32> -> vector<16x10xf32>
    %480 = tpu.iota {dimensions = array<i32: 0>} : vector<10x2xi32>
    %481 = tpu.iota {dimensions = array<i32: 1>} : vector<10x2xi32>
    %c0_i32_399 = arith.constant 0 : i32
    %482 = vector.broadcast %c0_i32_399 : i32 to vector<10x2xi32>
    %483 = arith.addi %482, %481 : vector<10x2xi32>
    %484 = arith.cmpi eq, %480, %483 : vector<10x2xi32>
    %485 = arith.extui %484 : vector<10x2xi1> to vector<10x2xi32>
    %486 = arith.sitofp %485 : vector<10x2xi32> to vector<10x2xf32>
    %cst_400 = arith.constant dense<0.000000e+00> : vector<16x2xf32>
    %487 = tpu.matmul %479, %486, %cst_400 {dimension_numbers = #tpu.dot_dimension_numbers<[1], [0], [0], [1], [0, 0, 1, 1], [], []>} : vector<16x10xf32>, vector<10x2xf32>, vector<16x2xf32> -> vector<16x2xf32>
    %c2_i32_401 = arith.constant 2 : i32
    %488 = vector.broadcast %c2_i32_401 : i32 to vector<10x2xi32>
    %489 = arith.addi %488, %481 : vector<10x2xi32>
    %490 = arith.cmpi eq, %480, %489 : vector<10x2xi32>
    %491 = arith.extui %490 : vector<10x2xi1> to vector<10x2xi32>
    %492 = arith.sitofp %491 : vector<10x2xi32> to vector<10x2xf32>
    %cst_402 = arith.constant dense<0.000000e+00> : vector<16x2xf32>
    %493 = tpu.matmul %479, %492, %cst_402 {dimension_numbers = #tpu.dot_dimension_numbers<[1], [0], [0], [1], [0, 0, 1, 1], [], []>} : vector<16x10xf32>, vector<10x2xf32>, vector<16x2xf32> -> vector<16x2xf32>
    %c4_i32_403 = arith.constant 4 : i32
    %494 = vector.broadcast %c4_i32_403 : i32 to vector<10x2xi32>
    %495 = arith.addi %494, %481 : vector<10x2xi32>
    %496 = arith.cmpi eq, %480, %495 : vector<10x2xi32>
    %497 = arith.extui %496 : vector<10x2xi1> to vector<10x2xi32>
    %498 = arith.sitofp %497 : vector<10x2xi32> to vector<10x2xf32>
    %cst_404 = arith.constant dense<0.000000e+00> : vector<16x2xf32>
    %499 = tpu.matmul %479, %498, %cst_404 {dimension_numbers = #tpu.dot_dimension_numbers<[1], [0], [0], [1], [0, 0, 1, 1], [], []>} : vector<16x10xf32>, vector<10x2xf32>, vector<16x2xf32> -> vector<16x2xf32>
    %c6_i32_405 = arith.constant 6 : i32
    %500 = vector.broadcast %c6_i32_405 : i32 to vector<10x2xi32>
    %501 = arith.addi %500, %481 : vector<10x2xi32>
    %502 = arith.cmpi eq, %480, %501 : vector<10x2xi32>
    %503 = arith.extui %502 : vector<10x2xi1> to vector<10x2xi32>
    %504 = arith.sitofp %503 : vector<10x2xi32> to vector<10x2xf32>
    %cst_406 = arith.constant dense<0.000000e+00> : vector<16x2xf32>
    %505 = tpu.matmul %479, %504, %cst_406 {dimension_numbers = #tpu.dot_dimension_numbers<[1], [0], [0], [1], [0, 0, 1, 1], [], []>} : vector<16x10xf32>, vector<10x2xf32>, vector<16x2xf32> -> vector<16x2xf32>
    %c8_i32_407 = arith.constant 8 : i32
    %506 = vector.broadcast %c8_i32_407 : i32 to vector<10x2xi32>
    %507 = arith.addi %506, %481 : vector<10x2xi32>
    %508 = arith.cmpi eq, %480, %507 : vector<10x2xi32>
    %509 = arith.extui %508 : vector<10x2xi1> to vector<10x2xi32>
    %510 = arith.sitofp %509 : vector<10x2xi32> to vector<10x2xf32>
    %cst_408 = arith.constant dense<0.000000e+00> : vector<16x2xf32>
    %511 = tpu.matmul %479, %510, %cst_408 {dimension_numbers = #tpu.dot_dimension_numbers<[1], [0], [0], [1], [0, 0, 1, 1], [], []>} : vector<16x10xf32>, vector<10x2xf32>, vector<16x2xf32> -> vector<16x2xf32>
    %512 = tpu.concatenate %487, %493, %499, %505, %511 in 0 : vector<16x2xf32>, vector<16x2xf32>, vector<16x2xf32>, vector<16x2xf32>, vector<16x2xf32> -> vector<80x2xf32>
    %c0_409 = arith.constant 0 : index
    %c0_410 = arith.constant 0 : index
    %513 = vector.load %arg4[%c0_409, %c0_410] : memref<1x80xf32, #tpu.memory_space<vmem>>, vector<1x80xf32>
    %cst_411 = arith.constant dense<0.000000e+00> : vector<1x2xf32>
    %514 = tpu.matmul %513, %512, %cst_411 {dimension_numbers = #tpu.dot_dimension_numbers<[1], [0], [0], [1], [0, 0, 1, 1], [], []>} : vector<1x80xf32>, vector<80x2xf32>, vector<1x2xf32> -> vector<1x2xf32>
    %c0_412 = arith.constant 0 : index
    %c0_413 = arith.constant 0 : index
    %515 = vector.load %arg5[%c0_412, %c0_413] : memref<1x1xf32, #tpu.memory_space<vmem>>, vector<1x1xf32>
    %516 = vector.broadcast %515 : vector<1x1xf32> to vector<1x2xf32>
    %517 = arith.addf %514, %516 : vector<1x2xf32>
    %cst_414 = arith.constant 0.000000e+00 : f32
    %518 = vector.broadcast %cst_414 : f32 to vector<1x2xf32>
    %519 = arith.maximumf %517, %518 : vector<1x2xf32>
    %c0_415 = arith.constant 0 : index
    %c0_416 = arith.constant 0 : index
    %520 = vector.load %arg6[%c0_415, %c0_416] : memref<16x1xf32, #tpu.memory_space<vmem>>, vector<16x1xf32>
    %521 = vector.broadcast %520 : vector<16x1xf32> to vector<16x2xf32>
    %522 = vector.broadcast %519 : vector<1x2xf32> to vector<16x2xf32>
    %523 = arith.mulf %521, %522 : vector<16x2xf32>
    %c0_417 = arith.constant 0 : index
    %c0_418 = arith.constant 0 : index
    %524 = vector.load %arg7[%c0_417, %c0_418] : memref<16x1xf32, #tpu.memory_space<vmem>>, vector<16x1xf32>
    %525 = vector.broadcast %524 : vector<16x1xf32> to vector<16x2xf32>
    %526 = arith.addf %523, %525 : vector<16x2xf32>
    %cst_419 = arith.constant 0.000000e+00 : f32
    %527 = vector.broadcast %cst_419 : f32 to vector<16x2xf32>
    %528 = arith.subf %527, %526 : vector<16x2xf32>
    %529 = math.exp %528 : vector<16x2xf32>
    %cst_420 = arith.constant 1.000000e+00 : f32
    %530 = vector.broadcast %cst_420 : f32 to vector<16x2xf32>
    %531 = arith.addf %530, %529 : vector<16x2xf32>
    %cst_421 = arith.constant 1.000000e+00 : f32
    %532 = vector.broadcast %cst_421 : f32 to vector<16x2xf32>
    %533 = arith.divf %532, %531 : vector<16x2xf32>
    %534 = math.exp %173 : vector<16x2xf32>
    %535 = math.exp %353 : vector<16x2xf32>
    %536 = math.exp %533 : vector<16x2xf32>
    %537 = arith.addf %534, %535 : vector<16x2xf32>
    %538 = arith.addf %537, %536 : vector<16x2xf32>
    %cst_422 = arith.constant 1.000000e+00 : f32
    %539 = vector.broadcast %cst_422 : f32 to vector<16x2xf32>
    %540 = arith.divf %539, %538 : vector<16x2xf32>
    %541 = tpu.iota {dimensions = array<i32: 1>} : vector<1x2xi32>
    %542 = arith.mulf %534, %540 : vector<16x2xf32>
    %c0_i32_423 = arith.constant 0 : i32
    %543 = vector.broadcast %c0_i32_423 : i32 to vector<1x2xi32>
    %544 = arith.cmpi eq, %541, %543 : vector<1x2xi32>
    %545 = arith.extui %544 : vector<1x2xi1> to vector<1x2xi32>
    %546 = arith.sitofp %545 : vector<1x2xi32> to vector<1x2xf32>
    %547 = vector.broadcast %546 : vector<1x2xf32> to vector<16x2xf32>
    %548 = arith.mulf %542, %547 : vector<16x2xf32>
    %cst_424 = arith.constant dense<0.000000e+00> : vector<16xf32>
    %549 = vector.multi_reduction <add>, %548, %cst_424 [1] : vector<16x2xf32> to vector<16xf32>
    %550 = vector.shape_cast %549 : vector<16xf32> to vector<16x1xf32>
    %c0_425 = arith.constant 0 : index
    %c0_426 = arith.constant 0 : index
    %c0_427 = arith.constant 0 : index
    %551 = vector.load %arg10[%c0_425, %c0_426, %c0_427] : memref<2x48x256xf32, #tpu.memory_space<vmem>>, vector<1x16x256xf32>
    %552 = vector.shape_cast %551 : vector<1x16x256xf32> to vector<16x256xf32>
    %553 = vector.broadcast %550 : vector<16x1xf32> to vector<16x256xf32>
    %554 = arith.mulf %552, %553 : vector<16x256xf32>
    %c0_428 = arith.constant 0 : index
    %c0_429 = arith.constant 0 : index
    %c0_430 = arith.constant 0 : index
    %555 = vector.load %arg10[%c0_428, %c0_429, %c0_430] : memref<2x48x256xf32, #tpu.memory_space<vmem>>, vector<1x16x256xf32>
    %556 = vector.shape_cast %555 : vector<1x16x256xf32> to vector<16x256xf32>
    %557 = vector.shape_cast %554 : vector<16x256xf32> to vector<1x16x256xf32>
    tpu.vector_store %arg10[%c0_428, %c0_429, %c0_430], %557 {strides = array<i32>} : memref<2x48x256xf32, #tpu.memory_space<vmem>>, vector<1x16x256xf32>,
    %c1_i32_431 = arith.constant 1 : i32
    %558 = vector.broadcast %c1_i32_431 : i32 to vector<1x2xi32>
    %559 = arith.cmpi eq, %541, %558 : vector<1x2xi32>
    %560 = arith.extui %559 : vector<1x2xi1> to vector<1x2xi32>
    %561 = arith.sitofp %560 : vector<1x2xi32> to vector<1x2xf32>
    %562 = vector.broadcast %561 : vector<1x2xf32> to vector<16x2xf32>
    %563 = arith.mulf %542, %562 : vector<16x2xf32>
    %cst_432 = arith.constant dense<0.000000e+00> : vector<16xf32>
    %564 = vector.multi_reduction <add>, %563, %cst_432 [1] : vector<16x2xf32> to vector<16xf32>
    %565 = vector.shape_cast %564 : vector<16xf32> to vector<16x1xf32>
    %c1_433 = arith.constant 1 : index
    %c0_434 = arith.constant 0 : index
    %c0_435 = arith.constant 0 : index
    %566 = vector.load %arg10[%c1_433, %c0_434, %c0_435] : memref<2x48x256xf32, #tpu.memory_space<vmem>>, vector<1x16x256xf32>
    %567 = vector.shape_cast %566 : vector<1x16x256xf32> to vector<16x256xf32>
    %568 = vector.broadcast %565 : vector<16x1xf32> to vector<16x256xf32>
    %569 = arith.mulf %567, %568 : vector<16x256xf32>
    %c1_436 = arith.constant 1 : index
    %c0_437 = arith.constant 0 : index
    %c0_438 = arith.constant 0 : index
    %570 = vector.load %arg10[%c1_436, %c0_437, %c0_438] : memref<2x48x256xf32, #tpu.memory_space<vmem>>, vector<1x16x256xf32>
    %571 = vector.shape_cast %570 : vector<1x16x256xf32> to vector<16x256xf32>
    %572 = vector.shape_cast %569 : vector<16x256xf32> to vector<1x16x256xf32>
    tpu.vector_store %arg10[%c1_436, %c0_437, %c0_438], %572 {strides = array<i32>} : memref<2x48x256xf32, #tpu.memory_space<vmem>>, vector<1x16x256xf32>,
    %573 = arith.mulf %535, %540 : vector<16x2xf32>
    %c0_i32_439 = arith.constant 0 : i32
    %574 = vector.broadcast %c0_i32_439 : i32 to vector<1x2xi32>
    %575 = arith.cmpi eq, %541, %574 : vector<1x2xi32>
    %576 = arith.extui %575 : vector<1x2xi1> to vector<1x2xi32>
    %577 = arith.sitofp %576 : vector<1x2xi32> to vector<1x2xf32>
    %578 = vector.broadcast %577 : vector<1x2xf32> to vector<16x2xf32>
    %579 = arith.mulf %573, %578 : vector<16x2xf32>
    %cst_440 = arith.constant dense<0.000000e+00> : vector<16xf32>
    %580 = vector.multi_reduction <add>, %579, %cst_440 [1] : vector<16x2xf32> to vector<16xf32>
    %581 = vector.shape_cast %580 : vector<16xf32> to vector<16x1xf32>
    %c0_441 = arith.constant 0 : index
    %c16_442 = arith.constant 16 : index
    %c0_443 = arith.constant 0 : index
    %582 = vector.load %arg10[%c0_441, %c16_442, %c0_443] : memref<2x48x256xf32, #tpu.memory_space<vmem>>, vector<1x16x256xf32>
    %583 = vector.shape_cast %582 : vector<1x16x256xf32> to vector<16x256xf32>
    %584 = vector.broadcast %581 : vector<16x1xf32> to vector<16x256xf32>
    %585 = arith.mulf %583, %584 : vector<16x256xf32>
    %c0_444 = arith.constant 0 : index
    %c16_445 = arith.constant 16 : index
    %c0_446 = arith.constant 0 : index
    %586 = vector.load %arg10[%c0_444, %c16_445, %c0_446] : memref<2x48x256xf32, #tpu.memory_space<vmem>>, vector<1x16x256xf32>
    %587 = vector.shape_cast %586 : vector<1x16x256xf32> to vector<16x256xf32>
    %588 = vector.shape_cast %585 : vector<16x256xf32> to vector<1x16x256xf32>
    tpu.vector_store %arg10[%c0_444, %c16_445, %c0_446], %588 {strides = array<i32>} : memref<2x48x256xf32, #tpu.memory_space<vmem>>, vector<1x16x256xf32>,
    %c1_i32_447 = arith.constant 1 : i32
    %589 = vector.broadcast %c1_i32_447 : i32 to vector<1x2xi32>
    %590 = arith.cmpi eq, %541, %589 : vector<1x2xi32>
    %591 = arith.extui %590 : vector<1x2xi1> to vector<1x2xi32>
    %592 = arith.sitofp %591 : vector<1x2xi32> to vector<1x2xf32>
    %593 = vector.broadcast %592 : vector<1x2xf32> to vector<16x2xf32>
    %594 = arith.mulf %573, %593 : vector<16x2xf32>
    %cst_448 = arith.constant dense<0.000000e+00> : vector<16xf32>
    %595 = vector.multi_reduction <add>, %594, %cst_448 [1] : vector<16x2xf32> to vector<16xf32>
    %596 = vector.shape_cast %595 : vector<16xf32> to vector<16x1xf32>
    %c1_449 = arith.constant 1 : index
    %c16_450 = arith.constant 16 : index
    %c0_451 = arith.constant 0 : index
    %597 = vector.load %arg10[%c1_449, %c16_450, %c0_451] : memref<2x48x256xf32, #tpu.memory_space<vmem>>, vector<1x16x256xf32>
    %598 = vector.shape_cast %597 : vector<1x16x256xf32> to vector<16x256xf32>
    %599 = vector.broadcast %596 : vector<16x1xf32> to vector<16x256xf32>
    %600 = arith.mulf %598, %599 : vector<16x256xf32>
    %c1_452 = arith.constant 1 : index
    %c16_453 = arith.constant 16 : index
    %c0_454 = arith.constant 0 : index
    %601 = vector.load %arg10[%c1_452, %c16_453, %c0_454] : memref<2x48x256xf32, #tpu.memory_space<vmem>>, vector<1x16x256xf32>
    %602 = vector.shape_cast %601 : vector<1x16x256xf32> to vector<16x256xf32>
    %603 = vector.shape_cast %600 : vector<16x256xf32> to vector<1x16x256xf32>
    tpu.vector_store %arg10[%c1_452, %c16_453, %c0_454], %603 {strides = array<i32>} : memref<2x48x256xf32, #tpu.memory_space<vmem>>, vector<1x16x256xf32>,
    %604 = arith.mulf %536, %540 : vector<16x2xf32>
    %c0_i32_455 = arith.constant 0 : i32
    %605 = vector.broadcast %c0_i32_455 : i32 to vector<1x2xi32>
    %606 = arith.cmpi eq, %541, %605 : vector<1x2xi32>
    %607 = arith.extui %606 : vector<1x2xi1> to vector<1x2xi32>
    %608 = arith.sitofp %607 : vector<1x2xi32> to vector<1x2xf32>
    %609 = vector.broadcast %608 : vector<1x2xf32> to vector<16x2xf32>
    %610 = arith.mulf %604, %609 : vector<16x2xf32>
    %cst_456 = arith.constant dense<0.000000e+00> : vector<16xf32>
    %611 = vector.multi_reduction <add>, %610, %cst_456 [1] : vector<16x2xf32> to vector<16xf32>
    %612 = vector.shape_cast %611 : vector<16xf32> to vector<16x1xf32>
    %c0_457 = arith.constant 0 : index
    %c32_458 = arith.constant 32 : index
    %c0_459 = arith.constant 0 : index
    %613 = vector.load %arg10[%c0_457, %c32_458, %c0_459] : memref<2x48x256xf32, #tpu.memory_space<vmem>>, vector<1x16x256xf32>
    %614 = vector.shape_cast %613 : vector<1x16x256xf32> to vector<16x256xf32>
    %615 = vector.broadcast %612 : vector<16x1xf32> to vector<16x256xf32>
    %616 = arith.mulf %614, %615 : vector<16x256xf32>
    %c0_460 = arith.constant 0 : index
    %c32_461 = arith.constant 32 : index
    %c0_462 = arith.constant 0 : index
    %617 = vector.load %arg10[%c0_460, %c32_461, %c0_462] : memref<2x48x256xf32, #tpu.memory_space<vmem>>, vector<1x16x256xf32>
    %618 = vector.shape_cast %617 : vector<1x16x256xf32> to vector<16x256xf32>
    %619 = vector.shape_cast %616 : vector<16x256xf32> to vector<1x16x256xf32>
    tpu.vector_store %arg10[%c0_460, %c32_461, %c0_462], %619 {strides = array<i32>} : memref<2x48x256xf32, #tpu.memory_space<vmem>>, vector<1x16x256xf32>,
    %c1_i32_463 = arith.constant 1 : i32
    %620 = vector.broadcast %c1_i32_463 : i32 to vector<1x2xi32>
    %621 = arith.cmpi eq, %541, %620 : vector<1x2xi32>
    %622 = arith.extui %621 : vector<1x2xi1> to vector<1x2xi32>
    %623 = arith.sitofp %622 : vector<1x2xi32> to vector<1x2xf32>
    %624 = vector.broadcast %623 : vector<1x2xf32> to vector<16x2xf32>
    %625 = arith.mulf %604, %624 : vector<16x2xf32>
    %cst_464 = arith.constant dense<0.000000e+00> : vector<16xf32>
    %626 = vector.multi_reduction <add>, %625, %cst_464 [1] : vector<16x2xf32> to vector<16xf32>
    %627 = vector.shape_cast %626 : vector<16xf32> to vector<16x1xf32>
    %c1_465 = arith.constant 1 : index
    %c32_466 = arith.constant 32 : index
    %c0_467 = arith.constant 0 : index
    %628 = vector.load %arg10[%c1_465, %c32_466, %c0_467] : memref<2x48x256xf32, #tpu.memory_space<vmem>>, vector<1x16x256xf32>
    %629 = vector.shape_cast %628 : vector<1x16x256xf32> to vector<16x256xf32>
    %630 = vector.broadcast %627 : vector<16x1xf32> to vector<16x256xf32>
    %631 = arith.mulf %629, %630 : vector<16x256xf32>
    %c1_468 = arith.constant 1 : index
    %c32_469 = arith.constant 32 : index
    %c0_470 = arith.constant 0 : index
    %632 = vector.load %arg10[%c1_468, %c32_469, %c0_470] : memref<2x48x256xf32, #tpu.memory_space<vmem>>, vector<1x16x256xf32>
    %633 = vector.shape_cast %632 : vector<1x16x256xf32> to vector<16x256xf32>
    %634 = vector.shape_cast %631 : vector<16x256xf32> to vector<1x16x256xf32>
    tpu.vector_store %arg10[%c1_468, %c32_469, %c0_470], %634 {strides = array<i32>} : memref<2x48x256xf32, #tpu.memory_space<vmem>>, vector<1x16x256xf32>,
    return
  }
  func.func @transform_0(%arg0: i32) -> (i32, i32, i32) {
    %c0_i32 = arith.constant 0 : i32
    %c0_i32_0 = arith.constant 0 : i32
    %c0_i32_1 = arith.constant 0 : i32
    return %arg0, %c0_i32, %c0_i32_0 : i32, i32, i32
  }
  func.func @transform_1(%arg0: i32) -> (i32, i32, i32) {
    %c0_i32 = arith.constant 0 : i32
    %c0_i32_0 = arith.constant 0 : i32
    %c0_i32_1 = arith.constant 0 : i32
    %c0_i32_2 = arith.constant 0 : i32
    return %c0_i32, %c0_i32_0, %c0_i32_1 : i32, i32, i32
  }
  func.func @transform_2(%arg0: i32) -> (i32, i32, i32) {
    %c0_i32 = arith.constant 0 : i32
    %c0_i32_0 = arith.constant 0 : i32
    %c0_i32_1 = arith.constant 0 : i32
    %c0_i32_2 = arith.constant 0 : i32
    return %c0_i32, %c0_i32_0, %c0_i32_1 : i32, i32, i32
  }
  func.func @transform_3(%arg0: i32) -> (i32, i32) {
    %c0_i32 = arith.constant 0 : i32
    %c0_i32_0 = arith.constant 0 : i32
    %c0_i32_1 = arith.constant 0 : i32
    return %c0_i32, %c0_i32_0 : i32, i32
  }
  func.func @transform_4(%arg0: i32) -> (i32, i32) {
    %c0_i32 = arith.constant 0 : i32
    %c0_i32_0 = arith.constant 0 : i32
    %c0_i32_1 = arith.constant 0 : i32
    return %c0_i32, %c0_i32_0 : i32, i32
  }
  func.func @transform_5(%arg0: i32) -> (i32, i32) {
    %c0_i32 = arith.constant 0 : i32
    %c0_i32_0 = arith.constant 0 : i32
    %c0_i32_1 = arith.constant 0 : i32
    return %c0_i32, %c0_i32_0 : i32, i32
  }
  func.func @transform_6(%arg0: i32) -> (i32, i32) {
    %c0_i32 = arith.constant 0 : i32
    %c0_i32_0 = arith.constant 0 : i32
    %c0_i32_1 = arith.constant 0 : i32
    return %c0_i32, %c0_i32_0 : i32, i32
  }
  func.func @transform_7(%arg0: i32) -> (i32, i32, i32) {
    %c0_i32 = arith.constant 0 : i32
    %c0_i32_0 = arith.constant 0 : i32
    %c0_i32_1 = arith.constant 0 : i32
    %c0_i32_2 = arith.constant 0 : i32
    return %c0_i32, %c0_i32_0, %c0_i32_1 : i32, i32, i32
  }
  func.func @transform_8(%arg0: i32) -> (i32, i32) {
    %c0_i32 = arith.constant 0 : i32
    %c0_i32_0 = arith.constant 0 : i32
    %c0_i32_1 = arith.constant 0 : i32
    return %c0_i32, %c0_i32_0 : i32, i32
  }
  func.func @transform_9(%arg0: i32) -> (i32, i32, i32) {
    %c0_i32 = arith.constant 0 : i32
    %c0_i32_0 = arith.constant 0 : i32
    %c0_i32_1 = arith.constant 0 : i32
    return %arg0, %c0_i32, %c0_i32_0 : i32, i32, i32
  }
}

</mosaic_0001>

<llo_original>
// kernel: tpu_custom_call.1
$region0: #{tpu_custom_call.1}
  #allocation0 [shape = 'u32[]', space=smem, size = 0x4, offset = 0x4, fixed_abs, tag = 'smem constant byte address 0x4 - core index']
  #allocation1 [shape = 'u32[144,128]{1,0:T(1,128)}', space=vmem, size = 0x12000, scoped, tag = 'internal scratch']
  #allocation2 [shape = 'f32[144,512]{1,0:T(8,128)}', space=vmem, size = 0x48000, scoped, tag = 'scratch operand']
  #allocation3 [shape = 'f32[1,1]{1,0:T(1,128)S(1)}', space=vmem, size = 0x200, scoped, tag = 'scoped memory for tpu_custom_call.1']
  %s0 = inlined_call_operand.vmem [shape: f32[2,48,256], index: 0, kind: input, shape index: {}]
  %s1 = inlined_call_operand.vmem [shape: f32[3,16,144], index: 1, kind: input, shape index: {}]
  %s2 = inlined_call_operand.vmem [shape: f32[3,16,1], index: 2, kind: input, shape index: {}]
  %s3 = inlined_call_operand.vmem [shape: f32[1,80], index: 3, kind: input, shape index: {}]
  %s4 = inlined_call_operand.<no memory space> [shape: f32[1,1], index: 4, kind: input, shape index: {}]
  %s5 = inlined_call_operand.vmem [shape: f32[16,1], index: 5, kind: input, shape index: {}]
  %s6 = inlined_call_operand.vmem [shape: f32[16,1], index: 6, kind: input, shape index: {}]
  %s7 = inlined_call_operand.vmem [shape: f32[9,1,256], index: 7, kind: input, shape index: {}]
  %s8 = inlined_call_operand.vmem [shape: f32[512,10], index: 8, kind: input, shape index: {}]
  %s9 = inlined_call_operand.hbm [shape: f32[2,48,256], index: 9, kind: output, shape index: {}]
  %s10 = sld [smem:[#allocation0]]
  $region46: #{tpu_custom_call.1} parent=0
    _
  %s12 = ssub.s32 1, %s10
  %s13 = scalar_select 0, %s12, %s10
  %v14 = vstv %s4
  %15 = vst [vmem:[#allocation3] sm:$0x1] %v14
  $region1: #{tpu_custom_call.1} parent=0
    #allocation4 [shape = 'u8[98304]{0}', space=vmem, size = 0x18000, scoped, tag = 'output window, operand 0, single buffered']
    #allocation5 [shape = 's32[1]{0}', space=sflag, size = 0x4, scoped, tag = 'scoped memory for tpu_custom_call.1']
    %16 = vsyncpa [#allocation5], 0
    // Predicated region
    $region2: #{tpu_custom_call.1} parent=1 // pred_check
      _
    $region3: #{tpu_custom_call.1} parent=1 // pred_check_branch
      %18 = sbr.rel (0) target = $region5
    $region4: #{tpu_custom_call.1} parent=1 // pred_region
      _
    $region5: #{tpu_custom_call.1} parent=1 // pred_fallthru
      _
    // Predicated region
    $region6: #{tpu_custom_call.1} parent=1 // pred_check
      _
    $region7: #{tpu_custom_call.1} parent=1 // pred_check_branch
      %20 = sbr.rel (0) target = $region9
    $region8: #{tpu_custom_call.1} parent=1 // pred_region
      _
    $region9: #{tpu_custom_call.1} parent=1 // pred_fallthru
      _
    // Predicated region
    $region10: #{tpu_custom_call.1} parent=1 // pred_check
      _
    $region11: #{tpu_custom_call.1} parent=1 // pred_check_branch
      %22 = sbr.rel (0) target = $region13
    $region12: #{tpu_custom_call.1} parent=1 // pred_region
      _
    $region13: #{tpu_custom_call.1} parent=1 // pred_fallthru
      _
    // Predicated region
    $region14: #{tpu_custom_call.1} parent=1 // pred_check
      _
    $region15: #{tpu_custom_call.1} parent=1 // pred_check_branch
      %24 = sbr.rel (0) target = $region17
    $region16: #{tpu_custom_call.1} parent=1 // pred_region
      _
    $region17: #{tpu_custom_call.1} parent=1 // pred_fallthru
      _
    // Predicated region
    $region18: #{tpu_custom_call.1} parent=1 // pred_check
      _
    $region19: #{tpu_custom_call.1} parent=1 // pred_check_branch
      %26 = sbr.rel (0) target = $region21
    $region20: #{tpu_custom_call.1} parent=1 // pred_region
      _
    $region21: #{tpu_custom_call.1} parent=1 // pred_fallthru
      _
    // Predicated region
    $region22: #{tpu_custom_call.1} parent=1 // pred_check
      _
    $region23: #{tpu_custom_call.1} parent=1 // pred_check_branch
      %28 = sbr.rel (0) target = $region25
    $region24: #{tpu_custom_call.1} parent=1 // pred_region
      _
    $region25: #{tpu_custom_call.1} parent=1 // pred_fallthru
      _
    // Predicated region
    $region26: #{tpu_custom_call.1} parent=1 // pred_check
      _
    $region27: #{tpu_custom_call.1} parent=1 // pred_check_branch
      %30 = sbr.rel (0) target = $region29
    $region28: #{tpu_custom_call.1} parent=1 // pred_region
      _
    $region29: #{tpu_custom_call.1} parent=1 // pred_fallthru
      _
    // Predicated region
    $region30: #{tpu_custom_call.1} parent=1 // pred_check
      _
    $region31: #{tpu_custom_call.1} parent=1 // pred_check_branch
      %32 = sbr.rel (0) target = $region33
    $region32: #{tpu_custom_call.1} parent=1 // pred_region
      _
    $region33: #{tpu_custom_call.1} parent=1 // pred_fallthru
      _
    // Predicated region
    $region34: #{tpu_custom_call.1} parent=1 // pred_check
      _
    $region35: #{tpu_custom_call.1} parent=1 // pred_check_branch
      %34 = sbr.rel (0) target = $region37
    $region36: #{tpu_custom_call.1} parent=1 // pred_region
      _
    $region37: #{tpu_custom_call.1} parent=1 // pred_fallthru
      _
    %v35 = vld [vmem:[%s0] sm:$0xff]
    %v36 = vld [vmem:[%s0 + $0x8] sm:$0xff]
    %v37 = vld [vmem:[%s0 + $0x10] sm:$0xff]
    %v38 = vld [vmem:[%s0 + $0x18] sm:$0xff]
    %39 = vrot.lane.b32.xlu0 %v35, 17
    %v40 = vpop.permute.xlu0 %39
    %41 = vrot.lane.b32.xlu0 %v37, 17
    %v42 = vpop.permute.xlu0 %41
    %43 = vrot.lane.b32.xlu0 %v36, 17
    %v44 = vpop.permute.xlu0 %43
    %45 = vrot.lane.b32.xlu0 %v38, 17
    %v46 = vpop.permute.xlu0 %45
    %v47 = vlaneseq
    %v48 = vand.u32 %v47, 127
    %vm49 = vcmp.lt.s32.totalorder %v48, 17
    %v50 = vsel %vm49, %v40, %v44
    %v51 = vsel %vm49, %v42, %v46
    %v52 = vsel %vm49, %v44, %v40
    %v53 = vsel %vm49, %v46, %v42
    %v54 = vld [vmem:[%s7] sm:$0x3]
    %v56 = vlaneseq
    %v57 = vshrl.u32 %v56, 7
    %v58 = vsub.s32 0, %v57
    %v59 = vrot.slane %v54, %v58
    %v60 = vlaneseq
    %v61 = vshrl.u32 %v60, 7
    %v62 = vsub.s32 1, %v61
    %v63 = vrot.slane %v54, %v62
    %v66 = vmul.f32 %v52, %v59
    %v67 = vmul.f32 %v50, %v63
    %v68 = vmul.f32 %v53, %v59
    %v69 = vmul.f32 %v51, %v63
    %70 = vst [vmem:[#allocation2] sm:$0xff] %v66
    %71 = vst [vmem:[#allocation2 + $0x8] sm:$0xff] %v67
    %72 = vst [vmem:[#allocation2 + $0x20] sm:$0xff] %v68
    %73 = vst [vmem:[#allocation2 + $0x28] sm:$0xff] %v69
    %74 = vrot.lane.b32.xlu0 %v35, 16
    %v75 = vpop.permute.xlu0 %74
    %76 = vrot.lane.b32.xlu0 %v37, 16
    %v77 = vpop.permute.xlu0 %76
    %78 = vrot.lane.b32.xlu0 %v36, 16
    %v79 = vpop.permute.xlu0 %78
    %80 = vrot.lane.b32.xlu0 %v38, 16
    %v81 = vpop.permute.xlu0 %80
    %vm82 = vcmp.lt.s32.totalorder %v48, 16
    %v83 = vsel %vm82, %v75, %v79
    %v84 = vsel %vm82, %v77, %v81
    %v85 = vsel %vm82, %v79, %v75
    %v86 = vsel %vm82, %v81, %v77
    %s87 = scalar_lea.vmem %s7, 2
    %v88 = vld [vmem:[%s87] sm:$0x3]
    %v90 = vlaneseq
    %v91 = vshrl.u32 %v90, 7
    %v92 = vsub.s32 0, %v91
    %v93 = vrot.slane %v88, %v92
    %v94 = vlaneseq
    %v95 = vshrl.u32 %v94, 7
    %v96 = vsub.s32 1, %v95
    %v97 = vrot.slane %v88, %v96
    %v100 = vmul.f32 %v85, %v93
    %v101 = vmul.f32 %v83, %v97
    %v102 = vmul.f32 %v86, %v93
    %v103 = vmul.f32 %v84, %v97
    %104 = vst [vmem:[#allocation2 + $0x40] sm:$0xff] %v100
    %105 = vst [vmem:[#allocation2 + $0x48] sm:$0xff] %v101
    %106 = vst [vmem:[#allocation2 + $0x60] sm:$0xff] %v102
    %107 = vst [vmem:[#allocation2 + $0x68] sm:$0xff] %v103
    %108 = vrot.lane.b32.xlu0 %v35, 15
    %v109 = vpop.permute.xlu0 %108
    %110 = vrot.lane.b32.xlu0 %v37, 15
    %v111 = vpop.permute.xlu0 %110
    %112 = vrot.lane.b32.xlu0 %v36, 15
    %v113 = vpop.permute.xlu0 %112
    %114 = vrot.lane.b32.xlu0 %v38, 15
    %v115 = vpop.permute.xlu0 %114
    %vm116 = vcmp.lt.s32.totalorder %v48, 15
    %v117 = vsel %vm116, %v109, %v113
    %v118 = vsel %vm116, %v111, %v115
    %v119 = vsel %vm116, %v113, %v109
    %v120 = vsel %vm116, %v115, %v111
    %s121 = scalar_lea.vmem %s7, 4
    %v122 = vld [vmem:[%s121] sm:$0x3]
    %v124 = vlaneseq
    %v125 = vshrl.u32 %v124, 7
    %v126 = vsub.s32 0, %v125
    %v127 = vrot.slane %v122, %v126
    %v128 = vlaneseq
    %v129 = vshrl.u32 %v128, 7
    %v130 = vsub.s32 1, %v129
    %v131 = vrot.slane %v122, %v130
    %v134 = vmul.f32 %v119, %v127
    %v135 = vmul.f32 %v117, %v131
    %v136 = vmul.f32 %v120, %v127
    %v137 = vmul.f32 %v118, %v131
    %138 = vst [vmem:[#allocation2 + $0x80] sm:$0xff] %v134
    %139 = vst [vmem:[#allocation2 + $0x88] sm:$0xff] %v135
    %140 = vst [vmem:[#allocation2 + $0xa0] sm:$0xff] %v136
    %141 = vst [vmem:[#allocation2 + $0xa8] sm:$0xff] %v137
    %142 = vrot.lane.b32.xlu0 %v35, 1
    %v143 = vpop.permute.xlu0 %142
    %144 = vrot.lane.b32.xlu0 %v37, 1
    %v145 = vpop.permute.xlu0 %144
    %146 = vrot.lane.b32.xlu0 %v36, 1
    %v147 = vpop.permute.xlu0 %146
    %148 = vrot.lane.b32.xlu0 %v38, 1
    %v149 = vpop.permute.xlu0 %148
    %vm150 = vcmp.lt.s32.totalorder %v48, 1
    %v151 = vsel %vm150, %v143, %v147
    %v152 = vsel %vm150, %v145, %v149
    %v153 = vsel %vm150, %v147, %v143
    %v154 = vsel %vm150, %v149, %v145
    %s155 = scalar_lea.vmem %s7, 6
    %v156 = vld [vmem:[%s155] sm:$0x3]
    %v158 = vlaneseq
    %v159 = vshrl.u32 %v158, 7
    %v160 = vsub.s32 0, %v159
    %v161 = vrot.slane %v156, %v160
    %v162 = vlaneseq
    %v163 = vshrl.u32 %v162, 7
    %v164 = vsub.s32 1, %v163
    %v165 = vrot.slane %v156, %v164
    %v168 = vmul.f32 %v153, %v161
    %v169 = vmul.f32 %v151, %v165
    %v170 = vmul.f32 %v154, %v161
    %v171 = vmul.f32 %v152, %v165
    %172 = vst [vmem:[#allocation2 + $0xc0] sm:$0xff] %v168
    %173 = vst [vmem:[#allocation2 + $0xc8] sm:$0xff] %v169
    %174 = vst [vmem:[#allocation2 + $0xe0] sm:$0xff] %v170
    %175 = vst [vmem:[#allocation2 + $0xe8] sm:$0xff] %v171
    %176 = vst [vmem:[#allocation2 + $0x100] sm:$0xff] %v35
    %177 = vst [vmem:[#allocation2 + $0x108] sm:$0xff] %v36
    %178 = vst [vmem:[#allocation2 + $0x120] sm:$0xff] %v37
    %179 = vst [vmem:[#allocation2 + $0x128] sm:$0xff] %v38
    %180 = vrot.lane.b32.xlu0 %v35, 127
    %v181 = vpop.permute.xlu0 %180
    %182 = vrot.lane.b32.xlu0 %v37, 127
    %v183 = vpop.permute.xlu0 %182
    %184 = vrot.lane.b32.xlu0 %v36, 127
    %v185 = vpop.permute.xlu0 %184
    %186 = vrot.lane.b32.xlu0 %v38, 127
    %v187 = vpop.permute.xlu0 %186
    %vm188 = vcmp.lt.s32.totalorder %v48, 127
    %v189 = vsel %vm188, %v181, %v185
    %v190 = vsel %vm188, %v183, %v187
    %v191 = vsel %vm188, %v185, %v181
    %v192 = vsel %vm188, %v187, %v183
    %s193 = scalar_lea.vmem %s7, 10
    %v194 = vld [vmem:[%s193] sm:$0x3]
    %v196 = vlaneseq
    %v197 = vshrl.u32 %v196, 7
    %v198 = vsub.s32 0, %v197
    %v199 = vrot.slane %v194, %v198
    %v200 = vlaneseq
    %v201 = vshrl.u32 %v200, 7
    %v202 = vsub.s32 1, %v201
    %v203 = vrot.slane %v194, %v202
    %v206 = vmul.f32 %v189, %v199
    %v207 = vmul.f32 %v191, %v203
    %v208 = vmul.f32 %v190, %v199
    %v209 = vmul.f32 %v192, %v203
    %210 = vst [vmem:[#allocation2 + $0x140] sm:$0xff] %v206
    %211 = vst [vmem:[#allocation2 + $0x148] sm:$0xff] %v207
    %212 = vst [vmem:[#allocation2 + $0x160] sm:$0xff] %v208
    %213 = vst [vmem:[#allocation2 + $0x168] sm:$0xff] %v209
    %214 = vrot.lane.b32.xlu0 %v35, 113
    %v215 = vpop.permute.xlu0 %214
    %216 = vrot.lane.b32.xlu0 %v37, 113
    %v217 = vpop.permute.xlu0 %216
    %218 = vrot.lane.b32.xlu0 %v36, 113
    %v219 = vpop.permute.xlu0 %218
    %220 = vrot.lane.b32.xlu0 %v38, 113
    %v221 = vpop.permute.xlu0 %220
    %vm222 = vcmp.lt.s32.totalorder %v48, 113
    %v223 = vsel %vm222, %v215, %v219
    %v224 = vsel %vm222, %v217, %v221
    %v225 = vsel %vm222, %v219, %v215
    %v226 = vsel %vm222, %v221, %v217
    %s227 = scalar_lea.vmem %s7, 12
    %v228 = vld [vmem:[%s227] sm:$0x3]
    %v230 = vlaneseq
    %v231 = vshrl.u32 %v230, 7
    %v232 = vsub.s32 0, %v231
    %v233 = vrot.slane %v228, %v232
    %v234 = vlaneseq
    %v235 = vshrl.u32 %v234, 7
    %v236 = vsub.s32 1, %v235
    %v237 = vrot.slane %v228, %v236
    %v240 = vmul.f32 %v223, %v233
    %v241 = vmul.f32 %v225, %v237
    %v242 = vmul.f32 %v224, %v233
    %v243 = vmul.f32 %v226, %v237
    %244 = vst [vmem:[#allocation2 + $0x180] sm:$0xff] %v240
    %245 = vst [vmem:[#allocation2 + $0x188] sm:$0xff] %v241
    %246 = vst [vmem:[#allocation2 + $0x1a0] sm:$0xff] %v242
    %247 = vst [vmem:[#allocation2 + $0x1a8] sm:$0xff] %v243
    %248 = vrot.lane.b32.xlu0 %v35, 112
    %v249 = vpop.permute.xlu0 %248
    %250 = vrot.lane.b32.xlu0 %v37, 112
    %v251 = vpop.permute.xlu0 %250
    %252 = vrot.lane.b32.xlu0 %v36, 112
    %v253 = vpop.permute.xlu0 %252
    %254 = vrot.lane.b32.xlu0 %v38, 112
    %v255 = vpop.permute.xlu0 %254
    %vm256 = vcmp.lt.s32.totalorder %v48, 112
    %v257 = vsel %vm256, %v249, %v253
    %v258 = vsel %vm256, %v251, %v255
    %v259 = vsel %vm256, %v253, %v249
    %v260 = vsel %vm256, %v255, %v251
    %s261 = scalar_lea.vmem %s7, 14
    %v262 = vld [vmem:[%s261] sm:$0x3]
    %v264 = vlaneseq
    %v265 = vshrl.u32 %v264, 7
    %v266 = vsub.s32 0, %v265
    %v267 = vrot.slane %v262, %v266
    %v268 = vlaneseq
    %v269 = vshrl.u32 %v268, 7
    %v270 = vsub.s32 1, %v269
    %v271 = vrot.slane %v262, %v270
    %v274 = vmul.f32 %v257, %v267
    %v275 = vmul.f32 %v259, %v271
    %v276 = vmul.f32 %v258, %v267
    %v277 = vmul.f32 %v260, %v271
    %278 = vst [vmem:[#allocation2 + $0x1c0] sm:$0xff] %v274
    %279 = vst [vmem:[#allocation2 + $0x1c8] sm:$0xff] %v275
    %280 = vst [vmem:[#allocation2 + $0x1e0] sm:$0xff] %v276
    %281 = vst [vmem:[#allocation2 + $0x1e8] sm:$0xff] %v277
    %282 = vrot.lane.b32.xlu0 %v35, 111
    %v283 = vpop.permute.xlu0 %282
    %284 = vrot.lane.b32.xlu0 %v37, 111
    %v285 = vpop.permute.xlu0 %284
    %286 = vrot.lane.b32.xlu0 %v36, 111
    %v287 = vpop.permute.xlu0 %286
    %288 = vrot.lane.b32.xlu0 %v38, 111
    %v289 = vpop.permute.xlu0 %288
    %vm290 = vcmp.lt.s32.totalorder %v48, 111
    %v291 = vsel %vm290, %v283, %v287
    %v292 = vsel %vm290, %v285, %v289
    %v293 = vsel %vm290, %v287, %v283
    %v294 = vsel %vm290, %v289, %v285
    %s295 = scalar_lea.vmem %s7, 16
    %v296 = vld [vmem:[%s295] sm:$0x3]
    %v298 = vlaneseq
    %v299 = vshrl.u32 %v298, 7
    %v300 = vsub.s32 0, %v299
    %v301 = vrot.slane %v296, %v300
    %v302 = vlaneseq
    %v303 = vshrl.u32 %v302, 7
    %v304 = vsub.s32 1, %v303
    %v305 = vrot.slane %v296, %v304
    %v308 = vmul.f32 %v291, %v301
    %v309 = vmul.f32 %v293, %v305
    %v310 = vmul.f32 %v292, %v301
    %v311 = vmul.f32 %v294, %v305
    %312 = vst [vmem:[#allocation2 + $0x200] sm:$0xff] %v308
    %313 = vst [vmem:[#allocation2 + $0x208] sm:$0xff] %v309
    %314 = vst [vmem:[#allocation2 + $0x220] sm:$0xff] %v310
    %315 = vst [vmem:[#allocation2 + $0x228] sm:$0xff] %v311
    %s316 = scalar_lea.vmem %s0, 96
    %v317 = vld [vmem:[%s316] sm:$0xff]
    %v318 = vld [vmem:[%s316 + $0x8] sm:$0xff]
    %v319 = vld [vmem:[%s316 + $0x10] sm:$0xff]
    %v320 = vld [vmem:[%s316 + $0x18] sm:$0xff]
    %321 = vrot.lane.b32.xlu0 %v317, 17
    %v322 = vpop.permute.xlu0 %321
    %323 = vrot.lane.b32.xlu0 %v319, 17
    %v324 = vpop.permute.xlu0 %323
    %325 = vrot.lane.b32.xlu0 %v318, 17
    %v326 = vpop.permute.xlu0 %325
    %327 = vrot.lane.b32.xlu0 %v320, 17
    %v328 = vpop.permute.xlu0 %327
    %v329 = vsel %vm49, %v322, %v326
    %v330 = vsel %vm49, %v324, %v328
    %v331 = vsel %vm49, %v326, %v322
    %v332 = vsel %vm49, %v328, %v324
    %v333 = vld [vmem:[%s7] sm:$0x3]
    %v335 = vlaneseq
    %v336 = vshrl.u32 %v335, 7
    %v337 = vsub.s32 0, %v336
    %v338 = vrot.slane %v333, %v337
    %v339 = vlaneseq
    %v340 = vshrl.u32 %v339, 7
    %v341 = vsub.s32 1, %v340
    %v342 = vrot.slane %v333, %v341
    %v345 = vmul.f32 %v331, %v338
    %v346 = vmul.f32 %v329, %v342
    %v347 = vmul.f32 %v332, %v338
    %v348 = vmul.f32 %v330, %v342
    %349 = vst [vmem:[#allocation2 + $0x10] sm:$0xff] %v345
    %350 = vst [vmem:[#allocation2 + $0x18] sm:$0xff] %v346
    %351 = vst [vmem:[#allocation2 + $0x30] sm:$0xff] %v347
    %352 = vst [vmem:[#allocation2 + $0x38] sm:$0xff] %v348
    %353 = vrot.lane.b32.xlu0 %v317, 16
    %v354 = vpop.permute.xlu0 %353
    %355 = vrot.lane.b32.xlu0 %v319, 16
    %v356 = vpop.permute.xlu0 %355
    %357 = vrot.lane.b32.xlu0 %v318, 16
    %v358 = vpop.permute.xlu0 %357
    %359 = vrot.lane.b32.xlu0 %v320, 16
    %v360 = vpop.permute.xlu0 %359
    %v361 = vsel %vm82, %v354, %v358
    %v362 = vsel %vm82, %v356, %v360
    %v363 = vsel %vm82, %v358, %v354
    %v364 = vsel %vm82, %v360, %v356
    %v365 = vld [vmem:[%s87] sm:$0x3]
    %v367 = vlaneseq
    %v368 = vshrl.u32 %v367, 7
    %v369 = vsub.s32 0, %v368
    %v370 = vrot.slane %v365, %v369
    %v371 = vlaneseq
    %v372 = vshrl.u32 %v371, 7
    %v373 = vsub.s32 1, %v372
    %v374 = vrot.slane %v365, %v373
    %v377 = vmul.f32 %v363, %v370
    %v378 = vmul.f32 %v361, %v374
    %v379 = vmul.f32 %v364, %v370
    %v380 = vmul.f32 %v362, %v374
    %381 = vst [vmem:[#allocation2 + $0x50] sm:$0xff] %v377
    %382 = vst [vmem:[#allocation2 + $0x58] sm:$0xff] %v378
    %383 = vst [vmem:[#allocation2 + $0x70] sm:$0xff] %v379
    %384 = vst [vmem:[#allocation2 + $0x78] sm:$0xff] %v380
    %385 = vrot.lane.b32.xlu0 %v317, 15
    %v386 = vpop.permute.xlu0 %385
    %387 = vrot.lane.b32.xlu0 %v319, 15
    %v388 = vpop.permute.xlu0 %387
    %389 = vrot.lane.b32.xlu0 %v318, 15
    %v390 = vpop.permute.xlu0 %389
    %391 = vrot.lane.b32.xlu0 %v320, 15
    %v392 = vpop.permute.xlu0 %391
    %v393 = vsel %vm116, %v386, %v390
    %v394 = vsel %vm116, %v388, %v392
    %v395 = vsel %vm116, %v390, %v386
    %v396 = vsel %vm116, %v392, %v388
    %v397 = vld [vmem:[%s121] sm:$0x3]
    %v399 = vlaneseq
    %v400 = vshrl.u32 %v399, 7
    %v401 = vsub.s32 0, %v400
    %v402 = vrot.slane %v397, %v401
    %v403 = vlaneseq
    %v404 = vshrl.u32 %v403, 7
    %v405 = vsub.s32 1, %v404
    %v406 = vrot.slane %v397, %v405
    %v409 = vmul.f32 %v395, %v402
    %v410 = vmul.f32 %v393, %v406
    %v411 = vmul.f32 %v396, %v402
    %v412 = vmul.f32 %v394, %v406
    %413 = vst [vmem:[#allocation2 + $0x90] sm:$0xff] %v409
    %414 = vst [vmem:[#allocation2 + $0x98] sm:$0xff] %v410
    %415 = vst [vmem:[#allocation2 + $0xb0] sm:$0xff] %v411
    %416 = vst [vmem:[#allocation2 + $0xb8] sm:$0xff] %v412
    %417 = vrot.lane.b32.xlu0 %v317, 1
    %v418 = vpop.permute.xlu0 %417
    %419 = vrot.lane.b32.xlu0 %v319, 1
    %v420 = vpop.permute.xlu0 %419
    %421 = vrot.lane.b32.xlu0 %v318, 1
    %v422 = vpop.permute.xlu0 %421
    %423 = vrot.lane.b32.xlu0 %v320, 1
    %v424 = vpop.permute.xlu0 %423
    %v425 = vsel %vm150, %v418, %v422
    %v426 = vsel %vm150, %v420, %v424
    %v427 = vsel %vm150, %v422, %v418
    %v428 = vsel %vm150, %v424, %v420
    %v429 = vld [vmem:[%s155] sm:$0x3]
    %v431 = vlaneseq
    %v432 = vshrl.u32 %v431, 7
    %v433 = vsub.s32 0, %v432
    %v434 = vrot.slane %v429, %v433
    %v435 = vlaneseq
    %v436 = vshrl.u32 %v435, 7
    %v437 = vsub.s32 1, %v436
    %v438 = vrot.slane %v429, %v437
    %v441 = vmul.f32 %v427, %v434
    %v442 = vmul.f32 %v425, %v438
    %v443 = vmul.f32 %v428, %v434
    %v444 = vmul.f32 %v426, %v438
    %445 = vst [vmem:[#allocation2 + $0xd0] sm:$0xff] %v441
    %446 = vst [vmem:[#allocation2 + $0xd8] sm:$0xff] %v442
    %447 = vst [vmem:[#allocation2 + $0xf0] sm:$0xff] %v443
    %448 = vst [vmem:[#allocation2 + $0xf8] sm:$0xff] %v444
    %449 = vst [vmem:[#allocation2 + $0x110] sm:$0xff] %v317
    %450 = vst [vmem:[#allocation2 + $0x118] sm:$0xff] %v318
    %451 = vst [vmem:[#allocation2 + $0x130] sm:$0xff] %v319
    %452 = vst [vmem:[#allocation2 + $0x138] sm:$0xff] %v320
    %453 = vrot.lane.b32.xlu0 %v317, 127
    %v454 = vpop.permute.xlu0 %453
    %455 = vrot.lane.b32.xlu0 %v319, 127
    %v456 = vpop.permute.xlu0 %455
    %457 = vrot.lane.b32.xlu0 %v318, 127
    %v458 = vpop.permute.xlu0 %457
    %459 = vrot.lane.b32.xlu0 %v320, 127
    %v460 = vpop.permute.xlu0 %459
    %v461 = vsel %vm188, %v454, %v458
    %v462 = vsel %vm188, %v456, %v460
    %v463 = vsel %vm188, %v458, %v454
    %v464 = vsel %vm188, %v460, %v456
    %v465 = vld [vmem:[%s193] sm:$0x3]
    %v467 = vlaneseq
    %v468 = vshrl.u32 %v467, 7
    %v469 = vsub.s32 0, %v468
    %v470 = vrot.slane %v465, %v469
    %v471 = vlaneseq
    %v472 = vshrl.u32 %v471, 7
    %v473 = vsub.s32 1, %v472
    %v474 = vrot.slane %v465, %v473
    %v477 = vmul.f32 %v461, %v470
    %v478 = vmul.f32 %v463, %v474
    %v479 = vmul.f32 %v462, %v470
    %v480 = vmul.f32 %v464, %v474
    %481 = vst [vmem:[#allocation2 + $0x150] sm:$0xff] %v477
    %482 = vst [vmem:[#allocation2 + $0x158] sm:$0xff] %v478
    %483 = vst [vmem:[#allocation2 + $0x170] sm:$0xff] %v479
    %484 = vst [vmem:[#allocation2 + $0x178] sm:$0xff] %v480
    %485 = vrot.lane.b32.xlu0 %v317, 113
    %v486 = vpop.permute.xlu0 %485
    %487 = vrot.lane.b32.xlu0 %v319, 113
    %v488 = vpop.permute.xlu0 %487
    %489 = vrot.lane.b32.xlu0 %v318, 113
    %v490 = vpop.permute.xlu0 %489
    %491 = vrot.lane.b32.xlu0 %v320, 113
    %v492 = vpop.permute.xlu0 %491
    %v493 = vsel %vm222, %v486, %v490
    %v494 = vsel %vm222, %v488, %v492
    %v495 = vsel %vm222, %v490, %v486
    %v496 = vsel %vm222, %v492, %v488
    %v497 = vld [vmem:[%s227] sm:$0x3]
    %v499 = vlaneseq
    %v500 = vshrl.u32 %v499, 7
    %v501 = vsub.s32 0, %v500
    %v502 = vrot.slane %v497, %v501
    %v503 = vlaneseq
    %v504 = vshrl.u32 %v503, 7
    %v505 = vsub.s32 1, %v504
    %v506 = vrot.slane %v497, %v505
    %v509 = vmul.f32 %v493, %v502
    %v510 = vmul.f32 %v495, %v506
    %v511 = vmul.f32 %v494, %v502
    %v512 = vmul.f32 %v496, %v506
    %513 = vst [vmem:[#allocation2 + $0x190] sm:$0xff] %v509
    %514 = vst [vmem:[#allocation2 + $0x198] sm:$0xff] %v510
    %515 = vst [vmem:[#allocation2 + $0x1b0] sm:$0xff] %v511
    %516 = vst [vmem:[#allocation2 + $0x1b8] sm:$0xff] %v512
    %517 = vrot.lane.b32.xlu0 %v317, 112
    %v518 = vpop.permute.xlu0 %517
    %519 = vrot.lane.b32.xlu0 %v319, 112
    %v520 = vpop.permute.xlu0 %519
    %521 = vrot.lane.b32.xlu0 %v318, 112
    %v522 = vpop.permute.xlu0 %521
    %523 = vrot.lane.b32.xlu0 %v320, 112
    %v524 = vpop.permute.xlu0 %523
    %v525 = vsel %vm256, %v518, %v522
    %v526 = vsel %vm256, %v520, %v524
    %v527 = vsel %vm256, %v522, %v518
    %v528 = vsel %vm256, %v524, %v520
    %v529 = vld [vmem:[%s261] sm:$0x3]
    %v531 = vlaneseq
    %v532 = vshrl.u32 %v531, 7
    %v533 = vsub.s32 0, %v532
    %v534 = vrot.slane %v529, %v533
    %v535 = vlaneseq
    %v536 = vshrl.u32 %v535, 7
    %v537 = vsub.s32 1, %v536
    %v538 = vrot.slane %v529, %v537
    %v541 = vmul.f32 %v525, %v534
    %v542 = vmul.f32 %v527, %v538
    %v543 = vmul.f32 %v526, %v534
    %v544 = vmul.f32 %v528, %v538
    %545 = vst [vmem:[#allocation2 + $0x1d0] sm:$0xff] %v541
    %546 = vst [vmem:[#allocation2 + $0x1d8] sm:$0xff] %v542
    %547 = vst [vmem:[#allocation2 + $0x1f0] sm:$0xff] %v543
    %548 = vst [vmem:[#allocation2 + $0x1f8] sm:$0xff] %v544
    %549 = vrot.lane.b32.xlu0 %v317, 111
    %v550 = vpop.permute.xlu0 %549
    %551 = vrot.lane.b32.xlu0 %v319, 111
    %v552 = vpop.permute.xlu0 %551
    %553 = vrot.lane.b32.xlu0 %v318, 111
    %v554 = vpop.permute.xlu0 %553
    %555 = vrot.lane.b32.xlu0 %v320, 111
    %v556 = vpop.permute.xlu0 %555
    %v557 = vsel %vm290, %v550, %v554
    %v558 = vsel %vm290, %v552, %v556
    %v559 = vsel %vm290, %v554, %v550
    %v560 = vsel %vm290, %v556, %v552
    %v561 = vld [vmem:[%s295] sm:$0x3]
    %v563 = vlaneseq
    %v564 = vshrl.u32 %v563, 7
    %v565 = vsub.s32 0, %v564
    %v566 = vrot.slane %v561, %v565
    %v567 = vlaneseq
    %v568 = vshrl.u32 %v567, 7
    %v569 = vsub.s32 1, %v568
    %v570 = vrot.slane %v561, %v569
    %v573 = vmul.f32 %v557, %v566
    %v574 = vmul.f32 %v559, %v570
    %v575 = vmul.f32 %v558, %v566
    %v576 = vmul.f32 %v560, %v570
    %577 = vst [vmem:[#allocation2 + $0x210] sm:$0xff] %v573
    %578 = vst [vmem:[#allocation2 + $0x218] sm:$0xff] %v574
    %579 = vst [vmem:[#allocation2 + $0x230] sm:$0xff] %v575
    %580 = vst [vmem:[#allocation2 + $0x238] sm:$0xff] %v576
    %v581 = vld [vmem:[%s1] sm:$0xff]
    %v582 = vld [vmem:[%s1 + $0x8] sm:$0xff]
    %v583 = vld [vmem:[%s1 + $0x10] sm:$0xff]
    %v584 = vld [vmem:[%s1 + $0x18] sm:$0xff]
    %v585 = vld [vmem:[#allocation2] sm:$0xff]
    %v586 = vld [vmem:[#allocation2 + $0x8] sm:$0xff]
    %v587 = vld [vmem:[#allocation2 + $0x10] sm:$0xff]
    %v588 = vld [vmem:[#allocation2 + $0x18] sm:$0xff]
    %v589 = vld [vmem:[#allocation2 + $0x20] sm:$0xff]
    %v590 = vld [vmem:[#allocation2 + $0x28] sm:$0xff]
    %v591 = vld [vmem:[#allocation2 + $0x30] sm:$0xff]
    %v592 = vld [vmem:[#allocation2 + $0x38] sm:$0xff]
    %v593 = vld [vmem:[#allocation2 + $0x40] sm:$0xff]
    %v594 = vld [vmem:[#allocation2 + $0x48] sm:$0xff]
    %v595 = vld [vmem:[#allocation2 + $0x50] sm:$0xff]
    %v596 = vld [vmem:[#allocation2 + $0x58] sm:$0xff]
    %v597 = vld [vmem:[#allocation2 + $0x60] sm:$0xff]
    %v598 = vld [vmem:[#allocation2 + $0x68] sm:$0xff]
    %v599 = vld [vmem:[#allocation2 + $0x70] sm:$0xff]
    %v600 = vld [vmem:[#allocation2 + $0x78] sm:$0xff]
    %v601 = vld [vmem:[#allocation2 + $0x80] sm:$0xff]
    %v602 = vld [vmem:[#allocation2 + $0x88] sm:$0xff]
    %v603 = vld [vmem:[#allocation2 + $0x90] sm:$0xff]
    %v604 = vld [vmem:[#allocation2 + $0x98] sm:$0xff]
    %v605 = vld [vmem:[#allocation2 + $0xa0] sm:$0xff]
    %v606 = vld [vmem:[#allocation2 + $0xa8] sm:$0xff]
    %v607 = vld [vmem:[#allocation2 + $0xb0] sm:$0xff]
    %v608 = vld [vmem:[#allocation2 + $0xb8] sm:$0xff]
    %v609 = vld [vmem:[#allocation2 + $0xc0] sm:$0xff]
    %v610 = vld [vmem:[#allocation2 + $0xc8] sm:$0xff]
    %v611 = vld [vmem:[#allocation2 + $0xd0] sm:$0xff]
    %v612 = vld [vmem:[#allocation2 + $0xd8] sm:$0xff]
    %v613 = vld [vmem:[#allocation2 + $0xe0] sm:$0xff]
    %v614 = vld [vmem:[#allocation2 + $0xe8] sm:$0xff]
    %v615 = vld [vmem:[#allocation2 + $0xf0] sm:$0xff]
    %v616 = vld [vmem:[#allocation2 + $0xf8] sm:$0xff]
    %v617 = vld [vmem:[#allocation2 + $0x100] sm:$0xff]
    %v618 = vld [vmem:[#allocation2 + $0x108] sm:$0xff]
    %v619 = vld [vmem:[#allocation2 + $0x110] sm:$0xff]
    %v620 = vld [vmem:[#allocation2 + $0x118] sm:$0xff]
    %v621 = vld [vmem:[#allocation2 + $0x120] sm:$0xff]
    %v622 = vld [vmem:[#allocation2 + $0x128] sm:$0xff]
    %v623 = vld [vmem:[#allocation2 + $0x130] sm:$0xff]
    %v624 = vld [vmem:[#allocation2 + $0x138] sm:$0xff]
    %v625 = vld [vmem:[#allocation2 + $0x140] sm:$0xff]
    %v626 = vld [vmem:[#allocation2 + $0x148] sm:$0xff]
    %v627 = vld [vmem:[#allocation2 + $0x150] sm:$0xff]
    %v628 = vld [vmem:[#allocation2 + $0x158] sm:$0xff]
    %v629 = vld [vmem:[#allocation2 + $0x160] sm:$0xff]
    %v630 = vld [vmem:[#allocation2 + $0x168] sm:$0xff]
    %v631 = vld [vmem:[#allocation2 + $0x170] sm:$0xff]
    %v632 = vld [vmem:[#allocation2 + $0x178] sm:$0xff]
    %v633 = vld [vmem:[#allocation2 + $0x180] sm:$0xff]
    %v634 = vld [vmem:[#allocation2 + $0x188] sm:$0xff]
    %v635 = vld [vmem:[#allocation2 + $0x190] sm:$0xff]
    %v636 = vld [vmem:[#allocation2 + $0x198] sm:$0xff]
    %v637 = vld [vmem:[#allocation2 + $0x1a0] sm:$0xff]
    %v638 = vld [vmem:[#allocation2 + $0x1a8] sm:$0xff]
    %v639 = vld [vmem:[#allocation2 + $0x1b0] sm:$0xff]
    %v640 = vld [vmem:[#allocation2 + $0x1b8] sm:$0xff]
    %v641 = vld [vmem:[#allocation2 + $0x1c0] sm:$0xff]
    %v642 = vld [vmem:[#allocation2 + $0x1c8] sm:$0xff]
    %v643 = vld [vmem:[#allocation2 + $0x1d0] sm:$0xff]
    %v644 = vld [vmem:[#allocation2 + $0x1d8] sm:$0xff]
    %v645 = vld [vmem:[#allocation2 + $0x1e0] sm:$0xff]
    %v646 = vld [vmem:[#allocation2 + $0x1e8] sm:$0xff]
    %v647 = vld [vmem:[#allocation2 + $0x1f0] sm:$0xff]
    %v648 = vld [vmem:[#allocation2 + $0x1f8] sm:$0xff]
    %v649 = vld [vmem:[#allocation2 + $0x200] sm:$0xff]
    %v650 = vld [vmem:[#allocation2 + $0x208] sm:$0xff]
    %v651 = vld [vmem:[#allocation2 + $0x210] sm:$0xff]
    %v652 = vld [vmem:[#allocation2 + $0x218] sm:$0xff]
    %v653 = vld [vmem:[#allocation2 + $0x220] sm:$0xff]
    %v654 = vld [vmem:[#allocation2 + $0x228] sm:$0xff]
    %v655 = vld [vmem:[#allocation2 + $0x230] sm:$0xff]
    %v656 = vld [vmem:[#allocation2 + $0x238] sm:$0xff]
    %v657 = vld [vmem:[%s2] sm:$0xff]
    %v658 = vld [vmem:[%s2 + $0x8] sm:$0xff]
    %660 = vset.pattern.permute.xlu0 0
    %661 = vperm.xlu0 %660, %v657
    %v662 = vpop.permute.xlu0 %661
    %665 = vset.pattern.permute.xlu0 0
    %666 = vperm.xlu0 %665, %v658
    %v667 = vpop.permute.xlu0 %666
    %vm669 = vcmask 130048
    %v671 = vsel %vm669, %v582, 0
    %v674 = vsel %vm669, %v584, 0
    %676 = vmatprep.subr.mxu0 %v586
    %677 = vmatpush1.msra.mxu0 %v585
    %678 = vmatprep.subr.mxu0 %v590
    %679 = vmatpush1.msra.mxu0 %v589
    %680 = vmatprep.subr.mxu0 %v594
    %681 = vmatpush1.msra.mxu0 %v593
    %682 = vmatprep.subr.mxu0 %v598
    %683 = vmatpush1.msra.mxu0 %v597
    %684 = vmatprep.subr.mxu0 %v602
    %685 = vmatpush1.msra.mxu0 %v601
    %686 = vmatprep.subr.mxu0 %v606
    %687 = vmatpush1.msra.mxu0 %v605
    %688 = vmatprep.subr.mxu0 %v610
    %689 = vmatpush1.msra.mxu0 %v609
    %690 = vmatprep.subr.mxu0 %v614
    %691 = vmatpush1.msra.mxu0 %v613
    %692 = vmatprep.subr.mxu0 %v618
    %693 = vmatpush1.msra.mxu0 %v617
    %694 = vmatprep.subr.mxu0 %v622
    %695 = vmatpush1.msra.mxu0 %v621
    %696 = vmatprep.subr.mxu0 %v626
    %697 = vmatpush1.msra.mxu0 %v625
    %698 = vmatprep.subr.mxu0 %v630
    %699 = vmatpush1.msra.mxu0 %v629
    %700 = vmatprep.subr.mxu0 %v634
    %701 = vmatpush1.msra.mxu0 %v633
    %702 = vmatprep.subr.mxu0 %v638
    %703 = vmatpush1.msra.mxu0 %v637
    %704 = vmatprep.subr.mxu0 %v642
    %705 = vmatpush1.msra.mxu0 %v641
    %706 = vmatprep.subr.mxu0 %v646
    %707 = vmatpush1.msra.mxu0 %v645
    %708 = vmatprep.subr.mxu0 %v650
    %709 = vmatpush1.msra.mxu0 %v649
    %710 = vmatprep.subr.mxu0 %v654
    %711 = vmatpush1.msra.mxu0 %v653
    %712 = vmatprep.subr.mxu0 0.0
    %713 = vmatpush1.msra.mxu0 0.0
    %714 = vmatprep.subr.mxu0 0.0
    %715 = vmatpush1.msra.mxu0 0.0
    %716 = vmatprep.subr.mxu0 0.0
    %717 = vmatpush1.msra.mxu0 0.0
    %718 = vmatprep.subr.mxu0 0.0
    %719 = vmatpush1.msra.mxu0 0.0
    %720 = vmatprep.subr.mxu0 0.0
    %721 = vmatpush1.msra.mxu0 0.0
    %722 = vmatprep.subr.mxu0 0.0
    %723 = vmatpush1.msra.mxu0 0.0
    %724 = vmatprep.subr.mxu0 0.0
    %725 = vmatpush1.msra.mxu0 0.0
    %726 = vmatprep.subr.mxu0 0.0
    %727 = vmatpush1.msra.mxu0 0.0
    %728 = vmatprep.subr.mxu0 0.0
    %729 = vmatpush1.msra.mxu0 0.0
    %730 = vmatprep.subr.mxu0 0.0
    %731 = vmatpush1.msra.mxu0 0.0
    %732 = vmatprep.subr.mxu0 0.0
    %733 = vmatpush1.msra.mxu0 0.0
    %734 = vmatprep.subr.mxu0 0.0
    %735 = vmatpush1.msra.mxu0 0.0
    %736 = vmatprep.subr.mxu0 0.0
    %737 = vmatpush1.msra.mxu0 0.0
    %738 = vmatprep.subr.mxu0 0.0
    %739 = vmatpush1.msra.mxu0 0.0
    %740 = vmatprep.mubr.f32.mxu0 %v671
    %741 = vmatmul.mubr.f32.gmra.mrb[0].mxu0 %v581
    %v742 = vpop.f32.mrb[0].mxu0
    %v743 = vadd.f32 %v662, %v742
    %v744 = vpop.f32.mrb[0].mxu0
    %v745 = vadd.f32 %v662, %v744
    %746 = vmatprep.mubr.f32.mxu0 %v674
    %747 = vmatmul.mubr.f32.gmra.mrb[0].mxu0 %v583
    %v748 = vpop.f32.mrb[0].mxu0
    %v749 = vadd.f32 %v667, %v748
    %v750 = vpop.f32.mrb[0].mxu0
    %v751 = vadd.f32 %v667, %v750
    %752 = vdwg.mxu0
    %753 = vmatprep.subr.mxu0 %v588
    %754 = vmatpush1.msra.mxu0 %v587
    %755 = vmatprep.subr.mxu0 %v592
    %756 = vmatpush1.msra.mxu0 %v591
    %757 = vmatprep.subr.mxu0 %v596
    %758 = vmatpush1.msra.mxu0 %v595
    %759 = vmatprep.subr.mxu0 %v600
    %760 = vmatpush1.msra.mxu0 %v599
    %761 = vmatprep.subr.mxu0 %v604
    %762 = vmatpush1.msra.mxu0 %v603
    %763 = vmatprep.subr.mxu0 %v608
    %764 = vmatpush1.msra.mxu0 %v607
    %765 = vmatprep.subr.mxu0 %v612
    %766 = vmatpush1.msra.mxu0 %v611
    %767 = vmatprep.subr.mxu0 %v616
    %768 = vmatpush1.msra.mxu0 %v615
    %769 = vmatprep.subr.mxu0 %v620
    %770 = vmatpush1.msra.mxu0 %v619
    %771 = vmatprep.subr.mxu0 %v624
    %772 = vmatpush1.msra.mxu0 %v623
    %773 = vmatprep.subr.mxu0 %v628
    %774 = vmatpush1.msra.mxu0 %v627
    %775 = vmatprep.subr.mxu0 %v632
    %776 = vmatpush1.msra.mxu0 %v631
    %777 = vmatprep.subr.mxu0 %v636
    %778 = vmatpush1.msra.mxu0 %v635
    %779 = vmatprep.subr.mxu0 %v640
    %780 = vmatpush1.msra.mxu0 %v639
    %781 = vmatprep.subr.mxu0 %v644
    %782 = vmatpush1.msra.mxu0 %v643
    %783 = vmatprep.subr.mxu0 %v648
    %784 = vmatpush1.msra.mxu0 %v647
    %785 = vmatprep.subr.mxu0 %v652
    %786 = vmatpush1.msra.mxu0 %v651
    %787 = vmatprep.subr.mxu0 %v656
    %788 = vmatpush1.msra.mxu0 %v655
    %789 = vmatprep.subr.mxu0 0.0
    %790 = vmatpush1.msra.mxu0 0.0
    %791 = vmatprep.subr.mxu0 0.0
    %792 = vmatpush1.msra.mxu0 0.0
    %793 = vmatprep.subr.mxu0 0.0
    %794 = vmatpush1.msra.mxu0 0.0
    %795 = vmatprep.subr.mxu0 0.0
    %796 = vmatpush1.msra.mxu0 0.0
    %797 = vmatprep.subr.mxu0 0.0
    %798 = vmatpush1.msra.mxu0 0.0
    %799 = vmatprep.subr.mxu0 0.0
    %800 = vmatpush1.msra.mxu0 0.0
    %801 = vmatprep.subr.mxu0 0.0
    %802 = vmatpush1.msra.mxu0 0.0
    %803 = vmatprep.subr.mxu0 0.0
    %804 = vmatpush1.msra.mxu0 0.0
    %805 = vmatprep.subr.mxu0 0.0
    %806 = vmatpush1.msra.mxu0 0.0
    %807 = vmatprep.subr.mxu0 0.0
    %808 = vmatpush1.msra.mxu0 0.0
    %809 = vmatprep.subr.mxu0 0.0
    %810 = vmatpush1.msra.mxu0 0.0
    %811 = vmatprep.subr.mxu0 0.0
    %812 = vmatpush1.msra.mxu0 0.0
    %813 = vmatprep.subr.mxu0 0.0
    %814 = vmatpush1.msra.mxu0 0.0
    %815 = vmatprep.subr.mxu0 0.0
    %816 = vmatpush1.msra.mxu0 0.0
    %817 = vmatprep.mubr.f32.mxu0 %v671
    %818 = vmatmul.mubr.f32.gmra.mrb[0].mxu0 %v581
    %v819 = vpop.f32.mrb[0].mxu0
    %v820 = vadd.f32 %v662, %v819
    %v821 = vpop.f32.mrb[0].mxu0
    %v822 = vadd.f32 %v662, %v821
    %823 = vmatprep.mubr.f32.mxu0 %v674
    %824 = vmatmul.mubr.f32.gmra.mrb[0].mxu0 %v583
    %v825 = vpop.f32.mrb[0].mxu0
    %v826 = vadd.f32 %v667, %v825
    %v827 = vpop.f32.mrb[0].mxu0
    %v828 = vadd.f32 %v667, %v827
    %829 = vdwg.mxu0
    %830 = vst [vmem:[#allocation4] sm:$0xff] %v743
    %831 = vst [vmem:[#allocation4 + $0x8] sm:$0xff] %v745
    %832 = vst [vmem:[#allocation4 + $0x10] sm:$0xff] %v749
    %833 = vst [vmem:[#allocation4 + $0x18] sm:$0xff] %v751
    %s834 = scalar_lea.vmem [#allocation4], 96
    %835 = vst [vmem:[%s834] sm:$0xff] %v820
    %836 = vst [vmem:[%s834 + $0x8] sm:$0xff] %v822
    %837 = vst [vmem:[%s834 + $0x10] sm:$0xff] %v826
    %838 = vst [vmem:[%s834 + $0x18] sm:$0xff] %v828
    %v839 = vld [vmem:[%s8] sm:$0xff]
    %v840 = vld [vmem:[%s8 + $0x8] sm:$0xff]
    %v841 = vld [vmem:[%s8 + $0x10] sm:$0xff]
    %v842 = vld [vmem:[%s8 + $0x18] sm:$0xff]
    %v843 = vld [vmem:[%s8 + $0x20] sm:$0xff]
    %v844 = vld [vmem:[%s8 + $0x28] sm:$0xff]
    %v845 = vld [vmem:[%s8 + $0x30] sm:$0xff]
    %v846 = vld [vmem:[%s8 + $0x38] sm:$0xff]
    %v847 = vld [vmem:[%s8 + $0x40] sm:$0xff]
    %v848 = vld [vmem:[%s8 + $0x48] sm:$0xff]
    %v849 = vld [vmem:[%s8 + $0x50] sm:$0xff]
    %v850 = vld [vmem:[%s8 + $0x58] sm:$0xff]
    %v851 = vld [vmem:[%s8 + $0x60] sm:$0xff]
    %v852 = vld [vmem:[%s8 + $0x68] sm:$0xff]
    %v853 = vld [vmem:[%s8 + $0x70] sm:$0xff]
    %v854 = vld [vmem:[%s8 + $0x78] sm:$0xff]
    %v855 = vld [vmem:[%s8 + $0x80] sm:$0xff]
    %v856 = vld [vmem:[%s8 + $0x88] sm:$0xff]
    %v857 = vld [vmem:[%s8 + $0x90] sm:$0xff]
    %v858 = vld [vmem:[%s8 + $0x98] sm:$0xff]
    %v859 = vld [vmem:[%s8 + $0xa0] sm:$0xff]
    %v860 = vld [vmem:[%s8 + $0xa8] sm:$0xff]
    %v861 = vld [vmem:[%s8 + $0xb0] sm:$0xff]
    %v862 = vld [vmem:[%s8 + $0xb8] sm:$0xff]
    %v863 = vld [vmem:[%s8 + $0xc0] sm:$0xff]
    %v864 = vld [vmem:[%s8 + $0xc8] sm:$0xff]
    %v865 = vld [vmem:[%s8 + $0xd0] sm:$0xff]
    %v866 = vld [vmem:[%s8 + $0xd8] sm:$0xff]
    %v867 = vld [vmem:[%s8 + $0xe0] sm:$0xff]
    %v868 = vld [vmem:[%s8 + $0xe8] sm:$0xff]
    %v869 = vld [vmem:[%s8 + $0xf0] sm:$0xff]
    %v870 = vld [vmem:[%s8 + $0xf8] sm:$0xff]
    %v871 = vld [vmem:[%s8 + $0x100] sm:$0xff]
    %v872 = vld [vmem:[%s8 + $0x108] sm:$0xff]
    %v873 = vld [vmem:[%s8 + $0x110] sm:$0xff]
    %v874 = vld [vmem:[%s8 + $0x118] sm:$0xff]
    %v875 = vld [vmem:[%s8 + $0x120] sm:$0xff]
    %v876 = vld [vmem:[%s8 + $0x128] sm:$0xff]
    %v877 = vld [vmem:[%s8 + $0x130] sm:$0xff]
    %v878 = vld [vmem:[%s8 + $0x138] sm:$0xff]
    %v879 = vld [vmem:[%s8 + $0x140] sm:$0xff]
    %v880 = vld [vmem:[%s8 + $0x148] sm:$0xff]
    %v881 = vld [vmem:[%s8 + $0x150] sm:$0xff]
    %v882 = vld [vmem:[%s8 + $0x158] sm:$0xff]
    %v883 = vld [vmem:[%s8 + $0x160] sm:$0xff]
    %v884 = vld [vmem:[%s8 + $0x168] sm:$0xff]
    %v885 = vld [vmem:[%s8 + $0x170] sm:$0xff]
    %v886 = vld [vmem:[%s8 + $0x178] sm:$0xff]
    %v887 = vld [vmem:[%s8 + $0x180] sm:$0xff]
    %v888 = vld [vmem:[%s8 + $0x188] sm:$0xff]
    %v889 = vld [vmem:[%s8 + $0x190] sm:$0xff]
    %v890 = vld [vmem:[%s8 + $0x198] sm:$0xff]
    %v891 = vld [vmem:[%s8 + $0x1a0] sm:$0xff]
    %v892 = vld [vmem:[%s8 + $0x1a8] sm:$0xff]
    %v893 = vld [vmem:[%s8 + $0x1b0] sm:$0xff]
    %v894 = vld [vmem:[%s8 + $0x1b8] sm:$0xff]
    %v895 = vld [vmem:[%s8 + $0x1c0] sm:$0xff]
    %v896 = vld [vmem:[%s8 + $0x1c8] sm:$0xff]
    %v897 = vld [vmem:[%s8 + $0x1d0] sm:$0xff]
    %v898 = vld [vmem:[%s8 + $0x1d8] sm:$0xff]
    %v899 = vld [vmem:[%s8 + $0x1e0] sm:$0xff]
    %v900 = vld [vmem:[%s8 + $0x1e8] sm:$0xff]
    %v901 = vld [vmem:[%s8 + $0x1f0] sm:$0xff]
    %v902 = vld [vmem:[%s8 + $0x1f8] sm:$0xff]
    %903 = vmatprep.subr.mxu0 0.0
    %904 = vmatpush1.msra.mxu0 %v839
    %905 = vmatprep.subr.mxu0 0.0
    %906 = vmatpush1.msra.mxu0 %v840
    %907 = vmatprep.subr.mxu0 0.0
    %908 = vmatpush1.msra.mxu0 %v841
    %909 = vmatprep.subr.mxu0 0.0
    %910 = vmatpush1.msra.mxu0 %v842
    %911 = vmatprep.subr.mxu0 0.0
    %912 = vmatpush1.msra.mxu0 %v843
    %913 = vmatprep.subr.mxu0 0.0
    %914 = vmatpush1.msra.mxu0 %v844
    %915 = vmatprep.subr.mxu0 0.0
    %916 = vmatpush1.msra.mxu0 %v845
    %917 = vmatprep.subr.mxu0 0.0
    %918 = vmatpush1.msra.mxu0 %v846
    %919 = vmatprep.subr.mxu0 0.0
    %920 = vmatpush1.msra.mxu0 %v847
    %921 = vmatprep.subr.mxu0 0.0
    %922 = vmatpush1.msra.mxu0 %v848
    %923 = vmatprep.subr.mxu0 0.0
    %924 = vmatpush1.msra.mxu0 %v849
    %925 = vmatprep.subr.mxu0 0.0
    %926 = vmatpush1.msra.mxu0 %v850
    %927 = vmatprep.subr.mxu0 0.0
    %928 = vmatpush1.msra.mxu0 %v851
    %929 = vmatprep.subr.mxu0 0.0
    %930 = vmatpush1.msra.mxu0 %v852
    %931 = vmatprep.subr.mxu0 0.0
    %932 = vmatpush1.msra.mxu0 %v853
    %933 = vmatprep.subr.mxu0 0.0
    %934 = vmatpush1.msra.mxu0 %v854
    %935 = vmatprep.subr.mxu0 0.0
    %936 = vmatpush1.msra.mxu0 %v855
    %937 = vmatprep.subr.mxu0 0.0
    %938 = vmatpush1.msra.mxu0 %v856
    %939 = vmatprep.subr.mxu0 0.0
    %940 = vmatpush1.msra.mxu0 %v857
    %941 = vmatprep.subr.mxu0 0.0
    %942 = vmatpush1.msra.mxu0 %v858
    %943 = vmatprep.subr.mxu0 0.0
    %944 = vmatpush1.msra.mxu0 %v859
    %945 = vmatprep.subr.mxu0 0.0
    %946 = vmatpush1.msra.mxu0 %v860
    %947 = vmatprep.subr.mxu0 0.0
    %948 = vmatpush1.msra.mxu0 %v861
    %949 = vmatprep.subr.mxu0 0.0
    %950 = vmatpush1.msra.mxu0 %v862
    %951 = vmatprep.subr.mxu0 0.0
    %952 = vmatpush1.msra.mxu0 %v863
    %953 = vmatprep.subr.mxu0 0.0
    %954 = vmatpush1.msra.mxu0 %v864
    %955 = vmatprep.subr.mxu0 0.0
    %956 = vmatpush1.msra.mxu0 %v865
    %957 = vmatprep.subr.mxu0 0.0
    %958 = vmatpush1.msra.mxu0 %v866
    %959 = vmatprep.subr.mxu0 0.0
    %960 = vmatpush1.msra.mxu0 %v867
    %961 = vmatprep.subr.mxu0 0.0
    %962 = vmatpush1.msra.mxu0 %v868
    %963 = vmatprep.subr.mxu0 0.0
    %964 = vmatpush1.msra.mxu0 %v869
    %965 = vmatprep.subr.mxu0 0.0
    %966 = vmatpush1.msra.mxu0 %v870
    %967 = vmatprep.mubr.f32.mxu0 %v745
    %968 = vmatmul.mubr.f32.gmra.mrb[0].mxu0 %v743
    %v969 = vpop.f32.mrb[0].mxu0
    %v970 = vadd.f32 0.0, %v969
    %v971 = vpop.f32.mrb[0].mxu0
    %972 = vmatprep.mubr.f32.mxu0 %v751
    %973 = vmatmul.mubr.f32.gmra.mrb[0].mxu0 %v749
    %v974 = vpop.f32.mrb[0].mxu0
    %v975 = vadd.f32 0.0, %v974
    %v976 = vpop.f32.mrb[0].mxu0
    %977 = vdwg.mxu0
    %978 = vmatprep.subr.mxu0 0.0
    %979 = vmatpush1.msra.mxu0 %v871
    %980 = vmatprep.subr.mxu0 0.0
    %981 = vmatpush1.msra.mxu0 %v872
    %982 = vmatprep.subr.mxu0 0.0
    %983 = vmatpush1.msra.mxu0 %v873
    %984 = vmatprep.subr.mxu0 0.0
    %985 = vmatpush1.msra.mxu0 %v874
    %986 = vmatprep.subr.mxu0 0.0
    %987 = vmatpush1.msra.mxu0 %v875
    %988 = vmatprep.subr.mxu0 0.0
    %989 = vmatpush1.msra.mxu0 %v876
    %990 = vmatprep.subr.mxu0 0.0
    %991 = vmatpush1.msra.mxu0 %v877
    %992 = vmatprep.subr.mxu0 0.0
    %993 = vmatpush1.msra.mxu0 %v878
    %994 = vmatprep.subr.mxu0 0.0
    %995 = vmatpush1.msra.mxu0 %v879
    %996 = vmatprep.subr.mxu0 0.0
    %997 = vmatpush1.msra.mxu0 %v880
    %998 = vmatprep.subr.mxu0 0.0
    %999 = vmatpush1.msra.mxu0 %v881
    %1000 = vmatprep.subr.mxu0 0.0
    %1001 = vmatpush1.msra.mxu0 %v882
    %1002 = vmatprep.subr.mxu0 0.0
    %1003 = vmatpush1.msra.mxu0 %v883
    %1004 = vmatprep.subr.mxu0 0.0
    %1005 = vmatpush1.msra.mxu0 %v884
    %1006 = vmatprep.subr.mxu0 0.0
    %1007 = vmatpush1.msra.mxu0 %v885
    %1008 = vmatprep.subr.mxu0 0.0
    %1009 = vmatpush1.msra.mxu0 %v886
    %1010 = vmatprep.subr.mxu0 0.0
    %1011 = vmatpush1.msra.mxu0 %v887
    %1012 = vmatprep.subr.mxu0 0.0
    %1013 = vmatpush1.msra.mxu0 %v888
    %1014 = vmatprep.subr.mxu0 0.0
    %1015 = vmatpush1.msra.mxu0 %v889
    %1016 = vmatprep.subr.mxu0 0.0
    %1017 = vmatpush1.msra.mxu0 %v890
    %1018 = vmatprep.subr.mxu0 0.0
    %1019 = vmatpush1.msra.mxu0 %v891
    %1020 = vmatprep.subr.mxu0 0.0
    %1021 = vmatpush1.msra.mxu0 %v892
    %1022 = vmatprep.subr.mxu0 0.0
    %1023 = vmatpush1.msra.mxu0 %v893
    %1024 = vmatprep.subr.mxu0 0.0
    %1025 = vmatpush1.msra.mxu0 %v894
    %1026 = vmatprep.subr.mxu0 0.0
    %1027 = vmatpush1.msra.mxu0 %v895
    %1028 = vmatprep.subr.mxu0 0.0
    %1029 = vmatpush1.msra.mxu0 %v896
    %1030 = vmatprep.subr.mxu0 0.0
    %1031 = vmatpush1.msra.mxu0 %v897
    %1032 = vmatprep.subr.mxu0 0.0
    %1033 = vmatpush1.msra.mxu0 %v898
    %1034 = vmatprep.subr.mxu0 0.0
    %1035 = vmatpush1.msra.mxu0 %v899
    %1036 = vmatprep.subr.mxu0 0.0
    %1037 = vmatpush1.msra.mxu0 %v900
    %1038 = vmatprep.subr.mxu0 0.0
    %1039 = vmatpush1.msra.mxu0 %v901
    %1040 = vmatprep.subr.mxu0 0.0
    %1041 = vmatpush1.msra.mxu0 %v902
    %1042 = vmatprep.mubr.f32.mxu0 %v822
    %1043 = vmatmul.mubr.f32.gmra.mrb[0].mxu0 %v820
    %v1044 = vpop.f32.mrb[0].mxu0
    %v1045 = vadd.f32 %v970, %v1044
    %v1046 = vpop.f32.mrb[0].mxu0
    %1047 = vmatprep.mubr.f32.mxu0 %v828
    %1048 = vmatmul.mubr.f32.gmra.mrb[0].mxu0 %v826
    %v1049 = vpop.f32.mrb[0].mxu0
    %v1050 = vadd.f32 %v975, %v1049
    %v1051 = vpop.f32.mrb[0].mxu0
    %1052 = vdwg.mxu0
    %v1053 = vlaneseq
    %v1054 = vshrl.u32 %v1053, 7
    %v1055 = vadd.s32 %v1054, 8
    %vm1056 = vcmp.eq.s32.totalorder %v1054, %v48
    %vm1057 = vcmp.eq.s32.totalorder %v1055, %v48
    %v1058 = vsel %vm1056, 1, 0
    %v1059 = vsel %vm1057, 1, 0
    %v1060 = vcvt.s32.f32 %v1058
    %v1061 = vcvt.s32.f32 %v1059
    %vm1062 = vcmask 80896
    %v1064 = vsel %vm1062, %v1045, 0
    %v1067 = vsel %vm1062, %v1050, 0
    %vm1069 = vcmask 1041408
    %v1071 = vsel %vm1069, %v1061, 0
    %1073 = vmatprep.subr.mxu0 0.0
    %1074 = vmatpush1.msra.mxu0 %v1060
    %1075 = vmatprep.subr.mxu0 0.0
    %1076 = vmatpush1.msra.mxu0 %v1071
    %1077 = vmatprep.subr.mxu0 0.0
    %1078 = vmatpush1.msra.mxu0 0.0
    %1079 = vmatprep.subr.mxu0 0.0
    %1080 = vmatpush1.msra.mxu0 0.0
    %1081 = vmatprep.subr.mxu0 0.0
    %1082 = vmatpush1.msra.mxu0 0.0
    %1083 = vmatprep.subr.mxu0 0.0
    %1084 = vmatpush1.msra.mxu0 0.0
    %1085 = vmatprep.subr.mxu0 0.0
    %1086 = vmatpush1.msra.mxu0 0.0
    %1087 = vmatprep.subr.mxu0 0.0
    %1088 = vmatpush1.msra.mxu0 0.0
    %1089 = vmatprep.subr.mxu0 0.0
    %1090 = vmatpush1.msra.mxu0 0.0
    %1091 = vmatprep.subr.mxu0 0.0
    %1092 = vmatpush1.msra.mxu0 0.0
    %1093 = vmatprep.subr.mxu0 0.0
    %1094 = vmatpush1.msra.mxu0 0.0
    %1095 = vmatprep.subr.mxu0 0.0
    %1096 = vmatpush1.msra.mxu0 0.0
    %1097 = vmatprep.subr.mxu0 0.0
    %1098 = vmatpush1.msra.mxu0 0.0
    %1099 = vmatprep.subr.mxu0 0.0
    %1100 = vmatpush1.msra.mxu0 0.0
    %1101 = vmatprep.subr.mxu0 0.0
    %1102 = vmatpush1.msra.mxu0 0.0
    %1103 = vmatprep.subr.mxu0 0.0
    %1104 = vmatpush1.msra.mxu0 0.0
    %1105 = vmatprep.subr.mxu0 0.0
    %1106 = vmatpush1.msra.mxu0 0.0
    %1107 = vmatprep.subr.mxu0 0.0
    %1108 = vmatpush1.msra.mxu0 0.0
    %1109 = vmatprep.subr.mxu0 0.0
    %1110 = vmatpush1.msra.mxu0 0.0
    %1111 = vmatprep.subr.mxu0 0.0
    %1112 = vmatpush1.msra.mxu0 0.0
    %1113 = vmatprep.subr.mxu0 0.0
    %1114 = vmatpush1.msra.mxu0 0.0
    %1115 = vmatprep.subr.mxu0 0.0
    %1116 = vmatpush1.msra.mxu0 0.0
    %1117 = vmatprep.subr.mxu0 0.0
    %1118 = vmatpush1.msra.mxu0 0.0
    %1119 = vmatprep.subr.mxu0 0.0
    %1120 = vmatpush1.msra.mxu0 0.0
    %1121 = vmatprep.subr.mxu0 0.0
    %1122 = vmatpush1.msra.mxu0 0.0
    %1123 = vmatprep.subr.mxu0 0.0
    %1124 = vmatpush1.msra.mxu0 0.0
    %1125 = vmatprep.subr.mxu0 0.0
    %1126 = vmatpush1.msra.mxu0 0.0
    %1127 = vmatprep.subr.mxu0 0.0
    %1128 = vmatpush1.msra.mxu0 0.0
    %1129 = vmatprep.subr.mxu0 0.0
    %1130 = vmatpush1.msra.mxu0 0.0
    %1131 = vmatprep.subr.mxu0 0.0
    %1132 = vmatpush1.msra.mxu0 0.0
    %1133 = vmatprep.subr.mxu0 0.0
    %1134 = vmatpush1.msra.mxu0 0.0
    %1135 = vmatprep.subr.mxu0 0.0
    %1136 = vmatpush1.msra.mxu0 0.0
    %1137 = vmatprep.mubr.f32.mxu0 0.0
    %1138 = vmatmul.mubr.f32.gmra.mrb[0].mxu0 %v1064
    %v1139 = vpop.f32.mrb[0].mxu0
    %v1140 = vadd.f32 0.0, %v1139
    %v1141 = vpop.f32.mrb[0].mxu0
    %1142 = vmatprep.mubr.f32.mxu0 0.0
    %1143 = vmatmul.mubr.f32.gmra.mrb[0].mxu0 %v1067
    %v1144 = vpop.f32.mrb[0].mxu0
    %v1145 = vadd.f32 0.0, %v1144
    %v1146 = vpop.f32.mrb[0].mxu0
    %1147 = vdwg.mxu0
    %v1148 = vadd.s32 %v48, 2
    %vm1149 = vcmp.eq.s32.totalorder %v1054, %v1148
    %vm1150 = vcmp.eq.s32.totalorder %v1055, %v1148
    %v1151 = vsel %vm1149, 1, 0
    %v1152 = vsel %vm1150, 1, 0
    %v1153 = vcvt.s32.f32 %v1151
    %v1154 = vcvt.s32.f32 %v1152
    %v1156 = vsel %vm1069, %v1154, 0
    %1158 = vmatprep.subr.mxu0 0.0
    %1159 = vmatpush1.msra.mxu0 %v1153
    %1160 = vmatprep.subr.mxu0 0.0
    %1161 = vmatpush1.msra.mxu0 %v1156
    %1162 = vmatprep.subr.mxu0 0.0
    %1163 = vmatpush1.msra.mxu0 0.0
    %1164 = vmatprep.subr.mxu0 0.0
    %1165 = vmatpush1.msra.mxu0 0.0
    %1166 = vmatprep.subr.mxu0 0.0
    %1167 = vmatpush1.msra.mxu0 0.0
    %1168 = vmatprep.subr.mxu0 0.0
    %1169 = vmatpush1.msra.mxu0 0.0
    %1170 = vmatprep.subr.mxu0 0.0
    %1171 = vmatpush1.msra.mxu0 0.0
    %1172 = vmatprep.subr.mxu0 0.0
    %1173 = vmatpush1.msra.mxu0 0.0
    %1174 = vmatprep.subr.mxu0 0.0
    %1175 = vmatpush1.msra.mxu0 0.0
    %1176 = vmatprep.subr.mxu0 0.0
    %1177 = vmatpush1.msra.mxu0 0.0
    %1178 = vmatprep.subr.mxu0 0.0
    %1179 = vmatpush1.msra.mxu0 0.0
    %1180 = vmatprep.subr.mxu0 0.0
    %1181 = vmatpush1.msra.mxu0 0.0
    %1182 = vmatprep.subr.mxu0 0.0
    %1183 = vmatpush1.msra.mxu0 0.0
    %1184 = vmatprep.subr.mxu0 0.0
    %1185 = vmatpush1.msra.mxu0 0.0
    %1186 = vmatprep.subr.mxu0 0.0
    %1187 = vmatpush1.msra.mxu0 0.0
    %1188 = vmatprep.subr.mxu0 0.0
    %1189 = vmatpush1.msra.mxu0 0.0
    %1190 = vmatprep.subr.mxu0 0.0
    %1191 = vmatpush1.msra.mxu0 0.0
    %1192 = vmatprep.subr.mxu0 0.0
    %1193 = vmatpush1.msra.mxu0 0.0
    %1194 = vmatprep.subr.mxu0 0.0
    %1195 = vmatpush1.msra.mxu0 0.0
    %1196 = vmatprep.subr.mxu0 0.0
    %1197 = vmatpush1.msra.mxu0 0.0
    %1198 = vmatprep.subr.mxu0 0.0
    %1199 = vmatpush1.msra.mxu0 0.0
    %1200 = vmatprep.subr.mxu0 0.0
    %1201 = vmatpush1.msra.mxu0 0.0
    %1202 = vmatprep.subr.mxu0 0.0
    %1203 = vmatpush1.msra.mxu0 0.0
    %1204 = vmatprep.subr.mxu0 0.0
    %1205 = vmatpush1.msra.mxu0 0.0
    %1206 = vmatprep.subr.mxu0 0.0
    %1207 = vmatpush1.msra.mxu0 0.0
    %1208 = vmatprep.subr.mxu0 0.0
    %1209 = vmatpush1.msra.mxu0 0.0
    %1210 = vmatprep.subr.mxu0 0.0
    %1211 = vmatpush1.msra.mxu0 0.0
    %1212 = vmatprep.subr.mxu0 0.0
    %1213 = vmatpush1.msra.mxu0 0.0
    %1214 = vmatprep.subr.mxu0 0.0
    %1215 = vmatpush1.msra.mxu0 0.0
    %1216 = vmatprep.subr.mxu0 0.0
    %1217 = vmatpush1.msra.mxu0 0.0
    %1218 = vmatprep.subr.mxu0 0.0
    %1219 = vmatpush1.msra.mxu0 0.0
    %1220 = vmatprep.subr.mxu0 0.0
    %1221 = vmatpush1.msra.mxu0 0.0
    %1222 = vmatprep.mubr.f32.mxu0 0.0
    %1223 = vmatmul.mubr.f32.gmra.mrb[0].mxu0 %v1064
    %v1224 = vpop.f32.mrb[0].mxu0
    %v1225 = vadd.f32 0.0, %v1224
    %v1226 = vpop.f32.mrb[0].mxu0
    %1227 = vmatprep.mubr.f32.mxu0 0.0
    %1228 = vmatmul.mubr.f32.gmra.mrb[0].mxu0 %v1067
    %v1229 = vpop.f32.mrb[0].mxu0
    %v1230 = vadd.f32 0.0, %v1229
    %v1231 = vpop.f32.mrb[0].mxu0
    %1232 = vdwg.mxu0
    %v1233 = vadd.s32 %v48, 4
    %vm1234 = vcmp.eq.s32.totalorder %v1054, %v1233
    %vm1235 = vcmp.eq.s32.totalorder %v1055, %v1233
    %v1236 = vsel %vm1234, 1, 0
    %v1237 = vsel %vm1235, 1, 0
    %v1238 = vcvt.s32.f32 %v1236
    %v1239 = vcvt.s32.f32 %v1237
    %v1241 = vsel %vm1069, %v1239, 0
    %1243 = vmatprep.subr.mxu0 0.0
    %1244 = vmatpush1.msra.mxu0 %v1238
    %1245 = vmatprep.subr.mxu0 0.0
    %1246 = vmatpush1.msra.mxu0 %v1241
    %1247 = vmatprep.subr.mxu0 0.0
    %1248 = vmatpush1.msra.mxu0 0.0
    %1249 = vmatprep.subr.mxu0 0.0
    %1250 = vmatpush1.msra.mxu0 0.0
    %1251 = vmatprep.subr.mxu0 0.0
    %1252 = vmatpush1.msra.mxu0 0.0
    %1253 = vmatprep.subr.mxu0 0.0
    %1254 = vmatpush1.msra.mxu0 0.0
    %1255 = vmatprep.subr.mxu0 0.0
    %1256 = vmatpush1.msra.mxu0 0.0
    %1257 = vmatprep.subr.mxu0 0.0
    %1258 = vmatpush1.msra.mxu0 0.0
    %1259 = vmatprep.subr.mxu0 0.0
    %1260 = vmatpush1.msra.mxu0 0.0
    %1261 = vmatprep.subr.mxu0 0.0
    %1262 = vmatpush1.msra.mxu0 0.0
    %1263 = vmatprep.subr.mxu0 0.0
    %1264 = vmatpush1.msra.mxu0 0.0
    %1265 = vmatprep.subr.mxu0 0.0
    %1266 = vmatpush1.msra.mxu0 0.0
    %1267 = vmatprep.subr.mxu0 0.0
    %1268 = vmatpush1.msra.mxu0 0.0
    %1269 = vmatprep.subr.mxu0 0.0
    %1270 = vmatpush1.msra.mxu0 0.0
    %1271 = vmatprep.subr.mxu0 0.0
    %1272 = vmatpush1.msra.mxu0 0.0
    %1273 = vmatprep.subr.mxu0 0.0
    %1274 = vmatpush1.msra.mxu0 0.0
    %1275 = vmatprep.subr.mxu0 0.0
    %1276 = vmatpush1.msra.mxu0 0.0
    %1277 = vmatprep.subr.mxu0 0.0
    %1278 = vmatpush1.msra.mxu0 0.0
    %1279 = vmatprep.subr.mxu0 0.0
    %1280 = vmatpush1.msra.mxu0 0.0
    %1281 = vmatprep.subr.mxu0 0.0
    %1282 = vmatpush1.msra.mxu0 0.0
    %1283 = vmatprep.subr.mxu0 0.0
    %1284 = vmatpush1.msra.mxu0 0.0
    %1285 = vmatprep.subr.mxu0 0.0
    %1286 = vmatpush1.msra.mxu0 0.0
    %1287 = vmatprep.subr.mxu0 0.0
    %1288 = vmatpush1.msra.mxu0 0.0
    %1289 = vmatprep.subr.mxu0 0.0
    %1290 = vmatpush1.msra.mxu0 0.0
    %1291 = vmatprep.subr.mxu0 0.0
    %1292 = vmatpush1.msra.mxu0 0.0
    %1293 = vmatprep.subr.mxu0 0.0
    %1294 = vmatpush1.msra.mxu0 0.0
    %1295 = vmatprep.subr.mxu0 0.0
    %1296 = vmatpush1.msra.mxu0 0.0
    %1297 = vmatprep.subr.mxu0 0.0
    %1298 = vmatpush1.msra.mxu0 0.0
    %1299 = vmatprep.subr.mxu0 0.0
    %1300 = vmatpush1.msra.mxu0 0.0
    %1301 = vmatprep.subr.mxu0 0.0
    %1302 = vmatpush1.msra.mxu0 0.0
    %1303 = vmatprep.subr.mxu0 0.0
    %1304 = vmatpush1.msra.mxu0 0.0
    %1305 = vmatprep.subr.mxu0 0.0
    %1306 = vmatpush1.msra.mxu0 0.0
    %1307 = vmatprep.mubr.f32.mxu0 0.0
    %1308 = vmatmul.mubr.f32.gmra.mrb[0].mxu0 %v1064
    %v1309 = vpop.f32.mrb[0].mxu0
    %v1310 = vadd.f32 0.0, %v1309
    %v1311 = vpop.f32.mrb[0].mxu0
    %1312 = vmatprep.mubr.f32.mxu0 0.0
    %1313 = vmatmul.mubr.f32.gmra.mrb[0].mxu0 %v1067
    %v1314 = vpop.f32.mrb[0].mxu0
    %v1315 = vadd.f32 0.0, %v1314
    %v1316 = vpop.f32.mrb[0].mxu0
    %1317 = vdwg.mxu0
    %v1318 = vadd.s32 %v48, 6
    %vm1319 = vcmp.eq.s32.totalorder %v1054, %v1318
    %vm1320 = vcmp.eq.s32.totalorder %v1055, %v1318
    %v1321 = vsel %vm1319, 1, 0
    %v1322 = vsel %vm1320, 1, 0
    %v1323 = vcvt.s32.f32 %v1321
    %v1324 = vcvt.s32.f32 %v1322
    %v1326 = vsel %vm1069, %v1324, 0
    %1328 = vmatprep.subr.mxu0 0.0
    %1329 = vmatpush1.msra.mxu0 %v1323
    %1330 = vmatprep.subr.mxu0 0.0
    %1331 = vmatpush1.msra.mxu0 %v1326
    %1332 = vmatprep.subr.mxu0 0.0
    %1333 = vmatpush1.msra.mxu0 0.0
    %1334 = vmatprep.subr.mxu0 0.0
    %1335 = vmatpush1.msra.mxu0 0.0
    %1336 = vmatprep.subr.mxu0 0.0
    %1337 = vmatpush1.msra.mxu0 0.0
    %1338 = vmatprep.subr.mxu0 0.0
    %1339 = vmatpush1.msra.mxu0 0.0
    %1340 = vmatprep.subr.mxu0 0.0
    %1341 = vmatpush1.msra.mxu0 0.0
    %1342 = vmatprep.subr.mxu0 0.0
    %1343 = vmatpush1.msra.mxu0 0.0
    %1344 = vmatprep.subr.mxu0 0.0
    %1345 = vmatpush1.msra.mxu0 0.0
    %1346 = vmatprep.subr.mxu0 0.0
    %1347 = vmatpush1.msra.mxu0 0.0
    %1348 = vmatprep.subr.mxu0 0.0
    %1349 = vmatpush1.msra.mxu0 0.0
    %1350 = vmatprep.subr.mxu0 0.0
    %1351 = vmatpush1.msra.mxu0 0.0
    %1352 = vmatprep.subr.mxu0 0.0
    %1353 = vmatpush1.msra.mxu0 0.0
    %1354 = vmatprep.subr.mxu0 0.0
    %1355 = vmatpush1.msra.mxu0 0.0
    %1356 = vmatprep.subr.mxu0 0.0
    %1357 = vmatpush1.msra.mxu0 0.0
    %1358 = vmatprep.subr.mxu0 0.0
    %1359 = vmatpush1.msra.mxu0 0.0
    %1360 = vmatprep.subr.mxu0 0.0
    %1361 = vmatpush1.msra.mxu0 0.0
    %1362 = vmatprep.subr.mxu0 0.0
    %1363 = vmatpush1.msra.mxu0 0.0
    %1364 = vmatprep.subr.mxu0 0.0
    %1365 = vmatpush1.msra.mxu0 0.0
    %1366 = vmatprep.subr.mxu0 0.0
    %1367 = vmatpush1.msra.mxu0 0.0
    %1368 = vmatprep.subr.mxu0 0.0
    %1369 = vmatpush1.msra.mxu0 0.0
    %1370 = vmatprep.subr.mxu0 0.0
    %1371 = vmatpush1.msra.mxu0 0.0
    %1372 = vmatprep.subr.mxu0 0.0
    %1373 = vmatpush1.msra.mxu0 0.0
    %1374 = vmatprep.subr.mxu0 0.0
    %1375 = vmatpush1.msra.mxu0 0.0
    %1376 = vmatprep.subr.mxu0 0.0
    %1377 = vmatpush1.msra.mxu0 0.0
    %1378 = vmatprep.subr.mxu0 0.0
    %1379 = vmatpush1.msra.mxu0 0.0
    %1380 = vmatprep.subr.mxu0 0.0
    %1381 = vmatpush1.msra.mxu0 0.0
    %1382 = vmatprep.subr.mxu0 0.0
    %1383 = vmatpush1.msra.mxu0 0.0
    %1384 = vmatprep.subr.mxu0 0.0
    %1385 = vmatpush1.msra.mxu0 0.0
    %1386 = vmatprep.subr.mxu0 0.0
    %1387 = vmatpush1.msra.mxu0 0.0
    %1388 = vmatprep.subr.mxu0 0.0
    %1389 = vmatpush1.msra.mxu0 0.0
    %1390 = vmatprep.subr.mxu0 0.0
    %1391 = vmatpush1.msra.mxu0 0.0
    %1392 = vmatprep.mubr.f32.mxu0 0.0
    %1393 = vmatmul.mubr.f32.gmra.mrb[0].mxu0 %v1064
    %v1394 = vpop.f32.mrb[0].mxu0
    %v1395 = vadd.f32 0.0, %v1394
    %v1396 = vpop.f32.mrb[0].mxu0
    %1397 = vmatprep.mubr.f32.mxu0 0.0
    %1398 = vmatmul.mubr.f32.gmra.mrb[0].mxu0 %v1067
    %v1399 = vpop.f32.mrb[0].mxu0
    %v1400 = vadd.f32 0.0, %v1399
    %v1401 = vpop.f32.mrb[0].mxu0
    %1402 = vdwg.mxu0
    %v1403 = vadd.s32 %v48, 8
    %vm1404 = vcmp.eq.s32.totalorder %v1054, %v1403
    %vm1405 = vcmp.eq.s32.totalorder %v1055, %v1403
    %v1406 = vsel %vm1404, 1, 0
    %v1407 = vsel %vm1405, 1, 0
    %v1408 = vcvt.s32.f32 %v1406
    %v1409 = vcvt.s32.f32 %v1407
    %v1411 = vsel %vm1069, %v1409, 0
    %1413 = vmatprep.subr.mxu0 0.0
    %1414 = vmatpush1.msra.mxu0 %v1408
    %1415 = vmatprep.subr.mxu0 0.0
    %1416 = vmatpush1.msra.mxu0 %v1411
    %1417 = vmatprep.subr.mxu0 0.0
    %1418 = vmatpush1.msra.mxu0 0.0
    %1419 = vmatprep.subr.mxu0 0.0
    %1420 = vmatpush1.msra.mxu0 0.0
    %1421 = vmatprep.subr.mxu0 0.0
    %1422 = vmatpush1.msra.mxu0 0.0
    %1423 = vmatprep.subr.mxu0 0.0
    %1424 = vmatpush1.msra.mxu0 0.0
    %1425 = vmatprep.subr.mxu0 0.0
    %1426 = vmatpush1.msra.mxu0 0.0
    %1427 = vmatprep.subr.mxu0 0.0
    %1428 = vmatpush1.msra.mxu0 0.0
    %1429 = vmatprep.subr.mxu0 0.0
    %1430 = vmatpush1.msra.mxu0 0.0
    %1431 = vmatprep.subr.mxu0 0.0
    %1432 = vmatpush1.msra.mxu0 0.0
    %1433 = vmatprep.subr.mxu0 0.0
    %1434 = vmatpush1.msra.mxu0 0.0
    %1435 = vmatprep.subr.mxu0 0.0
    %1436 = vmatpush1.msra.mxu0 0.0
    %1437 = vmatprep.subr.mxu0 0.0
    %1438 = vmatpush1.msra.mxu0 0.0
    %1439 = vmatprep.subr.mxu0 0.0
    %1440 = vmatpush1.msra.mxu0 0.0
    %1441 = vmatprep.subr.mxu0 0.0
    %1442 = vmatpush1.msra.mxu0 0.0
    %1443 = vmatprep.subr.mxu0 0.0
    %1444 = vmatpush1.msra.mxu0 0.0
    %1445 = vmatprep.subr.mxu0 0.0
    %1446 = vmatpush1.msra.mxu0 0.0
    %1447 = vmatprep.subr.mxu0 0.0
    %1448 = vmatpush1.msra.mxu0 0.0
    %1449 = vmatprep.subr.mxu0 0.0
    %1450 = vmatpush1.msra.mxu0 0.0
    %1451 = vmatprep.subr.mxu0 0.0
    %1452 = vmatpush1.msra.mxu0 0.0
    %1453 = vmatprep.subr.mxu0 0.0
    %1454 = vmatpush1.msra.mxu0 0.0
    %1455 = vmatprep.subr.mxu0 0.0
    %1456 = vmatpush1.msra.mxu0 0.0
    %1457 = vmatprep.subr.mxu0 0.0
    %1458 = vmatpush1.msra.mxu0 0.0
    %1459 = vmatprep.subr.mxu0 0.0
    %1460 = vmatpush1.msra.mxu0 0.0
    %1461 = vmatprep.subr.mxu0 0.0
    %1462 = vmatpush1.msra.mxu0 0.0
    %1463 = vmatprep.subr.mxu0 0.0
    %1464 = vmatpush1.msra.mxu0 0.0
    %1465 = vmatprep.subr.mxu0 0.0
    %1466 = vmatpush1.msra.mxu0 0.0
    %1467 = vmatprep.subr.mxu0 0.0
    %1468 = vmatpush1.msra.mxu0 0.0
    %1469 = vmatprep.subr.mxu0 0.0
    %1470 = vmatpush1.msra.mxu0 0.0
    %1471 = vmatprep.subr.mxu0 0.0
    %1472 = vmatpush1.msra.mxu0 0.0
    %1473 = vmatprep.subr.mxu0 0.0
    %1474 = vmatpush1.msra.mxu0 0.0
    %1475 = vmatprep.subr.mxu0 0.0
    %1476 = vmatpush1.msra.mxu0 0.0
    %1477 = vmatprep.mubr.f32.mxu0 0.0
    %1478 = vmatmul.mubr.f32.gmra.mrb[0].mxu0 %v1064
    %v1479 = vpop.f32.mrb[0].mxu0
    %v1480 = vadd.f32 0.0, %v1479
    %v1481 = vpop.f32.mrb[0].mxu0
    %1482 = vmatprep.mubr.f32.mxu0 0.0
    %1483 = vmatmul.mubr.f32.gmra.mrb[0].mxu0 %v1067
    %v1484 = vpop.f32.mrb[0].mxu0
    %v1485 = vadd.f32 0.0, %v1484
    %v1486 = vpop.f32.mrb[0].mxu0
    %1487 = vdwg.mxu0
    %v1488 = vld [vmem:[%s3] sm:$0x1]
    %v1489 = vld [vmem:[#allocation3] sm:$0x1]
    %1491 = vset.pattern.permute.xlu0 0
    %1492 = vperm.xlu0 %1491, %v1489
    %v1493 = vpop.permute.xlu0 %1492
    %v1495 = vlaneseq
    %v1496 = vshrl.u32 %v1495, 7
    %v1497 = vsub.s32 0, %v1496
    %v1498 = vrot.slane %v1493, %v1497
    %vm1499 = vcmask 654336
    %v1501 = vsel %vm1499, %v1488, 0
    %1503 = vmatprep.subr.mxu0 0.0
    %1504 = vmatpush1.msra.mxu0 %v1140
    %1505 = vmatprep.subr.mxu0 0.0
    %1506 = vmatpush1.msra.mxu0 %v1145
    %1507 = vmatprep.subr.mxu0 0.0
    %1508 = vmatpush1.msra.mxu0 %v1225
    %1509 = vmatprep.subr.mxu0 0.0
    %1510 = vmatpush1.msra.mxu0 %v1230
    %1511 = vmatprep.subr.mxu0 0.0
    %1512 = vmatpush1.msra.mxu0 %v1310
    %1513 = vmatprep.subr.mxu0 0.0
    %1514 = vmatpush1.msra.mxu0 %v1315
    %1515 = vmatprep.subr.mxu0 0.0
    %1516 = vmatpush1.msra.mxu0 %v1395
    %1517 = vmatprep.subr.mxu0 0.0
    %1518 = vmatpush1.msra.mxu0 %v1400
    %1519 = vmatprep.subr.mxu0 0.0
    %1520 = vmatpush1.msra.mxu0 %v1480
    %1521 = vmatprep.subr.mxu0 0.0
    %1522 = vmatpush1.msra.mxu0 %v1485
    %1523 = vmatprep.subr.mxu0 0.0
    %1524 = vmatpush1.msra.mxu0 0.0
    %1525 = vmatprep.subr.mxu0 0.0
    %1526 = vmatpush1.msra.mxu0 0.0
    %1527 = vmatprep.subr.mxu0 0.0
    %1528 = vmatpush1.msra.mxu0 0.0
    %1529 = vmatprep.subr.mxu0 0.0
    %1530 = vmatpush1.msra.mxu0 0.0
    %1531 = vmatprep.subr.mxu0 0.0
    %1532 = vmatpush1.msra.mxu0 0.0
    %1533 = vmatprep.subr.mxu0 0.0
    %1534 = vmatpush1.msra.mxu0 0.0
    %1535 = vmatprep.subr.mxu0 0.0
    %1536 = vmatpush1.msra.mxu0 0.0
    %1537 = vmatprep.subr.mxu0 0.0
    %1538 = vmatpush1.msra.mxu0 0.0
    %1539 = vmatprep.subr.mxu0 0.0
    %1540 = vmatpush1.msra.mxu0 0.0
    %1541 = vmatprep.subr.mxu0 0.0
    %1542 = vmatpush1.msra.mxu0 0.0
    %1543 = vmatprep.subr.mxu0 0.0
    %1544 = vmatpush1.msra.mxu0 0.0
    %1545 = vmatprep.subr.mxu0 0.0
    %1546 = vmatpush1.msra.mxu0 0.0
    %1547 = vmatprep.subr.mxu0 0.0
    %1548 = vmatpush1.msra.mxu0 0.0
    %1549 = vmatprep.subr.mxu0 0.0
    %1550 = vmatpush1.msra.mxu0 0.0
    %1551 = vmatprep.subr.mxu0 0.0
    %1552 = vmatpush1.msra.mxu0 0.0
    %1553 = vmatprep.subr.mxu0 0.0
    %1554 = vmatpush1.msra.mxu0 0.0
    %1555 = vmatprep.subr.mxu0 0.0
    %1556 = vmatpush1.msra.mxu0 0.0
    %1557 = vmatprep.subr.mxu0 0.0
    %1558 = vmatpush1.msra.mxu0 0.0
    %1559 = vmatprep.subr.mxu0 0.0
    %1560 = vmatpush1.msra.mxu0 0.0
    %1561 = vmatprep.subr.mxu0 0.0
    %1562 = vmatpush1.msra.mxu0 0.0
    %1563 = vmatprep.subr.mxu0 0.0
    %1564 = vmatpush1.msra.mxu0 0.0
    %1565 = vmatprep.subr.mxu0 0.0
    %1566 = vmatpush1.msra.mxu0 0.0
    %1567 = vmatprep.mubr.f32.mxu0 0.0
    %1568 = vmatmul.mubr.f32.gmra.mrb[0].mxu0 %v1501
    %v1569 = vpop.f32.mrb[0].mxu0
    %v1570 = vadd.f32 %v1498, %v1569
    %v1571 = vpop.f32.mrb[0].mxu0
    %1572 = vdwg.mxu0
    %v1573 = vmax.f32 %v1570, 0.0
    %v1574 = vld [vmem:[%s5] sm:$0xff]
    %v1575 = vld [vmem:[%s5 + $0x8] sm:$0xff]
    %1577 = vset.pattern.permute.xlu0 0
    %1578 = vperm.xlu0 %1577, %v1574
    %v1579 = vpop.permute.xlu0 %1578
    %1582 = vset.pattern.permute.xlu0 0
    %1583 = vperm.xlu0 %1582, %v1575
    %v1584 = vpop.permute.xlu0 %1583
    %v1586 = vlaneseq
    %v1587 = vshrl.u32 %v1586, 7
    %v1588 = vsub.s32 0, %v1587
    %v1589 = vrot.slane %v1573, %v1588
    %v1590 = vmul.f32 %v1579, %v1589
    %v1591 = vmul.f32 %v1584, %v1589
    %v1592 = vld [vmem:[%s6] sm:$0xff]
    %v1593 = vld [vmem:[%s6 + $0x8] sm:$0xff]
    %1595 = vset.pattern.permute.xlu0 0
    %1596 = vperm.xlu0 %1595, %v1592
    %v1597 = vpop.permute.xlu0 %1596
    %1600 = vset.pattern.permute.xlu0 0
    %1601 = vperm.xlu0 %1600, %v1593
    %v1602 = vpop.permute.xlu0 %1601
    %v1604 = vadd.f32 %v1590, %v1597
    %v1605 = vadd.f32 %v1591, %v1602
    %v1606 = vsub.f32 0.0, %v1604
    %v1607 = vsub.f32 0.0, %v1605
    %v1608 = vmul.f32 %v1606, 1.442695
    %v1609 = vpow.pop %v1608
    %v1610 = vmul.f32 %v1607, 1.442695
    %v1611 = vpow.pop %v1610
    %v1612 = vadd.f32 %v1609, 1.0
    %v1613 = vadd.f32 %v1611, 1.0
    %v1614 = vrcp.pop %v1612
    %v1615 = vmul.f32 1.0, %v1614
    %v1616 = vrcp.pop %v1613
    %v1617 = vmul.f32 1.0, %v1616
    %v1618 = vld [vmem:[%s0 + $0x20] sm:$0xff]
    %v1619 = vld [vmem:[%s0 + $0x28] sm:$0xff]
    %v1620 = vld [vmem:[%s0 + $0x30] sm:$0xff]
    %v1621 = vld [vmem:[%s0 + $0x38] sm:$0xff]
    %v1622 = vld [vmem:[#allocation4] sm:$0xff]
    %v1623 = vld [vmem:[#allocation4 + $0x8] sm:$0xff]
    %v1624 = vld [vmem:[#allocation4 + $0x10] sm:$0xff]
    %v1625 = vld [vmem:[#allocation4 + $0x18] sm:$0xff]
    %v1626 = vadd.f32 %v1618, %v1622
    %v1627 = vadd.f32 %v1619, %v1623
    %v1628 = vadd.f32 %v1620, %v1624
    %v1629 = vadd.f32 %v1621, %v1625
    %1630 = vrot.lane.b32.xlu0 %v1626, 17
    %v1631 = vpop.permute.xlu0 %1630
    %1632 = vrot.lane.b32.xlu0 %v1628, 17
    %v1633 = vpop.permute.xlu0 %1632
    %1634 = vrot.lane.b32.xlu0 %v1627, 17
    %v1635 = vpop.permute.xlu0 %1634
    %1636 = vrot.lane.b32.xlu0 %v1629, 17
    %v1637 = vpop.permute.xlu0 %1636
    %v1638 = vsel %vm49, %v1631, %v1635
    %v1639 = vsel %vm49, %v1633, %v1637
    %v1640 = vsel %vm49, %v1635, %v1631
    %v1641 = vsel %vm49, %v1637, %v1633
    %v1642 = vld [vmem:[%s7] sm:$0x3]
    %v1644 = vlaneseq
    %v1645 = vshrl.u32 %v1644, 7
    %v1646 = vsub.s32 0, %v1645
    %v1647 = vrot.slane %v1642, %v1646
    %v1648 = vlaneseq
    %v1649 = vshrl.u32 %v1648, 7
    %v1650 = vsub.s32 1, %v1649
    %v1651 = vrot.slane %v1642, %v1650
    %v1654 = vmul.f32 %v1640, %v1647
    %v1655 = vmul.f32 %v1638, %v1651
    %v1656 = vmul.f32 %v1641, %v1647
    %v1657 = vmul.f32 %v1639, %v1651
    %1658 = vst [vmem:[#allocation2] sm:$0xff] %v1654
    %1659 = vst [vmem:[#allocation2 + $0x8] sm:$0xff] %v1655
    %1660 = vst [vmem:[#allocation2 + $0x20] sm:$0xff] %v1656
    %1661 = vst [vmem:[#allocation2 + $0x28] sm:$0xff] %v1657
    %1662 = vrot.lane.b32.xlu0 %v1626, 16
    %v1663 = vpop.permute.xlu0 %1662
    %1664 = vrot.lane.b32.xlu0 %v1628, 16
    %v1665 = vpop.permute.xlu0 %1664
    %1666 = vrot.lane.b32.xlu0 %v1627, 16
    %v1667 = vpop.permute.xlu0 %1666
    %1668 = vrot.lane.b32.xlu0 %v1629, 16
    %v1669 = vpop.permute.xlu0 %1668
    %v1670 = vsel %vm82, %v1663, %v1667
    %v1671 = vsel %vm82, %v1665, %v1669
    %v1672 = vsel %vm82, %v1667, %v1663
    %v1673 = vsel %vm82, %v1669, %v1665
    %v1674 = vld [vmem:[%s87] sm:$0x3]
    %v1676 = vlaneseq
    %v1677 = vshrl.u32 %v1676, 7
    %v1678 = vsub.s32 0, %v1677
    %v1679 = vrot.slane %v1674, %v1678
    %v1680 = vlaneseq
    %v1681 = vshrl.u32 %v1680, 7
    %v1682 = vsub.s32 1, %v1681
    %v1683 = vrot.slane %v1674, %v1682
    %v1686 = vmul.f32 %v1672, %v1679
    %v1687 = vmul.f32 %v1670, %v1683
    %v1688 = vmul.f32 %v1673, %v1679
    %v1689 = vmul.f32 %v1671, %v1683
    %1690 = vst [vmem:[#allocation2 + $0x40] sm:$0xff] %v1686
    %1691 = vst [vmem:[#allocation2 + $0x48] sm:$0xff] %v1687
    %1692 = vst [vmem:[#allocation2 + $0x60] sm:$0xff] %v1688
    %1693 = vst [vmem:[#allocation2 + $0x68] sm:$0xff] %v1689
    %1694 = vrot.lane.b32.xlu0 %v1626, 15
    %v1695 = vpop.permute.xlu0 %1694
    %1696 = vrot.lane.b32.xlu0 %v1628, 15
    %v1697 = vpop.permute.xlu0 %1696
    %1698 = vrot.lane.b32.xlu0 %v1627, 15
    %v1699 = vpop.permute.xlu0 %1698
    %1700 = vrot.lane.b32.xlu0 %v1629, 15
    %v1701 = vpop.permute.xlu0 %1700
    %v1702 = vsel %vm116, %v1695, %v1699
    %v1703 = vsel %vm116, %v1697, %v1701
    %v1704 = vsel %vm116, %v1699, %v1695
    %v1705 = vsel %vm116, %v1701, %v1697
    %v1706 = vld [vmem:[%s121] sm:$0x3]
    %v1708 = vlaneseq
    %v1709 = vshrl.u32 %v1708, 7
    %v1710 = vsub.s32 0, %v1709
    %v1711 = vrot.slane %v1706, %v1710
    %v1712 = vlaneseq
    %v1713 = vshrl.u32 %v1712, 7
    %v1714 = vsub.s32 1, %v1713
    %v1715 = vrot.slane %v1706, %v1714
    %v1718 = vmul.f32 %v1704, %v1711
    %v1719 = vmul.f32 %v1702, %v1715
    %v1720 = vmul.f32 %v1705, %v1711
    %v1721 = vmul.f32 %v1703, %v1715
    %1722 = vst [vmem:[#allocation2 + $0x80] sm:$0xff] %v1718
    %1723 = vst [vmem:[#allocation2 + $0x88] sm:$0xff] %v1719
    %1724 = vst [vmem:[#allocation2 + $0xa0] sm:$0xff] %v1720
    %1725 = vst [vmem:[#allocation2 + $0xa8] sm:$0xff] %v1721
    %1726 = vrot.lane.b32.xlu0 %v1626, 1
    %v1727 = vpop.permute.xlu0 %1726
    %1728 = vrot.lane.b32.xlu0 %v1628, 1
    %v1729 = vpop.permute.xlu0 %1728
    %1730 = vrot.lane.b32.xlu0 %v1627, 1
    %v1731 = vpop.permute.xlu0 %1730
    %1732 = vrot.lane.b32.xlu0 %v1629, 1
    %v1733 = vpop.permute.xlu0 %1732
    %v1734 = vsel %vm150, %v1727, %v1731
    %v1735 = vsel %vm150, %v1729, %v1733
    %v1736 = vsel %vm150, %v1731, %v1727
    %v1737 = vsel %vm150, %v1733, %v1729
    %v1738 = vld [vmem:[%s155] sm:$0x3]
    %v1740 = vlaneseq
    %v1741 = vshrl.u32 %v1740, 7
    %v1742 = vsub.s32 0, %v1741
    %v1743 = vrot.slane %v1738, %v1742
    %v1744 = vlaneseq
    %v1745 = vshrl.u32 %v1744, 7
    %v1746 = vsub.s32 1, %v1745
    %v1747 = vrot.slane %v1738, %v1746
    %v1750 = vmul.f32 %v1736, %v1743
    %v1751 = vmul.f32 %v1734, %v1747
    %v1752 = vmul.f32 %v1737, %v1743
    %v1753 = vmul.f32 %v1735, %v1747
    %1754 = vst [vmem:[#allocation2 + $0xc0] sm:$0xff] %v1750
    %1755 = vst [vmem:[#allocation2 + $0xc8] sm:$0xff] %v1751
    %1756 = vst [vmem:[#allocation2 + $0xe0] sm:$0xff] %v1752
    %1757 = vst [vmem:[#allocation2 + $0xe8] sm:$0xff] %v1753
    %1758 = vst [vmem:[#allocation2 + $0x100] sm:$0xff] %v1626
    %1759 = vst [vmem:[#allocation2 + $0x108] sm:$0xff] %v1627
    %1760 = vst [vmem:[#allocation2 + $0x120] sm:$0xff] %v1628
    %1761 = vst [vmem:[#allocation2 + $0x128] sm:$0xff] %v1629
    %1762 = vrot.lane.b32.xlu0 %v1626, 127
    %v1763 = vpop.permute.xlu0 %1762
    %1764 = vrot.lane.b32.xlu0 %v1628, 127
    %v1765 = vpop.permute.xlu0 %1764
    %1766 = vrot.lane.b32.xlu0 %v1627, 127
    %v1767 = vpop.permute.xlu0 %1766
    %1768 = vrot.lane.b32.xlu0 %v1629, 127
    %v1769 = vpop.permute.xlu0 %1768
    %v1770 = vsel %vm188, %v1763, %v1767
    %v1771 = vsel %vm188, %v1765, %v1769
    %v1772 = vsel %vm188, %v1767, %v1763
    %v1773 = vsel %vm188, %v1769, %v1765
    %v1774 = vld [vmem:[%s193] sm:$0x3]
    %v1776 = vlaneseq
    %v1777 = vshrl.u32 %v1776, 7
    %v1778 = vsub.s32 0, %v1777
    %v1779 = vrot.slane %v1774, %v1778
    %v1780 = vlaneseq
    %v1781 = vshrl.u32 %v1780, 7
    %v1782 = vsub.s32 1, %v1781
    %v1783 = vrot.slane %v1774, %v1782
    %v1786 = vmul.f32 %v1770, %v1779
    %v1787 = vmul.f32 %v1772, %v1783
    %v1788 = vmul.f32 %v1771, %v1779
    %v1789 = vmul.f32 %v1773, %v1783
    %1790 = vst [vmem:[#allocation2 + $0x140] sm:$0xff] %v1786
    %1791 = vst [vmem:[#allocation2 + $0x148] sm:$0xff] %v1787
    %1792 = vst [vmem:[#allocation2 + $0x160] sm:$0xff] %v1788
    %1793 = vst [vmem:[#allocation2 + $0x168] sm:$0xff] %v1789
    %1794 = vrot.lane.b32.xlu0 %v1626, 113
    %v1795 = vpop.permute.xlu0 %1794
    %1796 = vrot.lane.b32.xlu0 %v1628, 113
    %v1797 = vpop.permute.xlu0 %1796
    %1798 = vrot.lane.b32.xlu0 %v1627, 113
    %v1799 = vpop.permute.xlu0 %1798
    %1800 = vrot.lane.b32.xlu0 %v1629, 113
    %v1801 = vpop.permute.xlu0 %1800
    %v1802 = vsel %vm222, %v1795, %v1799
    %v1803 = vsel %vm222, %v1797, %v1801
    %v1804 = vsel %vm222, %v1799, %v1795
    %v1805 = vsel %vm222, %v1801, %v1797
    %v1806 = vld [vmem:[%s227] sm:$0x3]
    %v1808 = vlaneseq
    %v1809 = vshrl.u32 %v1808, 7
    %v1810 = vsub.s32 0, %v1809
    %v1811 = vrot.slane %v1806, %v1810
    %v1812 = vlaneseq
    %v1813 = vshrl.u32 %v1812, 7
    %v1814 = vsub.s32 1, %v1813
    %v1815 = vrot.slane %v1806, %v1814
    %v1818 = vmul.f32 %v1802, %v1811
    %v1819 = vmul.f32 %v1804, %v1815
    %v1820 = vmul.f32 %v1803, %v1811
    %v1821 = vmul.f32 %v1805, %v1815
    %1822 = vst [vmem:[#allocation2 + $0x180] sm:$0xff] %v1818
    %1823 = vst [vmem:[#allocation2 + $0x188] sm:$0xff] %v1819
    %1824 = vst [vmem:[#allocation2 + $0x1a0] sm:$0xff] %v1820
    %1825 = vst [vmem:[#allocation2 + $0x1a8] sm:$0xff] %v1821
    %1826 = vrot.lane.b32.xlu0 %v1626, 112
    %v1827 = vpop.permute.xlu0 %1826
    %1828 = vrot.lane.b32.xlu0 %v1628, 112
    %v1829 = vpop.permute.xlu0 %1828
    %1830 = vrot.lane.b32.xlu0 %v1627, 112
    %v1831 = vpop.permute.xlu0 %1830
    %1832 = vrot.lane.b32.xlu0 %v1629, 112
    %v1833 = vpop.permute.xlu0 %1832
    %v1834 = vsel %vm256, %v1827, %v1831
    %v1835 = vsel %vm256, %v1829, %v1833
    %v1836 = vsel %vm256, %v1831, %v1827
    %v1837 = vsel %vm256, %v1833, %v1829
    %v1838 = vld [vmem:[%s261] sm:$0x3]
    %v1840 = vlaneseq
    %v1841 = vshrl.u32 %v1840, 7
    %v1842 = vsub.s32 0, %v1841
    %v1843 = vrot.slane %v1838, %v1842
    %v1844 = vlaneseq
    %v1845 = vshrl.u32 %v1844, 7
    %v1846 = vsub.s32 1, %v1845
    %v1847 = vrot.slane %v1838, %v1846
    %v1850 = vmul.f32 %v1834, %v1843
    %v1851 = vmul.f32 %v1836, %v1847
    %v1852 = vmul.f32 %v1835, %v1843
    %v1853 = vmul.f32 %v1837, %v1847
    %1854 = vst [vmem:[#allocation2 + $0x1c0] sm:$0xff] %v1850
    %1855 = vst [vmem:[#allocation2 + $0x1c8] sm:$0xff] %v1851
    %1856 = vst [vmem:[#allocation2 + $0x1e0] sm:$0xff] %v1852
    %1857 = vst [vmem:[#allocation2 + $0x1e8] sm:$0xff] %v1853
    %1858 = vrot.lane.b32.xlu0 %v1626, 111
    %v1859 = vpop.permute.xlu0 %1858
    %1860 = vrot.lane.b32.xlu0 %v1628, 111
    %v1861 = vpop.permute.xlu0 %1860
    %1862 = vrot.lane.b32.xlu0 %v1627, 111
    %v1863 = vpop.permute.xlu0 %1862
    %1864 = vrot.lane.b32.xlu0 %v1629, 111
    %v1865 = vpop.permute.xlu0 %1864
    %v1866 = vsel %vm290, %v1859, %v1863
    %v1867 = vsel %vm290, %v1861, %v1865
    %v1868 = vsel %vm290, %v1863, %v1859
    %v1869 = vsel %vm290, %v1865, %v1861
    %v1870 = vld [vmem:[%s295] sm:$0x3]
    %v1872 = vlaneseq
    %v1873 = vshrl.u32 %v1872, 7
    %v1874 = vsub.s32 0, %v1873
    %v1875 = vrot.slane %v1870, %v1874
    %v1876 = vlaneseq
    %v1877 = vshrl.u32 %v1876, 7
    %v1878 = vsub.s32 1, %v1877
    %v1879 = vrot.slane %v1870, %v1878
    %v1882 = vmul.f32 %v1866, %v1875
    %v1883 = vmul.f32 %v1868, %v1879
    %v1884 = vmul.f32 %v1867, %v1875
    %v1885 = vmul.f32 %v1869, %v1879
    %1886 = vst [vmem:[#allocation2 + $0x200] sm:$0xff] %v1882
    %1887 = vst [vmem:[#allocation2 + $0x208] sm:$0xff] %v1883
    %1888 = vst [vmem:[#allocation2 + $0x220] sm:$0xff] %v1884
    %1889 = vst [vmem:[#allocation2 + $0x228] sm:$0xff] %v1885
    %v1890 = vld [vmem:[%s316 + $0x20] sm:$0xff]
    %v1891 = vld [vmem:[%s316 + $0x28] sm:$0xff]
    %v1892 = vld [vmem:[%s316 + $0x30] sm:$0xff]
    %v1893 = vld [vmem:[%s316 + $0x38] sm:$0xff]
    %v1894 = vld [vmem:[%s834] sm:$0xff]
    %v1895 = vld [vmem:[%s834 + $0x8] sm:$0xff]
    %v1896 = vld [vmem:[%s834 + $0x10] sm:$0xff]
    %v1897 = vld [vmem:[%s834 + $0x18] sm:$0xff]
    %v1898 = vadd.f32 %v1890, %v1894
    %v1899 = vadd.f32 %v1891, %v1895
    %v1900 = vadd.f32 %v1892, %v1896
    %v1901 = vadd.f32 %v1893, %v1897
    %1902 = vrot.lane.b32.xlu0 %v1898, 17
    %v1903 = vpop.permute.xlu0 %1902
    %1904 = vrot.lane.b32.xlu0 %v1900, 17
    %v1905 = vpop.permute.xlu0 %1904
    %1906 = vrot.lane.b32.xlu0 %v1899, 17
    %v1907 = vpop.permute.xlu0 %1906
    %1908 = vrot.lane.b32.xlu0 %v1901, 17
    %v1909 = vpop.permute.xlu0 %1908
    %v1910 = vsel %vm49, %v1903, %v1907
    %v1911 = vsel %vm49, %v1905, %v1909
    %v1912 = vsel %vm49, %v1907, %v1903
    %v1913 = vsel %vm49, %v1909, %v1905
    %v1914 = vld [vmem:[%s7] sm:$0x3]
    %v1916 = vlaneseq
    %v1917 = vshrl.u32 %v1916, 7
    %v1918 = vsub.s32 0, %v1917
    %v1919 = vrot.slane %v1914, %v1918
    %v1920 = vlaneseq
    %v1921 = vshrl.u32 %v1920, 7
    %v1922 = vsub.s32 1, %v1921
    %v1923 = vrot.slane %v1914, %v1922
    %v1926 = vmul.f32 %v1912, %v1919
    %v1927 = vmul.f32 %v1910, %v1923
    %v1928 = vmul.f32 %v1913, %v1919
    %v1929 = vmul.f32 %v1911, %v1923
    %1930 = vst [vmem:[#allocation2 + $0x10] sm:$0xff] %v1926
    %1931 = vst [vmem:[#allocation2 + $0x18] sm:$0xff] %v1927
    %1932 = vst [vmem:[#allocation2 + $0x30] sm:$0xff] %v1928
    %1933 = vst [vmem:[#allocation2 + $0x38] sm:$0xff] %v1929
    %1934 = vrot.lane.b32.xlu0 %v1898, 16
    %v1935 = vpop.permute.xlu0 %1934
    %1936 = vrot.lane.b32.xlu0 %v1900, 16
    %v1937 = vpop.permute.xlu0 %1936
    %1938 = vrot.lane.b32.xlu0 %v1899, 16
    %v1939 = vpop.permute.xlu0 %1938
    %1940 = vrot.lane.b32.xlu0 %v1901, 16
    %v1941 = vpop.permute.xlu0 %1940
    %v1942 = vsel %vm82, %v1935, %v1939
    %v1943 = vsel %vm82, %v1937, %v1941
    %v1944 = vsel %vm82, %v1939, %v1935
    %v1945 = vsel %vm82, %v1941, %v1937
    %v1946 = vld [vmem:[%s87] sm:$0x3]
    %v1948 = vlaneseq
    %v1949 = vshrl.u32 %v1948, 7
    %v1950 = vsub.s32 0, %v1949
    %v1951 = vrot.slane %v1946, %v1950
    %v1952 = vlaneseq
    %v1953 = vshrl.u32 %v1952, 7
    %v1954 = vsub.s32 1, %v1953
    %v1955 = vrot.slane %v1946, %v1954
    %v1958 = vmul.f32 %v1944, %v1951
    %v1959 = vmul.f32 %v1942, %v1955
    %v1960 = vmul.f32 %v1945, %v1951
    %v1961 = vmul.f32 %v1943, %v1955
    %1962 = vst [vmem:[#allocation2 + $0x50] sm:$0xff] %v1958
    %1963 = vst [vmem:[#allocation2 + $0x58] sm:$0xff] %v1959
    %1964 = vst [vmem:[#allocation2 + $0x70] sm:$0xff] %v1960
    %1965 = vst [vmem:[#allocation2 + $0x78] sm:$0xff] %v1961
    %1966 = vrot.lane.b32.xlu0 %v1898, 15
    %v1967 = vpop.permute.xlu0 %1966
    %1968 = vrot.lane.b32.xlu0 %v1900, 15
    %v1969 = vpop.permute.xlu0 %1968
    %1970 = vrot.lane.b32.xlu0 %v1899, 15
    %v1971 = vpop.permute.xlu0 %1970
    %1972 = vrot.lane.b32.xlu0 %v1901, 15
    %v1973 = vpop.permute.xlu0 %1972
    %v1974 = vsel %vm116, %v1967, %v1971
    %v1975 = vsel %vm116, %v1969, %v1973
    %v1976 = vsel %vm116, %v1971, %v1967
    %v1977 = vsel %vm116, %v1973, %v1969
    %v1978 = vld [vmem:[%s121] sm:$0x3]
    %v1980 = vlaneseq
    %v1981 = vshrl.u32 %v1980, 7
    %v1982 = vsub.s32 0, %v1981
    %v1983 = vrot.slane %v1978, %v1982
    %v1984 = vlaneseq
    %v1985 = vshrl.u32 %v1984, 7
    %v1986 = vsub.s32 1, %v1985
    %v1987 = vrot.slane %v1978, %v1986
    %v1990 = vmul.f32 %v1976, %v1983
    %v1991 = vmul.f32 %v1974, %v1987
    %v1992 = vmul.f32 %v1977, %v1983
    %v1993 = vmul.f32 %v1975, %v1987
    %1994 = vst [vmem:[#allocation2 + $0x90] sm:$0xff] %v1990
    %1995 = vst [vmem:[#allocation2 + $0x98] sm:$0xff] %v1991
    %1996 = vst [vmem:[#allocation2 + $0xb0] sm:$0xff] %v1992
    %1997 = vst [vmem:[#allocation2 + $0xb8] sm:$0xff] %v1993
    %1998 = vrot.lane.b32.xlu0 %v1898, 1
    %v1999 = vpop.permute.xlu0 %1998
    %2000 = vrot.lane.b32.xlu0 %v1900, 1
    %v2001 = vpop.permute.xlu0 %2000
    %2002 = vrot.lane.b32.xlu0 %v1899, 1
    %v2003 = vpop.permute.xlu0 %2002
    %2004 = vrot.lane.b32.xlu0 %v1901, 1
    %v2005 = vpop.permute.xlu0 %2004
    %v2006 = vsel %vm150, %v1999, %v2003
    %v2007 = vsel %vm150, %v2001, %v2005
    %v2008 = vsel %vm150, %v2003, %v1999
    %v2009 = vsel %vm150, %v2005, %v2001
    %v2010 = vld [vmem:[%s155] sm:$0x3]
    %v2012 = vlaneseq
    %v2013 = vshrl.u32 %v2012, 7
    %v2014 = vsub.s32 0, %v2013
    %v2015 = vrot.slane %v2010, %v2014
    %v2016 = vlaneseq
    %v2017 = vshrl.u32 %v2016, 7
    %v2018 = vsub.s32 1, %v2017
    %v2019 = vrot.slane %v2010, %v2018
    %v2022 = vmul.f32 %v2008, %v2015
    %v2023 = vmul.f32 %v2006, %v2019
    %v2024 = vmul.f32 %v2009, %v2015
    %v2025 = vmul.f32 %v2007, %v2019
    %2026 = vst [vmem:[#allocation2 + $0xd0] sm:$0xff] %v2022
    %2027 = vst [vmem:[#allocation2 + $0xd8] sm:$0xff] %v2023
    %2028 = vst [vmem:[#allocation2 + $0xf0] sm:$0xff] %v2024
    %2029 = vst [vmem:[#allocation2 + $0xf8] sm:$0xff] %v2025
    %2030 = vst [vmem:[#allocation2 + $0x110] sm:$0xff] %v1898
    %2031 = vst [vmem:[#allocation2 + $0x118] sm:$0xff] %v1899
    %2032 = vst [vmem:[#allocation2 + $0x130] sm:$0xff] %v1900
    %2033 = vst [vmem:[#allocation2 + $0x138] sm:$0xff] %v1901
    %2034 = vrot.lane.b32.xlu0 %v1898, 127
    %v2035 = vpop.permute.xlu0 %2034
    %2036 = vrot.lane.b32.xlu0 %v1900, 127
    %v2037 = vpop.permute.xlu0 %2036
    %2038 = vrot.lane.b32.xlu0 %v1899, 127
    %v2039 = vpop.permute.xlu0 %2038
    %2040 = vrot.lane.b32.xlu0 %v1901, 127
    %v2041 = vpop.permute.xlu0 %2040
    %v2042 = vsel %vm188, %v2035, %v2039
    %v2043 = vsel %vm188, %v2037, %v2041
    %v2044 = vsel %vm188, %v2039, %v2035
    %v2045 = vsel %vm188, %v2041, %v2037
    %v2046 = vld [vmem:[%s193] sm:$0x3]
    %v2048 = vlaneseq
    %v2049 = vshrl.u32 %v2048, 7
    %v2050 = vsub.s32 0, %v2049
    %v2051 = vrot.slane %v2046, %v2050
    %v2052 = vlaneseq
    %v2053 = vshrl.u32 %v2052, 7
    %v2054 = vsub.s32 1, %v2053
    %v2055 = vrot.slane %v2046, %v2054
    %v2058 = vmul.f32 %v2042, %v2051
    %v2059 = vmul.f32 %v2044, %v2055
    %v2060 = vmul.f32 %v2043, %v2051
    %v2061 = vmul.f32 %v2045, %v2055
    %2062 = vst [vmem:[#allocation2 + $0x150] sm:$0xff] %v2058
    %2063 = vst [vmem:[#allocation2 + $0x158] sm:$0xff] %v2059
    %2064 = vst [vmem:[#allocation2 + $0x170] sm:$0xff] %v2060
    %2065 = vst [vmem:[#allocation2 + $0x178] sm:$0xff] %v2061
    %2066 = vrot.lane.b32.xlu0 %v1898, 113
    %v2067 = vpop.permute.xlu0 %2066
    %2068 = vrot.lane.b32.xlu0 %v1900, 113
    %v2069 = vpop.permute.xlu0 %2068
    %2070 = vrot.lane.b32.xlu0 %v1899, 113
    %v2071 = vpop.permute.xlu0 %2070
    %2072 = vrot.lane.b32.xlu0 %v1901, 113
    %v2073 = vpop.permute.xlu0 %2072
    %v2074 = vsel %vm222, %v2067, %v2071
    %v2075 = vsel %vm222, %v2069, %v2073
    %v2076 = vsel %vm222, %v2071, %v2067
    %v2077 = vsel %vm222, %v2073, %v2069
    %v2078 = vld [vmem:[%s227] sm:$0x3]
    %v2080 = vlaneseq
    %v2081 = vshrl.u32 %v2080, 7
    %v2082 = vsub.s32 0, %v2081
    %v2083 = vrot.slane %v2078, %v2082
    %v2084 = vlaneseq
    %v2085 = vshrl.u32 %v2084, 7
    %v2086 = vsub.s32 1, %v2085
    %v2087 = vrot.slane %v2078, %v2086
    %v2090 = vmul.f32 %v2074, %v2083
    %v2091 = vmul.f32 %v2076, %v2087
    %v2092 = vmul.f32 %v2075, %v2083
    %v2093 = vmul.f32 %v2077, %v2087
    %2094 = vst [vmem:[#allocation2 + $0x190] sm:$0xff] %v2090
    %2095 = vst [vmem:[#allocation2 + $0x198] sm:$0xff] %v2091
    %2096 = vst [vmem:[#allocation2 + $0x1b0] sm:$0xff] %v2092
    %2097 = vst [vmem:[#allocation2 + $0x1b8] sm:$0xff] %v2093
    %2098 = vrot.lane.b32.xlu0 %v1898, 112
    %v2099 = vpop.permute.xlu0 %2098
    %2100 = vrot.lane.b32.xlu0 %v1900, 112
    %v2101 = vpop.permute.xlu0 %2100
    %2102 = vrot.lane.b32.xlu0 %v1899, 112
    %v2103 = vpop.permute.xlu0 %2102
    %2104 = vrot.lane.b32.xlu0 %v1901, 112
    %v2105 = vpop.permute.xlu0 %2104
    %v2106 = vsel %vm256, %v2099, %v2103
    %v2107 = vsel %vm256, %v2101, %v2105
    %v2108 = vsel %vm256, %v2103, %v2099
    %v2109 = vsel %vm256, %v2105, %v2101
    %v2110 = vld [vmem:[%s261] sm:$0x3]
    %v2112 = vlaneseq
    %v2113 = vshrl.u32 %v2112, 7
    %v2114 = vsub.s32 0, %v2113
    %v2115 = vrot.slane %v2110, %v2114
    %v2116 = vlaneseq
    %v2117 = vshrl.u32 %v2116, 7
    %v2118 = vsub.s32 1, %v2117
    %v2119 = vrot.slane %v2110, %v2118
    %v2122 = vmul.f32 %v2106, %v2115
    %v2123 = vmul.f32 %v2108, %v2119
    %v2124 = vmul.f32 %v2107, %v2115
    %v2125 = vmul.f32 %v2109, %v2119
    %2126 = vst [vmem:[#allocation2 + $0x1d0] sm:$0xff] %v2122
    %2127 = vst [vmem:[#allocation2 + $0x1d8] sm:$0xff] %v2123
    %2128 = vst [vmem:[#allocation2 + $0x1f0] sm:$0xff] %v2124
    %2129 = vst [vmem:[#allocation2 + $0x1f8] sm:$0xff] %v2125
    %2130 = vrot.lane.b32.xlu0 %v1898, 111
    %v2131 = vpop.permute.xlu0 %2130
    %2132 = vrot.lane.b32.xlu0 %v1900, 111
    %v2133 = vpop.permute.xlu0 %2132
    %2134 = vrot.lane.b32.xlu0 %v1899, 111
    %v2135 = vpop.permute.xlu0 %2134
    %2136 = vrot.lane.b32.xlu0 %v1901, 111
    %v2137 = vpop.permute.xlu0 %2136
    %v2138 = vsel %vm290, %v2131, %v2135
    %v2139 = vsel %vm290, %v2133, %v2137
    %v2140 = vsel %vm290, %v2135, %v2131
    %v2141 = vsel %vm290, %v2137, %v2133
    %v2142 = vld [vmem:[%s295] sm:$0x3]
    %v2144 = vlaneseq
    %v2145 = vshrl.u32 %v2144, 7
    %v2146 = vsub.s32 0, %v2145
    %v2147 = vrot.slane %v2142, %v2146
    %v2148 = vlaneseq
    %v2149 = vshrl.u32 %v2148, 7
    %v2150 = vsub.s32 1, %v2149
    %v2151 = vrot.slane %v2142, %v2150
    %v2154 = vmul.f32 %v2138, %v2147
    %v2155 = vmul.f32 %v2140, %v2151
    %v2156 = vmul.f32 %v2139, %v2147
    %v2157 = vmul.f32 %v2141, %v2151
    %2158 = vst [vmem:[#allocation2 + $0x210] sm:$0xff] %v2154
    %2159 = vst [vmem:[#allocation2 + $0x218] sm:$0xff] %v2155
    %2160 = vst [vmem:[#allocation2 + $0x230] sm:$0xff] %v2156
    %2161 = vst [vmem:[#allocation2 + $0x238] sm:$0xff] %v2157
    %s2162 = scalar_lea.vmem %s1, 32
    %v2163 = vld [vmem:[%s2162] sm:$0xff]
    %v2164 = vld [vmem:[%s2162 + $0x8] sm:$0xff]
    %v2165 = vld [vmem:[%s2162 + $0x10] sm:$0xff]
    %v2166 = vld [vmem:[%s2162 + $0x18] sm:$0xff]
    %v2167 = vld [vmem:[#allocation2] sm:$0xff]
    %v2168 = vld [vmem:[#allocation2 + $0x8] sm:$0xff]
    %v2169 = vld [vmem:[#allocation2 + $0x10] sm:$0xff]
    %v2170 = vld [vmem:[#allocation2 + $0x18] sm:$0xff]
    %v2171 = vld [vmem:[#allocation2 + $0x20] sm:$0xff]
    %v2172 = vld [vmem:[#allocation2 + $0x28] sm:$0xff]
    %v2173 = vld [vmem:[#allocation2 + $0x30] sm:$0xff]
    %v2174 = vld [vmem:[#allocation2 + $0x38] sm:$0xff]
    %v2175 = vld [vmem:[#allocation2 + $0x40] sm:$0xff]
    %v2176 = vld [vmem:[#allocation2 + $0x48] sm:$0xff]
    %v2177 = vld [vmem:[#allocation2 + $0x50] sm:$0xff]
    %v2178 = vld [vmem:[#allocation2 + $0x58] sm:$0xff]
    %v2179 = vld [vmem:[#allocation2 + $0x60] sm:$0xff]
    %v2180 = vld [vmem:[#allocation2 + $0x68] sm:$0xff]
    %v2181 = vld [vmem:[#allocation2 + $0x70] sm:$0xff]
    %v2182 = vld [vmem:[#allocation2 + $0x78] sm:$0xff]
    %v2183 = vld [vmem:[#allocation2 + $0x80] sm:$0xff]
    %v2184 = vld [vmem:[#allocation2 + $0x88] sm:$0xff]
    %v2185 = vld [vmem:[#allocation2 + $0x90] sm:$0xff]
    %v2186 = vld [vmem:[#allocation2 + $0x98] sm:$0xff]
    %v2187 = vld [vmem:[#allocation2 + $0xa0] sm:$0xff]
    %v2188 = vld [vmem:[#allocation2 + $0xa8] sm:$0xff]
    %v2189 = vld [vmem:[#allocation2 + $0xb0] sm:$0xff]
    %v2190 = vld [vmem:[#allocation2 + $0xb8] sm:$0xff]
    %v2191 = vld [vmem:[#allocation2 + $0xc0] sm:$0xff]
    %v2192 = vld [vmem:[#allocation2 + $0xc8] sm:$0xff]
    %v2193 = vld [vmem:[#allocation2 + $0xd0] sm:$0xff]
    %v2194 = vld [vmem:[#allocation2 + $0xd8] sm:$0xff]
    %v2195 = vld [vmem:[#allocation2 + $0xe0] sm:$0xff]
    %v2196 = vld [vmem:[#allocation2 + $0xe8] sm:$0xff]
    %v2197 = vld [vmem:[#allocation2 + $0xf0] sm:$0xff]
    %v2198 = vld [vmem:[#allocation2 + $0xf8] sm:$0xff]
    %v2199 = vld [vmem:[#allocation2 + $0x100] sm:$0xff]
    %v2200 = vld [vmem:[#allocation2 + $0x108] sm:$0xff]
    %v2201 = vld [vmem:[#allocation2 + $0x110] sm:$0xff]
    %v2202 = vld [vmem:[#allocation2 + $0x118] sm:$0xff]
    %v2203 = vld [vmem:[#allocation2 + $0x120] sm:$0xff]
    %v2204 = vld [vmem:[#allocation2 + $0x128] sm:$0xff]
    %v2205 = vld [vmem:[#allocation2 + $0x130] sm:$0xff]
    %v2206 = vld [vmem:[#allocation2 + $0x138] sm:$0xff]
    %v2207 = vld [vmem:[#allocation2 + $0x140] sm:$0xff]
    %v2208 = vld [vmem:[#allocation2 + $0x148] sm:$0xff]
    %v2209 = vld [vmem:[#allocation2 + $0x150] sm:$0xff]
    %v2210 = vld [vmem:[#allocation2 + $0x158] sm:$0xff]
    %v2211 = vld [vmem:[#allocation2 + $0x160] sm:$0xff]
    %v2212 = vld [vmem:[#allocation2 + $0x168] sm:$0xff]
    %v2213 = vld [vmem:[#allocation2 + $0x170] sm:$0xff]
    %v2214 = vld [vmem:[#allocation2 + $0x178] sm:$0xff]
    %v2215 = vld [vmem:[#allocation2 + $0x180] sm:$0xff]
    %v2216 = vld [vmem:[#allocation2 + $0x188] sm:$0xff]
    %v2217 = vld [vmem:[#allocation2 + $0x190] sm:$0xff]
    %v2218 = vld [vmem:[#allocation2 + $0x198] sm:$0xff]
    %v2219 = vld [vmem:[#allocation2 + $0x1a0] sm:$0xff]
    %v2220 = vld [vmem:[#allocation2 + $0x1a8] sm:$0xff]
    %v2221 = vld [vmem:[#allocation2 + $0x1b0] sm:$0xff]
    %v2222 = vld [vmem:[#allocation2 + $0x1b8] sm:$0xff]
    %v2223 = vld [vmem:[#allocation2 + $0x1c0] sm:$0xff]
    %v2224 = vld [vmem:[#allocation2 + $0x1c8] sm:$0xff]
    %v2225 = vld [vmem:[#allocation2 + $0x1d0] sm:$0xff]
    %v2226 = vld [vmem:[#allocation2 + $0x1d8] sm:$0xff]
    %v2227 = vld [vmem:[#allocation2 + $0x1e0] sm:$0xff]
    %v2228 = vld [vmem:[#allocation2 + $0x1e8] sm:$0xff]
    %v2229 = vld [vmem:[#allocation2 + $0x1f0] sm:$0xff]
    %v2230 = vld [vmem:[#allocation2 + $0x1f8] sm:$0xff]
    %v2231 = vld [vmem:[#allocation2 + $0x200] sm:$0xff]
    %v2232 = vld [vmem:[#allocation2 + $0x208] sm:$0xff]
    %v2233 = vld [vmem:[#allocation2 + $0x210] sm:$0xff]
    %v2234 = vld [vmem:[#allocation2 + $0x218] sm:$0xff]
    %v2235 = vld [vmem:[#allocation2 + $0x220] sm:$0xff]
    %v2236 = vld [vmem:[#allocation2 + $0x228] sm:$0xff]
    %v2237 = vld [vmem:[#allocation2 + $0x230] sm:$0xff]
    %v2238 = vld [vmem:[#allocation2 + $0x238] sm:$0xff]
    %s2239 = scalar_lea.vmem %s2, 16
    %v2240 = vld [vmem:[%s2239] sm:$0xff]
    %v2241 = vld [vmem:[%s2239 + $0x8] sm:$0xff]
    %2243 = vset.pattern.permute.xlu0 0
    %2244 = vperm.xlu0 %2243, %v2240
    %v2245 = vpop.permute.xlu0 %2244
    %2248 = vset.pattern.permute.xlu0 0
    %2249 = vperm.xlu0 %2248, %v2241
    %v2250 = vpop.permute.xlu0 %2249
    %v2253 = vsel %vm669, %v2164, 0
    %v2256 = vsel %vm669, %v2166, 0
    %2258 = vmatprep.subr.mxu0 %v2168
    %2259 = vmatpush1.msra.mxu0 %v2167
    %2260 = vmatprep.subr.mxu0 %v2172
    %2261 = vmatpush1.msra.mxu0 %v2171
    %2262 = vmatprep.subr.mxu0 %v2176
    %2263 = vmatpush1.msra.mxu0 %v2175
    %2264 = vmatprep.subr.mxu0 %v2180
    %2265 = vmatpush1.msra.mxu0 %v2179
    %2266 = vmatprep.subr.mxu0 %v2184
    %2267 = vmatpush1.msra.mxu0 %v2183
    %2268 = vmatprep.subr.mxu0 %v2188
    %2269 = vmatpush1.msra.mxu0 %v2187
    %2270 = vmatprep.subr.mxu0 %v2192
    %2271 = vmatpush1.msra.mxu0 %v2191
    %2272 = vmatprep.subr.mxu0 %v2196
    %2273 = vmatpush1.msra.mxu0 %v2195
    %2274 = vmatprep.subr.mxu0 %v2200
    %2275 = vmatpush1.msra.mxu0 %v2199
    %2276 = vmatprep.subr.mxu0 %v2204
    %2277 = vmatpush1.msra.mxu0 %v2203
    %2278 = vmatprep.subr.mxu0 %v2208
    %2279 = vmatpush1.msra.mxu0 %v2207
    %2280 = vmatprep.subr.mxu0 %v2212
    %2281 = vmatpush1.msra.mxu0 %v2211
    %2282 = vmatprep.subr.mxu0 %v2216
    %2283 = vmatpush1.msra.mxu0 %v2215
    %2284 = vmatprep.subr.mxu0 %v2220
    %2285 = vmatpush1.msra.mxu0 %v2219
    %2286 = vmatprep.subr.mxu0 %v2224
    %2287 = vmatpush1.msra.mxu0 %v2223
    %2288 = vmatprep.subr.mxu0 %v2228
    %2289 = vmatpush1.msra.mxu0 %v2227
    %2290 = vmatprep.subr.mxu0 %v2232
    %2291 = vmatpush1.msra.mxu0 %v2231
    %2292 = vmatprep.subr.mxu0 %v2236
    %2293 = vmatpush1.msra.mxu0 %v2235
    %2294 = vmatprep.subr.mxu0 0.0
    %2295 = vmatpush1.msra.mxu0 0.0
    %2296 = vmatprep.subr.mxu0 0.0
    %2297 = vmatpush1.msra.mxu0 0.0
    %2298 = vmatprep.subr.mxu0 0.0
    %2299 = vmatpush1.msra.mxu0 0.0
    %2300 = vmatprep.subr.mxu0 0.0
    %2301 = vmatpush1.msra.mxu0 0.0
    %2302 = vmatprep.subr.mxu0 0.0
    %2303 = vmatpush1.msra.mxu0 0.0
    %2304 = vmatprep.subr.mxu0 0.0
    %2305 = vmatpush1.msra.mxu0 0.0
    %2306 = vmatprep.subr.mxu0 0.0
    %2307 = vmatpush1.msra.mxu0 0.0
    %2308 = vmatprep.subr.mxu0 0.0
    %2309 = vmatpush1.msra.mxu0 0.0
    %2310 = vmatprep.subr.mxu0 0.0
    %2311 = vmatpush1.msra.mxu0 0.0
    %2312 = vmatprep.subr.mxu0 0.0
    %2313 = vmatpush1.msra.mxu0 0.0
    %2314 = vmatprep.subr.mxu0 0.0
    %2315 = vmatpush1.msra.mxu0 0.0
    %2316 = vmatprep.subr.mxu0 0.0
    %2317 = vmatpush1.msra.mxu0 0.0
    %2318 = vmatprep.subr.mxu0 0.0
    %2319 = vmatpush1.msra.mxu0 0.0
    %2320 = vmatprep.subr.mxu0 0.0
    %2321 = vmatpush1.msra.mxu0 0.0
    %2322 = vmatprep.mubr.f32.mxu0 %v2253
    %2323 = vmatmul.mubr.f32.gmra.mrb[0].mxu0 %v2163
    %v2324 = vpop.f32.mrb[0].mxu0
    %v2325 = vadd.f32 %v2245, %v2324
    %v2326 = vpop.f32.mrb[0].mxu0
    %v2327 = vadd.f32 %v2245, %v2326
    %2328 = vmatprep.mubr.f32.mxu0 %v2256
    %2329 = vmatmul.mubr.f32.gmra.mrb[0].mxu0 %v2165
    %v2330 = vpop.f32.mrb[0].mxu0
    %v2331 = vadd.f32 %v2250, %v2330
    %v2332 = vpop.f32.mrb[0].mxu0
    %v2333 = vadd.f32 %v2250, %v2332
    %2334 = vdwg.mxu0
    %2335 = vmatprep.subr.mxu0 %v2170
    %2336 = vmatpush1.msra.mxu0 %v2169
    %2337 = vmatprep.subr.mxu0 %v2174
    %2338 = vmatpush1.msra.mxu0 %v2173
    %2339 = vmatprep.subr.mxu0 %v2178
    %2340 = vmatpush1.msra.mxu0 %v2177
    %2341 = vmatprep.subr.mxu0 %v2182
    %2342 = vmatpush1.msra.mxu0 %v2181
    %2343 = vmatprep.subr.mxu0 %v2186
    %2344 = vmatpush1.msra.mxu0 %v2185
    %2345 = vmatprep.subr.mxu0 %v2190
    %2346 = vmatpush1.msra.mxu0 %v2189
    %2347 = vmatprep.subr.mxu0 %v2194
    %2348 = vmatpush1.msra.mxu0 %v2193
    %2349 = vmatprep.subr.mxu0 %v2198
    %2350 = vmatpush1.msra.mxu0 %v2197
    %2351 = vmatprep.subr.mxu0 %v2202
    %2352 = vmatpush1.msra.mxu0 %v2201
    %2353 = vmatprep.subr.mxu0 %v2206
    %2354 = vmatpush1.msra.mxu0 %v2205
    %2355 = vmatprep.subr.mxu0 %v2210
    %2356 = vmatpush1.msra.mxu0 %v2209
    %2357 = vmatprep.subr.mxu0 %v2214
    %2358 = vmatpush1.msra.mxu0 %v2213
    %2359 = vmatprep.subr.mxu0 %v2218
    %2360 = vmatpush1.msra.mxu0 %v2217
    %2361 = vmatprep.subr.mxu0 %v2222
    %2362 = vmatpush1.msra.mxu0 %v2221
    %2363 = vmatprep.subr.mxu0 %v2226
    %2364 = vmatpush1.msra.mxu0 %v2225
    %2365 = vmatprep.subr.mxu0 %v2230
    %2366 = vmatpush1.msra.mxu0 %v2229
    %2367 = vmatprep.subr.mxu0 %v2234
    %2368 = vmatpush1.msra.mxu0 %v2233
    %2369 = vmatprep.subr.mxu0 %v2238
    %2370 = vmatpush1.msra.mxu0 %v2237
    %2371 = vmatprep.subr.mxu0 0.0
    %2372 = vmatpush1.msra.mxu0 0.0
    %2373 = vmatprep.subr.mxu0 0.0
    %2374 = vmatpush1.msra.mxu0 0.0
    %2375 = vmatprep.subr.mxu0 0.0
    %2376 = vmatpush1.msra.mxu0 0.0
    %2377 = vmatprep.subr.mxu0 0.0
    %2378 = vmatpush1.msra.mxu0 0.0
    %2379 = vmatprep.subr.mxu0 0.0
    %2380 = vmatpush1.msra.mxu0 0.0
    %2381 = vmatprep.subr.mxu0 0.0
    %2382 = vmatpush1.msra.mxu0 0.0
    %2383 = vmatprep.subr.mxu0 0.0
    %2384 = vmatpush1.msra.mxu0 0.0
    %2385 = vmatprep.subr.mxu0 0.0
    %2386 = vmatpush1.msra.mxu0 0.0
    %2387 = vmatprep.subr.mxu0 0.0
    %2388 = vmatpush1.msra.mxu0 0.0
    %2389 = vmatprep.subr.mxu0 0.0
    %2390 = vmatpush1.msra.mxu0 0.0
    %2391 = vmatprep.subr.mxu0 0.0
    %2392 = vmatpush1.msra.mxu0 0.0
    %2393 = vmatprep.subr.mxu0 0.0
    %2394 = vmatpush1.msra.mxu0 0.0
    %2395 = vmatprep.subr.mxu0 0.0
    %2396 = vmatpush1.msra.mxu0 0.0
    %2397 = vmatprep.subr.mxu0 0.0
    %2398 = vmatpush1.msra.mxu0 0.0
    %2399 = vmatprep.mubr.f32.mxu0 %v2253
    %2400 = vmatmul.mubr.f32.gmra.mrb[0].mxu0 %v2163
    %v2401 = vpop.f32.mrb[0].mxu0
    %v2402 = vadd.f32 %v2245, %v2401
    %v2403 = vpop.f32.mrb[0].mxu0
    %v2404 = vadd.f32 %v2245, %v2403
    %2405 = vmatprep.mubr.f32.mxu0 %v2256
    %2406 = vmatmul.mubr.f32.gmra.mrb[0].mxu0 %v2165
    %v2407 = vpop.f32.mrb[0].mxu0
    %v2408 = vadd.f32 %v2250, %v2407
    %v2409 = vpop.f32.mrb[0].mxu0
    %v2410 = vadd.f32 %v2250, %v2409
    %2411 = vdwg.mxu0
    %2412 = vst [vmem:[#allocation4 + $0x20] sm:$0xff] %v2325
    %2413 = vst [vmem:[#allocation4 + $0x28] sm:$0xff] %v2327
    %2414 = vst [vmem:[#allocation4 + $0x30] sm:$0xff] %v2331
    %2415 = vst [vmem:[#allocation4 + $0x38] sm:$0xff] %v2333
    %2416 = vst [vmem:[%s834 + $0x20] sm:$0xff] %v2402
    %2417 = vst [vmem:[%s834 + $0x28] sm:$0xff] %v2404
    %2418 = vst [vmem:[%s834 + $0x30] sm:$0xff] %v2408
    %2419 = vst [vmem:[%s834 + $0x38] sm:$0xff] %v2410
    %v2420 = vld [vmem:[%s8] sm:$0xff]
    %v2421 = vld [vmem:[%s8 + $0x8] sm:$0xff]
    %v2422 = vld [vmem:[%s8 + $0x10] sm:$0xff]
    %v2423 = vld [vmem:[%s8 + $0x18] sm:$0xff]
    %v2424 = vld [vmem:[%s8 + $0x20] sm:$0xff]
    %v2425 = vld [vmem:[%s8 + $0x28] sm:$0xff]
    %v2426 = vld [vmem:[%s8 + $0x30] sm:$0xff]
    %v2427 = vld [vmem:[%s8 + $0x38] sm:$0xff]
    %v2428 = vld [vmem:[%s8 + $0x40] sm:$0xff]
    %v2429 = vld [vmem:[%s8 + $0x48] sm:$0xff]
    %v2430 = vld [vmem:[%s8 + $0x50] sm:$0xff]
    %v2431 = vld [vmem:[%s8 + $0x58] sm:$0xff]
    %v2432 = vld [vmem:[%s8 + $0x60] sm:$0xff]
    %v2433 = vld [vmem:[%s8 + $0x68] sm:$0xff]
    %v2434 = vld [vmem:[%s8 + $0x70] sm:$0xff]
    %v2435 = vld [vmem:[%s8 + $0x78] sm:$0xff]
    %v2436 = vld [vmem:[%s8 + $0x80] sm:$0xff]
    %v2437 = vld [vmem:[%s8 + $0x88] sm:$0xff]
    %v2438 = vld [vmem:[%s8 + $0x90] sm:$0xff]
    %v2439 = vld [vmem:[%s8 + $0x98] sm:$0xff]
    %v2440 = vld [vmem:[%s8 + $0xa0] sm:$0xff]
    %v2441 = vld [vmem:[%s8 + $0xa8] sm:$0xff]
    %v2442 = vld [vmem:[%s8 + $0xb0] sm:$0xff]
    %v2443 = vld [vmem:[%s8 + $0xb8] sm:$0xff]
    %v2444 = vld [vmem:[%s8 + $0xc0] sm:$0xff]
    %v2445 = vld [vmem:[%s8 + $0xc8] sm:$0xff]
    %v2446 = vld [vmem:[%s8 + $0xd0] sm:$0xff]
    %v2447 = vld [vmem:[%s8 + $0xd8] sm:$0xff]
    %v2448 = vld [vmem:[%s8 + $0xe0] sm:$0xff]
    %v2449 = vld [vmem:[%s8 + $0xe8] sm:$0xff]
    %v2450 = vld [vmem:[%s8 + $0xf0] sm:$0xff]
    %v2451 = vld [vmem:[%s8 + $0xf8] sm:$0xff]
    %v2452 = vld [vmem:[%s8 + $0x100] sm:$0xff]
    %v2453 = vld [vmem:[%s8 + $0x108] sm:$0xff]
    %v2454 = vld [vmem:[%s8 + $0x110] sm:$0xff]
    %v2455 = vld [vmem:[%s8 + $0x118] sm:$0xff]
    %v2456 = vld [vmem:[%s8 + $0x120] sm:$0xff]
    %v2457 = vld [vmem:[%s8 + $0x128] sm:$0xff]
    %v2458 = vld [vmem:[%s8 + $0x130] sm:$0xff]
    %v2459 = vld [vmem:[%s8 + $0x138] sm:$0xff]
    %v2460 = vld [vmem:[%s8 + $0x140] sm:$0xff]
    %v2461 = vld [vmem:[%s8 + $0x148] sm:$0xff]
    %v2462 = vld [vmem:[%s8 + $0x150] sm:$0xff]
    %v2463 = vld [vmem:[%s8 + $0x158] sm:$0xff]
    %v2464 = vld [vmem:[%s8 + $0x160] sm:$0xff]
    %v2465 = vld [vmem:[%s8 + $0x168] sm:$0xff]
    %v2466 = vld [vmem:[%s8 + $0x170] sm:$0xff]
    %v2467 = vld [vmem:[%s8 + $0x178] sm:$0xff]
    %v2468 = vld [vmem:[%s8 + $0x180] sm:$0xff]
    %v2469 = vld [vmem:[%s8 + $0x188] sm:$0xff]
    %v2470 = vld [vmem:[%s8 + $0x190] sm:$0xff]
    %v2471 = vld [vmem:[%s8 + $0x198] sm:$0xff]
    %v2472 = vld [vmem:[%s8 + $0x1a0] sm:$0xff]
    %v2473 = vld [vmem:[%s8 + $0x1a8] sm:$0xff]
    %v2474 = vld [vmem:[%s8 + $0x1b0] sm:$0xff]
    %v2475 = vld [vmem:[%s8 + $0x1b8] sm:$0xff]
    %v2476 = vld [vmem:[%s8 + $0x1c0] sm:$0xff]
    %v2477 = vld [vmem:[%s8 + $0x1c8] sm:$0xff]
    %v2478 = vld [vmem:[%s8 + $0x1d0] sm:$0xff]
    %v2479 = vld [vmem:[%s8 + $0x1d8] sm:$0xff]
    %v2480 = vld [vmem:[%s8 + $0x1e0] sm:$0xff]
    %v2481 = vld [vmem:[%s8 + $0x1e8] sm:$0xff]
    %v2482 = vld [vmem:[%s8 + $0x1f0] sm:$0xff]
    %v2483 = vld [vmem:[%s8 + $0x1f8] sm:$0xff]
    %2484 = vmatprep.subr.mxu0 0.0
    %2485 = vmatpush1.msra.mxu0 %v2420
    %2486 = vmatprep.subr.mxu0 0.0
    %2487 = vmatpush1.msra.mxu0 %v2421
    %2488 = vmatprep.subr.mxu0 0.0
    %2489 = vmatpush1.msra.mxu0 %v2422
    %2490 = vmatprep.subr.mxu0 0.0
    %2491 = vmatpush1.msra.mxu0 %v2423
    %2492 = vmatprep.subr.mxu0 0.0
    %2493 = vmatpush1.msra.mxu0 %v2424
    %2494 = vmatprep.subr.mxu0 0.0
    %2495 = vmatpush1.msra.mxu0 %v2425
    %2496 = vmatprep.subr.mxu0 0.0
    %2497 = vmatpush1.msra.mxu0 %v2426
    %2498 = vmatprep.subr.mxu0 0.0
    %2499 = vmatpush1.msra.mxu0 %v2427
    %2500 = vmatprep.subr.mxu0 0.0
    %2501 = vmatpush1.msra.mxu0 %v2428
    %2502 = vmatprep.subr.mxu0 0.0
    %2503 = vmatpush1.msra.mxu0 %v2429
    %2504 = vmatprep.subr.mxu0 0.0
    %2505 = vmatpush1.msra.mxu0 %v2430
    %2506 = vmatprep.subr.mxu0 0.0
    %2507 = vmatpush1.msra.mxu0 %v2431
    %2508 = vmatprep.subr.mxu0 0.0
    %2509 = vmatpush1.msra.mxu0 %v2432
    %2510 = vmatprep.subr.mxu0 0.0
    %2511 = vmatpush1.msra.mxu0 %v2433
    %2512 = vmatprep.subr.mxu0 0.0
    %2513 = vmatpush1.msra.mxu0 %v2434
    %2514 = vmatprep.subr.mxu0 0.0
    %2515 = vmatpush1.msra.mxu0 %v2435
    %2516 = vmatprep.subr.mxu0 0.0
    %2517 = vmatpush1.msra.mxu0 %v2436
    %2518 = vmatprep.subr.mxu0 0.0
    %2519 = vmatpush1.msra.mxu0 %v2437
    %2520 = vmatprep.subr.mxu0 0.0
    %2521 = vmatpush1.msra.mxu0 %v2438
    %2522 = vmatprep.subr.mxu0 0.0
    %2523 = vmatpush1.msra.mxu0 %v2439
    %2524 = vmatprep.subr.mxu0 0.0
    %2525 = vmatpush1.msra.mxu0 %v2440
    %2526 = vmatprep.subr.mxu0 0.0
    %2527 = vmatpush1.msra.mxu0 %v2441
    %2528 = vmatprep.subr.mxu0 0.0
    %2529 = vmatpush1.msra.mxu0 %v2442
    %2530 = vmatprep.subr.mxu0 0.0
    %2531 = vmatpush1.msra.mxu0 %v2443
    %2532 = vmatprep.subr.mxu0 0.0
    %2533 = vmatpush1.msra.mxu0 %v2444
    %2534 = vmatprep.subr.mxu0 0.0
    %2535 = vmatpush1.msra.mxu0 %v2445
    %2536 = vmatprep.subr.mxu0 0.0
    %2537 = vmatpush1.msra.mxu0 %v2446
    %2538 = vmatprep.subr.mxu0 0.0
    %2539 = vmatpush1.msra.mxu0 %v2447
    %2540 = vmatprep.subr.mxu0 0.0
    %2541 = vmatpush1.msra.mxu0 %v2448
    %2542 = vmatprep.subr.mxu0 0.0
    %2543 = vmatpush1.msra.mxu0 %v2449
    %2544 = vmatprep.subr.mxu0 0.0
    %2545 = vmatpush1.msra.mxu0 %v2450
    %2546 = vmatprep.subr.mxu0 0.0
    %2547 = vmatpush1.msra.mxu0 %v2451
    %2548 = vmatprep.mubr.f32.mxu0 %v2327
    %2549 = vmatmul.mubr.f32.gmra.mrb[0].mxu0 %v2325
    %v2550 = vpop.f32.mrb[0].mxu0
    %v2551 = vadd.f32 0.0, %v2550
    %v2552 = vpop.f32.mrb[0].mxu0
    %2553 = vmatprep.mubr.f32.mxu0 %v2333
    %2554 = vmatmul.mubr.f32.gmra.mrb[0].mxu0 %v2331
    %v2555 = vpop.f32.mrb[0].mxu0
    %v2556 = vadd.f32 0.0, %v2555
    %v2557 = vpop.f32.mrb[0].mxu0
    %2558 = vdwg.mxu0
    %2559 = vmatprep.subr.mxu0 0.0
    %2560 = vmatpush1.msra.mxu0 %v2452
    %2561 = vmatprep.subr.mxu0 0.0
    %2562 = vmatpush1.msra.mxu0 %v2453
    %2563 = vmatprep.subr.mxu0 0.0
    %2564 = vmatpush1.msra.mxu0 %v2454
    %2565 = vmatprep.subr.mxu0 0.0
    %2566 = vmatpush1.msra.mxu0 %v2455
    %2567 = vmatprep.subr.mxu0 0.0
    %2568 = vmatpush1.msra.mxu0 %v2456
    %2569 = vmatprep.subr.mxu0 0.0
    %2570 = vmatpush1.msra.mxu0 %v2457
    %2571 = vmatprep.subr.mxu0 0.0
    %2572 = vmatpush1.msra.mxu0 %v2458
    %2573 = vmatprep.subr.mxu0 0.0
    %2574 = vmatpush1.msra.mxu0 %v2459
    %2575 = vmatprep.subr.mxu0 0.0
    %2576 = vmatpush1.msra.mxu0 %v2460
    %2577 = vmatprep.subr.mxu0 0.0
    %2578 = vmatpush1.msra.mxu0 %v2461
    %2579 = vmatprep.subr.mxu0 0.0
    %2580 = vmatpush1.msra.mxu0 %v2462
    %2581 = vmatprep.subr.mxu0 0.0
    %2582 = vmatpush1.msra.mxu0 %v2463
    %2583 = vmatprep.subr.mxu0 0.0
    %2584 = vmatpush1.msra.mxu0 %v2464
    %2585 = vmatprep.subr.mxu0 0.0
    %2586 = vmatpush1.msra.mxu0 %v2465
    %2587 = vmatprep.subr.mxu0 0.0
    %2588 = vmatpush1.msra.mxu0 %v2466
    %2589 = vmatprep.subr.mxu0 0.0
    %2590 = vmatpush1.msra.mxu0 %v2467
    %2591 = vmatprep.subr.mxu0 0.0
    %2592 = vmatpush1.msra.mxu0 %v2468
    %2593 = vmatprep.subr.mxu0 0.0
    %2594 = vmatpush1.msra.mxu0 %v2469
    %2595 = vmatprep.subr.mxu0 0.0
    %2596 = vmatpush1.msra.mxu0 %v2470
    %2597 = vmatprep.subr.mxu0 0.0
    %2598 = vmatpush1.msra.mxu0 %v2471
    %2599 = vmatprep.subr.mxu0 0.0
    %2600 = vmatpush1.msra.mxu0 %v2472
    %2601 = vmatprep.subr.mxu0 0.0
    %2602 = vmatpush1.msra.mxu0 %v2473
    %2603 = vmatprep.subr.mxu0 0.0
    %2604 = vmatpush1.msra.mxu0 %v2474
    %2605 = vmatprep.subr.mxu0 0.0
    %2606 = vmatpush1.msra.mxu0 %v2475
    %2607 = vmatprep.subr.mxu0 0.0
    %2608 = vmatpush1.msra.mxu0 %v2476
    %2609 = vmatprep.subr.mxu0 0.0
    %2610 = vmatpush1.msra.mxu0 %v2477
    %2611 = vmatprep.subr.mxu0 0.0
    %2612 = vmatpush1.msra.mxu0 %v2478
    %2613 = vmatprep.subr.mxu0 0.0
    %2614 = vmatpush1.msra.mxu0 %v2479
    %2615 = vmatprep.subr.mxu0 0.0
    %2616 = vmatpush1.msra.mxu0 %v2480
    %2617 = vmatprep.subr.mxu0 0.0
    %2618 = vmatpush1.msra.mxu0 %v2481
    %2619 = vmatprep.subr.mxu0 0.0
    %2620 = vmatpush1.msra.mxu0 %v2482
    %2621 = vmatprep.subr.mxu0 0.0
    %2622 = vmatpush1.msra.mxu0 %v2483
    %2623 = vmatprep.mubr.f32.mxu0 %v2404
    %2624 = vmatmul.mubr.f32.gmra.mrb[0].mxu0 %v2402
    %v2625 = vpop.f32.mrb[0].mxu0
    %v2626 = vadd.f32 %v2551, %v2625
    %v2627 = vpop.f32.mrb[0].mxu0
    %2628 = vmatprep.mubr.f32.mxu0 %v2410
    %2629 = vmatmul.mubr.f32.gmra.mrb[0].mxu0 %v2408
    %v2630 = vpop.f32.mrb[0].mxu0
    %v2631 = vadd.f32 %v2556, %v2630
    %v2632 = vpop.f32.mrb[0].mxu0
    %2633 = vdwg.mxu0
    %v2635 = vsel %vm1062, %v2626, 0
    %v2638 = vsel %vm1062, %v2631, 0
    %2640 = vmatprep.subr.mxu0 0.0
    %2641 = vmatpush1.msra.mxu0 %v1060
    %2642 = vmatprep.subr.mxu0 0.0
    %2643 = vmatpush1.msra.mxu0 %v1071
    %2644 = vmatprep.subr.mxu0 0.0
    %2645 = vmatpush1.msra.mxu0 0.0
    %2646 = vmatprep.subr.mxu0 0.0
    %2647 = vmatpush1.msra.mxu0 0.0
    %2648 = vmatprep.subr.mxu0 0.0
    %2649 = vmatpush1.msra.mxu0 0.0
    %2650 = vmatprep.subr.mxu0 0.0
    %2651 = vmatpush1.msra.mxu0 0.0
    %2652 = vmatprep.subr.mxu0 0.0
    %2653 = vmatpush1.msra.mxu0 0.0
    %2654 = vmatprep.subr.mxu0 0.0
    %2655 = vmatpush1.msra.mxu0 0.0
    %2656 = vmatprep.subr.mxu0 0.0
    %2657 = vmatpush1.msra.mxu0 0.0
    %2658 = vmatprep.subr.mxu0 0.0
    %2659 = vmatpush1.msra.mxu0 0.0
    %2660 = vmatprep.subr.mxu0 0.0
    %2661 = vmatpush1.msra.mxu0 0.0
    %2662 = vmatprep.subr.mxu0 0.0
    %2663 = vmatpush1.msra.mxu0 0.0
    %2664 = vmatprep.subr.mxu0 0.0
    %2665 = vmatpush1.msra.mxu0 0.0
    %2666 = vmatprep.subr.mxu0 0.0
    %2667 = vmatpush1.msra.mxu0 0.0
    %2668 = vmatprep.subr.mxu0 0.0
    %2669 = vmatpush1.msra.mxu0 0.0
    %2670 = vmatprep.subr.mxu0 0.0
    %2671 = vmatpush1.msra.mxu0 0.0
    %2672 = vmatprep.subr.mxu0 0.0
    %2673 = vmatpush1.msra.mxu0 0.0
    %2674 = vmatprep.subr.mxu0 0.0
    %2675 = vmatpush1.msra.mxu0 0.0
    %2676 = vmatprep.subr.mxu0 0.0
    %2677 = vmatpush1.msra.mxu0 0.0
    %2678 = vmatprep.subr.mxu0 0.0
    %2679 = vmatpush1.msra.mxu0 0.0
    %2680 = vmatprep.subr.mxu0 0.0
    %2681 = vmatpush1.msra.mxu0 0.0
    %2682 = vmatprep.subr.mxu0 0.0
    %2683 = vmatpush1.msra.mxu0 0.0
    %2684 = vmatprep.subr.mxu0 0.0
    %2685 = vmatpush1.msra.mxu0 0.0
    %2686 = vmatprep.subr.mxu0 0.0
    %2687 = vmatpush1.msra.mxu0 0.0
    %2688 = vmatprep.subr.mxu0 0.0
    %2689 = vmatpush1.msra.mxu0 0.0
    %2690 = vmatprep.subr.mxu0 0.0
    %2691 = vmatpush1.msra.mxu0 0.0
    %2692 = vmatprep.subr.mxu0 0.0
    %2693 = vmatpush1.msra.mxu0 0.0
    %2694 = vmatprep.subr.mxu0 0.0
    %2695 = vmatpush1.msra.mxu0 0.0
    %2696 = vmatprep.subr.mxu0 0.0
    %2697 = vmatpush1.msra.mxu0 0.0
    %2698 = vmatprep.subr.mxu0 0.0
    %2699 = vmatpush1.msra.mxu0 0.0
    %2700 = vmatprep.subr.mxu0 0.0
    %2701 = vmatpush1.msra.mxu0 0.0
    %2702 = vmatprep.subr.mxu0 0.0
    %2703 = vmatpush1.msra.mxu0 0.0
    %2704 = vmatprep.mubr.f32.mxu0 0.0
    %2705 = vmatmul.mubr.f32.gmra.mrb[0].mxu0 %v2635
    %v2706 = vpop.f32.mrb[0].mxu0
    %v2707 = vadd.f32 0.0, %v2706
    %v2708 = vpop.f32.mrb[0].mxu0
    %2709 = vmatprep.mubr.f32.mxu0 0.0
    %2710 = vmatmul.mubr.f32.gmra.mrb[0].mxu0 %v2638
    %v2711 = vpop.f32.mrb[0].mxu0
    %v2712 = vadd.f32 0.0, %v2711
    %v2713 = vpop.f32.mrb[0].mxu0
    %2714 = vdwg.mxu0
    %2715 = vmatprep.subr.mxu0 0.0
    %2716 = vmatpush1.msra.mxu0 %v1153
    %2717 = vmatprep.subr.mxu0 0.0
    %2718 = vmatpush1.msra.mxu0 %v1156
    %2719 = vmatprep.subr.mxu0 0.0
    %2720 = vmatpush1.msra.mxu0 0.0
    %2721 = vmatprep.subr.mxu0 0.0
    %2722 = vmatpush1.msra.mxu0 0.0
    %2723 = vmatprep.subr.mxu0 0.0
    %2724 = vmatpush1.msra.mxu0 0.0
    %2725 = vmatprep.subr.mxu0 0.0
    %2726 = vmatpush1.msra.mxu0 0.0
    %2727 = vmatprep.subr.mxu0 0.0
    %2728 = vmatpush1.msra.mxu0 0.0
    %2729 = vmatprep.subr.mxu0 0.0
    %2730 = vmatpush1.msra.mxu0 0.0
    %2731 = vmatprep.subr.mxu0 0.0
    %2732 = vmatpush1.msra.mxu0 0.0
    %2733 = vmatprep.subr.mxu0 0.0
    %2734 = vmatpush1.msra.mxu0 0.0
    %2735 = vmatprep.subr.mxu0 0.0
    %2736 = vmatpush1.msra.mxu0 0.0
    %2737 = vmatprep.subr.mxu0 0.0
    %2738 = vmatpush1.msra.mxu0 0.0
    %2739 = vmatprep.subr.mxu0 0.0
    %2740 = vmatpush1.msra.mxu0 0.0
    %2741 = vmatprep.subr.mxu0 0.0
    %2742 = vmatpush1.msra.mxu0 0.0
    %2743 = vmatprep.subr.mxu0 0.0
    %2744 = vmatpush1.msra.mxu0 0.0
    %2745 = vmatprep.subr.mxu0 0.0
    %2746 = vmatpush1.msra.mxu0 0.0
    %2747 = vmatprep.subr.mxu0 0.0
    %2748 = vmatpush1.msra.mxu0 0.0
    %2749 = vmatprep.subr.mxu0 0.0
    %2750 = vmatpush1.msra.mxu0 0.0
    %2751 = vmatprep.subr.mxu0 0.0
    %2752 = vmatpush1.msra.mxu0 0.0
    %2753 = vmatprep.subr.mxu0 0.0
    %2754 = vmatpush1.msra.mxu0 0.0
    %2755 = vmatprep.subr.mxu0 0.0
    %2756 = vmatpush1.msra.mxu0 0.0
    %2757 = vmatprep.subr.mxu0 0.0
    %2758 = vmatpush1.msra.mxu0 0.0
    %2759 = vmatprep.subr.mxu0 0.0
    %2760 = vmatpush1.msra.mxu0 0.0
    %2761 = vmatprep.subr.mxu0 0.0
    %2762 = vmatpush1.msra.mxu0 0.0
    %2763 = vmatprep.subr.mxu0 0.0
    %2764 = vmatpush1.msra.mxu0 0.0
    %2765 = vmatprep.subr.mxu0 0.0
    %2766 = vmatpush1.msra.mxu0 0.0
    %2767 = vmatprep.subr.mxu0 0.0
    %2768 = vmatpush1.msra.mxu0 0.0
    %2769 = vmatprep.subr.mxu0 0.0
    %2770 = vmatpush1.msra.mxu0 0.0
    %2771 = vmatprep.subr.mxu0 0.0
    %2772 = vmatpush1.msra.mxu0 0.0
    %2773 = vmatprep.subr.mxu0 0.0
    %2774 = vmatpush1.msra.mxu0 0.0
    %2775 = vmatprep.subr.mxu0 0.0
    %2776 = vmatpush1.msra.mxu0 0.0
    %2777 = vmatprep.subr.mxu0 0.0
    %2778 = vmatpush1.msra.mxu0 0.0
    %2779 = vmatprep.mubr.f32.mxu0 0.0
    %2780 = vmatmul.mubr.f32.gmra.mrb[0].mxu0 %v2635
    %v2781 = vpop.f32.mrb[0].mxu0
    %v2782 = vadd.f32 0.0, %v2781
    %v2783 = vpop.f32.mrb[0].mxu0
    %2784 = vmatprep.mubr.f32.mxu0 0.0
    %2785 = vmatmul.mubr.f32.gmra.mrb[0].mxu0 %v2638
    %v2786 = vpop.f32.mrb[0].mxu0
    %v2787 = vadd.f32 0.0, %v2786
    %v2788 = vpop.f32.mrb[0].mxu0
    %2789 = vdwg.mxu0
    %2790 = vmatprep.subr.mxu0 0.0
    %2791 = vmatpush1.msra.mxu0 %v1238
    %2792 = vmatprep.subr.mxu0 0.0
    %2793 = vmatpush1.msra.mxu0 %v1241
    %2794 = vmatprep.subr.mxu0 0.0
    %2795 = vmatpush1.msra.mxu0 0.0
    %2796 = vmatprep.subr.mxu0 0.0
    %2797 = vmatpush1.msra.mxu0 0.0
    %2798 = vmatprep.subr.mxu0 0.0
    %2799 = vmatpush1.msra.mxu0 0.0
    %2800 = vmatprep.subr.mxu0 0.0
    %2801 = vmatpush1.msra.mxu0 0.0
    %2802 = vmatprep.subr.mxu0 0.0
    %2803 = vmatpush1.msra.mxu0 0.0
    %2804 = vmatprep.subr.mxu0 0.0
    %2805 = vmatpush1.msra.mxu0 0.0
    %2806 = vmatprep.subr.mxu0 0.0
    %2807 = vmatpush1.msra.mxu0 0.0
    %2808 = vmatprep.subr.mxu0 0.0
    %2809 = vmatpush1.msra.mxu0 0.0
    %2810 = vmatprep.subr.mxu0 0.0
    %2811 = vmatpush1.msra.mxu0 0.0
    %2812 = vmatprep.subr.mxu0 0.0
    %2813 = vmatpush1.msra.mxu0 0.0
    %2814 = vmatprep.subr.mxu0 0.0
    %2815 = vmatpush1.msra.mxu0 0.0
    %2816 = vmatprep.subr.mxu0 0.0
    %2817 = vmatpush1.msra.mxu0 0.0
    %2818 = vmatprep.subr.mxu0 0.0
    %2819 = vmatpush1.msra.mxu0 0.0
    %2820 = vmatprep.subr.mxu0 0.0
    %2821 = vmatpush1.msra.mxu0 0.0
    %2822 = vmatprep.subr.mxu0 0.0
    %2823 = vmatpush1.msra.mxu0 0.0
    %2824 = vmatprep.subr.mxu0 0.0
    %2825 = vmatpush1.msra.mxu0 0.0
    %2826 = vmatprep.subr.mxu0 0.0
    %2827 = vmatpush1.msra.mxu0 0.0
    %2828 = vmatprep.subr.mxu0 0.0
    %2829 = vmatpush1.msra.mxu0 0.0
    %2830 = vmatprep.subr.mxu0 0.0
    %2831 = vmatpush1.msra.mxu0 0.0
    %2832 = vmatprep.subr.mxu0 0.0
    %2833 = vmatpush1.msra.mxu0 0.0
    %2834 = vmatprep.subr.mxu0 0.0
    %2835 = vmatpush1.msra.mxu0 0.0
    %2836 = vmatprep.subr.mxu0 0.0
    %2837 = vmatpush1.msra.mxu0 0.0
    %2838 = vmatprep.subr.mxu0 0.0
    %2839 = vmatpush1.msra.mxu0 0.0
    %2840 = vmatprep.subr.mxu0 0.0
    %2841 = vmatpush1.msra.mxu0 0.0
    %2842 = vmatprep.subr.mxu0 0.0
    %2843 = vmatpush1.msra.mxu0 0.0
    %2844 = vmatprep.subr.mxu0 0.0
    %2845 = vmatpush1.msra.mxu0 0.0
    %2846 = vmatprep.subr.mxu0 0.0
    %2847 = vmatpush1.msra.mxu0 0.0
    %2848 = vmatprep.subr.mxu0 0.0
    %2849 = vmatpush1.msra.mxu0 0.0
    %2850 = vmatprep.subr.mxu0 0.0
    %2851 = vmatpush1.msra.mxu0 0.0
    %2852 = vmatprep.subr.mxu0 0.0
    %2853 = vmatpush1.msra.mxu0 0.0
    %2854 = vmatprep.mubr.f32.mxu0 0.0
    %2855 = vmatmul.mubr.f32.gmra.mrb[0].mxu0 %v2635
    %v2856 = vpop.f32.mrb[0].mxu0
    %v2857 = vadd.f32 0.0, %v2856
    %v2858 = vpop.f32.mrb[0].mxu0
    %2859 = vmatprep.mubr.f32.mxu0 0.0
    %2860 = vmatmul.mubr.f32.gmra.mrb[0].mxu0 %v2638
    %v2861 = vpop.f32.mrb[0].mxu0
    %v2862 = vadd.f32 0.0, %v2861
    %v2863 = vpop.f32.mrb[0].mxu0
    %2864 = vdwg.mxu0
    %2865 = vmatprep.subr.mxu0 0.0
    %2866 = vmatpush1.msra.mxu0 %v1323
    %2867 = vmatprep.subr.mxu0 0.0
    %2868 = vmatpush1.msra.mxu0 %v1326
    %2869 = vmatprep.subr.mxu0 0.0
    %2870 = vmatpush1.msra.mxu0 0.0
    %2871 = vmatprep.subr.mxu0 0.0
    %2872 = vmatpush1.msra.mxu0 0.0
    %2873 = vmatprep.subr.mxu0 0.0
    %2874 = vmatpush1.msra.mxu0 0.0
    %2875 = vmatprep.subr.mxu0 0.0
    %2876 = vmatpush1.msra.mxu0 0.0
    %2877 = vmatprep.subr.mxu0 0.0
    %2878 = vmatpush1.msra.mxu0 0.0
    %2879 = vmatprep.subr.mxu0 0.0
    %2880 = vmatpush1.msra.mxu0 0.0
    %2881 = vmatprep.subr.mxu0 0.0
    %2882 = vmatpush1.msra.mxu0 0.0
    %2883 = vmatprep.subr.mxu0 0.0
    %2884 = vmatpush1.msra.mxu0 0.0
    %2885 = vmatprep.subr.mxu0 0.0
    %2886 = vmatpush1.msra.mxu0 0.0
    %2887 = vmatprep.subr.mxu0 0.0
    %2888 = vmatpush1.msra.mxu0 0.0
    %2889 = vmatprep.subr.mxu0 0.0
    %2890 = vmatpush1.msra.mxu0 0.0
    %2891 = vmatprep.subr.mxu0 0.0
    %2892 = vmatpush1.msra.mxu0 0.0
    %2893 = vmatprep.subr.mxu0 0.0
    %2894 = vmatpush1.msra.mxu0 0.0
    %2895 = vmatprep.subr.mxu0 0.0
    %2896 = vmatpush1.msra.mxu0 0.0
    %2897 = vmatprep.subr.mxu0 0.0
    %2898 = vmatpush1.msra.mxu0 0.0
    %2899 = vmatprep.subr.mxu0 0.0
    %2900 = vmatpush1.msra.mxu0 0.0
    %2901 = vmatprep.subr.mxu0 0.0
    %2902 = vmatpush1.msra.mxu0 0.0
    %2903 = vmatprep.subr.mxu0 0.0
    %2904 = vmatpush1.msra.mxu0 0.0
    %2905 = vmatprep.subr.mxu0 0.0
    %2906 = vmatpush1.msra.mxu0 0.0
    %2907 = vmatprep.subr.mxu0 0.0
    %2908 = vmatpush1.msra.mxu0 0.0
    %2909 = vmatprep.subr.mxu0 0.0
    %2910 = vmatpush1.msra.mxu0 0.0
    %2911 = vmatprep.subr.mxu0 0.0
    %2912 = vmatpush1.msra.mxu0 0.0
    %2913 = vmatprep.subr.mxu0 0.0
    %2914 = vmatpush1.msra.mxu0 0.0
    %2915 = vmatprep.subr.mxu0 0.0
    %2916 = vmatpush1.msra.mxu0 0.0
    %2917 = vmatprep.subr.mxu0 0.0
    %2918 = vmatpush1.msra.mxu0 0.0
    %2919 = vmatprep.subr.mxu0 0.0
    %2920 = vmatpush1.msra.mxu0 0.0
    %2921 = vmatprep.subr.mxu0 0.0
    %2922 = vmatpush1.msra.mxu0 0.0
    %2923 = vmatprep.subr.mxu0 0.0
    %2924 = vmatpush1.msra.mxu0 0.0
    %2925 = vmatprep.subr.mxu0 0.0
    %2926 = vmatpush1.msra.mxu0 0.0
    %2927 = vmatprep.subr.mxu0 0.0
    %2928 = vmatpush1.msra.mxu0 0.0
    %2929 = vmatprep.mubr.f32.mxu0 0.0
    %2930 = vmatmul.mubr.f32.gmra.mrb[0].mxu0 %v2635
    %v2931 = vpop.f32.mrb[0].mxu0
    %v2932 = vadd.f32 0.0, %v2931
    %v2933 = vpop.f32.mrb[0].mxu0
    %2934 = vmatprep.mubr.f32.mxu0 0.0
    %2935 = vmatmul.mubr.f32.gmra.mrb[0].mxu0 %v2638
    %v2936 = vpop.f32.mrb[0].mxu0
    %v2937 = vadd.f32 0.0, %v2936
    %v2938 = vpop.f32.mrb[0].mxu0
    %2939 = vdwg.mxu0
    %2940 = vmatprep.subr.mxu0 0.0
    %2941 = vmatpush1.msra.mxu0 %v1408
    %2942 = vmatprep.subr.mxu0 0.0
    %2943 = vmatpush1.msra.mxu0 %v1411
    %2944 = vmatprep.subr.mxu0 0.0
    %2945 = vmatpush1.msra.mxu0 0.0
    %2946 = vmatprep.subr.mxu0 0.0
    %2947 = vmatpush1.msra.mxu0 0.0
    %2948 = vmatprep.subr.mxu0 0.0
    %2949 = vmatpush1.msra.mxu0 0.0
    %2950 = vmatprep.subr.mxu0 0.0
    %2951 = vmatpush1.msra.mxu0 0.0
    %2952 = vmatprep.subr.mxu0 0.0
    %2953 = vmatpush1.msra.mxu0 0.0
    %2954 = vmatprep.subr.mxu0 0.0
    %2955 = vmatpush1.msra.mxu0 0.0
    %2956 = vmatprep.subr.mxu0 0.0
    %2957 = vmatpush1.msra.mxu0 0.0
    %2958 = vmatprep.subr.mxu0 0.0
    %2959 = vmatpush1.msra.mxu0 0.0
    %2960 = vmatprep.subr.mxu0 0.0
    %2961 = vmatpush1.msra.mxu0 0.0
    %2962 = vmatprep.subr.mxu0 0.0
    %2963 = vmatpush1.msra.mxu0 0.0
    %2964 = vmatprep.subr.mxu0 0.0
    %2965 = vmatpush1.msra.mxu0 0.0
    %2966 = vmatprep.subr.mxu0 0.0
    %2967 = vmatpush1.msra.mxu0 0.0
    %2968 = vmatprep.subr.mxu0 0.0
    %2969 = vmatpush1.msra.mxu0 0.0
    %2970 = vmatprep.subr.mxu0 0.0
    %2971 = vmatpush1.msra.mxu0 0.0
    %2972 = vmatprep.subr.mxu0 0.0
    %2973 = vmatpush1.msra.mxu0 0.0
    %2974 = vmatprep.subr.mxu0 0.0
    %2975 = vmatpush1.msra.mxu0 0.0
    %2976 = vmatprep.subr.mxu0 0.0
    %2977 = vmatpush1.msra.mxu0 0.0
    %2978 = vmatprep.subr.mxu0 0.0
    %2979 = vmatpush1.msra.mxu0 0.0
    %2980 = vmatprep.subr.mxu0 0.0
    %2981 = vmatpush1.msra.mxu0 0.0
    %2982 = vmatprep.subr.mxu0 0.0
    %2983 = vmatpush1.msra.mxu0 0.0
    %2984 = vmatprep.subr.mxu0 0.0
    %2985 = vmatpush1.msra.mxu0 0.0
    %2986 = vmatprep.subr.mxu0 0.0
    %2987 = vmatpush1.msra.mxu0 0.0
    %2988 = vmatprep.subr.mxu0 0.0
    %2989 = vmatpush1.msra.mxu0 0.0
    %2990 = vmatprep.subr.mxu0 0.0
    %2991 = vmatpush1.msra.mxu0 0.0
    %2992 = vmatprep.subr.mxu0 0.0
    %2993 = vmatpush1.msra.mxu0 0.0
    %2994 = vmatprep.subr.mxu0 0.0
    %2995 = vmatpush1.msra.mxu0 0.0
    %2996 = vmatprep.subr.mxu0 0.0
    %2997 = vmatpush1.msra.mxu0 0.0
    %2998 = vmatprep.subr.mxu0 0.0
    %2999 = vmatpush1.msra.mxu0 0.0
    %3000 = vmatprep.subr.mxu0 0.0
    %3001 = vmatpush1.msra.mxu0 0.0
    %3002 = vmatprep.subr.mxu0 0.0
    %3003 = vmatpush1.msra.mxu0 0.0
    %3004 = vmatprep.mubr.f32.mxu0 0.0
    %3005 = vmatmul.mubr.f32.gmra.mrb[0].mxu0 %v2635
    %v3006 = vpop.f32.mrb[0].mxu0
    %v3007 = vadd.f32 0.0, %v3006
    %v3008 = vpop.f32.mrb[0].mxu0
    %3009 = vmatprep.mubr.f32.mxu0 0.0
    %3010 = vmatmul.mubr.f32.gmra.mrb[0].mxu0 %v2638
    %v3011 = vpop.f32.mrb[0].mxu0
    %v3012 = vadd.f32 0.0, %v3011
    %v3013 = vpop.f32.mrb[0].mxu0
    %3014 = vdwg.mxu0
    %v3015 = vld [vmem:[%s3] sm:$0x1]
    %v3016 = vld [vmem:[#allocation3] sm:$0x1]
    %3018 = vset.pattern.permute.xlu0 0
    %3019 = vperm.xlu0 %3018, %v3016
    %v3020 = vpop.permute.xlu0 %3019
    %v3022 = vlaneseq
    %v3023 = vshrl.u32 %v3022, 7
    %v3024 = vsub.s32 0, %v3023
    %v3025 = vrot.slane %v3020, %v3024
    %v3027 = vsel %vm1499, %v3015, 0
    %3029 = vmatprep.subr.mxu0 0.0
    %3030 = vmatpush1.msra.mxu0 %v2707
    %3031 = vmatprep.subr.mxu0 0.0
    %3032 = vmatpush1.msra.mxu0 %v2712
    %3033 = vmatprep.subr.mxu0 0.0
    %3034 = vmatpush1.msra.mxu0 %v2782
    %3035 = vmatprep.subr.mxu0 0.0
    %3036 = vmatpush1.msra.mxu0 %v2787
    %3037 = vmatprep.subr.mxu0 0.0
    %3038 = vmatpush1.msra.mxu0 %v2857
    %3039 = vmatprep.subr.mxu0 0.0
    %3040 = vmatpush1.msra.mxu0 %v2862
    %3041 = vmatprep.subr.mxu0 0.0
    %3042 = vmatpush1.msra.mxu0 %v2932
    %3043 = vmatprep.subr.mxu0 0.0
    %3044 = vmatpush1.msra.mxu0 %v2937
    %3045 = vmatprep.subr.mxu0 0.0
    %3046 = vmatpush1.msra.mxu0 %v3007
    %3047 = vmatprep.subr.mxu0 0.0
    %3048 = vmatpush1.msra.mxu0 %v3012
    %3049 = vmatprep.subr.mxu0 0.0
    %3050 = vmatpush1.msra.mxu0 0.0
    %3051 = vmatprep.subr.mxu0 0.0
    %3052 = vmatpush1.msra.mxu0 0.0
    %3053 = vmatprep.subr.mxu0 0.0
    %3054 = vmatpush1.msra.mxu0 0.0
    %3055 = vmatprep.subr.mxu0 0.0
    %3056 = vmatpush1.msra.mxu0 0.0
    %3057 = vmatprep.subr.mxu0 0.0
    %3058 = vmatpush1.msra.mxu0 0.0
    %3059 = vmatprep.subr.mxu0 0.0
    %3060 = vmatpush1.msra.mxu0 0.0
    %3061 = vmatprep.subr.mxu0 0.0
    %3062 = vmatpush1.msra.mxu0 0.0
    %3063 = vmatprep.subr.mxu0 0.0
    %3064 = vmatpush1.msra.mxu0 0.0
    %3065 = vmatprep.subr.mxu0 0.0
    %3066 = vmatpush1.msra.mxu0 0.0
    %3067 = vmatprep.subr.mxu0 0.0
    %3068 = vmatpush1.msra.mxu0 0.0
    %3069 = vmatprep.subr.mxu0 0.0
    %3070 = vmatpush1.msra.mxu0 0.0
    %3071 = vmatprep.subr.mxu0 0.0
    %3072 = vmatpush1.msra.mxu0 0.0
    %3073 = vmatprep.subr.mxu0 0.0
    %3074 = vmatpush1.msra.mxu0 0.0
    %3075 = vmatprep.subr.mxu0 0.0
    %3076 = vmatpush1.msra.mxu0 0.0
    %3077 = vmatprep.subr.mxu0 0.0
    %3078 = vmatpush1.msra.mxu0 0.0
    %3079 = vmatprep.subr.mxu0 0.0
    %3080 = vmatpush1.msra.mxu0 0.0
    %3081 = vmatprep.subr.mxu0 0.0
    %3082 = vmatpush1.msra.mxu0 0.0
    %3083 = vmatprep.subr.mxu0 0.0
    %3084 = vmatpush1.msra.mxu0 0.0
    %3085 = vmatprep.subr.mxu0 0.0
    %3086 = vmatpush1.msra.mxu0 0.0
    %3087 = vmatprep.subr.mxu0 0.0
    %3088 = vmatpush1.msra.mxu0 0.0
    %3089 = vmatprep.subr.mxu0 0.0
    %3090 = vmatpush1.msra.mxu0 0.0
    %3091 = vmatprep.subr.mxu0 0.0
    %3092 = vmatpush1.msra.mxu0 0.0
    %3093 = vmatprep.mubr.f32.mxu0 0.0
    %3094 = vmatmul.mubr.f32.gmra.mrb[0].mxu0 %v3027
    %v3095 = vpop.f32.mrb[0].mxu0
    %v3096 = vadd.f32 %v3025, %v3095
    %v3097 = vpop.f32.mrb[0].mxu0
    %3098 = vdwg.mxu0
    %v3099 = vmax.f32 %v3096, 0.0
    %v3100 = vld [vmem:[%s5] sm:$0xff]
    %v3101 = vld [vmem:[%s5 + $0x8] sm:$0xff]
    %3103 = vset.pattern.permute.xlu0 0
    %3104 = vperm.xlu0 %3103, %v3100
    %v3105 = vpop.permute.xlu0 %3104
    %3108 = vset.pattern.permute.xlu0 0
    %3109 = vperm.xlu0 %3108, %v3101
    %v3110 = vpop.permute.xlu0 %3109
    %v3112 = vlaneseq
    %v3113 = vshrl.u32 %v3112, 7
    %v3114 = vsub.s32 0, %v3113
    %v3115 = vrot.slane %v3099, %v3114
    %v3116 = vmul.f32 %v3105, %v3115
    %v3117 = vmul.f32 %v3110, %v3115
    %v3118 = vld [vmem:[%s6] sm:$0xff]
    %v3119 = vld [vmem:[%s6 + $0x8] sm:$0xff]
    %3121 = vset.pattern.permute.xlu0 0
    %3122 = vperm.xlu0 %3121, %v3118
    %v3123 = vpop.permute.xlu0 %3122
    %3126 = vset.pattern.permute.xlu0 0
    %3127 = vperm.xlu0 %3126, %v3119
    %v3128 = vpop.permute.xlu0 %3127
    %v3130 = vadd.f32 %v3116, %v3123
    %v3131 = vadd.f32 %v3117, %v3128
    %v3132 = vsub.f32 0.0, %v3130
    %v3133 = vsub.f32 0.0, %v3131
    %v3134 = vmul.f32 %v3132, 1.442695
    %v3135 = vpow.pop %v3134
    %v3136 = vmul.f32 %v3133, 1.442695
    %v3137 = vpow.pop %v3136
    %v3138 = vadd.f32 %v3135, 1.0
    %v3139 = vadd.f32 %v3137, 1.0
    %v3140 = vrcp.pop %v3138
    %v3141 = vmul.f32 1.0, %v3140
    %v3142 = vrcp.pop %v3139
    %v3143 = vmul.f32 1.0, %v3142
    %v3144 = vld [vmem:[%s0 + $0x40] sm:$0xff]
    %v3145 = vld [vmem:[%s0 + $0x48] sm:$0xff]
    %v3146 = vld [vmem:[%s0 + $0x50] sm:$0xff]
    %v3147 = vld [vmem:[%s0 + $0x58] sm:$0xff]
    %v3148 = vld [vmem:[#allocation4 + $0x20] sm:$0xff]
    %v3149 = vld [vmem:[#allocation4 + $0x28] sm:$0xff]
    %v3150 = vld [vmem:[#allocation4 + $0x30] sm:$0xff]
    %v3151 = vld [vmem:[#allocation4 + $0x38] sm:$0xff]
    %v3152 = vadd.f32 %v3144, %v3148
    %v3153 = vadd.f32 %v3145, %v3149
    %v3154 = vadd.f32 %v3146, %v3150
    %v3155 = vadd.f32 %v3147, %v3151
    %3156 = vrot.lane.b32.xlu0 %v3152, 17
    %v3157 = vpop.permute.xlu0 %3156
    %3158 = vrot.lane.b32.xlu0 %v3154, 17
    %v3159 = vpop.permute.xlu0 %3158
    %3160 = vrot.lane.b32.xlu0 %v3153, 17
    %v3161 = vpop.permute.xlu0 %3160
    %3162 = vrot.lane.b32.xlu0 %v3155, 17
    %v3163 = vpop.permute.xlu0 %3162
    %v3164 = vsel %vm49, %v3157, %v3161
    %v3165 = vsel %vm49, %v3159, %v3163
    %v3166 = vsel %vm49, %v3161, %v3157
    %v3167 = vsel %vm49, %v3163, %v3159
    %v3168 = vld [vmem:[%s7] sm:$0x3]
    %v3170 = vlaneseq
    %v3171 = vshrl.u32 %v3170, 7
    %v3172 = vsub.s32 0, %v3171
    %v3173 = vrot.slane %v3168, %v3172
    %v3174 = vlaneseq
    %v3175 = vshrl.u32 %v3174, 7
    %v3176 = vsub.s32 1, %v3175
    %v3177 = vrot.slane %v3168, %v3176
    %v3180 = vmul.f32 %v3166, %v3173
    %v3181 = vmul.f32 %v3164, %v3177
    %v3182 = vmul.f32 %v3167, %v3173
    %v3183 = vmul.f32 %v3165, %v3177
    %3184 = vst [vmem:[#allocation2] sm:$0xff] %v3180
    %3185 = vst [vmem:[#allocation2 + $0x8] sm:$0xff] %v3181
    %3186 = vst [vmem:[#allocation2 + $0x20] sm:$0xff] %v3182
    %3187 = vst [vmem:[#allocation2 + $0x28] sm:$0xff] %v3183
    %3188 = vrot.lane.b32.xlu0 %v3152, 16
    %v3189 = vpop.permute.xlu0 %3188
    %3190 = vrot.lane.b32.xlu0 %v3154, 16
    %v3191 = vpop.permute.xlu0 %3190
    %3192 = vrot.lane.b32.xlu0 %v3153, 16
    %v3193 = vpop.permute.xlu0 %3192
    %3194 = vrot.lane.b32.xlu0 %v3155, 16
    %v3195 = vpop.permute.xlu0 %3194
    %v3196 = vsel %vm82, %v3189, %v3193
    %v3197 = vsel %vm82, %v3191, %v3195
    %v3198 = vsel %vm82, %v3193, %v3189
    %v3199 = vsel %vm82, %v3195, %v3191
    %v3200 = vld [vmem:[%s87] sm:$0x3]
    %v3202 = vlaneseq
    %v3203 = vshrl.u32 %v3202, 7
    %v3204 = vsub.s32 0, %v3203
    %v3205 = vrot.slane %v3200, %v3204
    %v3206 = vlaneseq
    %v3207 = vshrl.u32 %v3206, 7
    %v3208 = vsub.s32 1, %v3207
    %v3209 = vrot.slane %v3200, %v3208
    %v3212 = vmul.f32 %v3198, %v3205
    %v3213 = vmul.f32 %v3196, %v3209
    %v3214 = vmul.f32 %v3199, %v3205
    %v3215 = vmul.f32 %v3197, %v3209
    %3216 = vst [vmem:[#allocation2 + $0x40] sm:$0xff] %v3212
    %3217 = vst [vmem:[#allocation2 + $0x48] sm:$0xff] %v3213
    %3218 = vst [vmem:[#allocation2 + $0x60] sm:$0xff] %v3214
    %3219 = vst [vmem:[#allocation2 + $0x68] sm:$0xff] %v3215
    %3220 = vrot.lane.b32.xlu0 %v3152, 15
    %v3221 = vpop.permute.xlu0 %3220
    %3222 = vrot.lane.b32.xlu0 %v3154, 15
    %v3223 = vpop.permute.xlu0 %3222
    %3224 = vrot.lane.b32.xlu0 %v3153, 15
    %v3225 = vpop.permute.xlu0 %3224
    %3226 = vrot.lane.b32.xlu0 %v3155, 15
    %v3227 = vpop.permute.xlu0 %3226
    %v3228 = vsel %vm116, %v3221, %v3225
    %v3229 = vsel %vm116, %v3223, %v3227
    %v3230 = vsel %vm116, %v3225, %v3221
    %v3231 = vsel %vm116, %v3227, %v3223
    %v3232 = vld [vmem:[%s121] sm:$0x3]
    %v3234 = vlaneseq
    %v3235 = vshrl.u32 %v3234, 7
    %v3236 = vsub.s32 0, %v3235
    %v3237 = vrot.slane %v3232, %v3236
    %v3238 = vlaneseq
    %v3239 = vshrl.u32 %v3238, 7
    %v3240 = vsub.s32 1, %v3239
    %v3241 = vrot.slane %v3232, %v3240
    %v3244 = vmul.f32 %v3230, %v3237
    %v3245 = vmul.f32 %v3228, %v3241
    %v3246 = vmul.f32 %v3231, %v3237
    %v3247 = vmul.f32 %v3229, %v3241
    %3248 = vst [vmem:[#allocation2 + $0x80] sm:$0xff] %v3244
    %3249 = vst [vmem:[#allocation2 + $0x88] sm:$0xff] %v3245
    %3250 = vst [vmem:[#allocation2 + $0xa0] sm:$0xff] %v3246
    %3251 = vst [vmem:[#allocation2 + $0xa8] sm:$0xff] %v3247
    %3252 = vrot.lane.b32.xlu0 %v3152, 1
    %v3253 = vpop.permute.xlu0 %3252
    %3254 = vrot.lane.b32.xlu0 %v3154, 1
    %v3255 = vpop.permute.xlu0 %3254
    %3256 = vrot.lane.b32.xlu0 %v3153, 1
    %v3257 = vpop.permute.xlu0 %3256
    %3258 = vrot.lane.b32.xlu0 %v3155, 1
    %v3259 = vpop.permute.xlu0 %3258
    %v3260 = vsel %vm150, %v3253, %v3257
    %v3261 = vsel %vm150, %v3255, %v3259
    %v3262 = vsel %vm150, %v3257, %v3253
    %v3263 = vsel %vm150, %v3259, %v3255
    %v3264 = vld [vmem:[%s155] sm:$0x3]
    %v3266 = vlaneseq
    %v3267 = vshrl.u32 %v3266, 7
    %v3268 = vsub.s32 0, %v3267
    %v3269 = vrot.slane %v3264, %v3268
    %v3270 = vlaneseq
    %v3271 = vshrl.u32 %v3270, 7
    %v3272 = vsub.s32 1, %v3271
    %v3273 = vrot.slane %v3264, %v3272
    %v3276 = vmul.f32 %v3262, %v3269
    %v3277 = vmul.f32 %v3260, %v3273
    %v3278 = vmul.f32 %v3263, %v3269
    %v3279 = vmul.f32 %v3261, %v3273
    %3280 = vst [vmem:[#allocation2 + $0xc0] sm:$0xff] %v3276
    %3281 = vst [vmem:[#allocation2 + $0xc8] sm:$0xff] %v3277
    %3282 = vst [vmem:[#allocation2 + $0xe0] sm:$0xff] %v3278
    %3283 = vst [vmem:[#allocation2 + $0xe8] sm:$0xff] %v3279
    %3284 = vst [vmem:[#allocation2 + $0x100] sm:$0xff] %v3152
    %3285 = vst [vmem:[#allocation2 + $0x108] sm:$0xff] %v3153
    %3286 = vst [vmem:[#allocation2 + $0x120] sm:$0xff] %v3154
    %3287 = vst [vmem:[#allocation2 + $0x128] sm:$0xff] %v3155
    %3288 = vrot.lane.b32.xlu0 %v3152, 127
    %v3289 = vpop.permute.xlu0 %3288
    %3290 = vrot.lane.b32.xlu0 %v3154, 127
    %v3291 = vpop.permute.xlu0 %3290
    %3292 = vrot.lane.b32.xlu0 %v3153, 127
    %v3293 = vpop.permute.xlu0 %3292
    %3294 = vrot.lane.b32.xlu0 %v3155, 127
    %v3295 = vpop.permute.xlu0 %3294
    %v3296 = vsel %vm188, %v3289, %v3293
    %v3297 = vsel %vm188, %v3291, %v3295
    %v3298 = vsel %vm188, %v3293, %v3289
    %v3299 = vsel %vm188, %v3295, %v3291
    %v3300 = vld [vmem:[%s193] sm:$0x3]
    %v3302 = vlaneseq
    %v3303 = vshrl.u32 %v3302, 7
    %v3304 = vsub.s32 0, %v3303
    %v3305 = vrot.slane %v3300, %v3304
    %v3306 = vlaneseq
    %v3307 = vshrl.u32 %v3306, 7
    %v3308 = vsub.s32 1, %v3307
    %v3309 = vrot.slane %v3300, %v3308
    %v3312 = vmul.f32 %v3296, %v3305
    %v3313 = vmul.f32 %v3298, %v3309
    %v3314 = vmul.f32 %v3297, %v3305
    %v3315 = vmul.f32 %v3299, %v3309
    %3316 = vst [vmem:[#allocation2 + $0x140] sm:$0xff] %v3312
    %3317 = vst [vmem:[#allocation2 + $0x148] sm:$0xff] %v3313
    %3318 = vst [vmem:[#allocation2 + $0x160] sm:$0xff] %v3314
    %3319 = vst [vmem:[#allocation2 + $0x168] sm:$0xff] %v3315
    %3320 = vrot.lane.b32.xlu0 %v3152, 113
    %v3321 = vpop.permute.xlu0 %3320
    %3322 = vrot.lane.b32.xlu0 %v3154, 113
    %v3323 = vpop.permute.xlu0 %3322
    %3324 = vrot.lane.b32.xlu0 %v3153, 113
    %v3325 = vpop.permute.xlu0 %3324
    %3326 = vrot.lane.b32.xlu0 %v3155, 113
    %v3327 = vpop.permute.xlu0 %3326
    %v3328 = vsel %vm222, %v3321, %v3325
    %v3329 = vsel %vm222, %v3323, %v3327
    %v3330 = vsel %vm222, %v3325, %v3321
    %v3331 = vsel %vm222, %v3327, %v3323
    %v3332 = vld [vmem:[%s227] sm:$0x3]
    %v3334 = vlaneseq
    %v3335 = vshrl.u32 %v3334, 7
    %v3336 = vsub.s32 0, %v3335
    %v3337 = vrot.slane %v3332, %v3336
    %v3338 = vlaneseq
    %v3339 = vshrl.u32 %v3338, 7
    %v3340 = vsub.s32 1, %v3339
    %v3341 = vrot.slane %v3332, %v3340
    %v3344 = vmul.f32 %v3328, %v3337
    %v3345 = vmul.f32 %v3330, %v3341
    %v3346 = vmul.f32 %v3329, %v3337
    %v3347 = vmul.f32 %v3331, %v3341
    %3348 = vst [vmem:[#allocation2 + $0x180] sm:$0xff] %v3344
    %3349 = vst [vmem:[#allocation2 + $0x188] sm:$0xff] %v3345
    %3350 = vst [vmem:[#allocation2 + $0x1a0] sm:$0xff] %v3346
    %3351 = vst [vmem:[#allocation2 + $0x1a8] sm:$0xff] %v3347
    %3352 = vrot.lane.b32.xlu0 %v3152, 112
    %v3353 = vpop.permute.xlu0 %3352
    %3354 = vrot.lane.b32.xlu0 %v3154, 112
    %v3355 = vpop.permute.xlu0 %3354
    %3356 = vrot.lane.b32.xlu0 %v3153, 112
    %v3357 = vpop.permute.xlu0 %3356
    %3358 = vrot.lane.b32.xlu0 %v3155, 112
    %v3359 = vpop.permute.xlu0 %3358
    %v3360 = vsel %vm256, %v3353, %v3357
    %v3361 = vsel %vm256, %v3355, %v3359
    %v3362 = vsel %vm256, %v3357, %v3353
    %v3363 = vsel %vm256, %v3359, %v3355
    %v3364 = vld [vmem:[%s261] sm:$0x3]
    %v3366 = vlaneseq
    %v3367 = vshrl.u32 %v3366, 7
    %v3368 = vsub.s32 0, %v3367
    %v3369 = vrot.slane %v3364, %v3368
    %v3370 = vlaneseq
    %v3371 = vshrl.u32 %v3370, 7
    %v3372 = vsub.s32 1, %v3371
    %v3373 = vrot.slane %v3364, %v3372
    %v3376 = vmul.f32 %v3360, %v3369
    %v3377 = vmul.f32 %v3362, %v3373
    %v3378 = vmul.f32 %v3361, %v3369
    %v3379 = vmul.f32 %v3363, %v3373
    %3380 = vst [vmem:[#allocation2 + $0x1c0] sm:$0xff] %v3376
    %3381 = vst [vmem:[#allocation2 + $0x1c8] sm:$0xff] %v3377
    %3382 = vst [vmem:[#allocation2 + $0x1e0] sm:$0xff] %v3378
    %3383 = vst [vmem:[#allocation2 + $0x1e8] sm:$0xff] %v3379
    %3384 = vrot.lane.b32.xlu0 %v3152, 111
    %v3385 = vpop.permute.xlu0 %3384
    %3386 = vrot.lane.b32.xlu0 %v3154, 111
    %v3387 = vpop.permute.xlu0 %3386
    %3388 = vrot.lane.b32.xlu0 %v3153, 111
    %v3389 = vpop.permute.xlu0 %3388
    %3390 = vrot.lane.b32.xlu0 %v3155, 111
    %v3391 = vpop.permute.xlu0 %3390
    %v3392 = vsel %vm290, %v3385, %v3389
    %v3393 = vsel %vm290, %v3387, %v3391
    %v3394 = vsel %vm290, %v3389, %v3385
    %v3395 = vsel %vm290, %v3391, %v3387
    %v3396 = vld [vmem:[%s295] sm:$0x3]
    %v3398 = vlaneseq
    %v3399 = vshrl.u32 %v3398, 7
    %v3400 = vsub.s32 0, %v3399
    %v3401 = vrot.slane %v3396, %v3400
    %v3402 = vlaneseq
    %v3403 = vshrl.u32 %v3402, 7
    %v3404 = vsub.s32 1, %v3403
    %v3405 = vrot.slane %v3396, %v3404
    %v3408 = vmul.f32 %v3392, %v3401
    %v3409 = vmul.f32 %v3394, %v3405
    %v3410 = vmul.f32 %v3393, %v3401
    %v3411 = vmul.f32 %v3395, %v3405
    %3412 = vst [vmem:[#allocation2 + $0x200] sm:$0xff] %v3408
    %3413 = vst [vmem:[#allocation2 + $0x208] sm:$0xff] %v3409
    %3414 = vst [vmem:[#allocation2 + $0x220] sm:$0xff] %v3410
    %3415 = vst [vmem:[#allocation2 + $0x228] sm:$0xff] %v3411
    %v3416 = vld [vmem:[%s316 + $0x40] sm:$0xff]
    %v3417 = vld [vmem:[%s316 + $0x48] sm:$0xff]
    %v3418 = vld [vmem:[%s316 + $0x50] sm:$0xff]
    %v3419 = vld [vmem:[%s316 + $0x58] sm:$0xff]
    %v3420 = vld [vmem:[%s834 + $0x20] sm:$0xff]
    %v3421 = vld [vmem:[%s834 + $0x28] sm:$0xff]
    %v3422 = vld [vmem:[%s834 + $0x30] sm:$0xff]
    %v3423 = vld [vmem:[%s834 + $0x38] sm:$0xff]
    %v3424 = vadd.f32 %v3416, %v3420
    %v3425 = vadd.f32 %v3417, %v3421
    %v3426 = vadd.f32 %v3418, %v3422
    %v3427 = vadd.f32 %v3419, %v3423
    %3428 = vrot.lane.b32.xlu0 %v3424, 17
    %v3429 = vpop.permute.xlu0 %3428
    %3430 = vrot.lane.b32.xlu0 %v3426, 17
    %v3431 = vpop.permute.xlu0 %3430
    %3432 = vrot.lane.b32.xlu0 %v3425, 17
    %v3433 = vpop.permute.xlu0 %3432
    %3434 = vrot.lane.b32.xlu0 %v3427, 17
    %v3435 = vpop.permute.xlu0 %3434
    %v3436 = vsel %vm49, %v3429, %v3433
    %v3437 = vsel %vm49, %v3431, %v3435
    %v3438 = vsel %vm49, %v3433, %v3429
    %v3439 = vsel %vm49, %v3435, %v3431
    %v3440 = vld [vmem:[%s7] sm:$0x3]
    %v3442 = vlaneseq
    %v3443 = vshrl.u32 %v3442, 7
    %v3444 = vsub.s32 0, %v3443
    %v3445 = vrot.slane %v3440, %v3444
    %v3446 = vlaneseq
    %v3447 = vshrl.u32 %v3446, 7
    %v3448 = vsub.s32 1, %v3447
    %v3449 = vrot.slane %v3440, %v3448
    %v3452 = vmul.f32 %v3438, %v3445
    %v3453 = vmul.f32 %v3436, %v3449
    %v3454 = vmul.f32 %v3439, %v3445
    %v3455 = vmul.f32 %v3437, %v3449
    %3456 = vst [vmem:[#allocation2 + $0x10] sm:$0xff] %v3452
    %3457 = vst [vmem:[#allocation2 + $0x18] sm:$0xff] %v3453
    %3458 = vst [vmem:[#allocation2 + $0x30] sm:$0xff] %v3454
    %3459 = vst [vmem:[#allocation2 + $0x38] sm:$0xff] %v3455
    %3460 = vrot.lane.b32.xlu0 %v3424, 16
    %v3461 = vpop.permute.xlu0 %3460
    %3462 = vrot.lane.b32.xlu0 %v3426, 16
    %v3463 = vpop.permute.xlu0 %3462
    %3464 = vrot.lane.b32.xlu0 %v3425, 16
    %v3465 = vpop.permute.xlu0 %3464
    %3466 = vrot.lane.b32.xlu0 %v3427, 16
    %v3467 = vpop.permute.xlu0 %3466
    %v3468 = vsel %vm82, %v3461, %v3465
    %v3469 = vsel %vm82, %v3463, %v3467
    %v3470 = vsel %vm82, %v3465, %v3461
    %v3471 = vsel %vm82, %v3467, %v3463
    %v3472 = vld [vmem:[%s87] sm:$0x3]
    %v3474 = vlaneseq
    %v3475 = vshrl.u32 %v3474, 7
    %v3476 = vsub.s32 0, %v3475
    %v3477 = vrot.slane %v3472, %v3476
    %v3478 = vlaneseq
    %v3479 = vshrl.u32 %v3478, 7
    %v3480 = vsub.s32 1, %v3479
    %v3481 = vrot.slane %v3472, %v3480
    %v3484 = vmul.f32 %v3470, %v3477
    %v3485 = vmul.f32 %v3468, %v3481
    %v3486 = vmul.f32 %v3471, %v3477
    %v3487 = vmul.f32 %v3469, %v3481
    %3488 = vst [vmem:[#allocation2 + $0x50] sm:$0xff] %v3484
    %3489 = vst [vmem:[#allocation2 + $0x58] sm:$0xff] %v3485
    %3490 = vst [vmem:[#allocation2 + $0x70] sm:$0xff] %v3486
    %3491 = vst [vmem:[#allocation2 + $0x78] sm:$0xff] %v3487
    %3492 = vrot.lane.b32.xlu0 %v3424, 15
    %v3493 = vpop.permute.xlu0 %3492
    %3494 = vrot.lane.b32.xlu0 %v3426, 15
    %v3495 = vpop.permute.xlu0 %3494
    %3496 = vrot.lane.b32.xlu0 %v3425, 15
    %v3497 = vpop.permute.xlu0 %3496
    %3498 = vrot.lane.b32.xlu0 %v3427, 15
    %v3499 = vpop.permute.xlu0 %3498
    %v3500 = vsel %vm116, %v3493, %v3497
    %v3501 = vsel %vm116, %v3495, %v3499
    %v3502 = vsel %vm116, %v3497, %v3493
    %v3503 = vsel %vm116, %v3499, %v3495
    %v3504 = vld [vmem:[%s121] sm:$0x3]
    %v3506 = vlaneseq
    %v3507 = vshrl.u32 %v3506, 7
    %v3508 = vsub.s32 0, %v3507
    %v3509 = vrot.slane %v3504, %v3508
    %v3510 = vlaneseq
    %v3511 = vshrl.u32 %v3510, 7
    %v3512 = vsub.s32 1, %v3511
    %v3513 = vrot.slane %v3504, %v3512
    %v3516 = vmul.f32 %v3502, %v3509
    %v3517 = vmul.f32 %v3500, %v3513
    %v3518 = vmul.f32 %v3503, %v3509
    %v3519 = vmul.f32 %v3501, %v3513
    %3520 = vst [vmem:[#allocation2 + $0x90] sm:$0xff] %v3516
    %3521 = vst [vmem:[#allocation2 + $0x98] sm:$0xff] %v3517
    %3522 = vst [vmem:[#allocation2 + $0xb0] sm:$0xff] %v3518
    %3523 = vst [vmem:[#allocation2 + $0xb8] sm:$0xff] %v3519
    %3524 = vrot.lane.b32.xlu0 %v3424, 1
    %v3525 = vpop.permute.xlu0 %3524
    %3526 = vrot.lane.b32.xlu0 %v3426, 1
    %v3527 = vpop.permute.xlu0 %3526
    %3528 = vrot.lane.b32.xlu0 %v3425, 1
    %v3529 = vpop.permute.xlu0 %3528
    %3530 = vrot.lane.b32.xlu0 %v3427, 1
    %v3531 = vpop.permute.xlu0 %3530
    %v3532 = vsel %vm150, %v3525, %v3529
    %v3533 = vsel %vm150, %v3527, %v3531
    %v3534 = vsel %vm150, %v3529, %v3525
    %v3535 = vsel %vm150, %v3531, %v3527
    %v3536 = vld [vmem:[%s155] sm:$0x3]
    %v3538 = vlaneseq
    %v3539 = vshrl.u32 %v3538, 7
    %v3540 = vsub.s32 0, %v3539
    %v3541 = vrot.slane %v3536, %v3540
    %v3542 = vlaneseq
    %v3543 = vshrl.u32 %v3542, 7
    %v3544 = vsub.s32 1, %v3543
    %v3545 = vrot.slane %v3536, %v3544
    %v3548 = vmul.f32 %v3534, %v3541
    %v3549 = vmul.f32 %v3532, %v3545
    %v3550 = vmul.f32 %v3535, %v3541
    %v3551 = vmul.f32 %v3533, %v3545
    %3552 = vst [vmem:[#allocation2 + $0xd0] sm:$0xff] %v3548
    %3553 = vst [vmem:[#allocation2 + $0xd8] sm:$0xff] %v3549
    %3554 = vst [vmem:[#allocation2 + $0xf0] sm:$0xff] %v3550
    %3555 = vst [vmem:[#allocation2 + $0xf8] sm:$0xff] %v3551
    %3556 = vst [vmem:[#allocation2 + $0x110] sm:$0xff] %v3424
    %3557 = vst [vmem:[#allocation2 + $0x118] sm:$0xff] %v3425
    %3558 = vst [vmem:[#allocation2 + $0x130] sm:$0xff] %v3426
    %3559 = vst [vmem:[#allocation2 + $0x138] sm:$0xff] %v3427
    %3560 = vrot.lane.b32.xlu0 %v3424, 127
    %v3561 = vpop.permute.xlu0 %3560
    %3562 = vrot.lane.b32.xlu0 %v3426, 127
    %v3563 = vpop.permute.xlu0 %3562
    %3564 = vrot.lane.b32.xlu0 %v3425, 127
    %v3565 = vpop.permute.xlu0 %3564
    %3566 = vrot.lane.b32.xlu0 %v3427, 127
    %v3567 = vpop.permute.xlu0 %3566
    %v3568 = vsel %vm188, %v3561, %v3565
    %v3569 = vsel %vm188, %v3563, %v3567
    %v3570 = vsel %vm188, %v3565, %v3561
    %v3571 = vsel %vm188, %v3567, %v3563
    %v3572 = vld [vmem:[%s193] sm:$0x3]
    %v3574 = vlaneseq
    %v3575 = vshrl.u32 %v3574, 7
    %v3576 = vsub.s32 0, %v3575
    %v3577 = vrot.slane %v3572, %v3576
    %v3578 = vlaneseq
    %v3579 = vshrl.u32 %v3578, 7
    %v3580 = vsub.s32 1, %v3579
    %v3581 = vrot.slane %v3572, %v3580
    %v3584 = vmul.f32 %v3568, %v3577
    %v3585 = vmul.f32 %v3570, %v3581
    %v3586 = vmul.f32 %v3569, %v3577
    %v3587 = vmul.f32 %v3571, %v3581
    %3588 = vst [vmem:[#allocation2 + $0x150] sm:$0xff] %v3584
    %3589 = vst [vmem:[#allocation2 + $0x158] sm:$0xff] %v3585
    %3590 = vst [vmem:[#allocation2 + $0x170] sm:$0xff] %v3586
    %3591 = vst [vmem:[#allocation2 + $0x178] sm:$0xff] %v3587
    %3592 = vrot.lane.b32.xlu0 %v3424, 113
    %v3593 = vpop.permute.xlu0 %3592
    %3594 = vrot.lane.b32.xlu0 %v3426, 113
    %v3595 = vpop.permute.xlu0 %3594
    %3596 = vrot.lane.b32.xlu0 %v3425, 113
    %v3597 = vpop.permute.xlu0 %3596
    %3598 = vrot.lane.b32.xlu0 %v3427, 113
    %v3599 = vpop.permute.xlu0 %3598
    %v3600 = vsel %vm222, %v3593, %v3597
    %v3601 = vsel %vm222, %v3595, %v3599
    %v3602 = vsel %vm222, %v3597, %v3593
    %v3603 = vsel %vm222, %v3599, %v3595
    %v3604 = vld [vmem:[%s227] sm:$0x3]
    %v3606 = vlaneseq
    %v3607 = vshrl.u32 %v3606, 7
    %v3608 = vsub.s32 0, %v3607
    %v3609 = vrot.slane %v3604, %v3608
    %v3610 = vlaneseq
    %v3611 = vshrl.u32 %v3610, 7
    %v3612 = vsub.s32 1, %v3611
    %v3613 = vrot.slane %v3604, %v3612
    %v3616 = vmul.f32 %v3600, %v3609
    %v3617 = vmul.f32 %v3602, %v3613
    %v3618 = vmul.f32 %v3601, %v3609
    %v3619 = vmul.f32 %v3603, %v3613
    %3620 = vst [vmem:[#allocation2 + $0x190] sm:$0xff] %v3616
    %3621 = vst [vmem:[#allocation2 + $0x198] sm:$0xff] %v3617
    %3622 = vst [vmem:[#allocation2 + $0x1b0] sm:$0xff] %v3618
    %3623 = vst [vmem:[#allocation2 + $0x1b8] sm:$0xff] %v3619
    %3624 = vrot.lane.b32.xlu0 %v3424, 112
    %v3625 = vpop.permute.xlu0 %3624
    %3626 = vrot.lane.b32.xlu0 %v3426, 112
    %v3627 = vpop.permute.xlu0 %3626
    %3628 = vrot.lane.b32.xlu0 %v3425, 112
    %v3629 = vpop.permute.xlu0 %3628
    %3630 = vrot.lane.b32.xlu0 %v3427, 112
    %v3631 = vpop.permute.xlu0 %3630
    %v3632 = vsel %vm256, %v3625, %v3629
    %v3633 = vsel %vm256, %v3627, %v3631
    %v3634 = vsel %vm256, %v3629, %v3625
    %v3635 = vsel %vm256, %v3631, %v3627
    %v3636 = vld [vmem:[%s261] sm:$0x3]
    %v3638 = vlaneseq
    %v3639 = vshrl.u32 %v3638, 7
    %v3640 = vsub.s32 0, %v3639
    %v3641 = vrot.slane %v3636, %v3640
    %v3642 = vlaneseq
    %v3643 = vshrl.u32 %v3642, 7
    %v3644 = vsub.s32 1, %v3643
    %v3645 = vrot.slane %v3636, %v3644
    %v3648 = vmul.f32 %v3632, %v3641
    %v3649 = vmul.f32 %v3634, %v3645
    %v3650 = vmul.f32 %v3633, %v3641
    %v3651 = vmul.f32 %v3635, %v3645
    %3652 = vst [vmem:[#allocation2 + $0x1d0] sm:$0xff] %v3648
    %3653 = vst [vmem:[#allocation2 + $0x1d8] sm:$0xff] %v3649
    %3654 = vst [vmem:[#allocation2 + $0x1f0] sm:$0xff] %v3650
    %3655 = vst [vmem:[#allocation2 + $0x1f8] sm:$0xff] %v3651
    %3656 = vrot.lane.b32.xlu0 %v3424, 111
    %v3657 = vpop.permute.xlu0 %3656
    %3658 = vrot.lane.b32.xlu0 %v3426, 111
    %v3659 = vpop.permute.xlu0 %3658
    %3660 = vrot.lane.b32.xlu0 %v3425, 111
    %v3661 = vpop.permute.xlu0 %3660
    %3662 = vrot.lane.b32.xlu0 %v3427, 111
    %v3663 = vpop.permute.xlu0 %3662
    %v3664 = vsel %vm290, %v3657, %v3661
    %v3665 = vsel %vm290, %v3659, %v3663
    %v3666 = vsel %vm290, %v3661, %v3657
    %v3667 = vsel %vm290, %v3663, %v3659
    %v3668 = vld [vmem:[%s295] sm:$0x3]
    %v3670 = vlaneseq
    %v3671 = vshrl.u32 %v3670, 7
    %v3672 = vsub.s32 0, %v3671
    %v3673 = vrot.slane %v3668, %v3672
    %v3674 = vlaneseq
    %v3675 = vshrl.u32 %v3674, 7
    %v3676 = vsub.s32 1, %v3675
    %v3677 = vrot.slane %v3668, %v3676
    %v3680 = vmul.f32 %v3664, %v3673
    %v3681 = vmul.f32 %v3666, %v3677
    %v3682 = vmul.f32 %v3665, %v3673
    %v3683 = vmul.f32 %v3667, %v3677
    %3684 = vst [vmem:[#allocation2 + $0x210] sm:$0xff] %v3680
    %3685 = vst [vmem:[#allocation2 + $0x218] sm:$0xff] %v3681
    %3686 = vst [vmem:[#allocation2 + $0x230] sm:$0xff] %v3682
    %3687 = vst [vmem:[#allocation2 + $0x238] sm:$0xff] %v3683
    %s3688 = scalar_lea.vmem %s1, 64
    %v3689 = vld [vmem:[%s3688] sm:$0xff]
    %v3690 = vld [vmem:[%s3688 + $0x8] sm:$0xff]
    %v3691 = vld [vmem:[%s3688 + $0x10] sm:$0xff]
    %v3692 = vld [vmem:[%s3688 + $0x18] sm:$0xff]
    %v3693 = vld [vmem:[#allocation2] sm:$0xff]
    %v3694 = vld [vmem:[#allocation2 + $0x8] sm:$0xff]
    %v3695 = vld [vmem:[#allocation2 + $0x10] sm:$0xff]
    %v3696 = vld [vmem:[#allocation2 + $0x18] sm:$0xff]
    %v3697 = vld [vmem:[#allocation2 + $0x20] sm:$0xff]
    %v3698 = vld [vmem:[#allocation2 + $0x28] sm:$0xff]
    %v3699 = vld [vmem:[#allocation2 + $0x30] sm:$0xff]
    %v3700 = vld [vmem:[#allocation2 + $0x38] sm:$0xff]
    %v3701 = vld [vmem:[#allocation2 + $0x40] sm:$0xff]
    %v3702 = vld [vmem:[#allocation2 + $0x48] sm:$0xff]
    %v3703 = vld [vmem:[#allocation2 + $0x50] sm:$0xff]
    %v3704 = vld [vmem:[#allocation2 + $0x58] sm:$0xff]
    %v3705 = vld [vmem:[#allocation2 + $0x60] sm:$0xff]
    %v3706 = vld [vmem:[#allocation2 + $0x68] sm:$0xff]
    %v3707 = vld [vmem:[#allocation2 + $0x70] sm:$0xff]
    %v3708 = vld [vmem:[#allocation2 + $0x78] sm:$0xff]
    %v3709 = vld [vmem:[#allocation2 + $0x80] sm:$0xff]
    %v3710 = vld [vmem:[#allocation2 + $0x88] sm:$0xff]
    %v3711 = vld [vmem:[#allocation2 + $0x90] sm:$0xff]
    %v3712 = vld [vmem:[#allocation2 + $0x98] sm:$0xff]
    %v3713 = vld [vmem:[#allocation2 + $0xa0] sm:$0xff]
    %v3714 = vld [vmem:[#allocation2 + $0xa8] sm:$0xff]
    %v3715 = vld [vmem:[#allocation2 + $0xb0] sm:$0xff]
    %v3716 = vld [vmem:[#allocation2 + $0xb8] sm:$0xff]
    %v3717 = vld [vmem:[#allocation2 + $0xc0] sm:$0xff]
    %v3718 = vld [vmem:[#allocation2 + $0xc8] sm:$0xff]
    %v3719 = vld [vmem:[#allocation2 + $0xd0] sm:$0xff]
    %v3720 = vld [vmem:[#allocation2 + $0xd8] sm:$0xff]
    %v3721 = vld [vmem:[#allocation2 + $0xe0] sm:$0xff]
    %v3722 = vld [vmem:[#allocation2 + $0xe8] sm:$0xff]
    %v3723 = vld [vmem:[#allocation2 + $0xf0] sm:$0xff]
    %v3724 = vld [vmem:[#allocation2 + $0xf8] sm:$0xff]
    %v3725 = vld [vmem:[#allocation2 + $0x100] sm:$0xff]
    %v3726 = vld [vmem:[#allocation2 + $0x108] sm:$0xff]
    %v3727 = vld [vmem:[#allocation2 + $0x110] sm:$0xff]
    %v3728 = vld [vmem:[#allocation2 + $0x118] sm:$0xff]
    %v3729 = vld [vmem:[#allocation2 + $0x120] sm:$0xff]
    %v3730 = vld [vmem:[#allocation2 + $0x128] sm:$0xff]
    %v3731 = vld [vmem:[#allocation2 + $0x130] sm:$0xff]
    %v3732 = vld [vmem:[#allocation2 + $0x138] sm:$0xff]
    %v3733 = vld [vmem:[#allocation2 + $0x140] sm:$0xff]
    %v3734 = vld [vmem:[#allocation2 + $0x148] sm:$0xff]
    %v3735 = vld [vmem:[#allocation2 + $0x150] sm:$0xff]
    %v3736 = vld [vmem:[#allocation2 + $0x158] sm:$0xff]
    %v3737 = vld [vmem:[#allocation2 + $0x160] sm:$0xff]
    %v3738 = vld [vmem:[#allocation2 + $0x168] sm:$0xff]
    %v3739 = vld [vmem:[#allocation2 + $0x170] sm:$0xff]
    %v3740 = vld [vmem:[#allocation2 + $0x178] sm:$0xff]
    %v3741 = vld [vmem:[#allocation2 + $0x180] sm:$0xff]
    %v3742 = vld [vmem:[#allocation2 + $0x188] sm:$0xff]
    %v3743 = vld [vmem:[#allocation2 + $0x190] sm:$0xff]
    %v3744 = vld [vmem:[#allocation2 + $0x198] sm:$0xff]
    %v3745 = vld [vmem:[#allocation2 + $0x1a0] sm:$0xff]
    %v3746 = vld [vmem:[#allocation2 + $0x1a8] sm:$0xff]
    %v3747 = vld [vmem:[#allocation2 + $0x1b0] sm:$0xff]
    %v3748 = vld [vmem:[#allocation2 + $0x1b8] sm:$0xff]
    %v3749 = vld [vmem:[#allocation2 + $0x1c0] sm:$0xff]
    %v3750 = vld [vmem:[#allocation2 + $0x1c8] sm:$0xff]
    %v3751 = vld [vmem:[#allocation2 + $0x1d0] sm:$0xff]
    %v3752 = vld [vmem:[#allocation2 + $0x1d8] sm:$0xff]
    %v3753 = vld [vmem:[#allocation2 + $0x1e0] sm:$0xff]
    %v3754 = vld [vmem:[#allocation2 + $0x1e8] sm:$0xff]
    %v3755 = vld [vmem:[#allocation2 + $0x1f0] sm:$0xff]
    %v3756 = vld [vmem:[#allocation2 + $0x1f8] sm:$0xff]
    %v3757 = vld [vmem:[#allocation2 + $0x200] sm:$0xff]
    %v3758 = vld [vmem:[#allocation2 + $0x208] sm:$0xff]
    %v3759 = vld [vmem:[#allocation2 + $0x210] sm:$0xff]
    %v3760 = vld [vmem:[#allocation2 + $0x218] sm:$0xff]
    %v3761 = vld [vmem:[#allocation2 + $0x220] sm:$0xff]
    %v3762 = vld [vmem:[#allocation2 + $0x228] sm:$0xff]
    %v3763 = vld [vmem:[#allocation2 + $0x230] sm:$0xff]
    %v3764 = vld [vmem:[#allocation2 + $0x238] sm:$0xff]
    %s3765 = scalar_lea.vmem %s2, 32
    %v3766 = vld [vmem:[%s3765] sm:$0xff]
    %v3767 = vld [vmem:[%s3765 + $0x8] sm:$0xff]
    %3769 = vset.pattern.permute.xlu0 0
    %3770 = vperm.xlu0 %3769, %v3766
    %v3771 = vpop.permute.xlu0 %3770
    %3774 = vset.pattern.permute.xlu0 0
    %3775 = vperm.xlu0 %3774, %v3767
    %v3776 = vpop.permute.xlu0 %3775
    %v3779 = vsel %vm669, %v3690, 0
    %v3782 = vsel %vm669, %v3692, 0
    %3784 = vmatprep.subr.mxu0 %v3694
    %3785 = vmatpush1.msra.mxu0 %v3693
    %3786 = vmatprep.subr.mxu0 %v3698
    %3787 = vmatpush1.msra.mxu0 %v3697
    %3788 = vmatprep.subr.mxu0 %v3702
    %3789 = vmatpush1.msra.mxu0 %v3701
    %3790 = vmatprep.subr.mxu0 %v3706
    %3791 = vmatpush1.msra.mxu0 %v3705
    %3792 = vmatprep.subr.mxu0 %v3710
    %3793 = vmatpush1.msra.mxu0 %v3709
    %3794 = vmatprep.subr.mxu0 %v3714
    %3795 = vmatpush1.msra.mxu0 %v3713
    %3796 = vmatprep.subr.mxu0 %v3718
    %3797 = vmatpush1.msra.mxu0 %v3717
    %3798 = vmatprep.subr.mxu0 %v3722
    %3799 = vmatpush1.msra.mxu0 %v3721
    %3800 = vmatprep.subr.mxu0 %v3726
    %3801 = vmatpush1.msra.mxu0 %v3725
    %3802 = vmatprep.subr.mxu0 %v3730
    %3803 = vmatpush1.msra.mxu0 %v3729
    %3804 = vmatprep.subr.mxu0 %v3734
    %3805 = vmatpush1.msra.mxu0 %v3733
    %3806 = vmatprep.subr.mxu0 %v3738
    %3807 = vmatpush1.msra.mxu0 %v3737
    %3808 = vmatprep.subr.mxu0 %v3742
    %3809 = vmatpush1.msra.mxu0 %v3741
    %3810 = vmatprep.subr.mxu0 %v3746
    %3811 = vmatpush1.msra.mxu0 %v3745
    %3812 = vmatprep.subr.mxu0 %v3750
    %3813 = vmatpush1.msra.mxu0 %v3749
    %3814 = vmatprep.subr.mxu0 %v3754
    %3815 = vmatpush1.msra.mxu0 %v3753
    %3816 = vmatprep.subr.mxu0 %v3758
    %3817 = vmatpush1.msra.mxu0 %v3757
    %3818 = vmatprep.subr.mxu0 %v3762
    %3819 = vmatpush1.msra.mxu0 %v3761
    %3820 = vmatprep.subr.mxu0 0.0
    %3821 = vmatpush1.msra.mxu0 0.0
    %3822 = vmatprep.subr.mxu0 0.0
    %3823 = vmatpush1.msra.mxu0 0.0
    %3824 = vmatprep.subr.mxu0 0.0
    %3825 = vmatpush1.msra.mxu0 0.0
    %3826 = vmatprep.subr.mxu0 0.0
    %3827 = vmatpush1.msra.mxu0 0.0
    %3828 = vmatprep.subr.mxu0 0.0
    %3829 = vmatpush1.msra.mxu0 0.0
    %3830 = vmatprep.subr.mxu0 0.0
    %3831 = vmatpush1.msra.mxu0 0.0
    %3832 = vmatprep.subr.mxu0 0.0
    %3833 = vmatpush1.msra.mxu0 0.0
    %3834 = vmatprep.subr.mxu0 0.0
    %3835 = vmatpush1.msra.mxu0 0.0
    %3836 = vmatprep.subr.mxu0 0.0
    %3837 = vmatpush1.msra.mxu0 0.0
    %3838 = vmatprep.subr.mxu0 0.0
    %3839 = vmatpush1.msra.mxu0 0.0
    %3840 = vmatprep.subr.mxu0 0.0
    %3841 = vmatpush1.msra.mxu0 0.0
    %3842 = vmatprep.subr.mxu0 0.0
    %3843 = vmatpush1.msra.mxu0 0.0
    %3844 = vmatprep.subr.mxu0 0.0
    %3845 = vmatpush1.msra.mxu0 0.0
    %3846 = vmatprep.subr.mxu0 0.0
    %3847 = vmatpush1.msra.mxu0 0.0
    %3848 = vmatprep.mubr.f32.mxu0 %v3779
    %3849 = vmatmul.mubr.f32.gmra.mrb[0].mxu0 %v3689
    %v3850 = vpop.f32.mrb[0].mxu0
    %v3851 = vadd.f32 %v3771, %v3850
    %v3852 = vpop.f32.mrb[0].mxu0
    %v3853 = vadd.f32 %v3771, %v3852
    %3854 = vmatprep.mubr.f32.mxu0 %v3782
    %3855 = vmatmul.mubr.f32.gmra.mrb[0].mxu0 %v3691
    %v3856 = vpop.f32.mrb[0].mxu0
    %v3857 = vadd.f32 %v3776, %v3856
    %v3858 = vpop.f32.mrb[0].mxu0
    %v3859 = vadd.f32 %v3776, %v3858
    %3860 = vdwg.mxu0
    %3861 = vmatprep.subr.mxu0 %v3696
    %3862 = vmatpush1.msra.mxu0 %v3695
    %3863 = vmatprep.subr.mxu0 %v3700
    %3864 = vmatpush1.msra.mxu0 %v3699
    %3865 = vmatprep.subr.mxu0 %v3704
    %3866 = vmatpush1.msra.mxu0 %v3703
    %3867 = vmatprep.subr.mxu0 %v3708
    %3868 = vmatpush1.msra.mxu0 %v3707
    %3869 = vmatprep.subr.mxu0 %v3712
    %3870 = vmatpush1.msra.mxu0 %v3711
    %3871 = vmatprep.subr.mxu0 %v3716
    %3872 = vmatpush1.msra.mxu0 %v3715
    %3873 = vmatprep.subr.mxu0 %v3720
    %3874 = vmatpush1.msra.mxu0 %v3719
    %3875 = vmatprep.subr.mxu0 %v3724
    %3876 = vmatpush1.msra.mxu0 %v3723
    %3877 = vmatprep.subr.mxu0 %v3728
    %3878 = vmatpush1.msra.mxu0 %v3727
    %3879 = vmatprep.subr.mxu0 %v3732
    %3880 = vmatpush1.msra.mxu0 %v3731
    %3881 = vmatprep.subr.mxu0 %v3736
    %3882 = vmatpush1.msra.mxu0 %v3735
    %3883 = vmatprep.subr.mxu0 %v3740
    %3884 = vmatpush1.msra.mxu0 %v3739
    %3885 = vmatprep.subr.mxu0 %v3744
    %3886 = vmatpush1.msra.mxu0 %v3743
    %3887 = vmatprep.subr.mxu0 %v3748
    %3888 = vmatpush1.msra.mxu0 %v3747
    %3889 = vmatprep.subr.mxu0 %v3752
    %3890 = vmatpush1.msra.mxu0 %v3751
    %3891 = vmatprep.subr.mxu0 %v3756
    %3892 = vmatpush1.msra.mxu0 %v3755
    %3893 = vmatprep.subr.mxu0 %v3760
    %3894 = vmatpush1.msra.mxu0 %v3759
    %3895 = vmatprep.subr.mxu0 %v3764
    %3896 = vmatpush1.msra.mxu0 %v3763
    %3897 = vmatprep.subr.mxu0 0.0
    %3898 = vmatpush1.msra.mxu0 0.0
    %3899 = vmatprep.subr.mxu0 0.0
    %3900 = vmatpush1.msra.mxu0 0.0
    %3901 = vmatprep.subr.mxu0 0.0
    %3902 = vmatpush1.msra.mxu0 0.0
    %3903 = vmatprep.subr.mxu0 0.0
    %3904 = vmatpush1.msra.mxu0 0.0
    %3905 = vmatprep.subr.mxu0 0.0
    %3906 = vmatpush1.msra.mxu0 0.0
    %3907 = vmatprep.subr.mxu0 0.0
    %3908 = vmatpush1.msra.mxu0 0.0
    %3909 = vmatprep.subr.mxu0 0.0
    %3910 = vmatpush1.msra.mxu0 0.0
    %3911 = vmatprep.subr.mxu0 0.0
    %3912 = vmatpush1.msra.mxu0 0.0
    %3913 = vmatprep.subr.mxu0 0.0
    %3914 = vmatpush1.msra.mxu0 0.0
    %3915 = vmatprep.subr.mxu0 0.0
    %3916 = vmatpush1.msra.mxu0 0.0
    %3917 = vmatprep.subr.mxu0 0.0
    %3918 = vmatpush1.msra.mxu0 0.0
    %3919 = vmatprep.subr.mxu0 0.0
    %3920 = vmatpush1.msra.mxu0 0.0
    %3921 = vmatprep.subr.mxu0 0.0
    %3922 = vmatpush1.msra.mxu0 0.0
    %3923 = vmatprep.subr.mxu0 0.0
    %3924 = vmatpush1.msra.mxu0 0.0
    %3925 = vmatprep.mubr.f32.mxu0 %v3779
    %3926 = vmatmul.mubr.f32.gmra.mrb[0].mxu0 %v3689
    %v3927 = vpop.f32.mrb[0].mxu0
    %v3928 = vadd.f32 %v3771, %v3927
    %v3929 = vpop.f32.mrb[0].mxu0
    %v3930 = vadd.f32 %v3771, %v3929
    %3931 = vmatprep.mubr.f32.mxu0 %v3782
    %3932 = vmatmul.mubr.f32.gmra.mrb[0].mxu0 %v3691
    %v3933 = vpop.f32.mrb[0].mxu0
    %v3934 = vadd.f32 %v3776, %v3933
    %v3935 = vpop.f32.mrb[0].mxu0
    %v3936 = vadd.f32 %v3776, %v3935
    %3937 = vdwg.mxu0
    %3938 = vst [vmem:[#allocation4 + $0x40] sm:$0xff] %v3851
    %3939 = vst [vmem:[#allocation4 + $0x48] sm:$0xff] %v3853
    %3940 = vst [vmem:[#allocation4 + $0x50] sm:$0xff] %v3857
    %3941 = vst [vmem:[#allocation4 + $0x58] sm:$0xff] %v3859
    %3942 = vst [vmem:[%s834 + $0x40] sm:$0xff] %v3928
    %3943 = vst [vmem:[%s834 + $0x48] sm:$0xff] %v3930
    %3944 = vst [vmem:[%s834 + $0x50] sm:$0xff] %v3934
    %3945 = vst [vmem:[%s834 + $0x58] sm:$0xff] %v3936
    %v3946 = vld [vmem:[%s8] sm:$0xff]
    %v3947 = vld [vmem:[%s8 + $0x8] sm:$0xff]
    %v3948 = vld [vmem:[%s8 + $0x10] sm:$0xff]
    %v3949 = vld [vmem:[%s8 + $0x18] sm:$0xff]
    %v3950 = vld [vmem:[%s8 + $0x20] sm:$0xff]
    %v3951 = vld [vmem:[%s8 + $0x28] sm:$0xff]
    %v3952 = vld [vmem:[%s8 + $0x30] sm:$0xff]
    %v3953 = vld [vmem:[%s8 + $0x38] sm:$0xff]
    %v3954 = vld [vmem:[%s8 + $0x40] sm:$0xff]
    %v3955 = vld [vmem:[%s8 + $0x48] sm:$0xff]
    %v3956 = vld [vmem:[%s8 + $0x50] sm:$0xff]
    %v3957 = vld [vmem:[%s8 + $0x58] sm:$0xff]
    %v3958 = vld [vmem:[%s8 + $0x60] sm:$0xff]
    %v3959 = vld [vmem:[%s8 + $0x68] sm:$0xff]
    %v3960 = vld [vmem:[%s8 + $0x70] sm:$0xff]
    %v3961 = vld [vmem:[%s8 + $0x78] sm:$0xff]
    %v3962 = vld [vmem:[%s8 + $0x80] sm:$0xff]
    %v3963 = vld [vmem:[%s8 + $0x88] sm:$0xff]
    %v3964 = vld [vmem:[%s8 + $0x90] sm:$0xff]
    %v3965 = vld [vmem:[%s8 + $0x98] sm:$0xff]
    %v3966 = vld [vmem:[%s8 + $0xa0] sm:$0xff]
    %v3967 = vld [vmem:[%s8 + $0xa8] sm:$0xff]
    %v3968 = vld [vmem:[%s8 + $0xb0] sm:$0xff]
    %v3969 = vld [vmem:[%s8 + $0xb8] sm:$0xff]
    %v3970 = vld [vmem:[%s8 + $0xc0] sm:$0xff]
    %v3971 = vld [vmem:[%s8 + $0xc8] sm:$0xff]
    %v3972 = vld [vmem:[%s8 + $0xd0] sm:$0xff]
    %v3973 = vld [vmem:[%s8 + $0xd8] sm:$0xff]
    %v3974 = vld [vmem:[%s8 + $0xe0] sm:$0xff]
    %v3975 = vld [vmem:[%s8 + $0xe8] sm:$0xff]
    %v3976 = vld [vmem:[%s8 + $0xf0] sm:$0xff]
    %v3977 = vld [vmem:[%s8 + $0xf8] sm:$0xff]
    %v3978 = vld [vmem:[%s8 + $0x100] sm:$0xff]
    %v3979 = vld [vmem:[%s8 + $0x108] sm:$0xff]
    %v3980 = vld [vmem:[%s8 + $0x110] sm:$0xff]
    %v3981 = vld [vmem:[%s8 + $0x118] sm:$0xff]
    %v3982 = vld [vmem:[%s8 + $0x120] sm:$0xff]
    %v3983 = vld [vmem:[%s8 + $0x128] sm:$0xff]
    %v3984 = vld [vmem:[%s8 + $0x130] sm:$0xff]
    %v3985 = vld [vmem:[%s8 + $0x138] sm:$0xff]
    %v3986 = vld [vmem:[%s8 + $0x140] sm:$0xff]
    %v3987 = vld [vmem:[%s8 + $0x148] sm:$0xff]
    %v3988 = vld [vmem:[%s8 + $0x150] sm:$0xff]
    %v3989 = vld [vmem:[%s8 + $0x158] sm:$0xff]
    %v3990 = vld [vmem:[%s8 + $0x160] sm:$0xff]
    %v3991 = vld [vmem:[%s8 + $0x168] sm:$0xff]
    %v3992 = vld [vmem:[%s8 + $0x170] sm:$0xff]
    %v3993 = vld [vmem:[%s8 + $0x178] sm:$0xff]
    %v3994 = vld [vmem:[%s8 + $0x180] sm:$0xff]
    %v3995 = vld [vmem:[%s8 + $0x188] sm:$0xff]
    %v3996 = vld [vmem:[%s8 + $0x190] sm:$0xff]
    %v3997 = vld [vmem:[%s8 + $0x198] sm:$0xff]
    %v3998 = vld [vmem:[%s8 + $0x1a0] sm:$0xff]
    %v3999 = vld [vmem:[%s8 + $0x1a8] sm:$0xff]
    %v4000 = vld [vmem:[%s8 + $0x1b0] sm:$0xff]
    %v4001 = vld [vmem:[%s8 + $0x1b8] sm:$0xff]
    %v4002 = vld [vmem:[%s8 + $0x1c0] sm:$0xff]
    %v4003 = vld [vmem:[%s8 + $0x1c8] sm:$0xff]
    %v4004 = vld [vmem:[%s8 + $0x1d0] sm:$0xff]
    %v4005 = vld [vmem:[%s8 + $0x1d8] sm:$0xff]
    %v4006 = vld [vmem:[%s8 + $0x1e0] sm:$0xff]
    %v4007 = vld [vmem:[%s8 + $0x1e8] sm:$0xff]
    %v4008 = vld [vmem:[%s8 + $0x1f0] sm:$0xff]
    %v4009 = vld [vmem:[%s8 + $0x1f8] sm:$0xff]
    %4010 = vmatprep.subr.mxu0 0.0
    %4011 = vmatpush1.msra.mxu0 %v3946
    %4012 = vmatprep.subr.mxu0 0.0
    %4013 = vmatpush1.msra.mxu0 %v3947
    %4014 = vmatprep.subr.mxu0 0.0
    %4015 = vmatpush1.msra.mxu0 %v3948
    %4016 = vmatprep.subr.mxu0 0.0
    %4017 = vmatpush1.msra.mxu0 %v3949
    %4018 = vmatprep.subr.mxu0 0.0
    %4019 = vmatpush1.msra.mxu0 %v3950
    %4020 = vmatprep.subr.mxu0 0.0
    %4021 = vmatpush1.msra.mxu0 %v3951
    %4022 = vmatprep.subr.mxu0 0.0
    %4023 = vmatpush1.msra.mxu0 %v3952
    %4024 = vmatprep.subr.mxu0 0.0
    %4025 = vmatpush1.msra.mxu0 %v3953
    %4026 = vmatprep.subr.mxu0 0.0
    %4027 = vmatpush1.msra.mxu0 %v3954
    %4028 = vmatprep.subr.mxu0 0.0
    %4029 = vmatpush1.msra.mxu0 %v3955
    %4030 = vmatprep.subr.mxu0 0.0
    %4031 = vmatpush1.msra.mxu0 %v3956
    %4032 = vmatprep.subr.mxu0 0.0
    %4033 = vmatpush1.msra.mxu0 %v3957
    %4034 = vmatprep.subr.mxu0 0.0
    %4035 = vmatpush1.msra.mxu0 %v3958
    %4036 = vmatprep.subr.mxu0 0.0
    %4037 = vmatpush1.msra.mxu0 %v3959
    %4038 = vmatprep.subr.mxu0 0.0
    %4039 = vmatpush1.msra.mxu0 %v3960
    %4040 = vmatprep.subr.mxu0 0.0
    %4041 = vmatpush1.msra.mxu0 %v3961
    %4042 = vmatprep.subr.mxu0 0.0
    %4043 = vmatpush1.msra.mxu0 %v3962
    %4044 = vmatprep.subr.mxu0 0.0
    %4045 = vmatpush1.msra.mxu0 %v3963
    %4046 = vmatprep.subr.mxu0 0.0
    %4047 = vmatpush1.msra.mxu0 %v3964
    %4048 = vmatprep.subr.mxu0 0.0
    %4049 = vmatpush1.msra.mxu0 %v3965
    %4050 = vmatprep.subr.mxu0 0.0
    %4051 = vmatpush1.msra.mxu0 %v3966
    %4052 = vmatprep.subr.mxu0 0.0
    %4053 = vmatpush1.msra.mxu0 %v3967
    %4054 = vmatprep.subr.mxu0 0.0
    %4055 = vmatpush1.msra.mxu0 %v3968
    %4056 = vmatprep.subr.mxu0 0.0
    %4057 = vmatpush1.msra.mxu0 %v3969
    %4058 = vmatprep.subr.mxu0 0.0
    %4059 = vmatpush1.msra.mxu0 %v3970
    %4060 = vmatprep.subr.mxu0 0.0
    %4061 = vmatpush1.msra.mxu0 %v3971
    %4062 = vmatprep.subr.mxu0 0.0
    %4063 = vmatpush1.msra.mxu0 %v3972
    %4064 = vmatprep.subr.mxu0 0.0
    %4065 = vmatpush1.msra.mxu0 %v3973
    %4066 = vmatprep.subr.mxu0 0.0
    %4067 = vmatpush1.msra.mxu0 %v3974
    %4068 = vmatprep.subr.mxu0 0.0
    %4069 = vmatpush1.msra.mxu0 %v3975
    %4070 = vmatprep.subr.mxu0 0.0
    %4071 = vmatpush1.msra.mxu0 %v3976
    %4072 = vmatprep.subr.mxu0 0.0
    %4073 = vmatpush1.msra.mxu0 %v3977
    %4074 = vmatprep.mubr.f32.mxu0 %v3853
    %4075 = vmatmul.mubr.f32.gmra.mrb[0].mxu0 %v3851
    %v4076 = vpop.f32.mrb[0].mxu0
    %v4077 = vadd.f32 0.0, %v4076
    %v4078 = vpop.f32.mrb[0].mxu0
    %4079 = vmatprep.mubr.f32.mxu0 %v3859
    %4080 = vmatmul.mubr.f32.gmra.mrb[0].mxu0 %v3857
    %v4081 = vpop.f32.mrb[0].mxu0
    %v4082 = vadd.f32 0.0, %v4081
    %v4083 = vpop.f32.mrb[0].mxu0
    %4084 = vdwg.mxu0
    %4085 = vmatprep.subr.mxu0 0.0
    %4086 = vmatpush1.msra.mxu0 %v3978
    %4087 = vmatprep.subr.mxu0 0.0
    %4088 = vmatpush1.msra.mxu0 %v3979
    %4089 = vmatprep.subr.mxu0 0.0
    %4090 = vmatpush1.msra.mxu0 %v3980
    %4091 = vmatprep.subr.mxu0 0.0
    %4092 = vmatpush1.msra.mxu0 %v3981
    %4093 = vmatprep.subr.mxu0 0.0
    %4094 = vmatpush1.msra.mxu0 %v3982
    %4095 = vmatprep.subr.mxu0 0.0
    %4096 = vmatpush1.msra.mxu0 %v3983
    %4097 = vmatprep.subr.mxu0 0.0
    %4098 = vmatpush1.msra.mxu0 %v3984
    %4099 = vmatprep.subr.mxu0 0.0
    %4100 = vmatpush1.msra.mxu0 %v3985
    %4101 = vmatprep.subr.mxu0 0.0
    %4102 = vmatpush1.msra.mxu0 %v3986
    %4103 = vmatprep.subr.mxu0 0.0
    %4104 = vmatpush1.msra.mxu0 %v3987
    %4105 = vmatprep.subr.mxu0 0.0
    %4106 = vmatpush1.msra.mxu0 %v3988
    %4107 = vmatprep.subr.mxu0 0.0
    %4108 = vmatpush1.msra.mxu0 %v3989
    %4109 = vmatprep.subr.mxu0 0.0
    %4110 = vmatpush1.msra.mxu0 %v3990
    %4111 = vmatprep.subr.mxu0 0.0
    %4112 = vmatpush1.msra.mxu0 %v3991
    %4113 = vmatprep.subr.mxu0 0.0
    %4114 = vmatpush1.msra.mxu0 %v3992
    %4115 = vmatprep.subr.mxu0 0.0
    %4116 = vmatpush1.msra.mxu0 %v3993
    %4117 = vmatprep.subr.mxu0 0.0
    %4118 = vmatpush1.msra.mxu0 %v3994
    %4119 = vmatprep.subr.mxu0 0.0
    %4120 = vmatpush1.msra.mxu0 %v3995
    %4121 = vmatprep.subr.mxu0 0.0
    %4122 = vmatpush1.msra.mxu0 %v3996
    %4123 = vmatprep.subr.mxu0 0.0
    %4124 = vmatpush1.msra.mxu0 %v3997
    %4125 = vmatprep.subr.mxu0 0.0
    %4126 = vmatpush1.msra.mxu0 %v3998
    %4127 = vmatprep.subr.mxu0 0.0
    %4128 = vmatpush1.msra.mxu0 %v3999
    %4129 = vmatprep.subr.mxu0 0.0
    %4130 = vmatpush1.msra.mxu0 %v4000
    %4131 = vmatprep.subr.mxu0 0.0
    %4132 = vmatpush1.msra.mxu0 %v4001
    %4133 = vmatprep.subr.mxu0 0.0
    %4134 = vmatpush1.msra.mxu0 %v4002
    %4135 = vmatprep.subr.mxu0 0.0
    %4136 = vmatpush1.msra.mxu0 %v4003
    %4137 = vmatprep.subr.mxu0 0.0
    %4138 = vmatpush1.msra.mxu0 %v4004
    %4139 = vmatprep.subr.mxu0 0.0
    %4140 = vmatpush1.msra.mxu0 %v4005
    %4141 = vmatprep.subr.mxu0 0.0
    %4142 = vmatpush1.msra.mxu0 %v4006
    %4143 = vmatprep.subr.mxu0 0.0
    %4144 = vmatpush1.msra.mxu0 %v4007
    %4145 = vmatprep.subr.mxu0 0.0
    %4146 = vmatpush1.msra.mxu0 %v4008
    %4147 = vmatprep.subr.mxu0 0.0
    %4148 = vmatpush1.msra.mxu0 %v4009
    %4149 = vmatprep.mubr.f32.mxu0 %v3930
    %4150 = vmatmul.mubr.f32.gmra.mrb[0].mxu0 %v3928
    %v4151 = vpop.f32.mrb[0].mxu0
    %v4152 = vadd.f32 %v4077, %v4151
    %v4153 = vpop.f32.mrb[0].mxu0
    %4154 = vmatprep.mubr.f32.mxu0 %v3936
    %4155 = vmatmul.mubr.f32.gmra.mrb[0].mxu0 %v3934
    %v4156 = vpop.f32.mrb[0].mxu0
    %v4157 = vadd.f32 %v4082, %v4156
    %v4158 = vpop.f32.mrb[0].mxu0
    %4159 = vdwg.mxu0
    %v4161 = vsel %vm1062, %v4152, 0
    %v4164 = vsel %vm1062, %v4157, 0
    %4166 = vmatprep.subr.mxu0 0.0
    %4167 = vmatpush1.msra.mxu0 %v1060
    %4168 = vmatprep.subr.mxu0 0.0
    %4169 = vmatpush1.msra.mxu0 %v1071
    %4170 = vmatprep.subr.mxu0 0.0
    %4171 = vmatpush1.msra.mxu0 0.0
    %4172 = vmatprep.subr.mxu0 0.0
    %4173 = vmatpush1.msra.mxu0 0.0
    %4174 = vmatprep.subr.mxu0 0.0
    %4175 = vmatpush1.msra.mxu0 0.0
    %4176 = vmatprep.subr.mxu0 0.0
    %4177 = vmatpush1.msra.mxu0 0.0
    %4178 = vmatprep.subr.mxu0 0.0
    %4179 = vmatpush1.msra.mxu0 0.0
    %4180 = vmatprep.subr.mxu0 0.0
    %4181 = vmatpush1.msra.mxu0 0.0
    %4182 = vmatprep.subr.mxu0 0.0
    %4183 = vmatpush1.msra.mxu0 0.0
    %4184 = vmatprep.subr.mxu0 0.0
    %4185 = vmatpush1.msra.mxu0 0.0
    %4186 = vmatprep.subr.mxu0 0.0
    %4187 = vmatpush1.msra.mxu0 0.0
    %4188 = vmatprep.subr.mxu0 0.0
    %4189 = vmatpush1.msra.mxu0 0.0
    %4190 = vmatprep.subr.mxu0 0.0
    %4191 = vmatpush1.msra.mxu0 0.0
    %4192 = vmatprep.subr.mxu0 0.0
    %4193 = vmatpush1.msra.mxu0 0.0
    %4194 = vmatprep.subr.mxu0 0.0
    %4195 = vmatpush1.msra.mxu0 0.0
    %4196 = vmatprep.subr.mxu0 0.0
    %4197 = vmatpush1.msra.mxu0 0.0
    %4198 = vmatprep.subr.mxu0 0.0
    %4199 = vmatpush1.msra.mxu0 0.0
    %4200 = vmatprep.subr.mxu0 0.0
    %4201 = vmatpush1.msra.mxu0 0.0
    %4202 = vmatprep.subr.mxu0 0.0
    %4203 = vmatpush1.msra.mxu0 0.0
    %4204 = vmatprep.subr.mxu0 0.0
    %4205 = vmatpush1.msra.mxu0 0.0
    %4206 = vmatprep.subr.mxu0 0.0
    %4207 = vmatpush1.msra.mxu0 0.0
    %4208 = vmatprep.subr.mxu0 0.0
    %4209 = vmatpush1.msra.mxu0 0.0
    %4210 = vmatprep.subr.mxu0 0.0
    %4211 = vmatpush1.msra.mxu0 0.0
    %4212 = vmatprep.subr.mxu0 0.0
    %4213 = vmatpush1.msra.mxu0 0.0
    %4214 = vmatprep.subr.mxu0 0.0
    %4215 = vmatpush1.msra.mxu0 0.0
    %4216 = vmatprep.subr.mxu0 0.0
    %4217 = vmatpush1.msra.mxu0 0.0
    %4218 = vmatprep.subr.mxu0 0.0
    %4219 = vmatpush1.msra.mxu0 0.0
    %4220 = vmatprep.subr.mxu0 0.0
    %4221 = vmatpush1.msra.mxu0 0.0
    %4222 = vmatprep.subr.mxu0 0.0
    %4223 = vmatpush1.msra.mxu0 0.0
    %4224 = vmatprep.subr.mxu0 0.0
    %4225 = vmatpush1.msra.mxu0 0.0
    %4226 = vmatprep.subr.mxu0 0.0
    %4227 = vmatpush1.msra.mxu0 0.0
    %4228 = vmatprep.subr.mxu0 0.0
    %4229 = vmatpush1.msra.mxu0 0.0
    %4230 = vmatprep.mubr.f32.mxu0 0.0
    %4231 = vmatmul.mubr.f32.gmra.mrb[0].mxu0 %v4161
    %v4232 = vpop.f32.mrb[0].mxu0
    %v4233 = vadd.f32 0.0, %v4232
    %v4234 = vpop.f32.mrb[0].mxu0
    %4235 = vmatprep.mubr.f32.mxu0 0.0
    %4236 = vmatmul.mubr.f32.gmra.mrb[0].mxu0 %v4164
    %v4237 = vpop.f32.mrb[0].mxu0
    %v4238 = vadd.f32 0.0, %v4237
    %v4239 = vpop.f32.mrb[0].mxu0
    %4240 = vdwg.mxu0
    %4241 = vmatprep.subr.mxu0 0.0
    %4242 = vmatpush1.msra.mxu0 %v1153
    %4243 = vmatprep.subr.mxu0 0.0
    %4244 = vmatpush1.msra.mxu0 %v1156
    %4245 = vmatprep.subr.mxu0 0.0
    %4246 = vmatpush1.msra.mxu0 0.0
    %4247 = vmatprep.subr.mxu0 0.0
    %4248 = vmatpush1.msra.mxu0 0.0
    %4249 = vmatprep.subr.mxu0 0.0
    %4250 = vmatpush1.msra.mxu0 0.0
    %4251 = vmatprep.subr.mxu0 0.0
    %4252 = vmatpush1.msra.mxu0 0.0
    %4253 = vmatprep.subr.mxu0 0.0
    %4254 = vmatpush1.msra.mxu0 0.0
    %4255 = vmatprep.subr.mxu0 0.0
    %4256 = vmatpush1.msra.mxu0 0.0
    %4257 = vmatprep.subr.mxu0 0.0
    %4258 = vmatpush1.msra.mxu0 0.0
    %4259 = vmatprep.subr.mxu0 0.0
    %4260 = vmatpush1.msra.mxu0 0.0
    %4261 = vmatprep.subr.mxu0 0.0
    %4262 = vmatpush1.msra.mxu0 0.0
    %4263 = vmatprep.subr.mxu0 0.0
    %4264 = vmatpush1.msra.mxu0 0.0
    %4265 = vmatprep.subr.mxu0 0.0
    %4266 = vmatpush1.msra.mxu0 0.0
    %4267 = vmatprep.subr.mxu0 0.0
    %4268 = vmatpush1.msra.mxu0 0.0
    %4269 = vmatprep.subr.mxu0 0.0
    %4270 = vmatpush1.msra.mxu0 0.0
    %4271 = vmatprep.subr.mxu0 0.0
    %4272 = vmatpush1.msra.mxu0 0.0
    %4273 = vmatprep.subr.mxu0 0.0
    %4274 = vmatpush1.msra.mxu0 0.0
    %4275 = vmatprep.subr.mxu0 0.0
    %4276 = vmatpush1.msra.mxu0 0.0
    %4277 = vmatprep.subr.mxu0 0.0
    %4278 = vmatpush1.msra.mxu0 0.0
    %4279 = vmatprep.subr.mxu0 0.0
    %4280 = vmatpush1.msra.mxu0 0.0
    %4281 = vmatprep.subr.mxu0 0.0
    %4282 = vmatpush1.msra.mxu0 0.0
    %4283 = vmatprep.subr.mxu0 0.0
    %4284 = vmatpush1.msra.mxu0 0.0
    %4285 = vmatprep.subr.mxu0 0.0
    %4286 = vmatpush1.msra.mxu0 0.0
    %4287 = vmatprep.subr.mxu0 0.0
    %4288 = vmatpush1.msra.mxu0 0.0
    %4289 = vmatprep.subr.mxu0 0.0
    %4290 = vmatpush1.msra.mxu0 0.0
    %4291 = vmatprep.subr.mxu0 0.0
    %4292 = vmatpush1.msra.mxu0 0.0
    %4293 = vmatprep.subr.mxu0 0.0
    %4294 = vmatpush1.msra.mxu0 0.0
    %4295 = vmatprep.subr.mxu0 0.0
    %4296 = vmatpush1.msra.mxu0 0.0
    %4297 = vmatprep.subr.mxu0 0.0
    %4298 = vmatpush1.msra.mxu0 0.0
    %4299 = vmatprep.subr.mxu0 0.0
    %4300 = vmatpush1.msra.mxu0 0.0
    %4301 = vmatprep.subr.mxu0 0.0
    %4302 = vmatpush1.msra.mxu0 0.0
    %4303 = vmatprep.subr.mxu0 0.0
    %4304 = vmatpush1.msra.mxu0 0.0
    %4305 = vmatprep.mubr.f32.mxu0 0.0
    %4306 = vmatmul.mubr.f32.gmra.mrb[0].mxu0 %v4161
    %v4307 = vpop.f32.mrb[0].mxu0
    %v4308 = vadd.f32 0.0, %v4307
    %v4309 = vpop.f32.mrb[0].mxu0
    %4310 = vmatprep.mubr.f32.mxu0 0.0
    %4311 = vmatmul.mubr.f32.gmra.mrb[0].mxu0 %v4164
    %v4312 = vpop.f32.mrb[0].mxu0
    %v4313 = vadd.f32 0.0, %v4312
    %v4314 = vpop.f32.mrb[0].mxu0
    %4315 = vdwg.mxu0
    %4316 = vmatprep.subr.mxu0 0.0
    %4317 = vmatpush1.msra.mxu0 %v1238
    %4318 = vmatprep.subr.mxu0 0.0
    %4319 = vmatpush1.msra.mxu0 %v1241
    %4320 = vmatprep.subr.mxu0 0.0
    %4321 = vmatpush1.msra.mxu0 0.0
    %4322 = vmatprep.subr.mxu0 0.0
    %4323 = vmatpush1.msra.mxu0 0.0
    %4324 = vmatprep.subr.mxu0 0.0
    %4325 = vmatpush1.msra.mxu0 0.0
    %4326 = vmatprep.subr.mxu0 0.0
    %4327 = vmatpush1.msra.mxu0 0.0
    %4328 = vmatprep.subr.mxu0 0.0
    %4329 = vmatpush1.msra.mxu0 0.0
    %4330 = vmatprep.subr.mxu0 0.0
    %4331 = vmatpush1.msra.mxu0 0.0
    %4332 = vmatprep.subr.mxu0 0.0
    %4333 = vmatpush1.msra.mxu0 0.0
    %4334 = vmatprep.subr.mxu0 0.0
    %4335 = vmatpush1.msra.mxu0 0.0
    %4336 = vmatprep.subr.mxu0 0.0
    %4337 = vmatpush1.msra.mxu0 0.0
    %4338 = vmatprep.subr.mxu0 0.0
    %4339 = vmatpush1.msra.mxu0 0.0
    %4340 = vmatprep.subr.mxu0 0.0
    %4341 = vmatpush1.msra.mxu0 0.0
    %4342 = vmatprep.subr.mxu0 0.0
    %4343 = vmatpush1.msra.mxu0 0.0
    %4344 = vmatprep.subr.mxu0 0.0
    %4345 = vmatpush1.msra.mxu0 0.0
    %4346 = vmatprep.subr.mxu0 0.0
    %4347 = vmatpush1.msra.mxu0 0.0
    %4348 = vmatprep.subr.mxu0 0.0
    %4349 = vmatpush1.msra.mxu0 0.0
    %4350 = vmatprep.subr.mxu0 0.0
    %4351 = vmatpush1.msra.mxu0 0.0
    %4352 = vmatprep.subr.mxu0 0.0
    %4353 = vmatpush1.msra.mxu0 0.0
    %4354 = vmatprep.subr.mxu0 0.0
    %4355 = vmatpush1.msra.mxu0 0.0
    %4356 = vmatprep.subr.mxu0 0.0
    %4357 = vmatpush1.msra.mxu0 0.0
    %4358 = vmatprep.subr.mxu0 0.0
    %4359 = vmatpush1.msra.mxu0 0.0
    %4360 = vmatprep.subr.mxu0 0.0
    %4361 = vmatpush1.msra.mxu0 0.0
    %4362 = vmatprep.subr.mxu0 0.0
    %4363 = vmatpush1.msra.mxu0 0.0
    %4364 = vmatprep.subr.mxu0 0.0
    %4365 = vmatpush1.msra.mxu0 0.0
    %4366 = vmatprep.subr.mxu0 0.0
    %4367 = vmatpush1.msra.mxu0 0.0
    %4368 = vmatprep.subr.mxu0 0.0
    %4369 = vmatpush1.msra.mxu0 0.0
    %4370 = vmatprep.subr.mxu0 0.0
    %4371 = vmatpush1.msra.mxu0 0.0
    %4372 = vmatprep.subr.mxu0 0.0
    %4373 = vmatpush1.msra.mxu0 0.0
    %4374 = vmatprep.subr.mxu0 0.0
    %4375 = vmatpush1.msra.mxu0 0.0
    %4376 = vmatprep.subr.mxu0 0.0
    %4377 = vmatpush1.msra.mxu0 0.0
    %4378 = vmatprep.subr.mxu0 0.0
    %4379 = vmatpush1.msra.mxu0 0.0
    %4380 = vmatprep.mubr.f32.mxu0 0.0
    %4381 = vmatmul.mubr.f32.gmra.mrb[0].mxu0 %v4161
    %v4382 = vpop.f32.mrb[0].mxu0
    %v4383 = vadd.f32 0.0, %v4382
    %v4384 = vpop.f32.mrb[0].mxu0
    %4385 = vmatprep.mubr.f32.mxu0 0.0
    %4386 = vmatmul.mubr.f32.gmra.mrb[0].mxu0 %v4164
    %v4387 = vpop.f32.mrb[0].mxu0
    %v4388 = vadd.f32 0.0, %v4387
    %v4389 = vpop.f32.mrb[0].mxu0
    %4390 = vdwg.mxu0
    %4391 = vmatprep.subr.mxu0 0.0
    %4392 = vmatpush1.msra.mxu0 %v1323
    %4393 = vmatprep.subr.mxu0 0.0
    %4394 = vmatpush1.msra.mxu0 %v1326
    %4395 = vmatprep.subr.mxu0 0.0
    %4396 = vmatpush1.msra.mxu0 0.0
    %4397 = vmatprep.subr.mxu0 0.0
    %4398 = vmatpush1.msra.mxu0 0.0
    %4399 = vmatprep.subr.mxu0 0.0
    %4400 = vmatpush1.msra.mxu0 0.0
    %4401 = vmatprep.subr.mxu0 0.0
    %4402 = vmatpush1.msra.mxu0 0.0
    %4403 = vmatprep.subr.mxu0 0.0
    %4404 = vmatpush1.msra.mxu0 0.0
    %4405 = vmatprep.subr.mxu0 0.0
    %4406 = vmatpush1.msra.mxu0 0.0
    %4407 = vmatprep.subr.mxu0 0.0
    %4408 = vmatpush1.msra.mxu0 0.0
    %4409 = vmatprep.subr.mxu0 0.0
    %4410 = vmatpush1.msra.mxu0 0.0
    %4411 = vmatprep.subr.mxu0 0.0
    %4412 = vmatpush1.msra.mxu0 0.0
    %4413 = vmatprep.subr.mxu0 0.0
    %4414 = vmatpush1.msra.mxu0 0.0
    %4415 = vmatprep.subr.mxu0 0.0
    %4416 = vmatpush1.msra.mxu0 0.0
    %4417 = vmatprep.subr.mxu0 0.0
    %4418 = vmatpush1.msra.mxu0 0.0
    %4419 = vmatprep.subr.mxu0 0.0
    %4420 = vmatpush1.msra.mxu0 0.0
    %4421 = vmatprep.subr.mxu0 0.0
    %4422 = vmatpush1.msra.mxu0 0.0
    %4423 = vmatprep.subr.mxu0 0.0
    %4424 = vmatpush1.msra.mxu0 0.0
    %4425 = vmatprep.subr.mxu0 0.0
    %4426 = vmatpush1.msra.mxu0 0.0
    %4427 = vmatprep.subr.mxu0 0.0
    %4428 = vmatpush1.msra.mxu0 0.0
    %4429 = vmatprep.subr.mxu0 0.0
    %4430 = vmatpush1.msra.mxu0 0.0
    %4431 = vmatprep.subr.mxu0 0.0
    %4432 = vmatpush1.msra.mxu0 0.0
    %4433 = vmatprep.subr.mxu0 0.0
    %4434 = vmatpush1.msra.mxu0 0.0
    %4435 = vmatprep.subr.mxu0 0.0
    %4436 = vmatpush1.msra.mxu0 0.0
    %4437 = vmatprep.subr.mxu0 0.0
    %4438 = vmatpush1.msra.mxu0 0.0
    %4439 = vmatprep.subr.mxu0 0.0
    %4440 = vmatpush1.msra.mxu0 0.0
    %4441 = vmatprep.subr.mxu0 0.0
    %4442 = vmatpush1.msra.mxu0 0.0
    %4443 = vmatprep.subr.mxu0 0.0
    %4444 = vmatpush1.msra.mxu0 0.0
    %4445 = vmatprep.subr.mxu0 0.0
    %4446 = vmatpush1.msra.mxu0 0.0
    %4447 = vmatprep.subr.mxu0 0.0
    %4448 = vmatpush1.msra.mxu0 0.0
    %4449 = vmatprep.subr.mxu0 0.0
    %4450 = vmatpush1.msra.mxu0 0.0
    %4451 = vmatprep.subr.mxu0 0.0
    %4452 = vmatpush1.msra.mxu0 0.0
    %4453 = vmatprep.subr.mxu0 0.0
    %4454 = vmatpush1.msra.mxu0 0.0
    %4455 = vmatprep.mubr.f32.mxu0 0.0
    %4456 = vmatmul.mubr.f32.gmra.mrb[0].mxu0 %v4161
    %v4457 = vpop.f32.mrb[0].mxu0
    %v4458 = vadd.f32 0.0, %v4457
    %v4459 = vpop.f32.mrb[0].mxu0
    %4460 = vmatprep.mubr.f32.mxu0 0.0
    %4461 = vmatmul.mubr.f32.gmra.mrb[0].mxu0 %v4164
    %v4462 = vpop.f32.mrb[0].mxu0
    %v4463 = vadd.f32 0.0, %v4462
    %v4464 = vpop.f32.mrb[0].mxu0
    %4465 = vdwg.mxu0
    %4466 = vmatprep.subr.mxu0 0.0
    %4467 = vmatpush1.msra.mxu0 %v1408
    %4468 = vmatprep.subr.mxu0 0.0
    %4469 = vmatpush1.msra.mxu0 %v1411
    %4470 = vmatprep.subr.mxu0 0.0
    %4471 = vmatpush1.msra.mxu0 0.0
    %4472 = vmatprep.subr.mxu0 0.0
    %4473 = vmatpush1.msra.mxu0 0.0
    %4474 = vmatprep.subr.mxu0 0.0
    %4475 = vmatpush1.msra.mxu0 0.0
    %4476 = vmatprep.subr.mxu0 0.0
    %4477 = vmatpush1.msra.mxu0 0.0
    %4478 = vmatprep.subr.mxu0 0.0
    %4479 = vmatpush1.msra.mxu0 0.0
    %4480 = vmatprep.subr.mxu0 0.0
    %4481 = vmatpush1.msra.mxu0 0.0
    %4482 = vmatprep.subr.mxu0 0.0
    %4483 = vmatpush1.msra.mxu0 0.0
    %4484 = vmatprep.subr.mxu0 0.0
    %4485 = vmatpush1.msra.mxu0 0.0
    %4486 = vmatprep.subr.mxu0 0.0
    %4487 = vmatpush1.msra.mxu0 0.0
    %4488 = vmatprep.subr.mxu0 0.0
    %4489 = vmatpush1.msra.mxu0 0.0
    %4490 = vmatprep.subr.mxu0 0.0
    %4491 = vmatpush1.msra.mxu0 0.0
    %4492 = vmatprep.subr.mxu0 0.0
    %4493 = vmatpush1.msra.mxu0 0.0
    %4494 = vmatprep.subr.mxu0 0.0
    %4495 = vmatpush1.msra.mxu0 0.0
    %4496 = vmatprep.subr.mxu0 0.0
    %4497 = vmatpush1.msra.mxu0 0.0
    %4498 = vmatprep.subr.mxu0 0.0
    %4499 = vmatpush1.msra.mxu0 0.0
    %4500 = vmatprep.subr.mxu0 0.0
    %4501 = vmatpush1.msra.mxu0 0.0
    %4502 = vmatprep.subr.mxu0 0.0
    %4503 = vmatpush1.msra.mxu0 0.0
    %4504 = vmatprep.subr.mxu0 0.0
    %4505 = vmatpush1.msra.mxu0 0.0
    %4506 = vmatprep.subr.mxu0 0.0
    %4507 = vmatpush1.msra.mxu0 0.0
    %4508 = vmatprep.subr.mxu0 0.0
    %4509 = vmatpush1.msra.mxu0 0.0
    %4510 = vmatprep.subr.mxu0 0.0
    %4511 = vmatpush1.msra.mxu0 0.0
    %4512 = vmatprep.subr.mxu0 0.0
    %4513 = vmatpush1.msra.mxu0 0.0
    %4514 = vmatprep.subr.mxu0 0.0
    %4515 = vmatpush1.msra.mxu0 0.0
    %4516 = vmatprep.subr.mxu0 0.0
    %4517 = vmatpush1.msra.mxu0 0.0
    %4518 = vmatprep.subr.mxu0 0.0
    %4519 = vmatpush1.msra.mxu0 0.0
    %4520 = vmatprep.subr.mxu0 0.0
    %4521 = vmatpush1.msra.mxu0 0.0
    %4522 = vmatprep.subr.mxu0 0.0
    %4523 = vmatpush1.msra.mxu0 0.0
    %4524 = vmatprep.subr.mxu0 0.0
    %4525 = vmatpush1.msra.mxu0 0.0
    %4526 = vmatprep.subr.mxu0 0.0
    %4527 = vmatpush1.msra.mxu0 0.0
    %4528 = vmatprep.subr.mxu0 0.0
    %4529 = vmatpush1.msra.mxu0 0.0
    %4530 = vmatprep.mubr.f32.mxu0 0.0
    %4531 = vmatmul.mubr.f32.gmra.mrb[0].mxu0 %v4161
    %v4532 = vpop.f32.mrb[0].mxu0
    %v4533 = vadd.f32 0.0, %v4532
    %v4534 = vpop.f32.mrb[0].mxu0
    %4535 = vmatprep.mubr.f32.mxu0 0.0
    %4536 = vmatmul.mubr.f32.gmra.mrb[0].mxu0 %v4164
    %v4537 = vpop.f32.mrb[0].mxu0
    %v4538 = vadd.f32 0.0, %v4537
    %v4539 = vpop.f32.mrb[0].mxu0
    %4540 = vdwg.mxu0
    %v4541 = vld [vmem:[%s3] sm:$0x1]
    %v4542 = vld [vmem:[#allocation3] sm:$0x1]
    %4544 = vset.pattern.permute.xlu0 0
    %4545 = vperm.xlu0 %4544, %v4542
    %v4546 = vpop.permute.xlu0 %4545
    %v4548 = vlaneseq
    %v4549 = vshrl.u32 %v4548, 7
    %v4550 = vsub.s32 0, %v4549
    %v4551 = vrot.slane %v4546, %v4550
    %v4553 = vsel %vm1499, %v4541, 0
    %4555 = vmatprep.subr.mxu0 0.0
    %4556 = vmatpush1.msra.mxu0 %v4233
    %4557 = vmatprep.subr.mxu0 0.0
    %4558 = vmatpush1.msra.mxu0 %v4238
    %4559 = vmatprep.subr.mxu0 0.0
    %4560 = vmatpush1.msra.mxu0 %v4308
    %4561 = vmatprep.subr.mxu0 0.0
    %4562 = vmatpush1.msra.mxu0 %v4313
    %4563 = vmatprep.subr.mxu0 0.0
    %4564 = vmatpush1.msra.mxu0 %v4383
    %4565 = vmatprep.subr.mxu0 0.0
    %4566 = vmatpush1.msra.mxu0 %v4388
    %4567 = vmatprep.subr.mxu0 0.0
    %4568 = vmatpush1.msra.mxu0 %v4458
    %4569 = vmatprep.subr.mxu0 0.0
    %4570 = vmatpush1.msra.mxu0 %v4463
    %4571 = vmatprep.subr.mxu0 0.0
    %4572 = vmatpush1.msra.mxu0 %v4533
    %4573 = vmatprep.subr.mxu0 0.0
    %4574 = vmatpush1.msra.mxu0 %v4538
    %4575 = vmatprep.subr.mxu0 0.0
    %4576 = vmatpush1.msra.mxu0 0.0
    %4577 = vmatprep.subr.mxu0 0.0
    %4578 = vmatpush1.msra.mxu0 0.0
    %4579 = vmatprep.subr.mxu0 0.0
    %4580 = vmatpush1.msra.mxu0 0.0
    %4581 = vmatprep.subr.mxu0 0.0
    %4582 = vmatpush1.msra.mxu0 0.0
    %4583 = vmatprep.subr.mxu0 0.0
    %4584 = vmatpush1.msra.mxu0 0.0
    %4585 = vmatprep.subr.mxu0 0.0
    %4586 = vmatpush1.msra.mxu0 0.0
    %4587 = vmatprep.subr.mxu0 0.0
    %4588 = vmatpush1.msra.mxu0 0.0
    %4589 = vmatprep.subr.mxu0 0.0
    %4590 = vmatpush1.msra.mxu0 0.0
    %4591 = vmatprep.subr.mxu0 0.0
    %4592 = vmatpush1.msra.mxu0 0.0
    %4593 = vmatprep.subr.mxu0 0.0
    %4594 = vmatpush1.msra.mxu0 0.0
    %4595 = vmatprep.subr.mxu0 0.0
    %4596 = vmatpush1.msra.mxu0 0.0
    %4597 = vmatprep.subr.mxu0 0.0
    %4598 = vmatpush1.msra.mxu0 0.0
    %4599 = vmatprep.subr.mxu0 0.0
    %4600 = vmatpush1.msra.mxu0 0.0
    %4601 = vmatprep.subr.mxu0 0.0
    %4602 = vmatpush1.msra.mxu0 0.0
    %4603 = vmatprep.subr.mxu0 0.0
    %4604 = vmatpush1.msra.mxu0 0.0
    %4605 = vmatprep.subr.mxu0 0.0
    %4606 = vmatpush1.msra.mxu0 0.0
    %4607 = vmatprep.subr.mxu0 0.0
    %4608 = vmatpush1.msra.mxu0 0.0
    %4609 = vmatprep.subr.mxu0 0.0
    %4610 = vmatpush1.msra.mxu0 0.0
    %4611 = vmatprep.subr.mxu0 0.0
    %4612 = vmatpush1.msra.mxu0 0.0
    %4613 = vmatprep.subr.mxu0 0.0
    %4614 = vmatpush1.msra.mxu0 0.0
    %4615 = vmatprep.subr.mxu0 0.0
    %4616 = vmatpush1.msra.mxu0 0.0
    %4617 = vmatprep.subr.mxu0 0.0
    %4618 = vmatpush1.msra.mxu0 0.0
    %4619 = vmatprep.mubr.f32.mxu0 0.0
    %4620 = vmatmul.mubr.f32.gmra.mrb[0].mxu0 %v4553
    %v4621 = vpop.f32.mrb[0].mxu0
    %v4622 = vadd.f32 %v4551, %v4621
    %v4623 = vpop.f32.mrb[0].mxu0
    %4624 = vdwg.mxu0
    %v4625 = vmax.f32 %v4622, 0.0
    %v4626 = vld [vmem:[%s5] sm:$0xff]
    %v4627 = vld [vmem:[%s5 + $0x8] sm:$0xff]
    %4629 = vset.pattern.permute.xlu0 0
    %4630 = vperm.xlu0 %4629, %v4626
    %v4631 = vpop.permute.xlu0 %4630
    %4634 = vset.pattern.permute.xlu0 0
    %4635 = vperm.xlu0 %4634, %v4627
    %v4636 = vpop.permute.xlu0 %4635
    %v4638 = vlaneseq
    %v4639 = vshrl.u32 %v4638, 7
    %v4640 = vsub.s32 0, %v4639
    %v4641 = vrot.slane %v4625, %v4640
    %v4642 = vmul.f32 %v4631, %v4641
    %v4643 = vmul.f32 %v4636, %v4641
    %v4644 = vld [vmem:[%s6] sm:$0xff]
    %v4645 = vld [vmem:[%s6 + $0x8] sm:$0xff]
    %4647 = vset.pattern.permute.xlu0 0
    %4648 = vperm.xlu0 %4647, %v4644
    %v4649 = vpop.permute.xlu0 %4648
    %4652 = vset.pattern.permute.xlu0 0
    %4653 = vperm.xlu0 %4652, %v4645
    %v4654 = vpop.permute.xlu0 %4653
    %v4656 = vadd.f32 %v4642, %v4649
    %v4657 = vadd.f32 %v4643, %v4654
    %v4658 = vsub.f32 0.0, %v4656
    %v4659 = vsub.f32 0.0, %v4657
    %v4660 = vmul.f32 %v4658, 1.442695
    %v4661 = vpow.pop %v4660
    %v4662 = vmul.f32 %v4659, 1.442695
    %v4663 = vpow.pop %v4662
    %v4664 = vadd.f32 %v4661, 1.0
    %v4665 = vadd.f32 %v4663, 1.0
    %v4666 = vrcp.pop %v4664
    %v4667 = vmul.f32 1.0, %v4666
    %v4668 = vrcp.pop %v4665
    %v4669 = vmul.f32 1.0, %v4668
    %v4670 = vmul.f32 %v1615, 1.442695
    %v4671 = vpow.pop %v4670
    %v4672 = vmul.f32 %v1617, 1.442695
    %v4673 = vpow.pop %v4672
    %v4674 = vmul.f32 %v3141, 1.442695
    %v4675 = vpow.pop %v4674
    %v4676 = vmul.f32 %v3143, 1.442695
    %v4677 = vpow.pop %v4676
    %v4678 = vmul.f32 %v4667, 1.442695
    %v4679 = vpow.pop %v4678
    %v4680 = vmul.f32 %v4669, 1.442695
    %v4681 = vpow.pop %v4680
    %v4682 = vadd.f32 %v4671, %v4675
    %v4683 = vadd.f32 %v4673, %v4677
    %v4684 = vadd.f32 %v4682, %v4679
    %v4685 = vadd.f32 %v4683, %v4681
    %v4686 = vrcp.pop %v4684
    %v4687 = vmul.f32 1.0, %v4686
    %v4688 = vrcp.pop %v4685
    %v4689 = vmul.f32 1.0, %v4688
    %v4690 = vmul.f32 %v4671, %v4687
    %v4691 = vmul.f32 %v4673, %v4689
    %vm4692 = vcmp.eq.s32.totalorder %v48, 0
    %v4693 = vsel %vm4692, 1, 0
    %v4694 = vcvt.s32.f32 %v4693
    %v4695 = vmul.f32 %v4690, %v4694
    %v4696 = vmul.f32 %v4691, %v4694
    %vm4697 = vcmask 15360
    %v4698 = vsel %vm4697, %v4695, 0.0
    %4699 = vadd.xlane.f32.xlu0 %v4698
    %v4700 = vpop.xlane.xlu0 %4699
    %v4701 = vsel %vm4697, %v4696, 0.0
    %4702 = vadd.xlane.f32.xlu0 %v4701
    %v4703 = vpop.xlane.xlu0 %4702
    %v4704 = vld [vmem:[#allocation4] sm:$0xff]
    %v4705 = vld [vmem:[#allocation4 + $0x8] sm:$0xff]
    %v4706 = vld [vmem:[#allocation4 + $0x10] sm:$0xff]
    %v4707 = vld [vmem:[#allocation4 + $0x18] sm:$0xff]
    %v4708 = vmul.f32 %v4704, %v4700
    %v4709 = vmul.f32 %v4705, %v4700
    %v4710 = vmul.f32 %v4706, %v4703
    %v4711 = vmul.f32 %v4707, %v4703
    %4712 = vst [vmem:[#allocation4] sm:$0xff] %v4708
    %4713 = vst [vmem:[#allocation4 + $0x8] sm:$0xff] %v4709
    %4714 = vst [vmem:[#allocation4 + $0x10] sm:$0xff] %v4710
    %4715 = vst [vmem:[#allocation4 + $0x18] sm:$0xff] %v4711
    %vm4716 = vcmp.eq.s32.totalorder %v48, 1
    %v4717 = vsel %vm4716, 1, 0
    %v4718 = vcvt.s32.f32 %v4717
    %v4719 = vmul.f32 %v4690, %v4718
    %v4720 = vmul.f32 %v4691, %v4718
    %v4721 = vsel %vm4697, %v4719, 0.0
    %4722 = vadd.xlane.f32.xlu0 %v4721
    %v4723 = vpop.xlane.xlu0 %4722
    %v4724 = vsel %vm4697, %v4720, 0.0
    %4725 = vadd.xlane.f32.xlu0 %v4724
    %v4726 = vpop.xlane.xlu0 %4725
    %v4727 = vld [vmem:[%s834] sm:$0xff]
    %v4728 = vld [vmem:[%s834 + $0x8] sm:$0xff]
    %v4729 = vld [vmem:[%s834 + $0x10] sm:$0xff]
    %v4730 = vld [vmem:[%s834 + $0x18] sm:$0xff]
    %v4731 = vmul.f32 %v4727, %v4723
    %v4732 = vmul.f32 %v4728, %v4723
    %v4733 = vmul.f32 %v4729, %v4726
    %v4734 = vmul.f32 %v4730, %v4726
    %4735 = vst [vmem:[%s834] sm:$0xff] %v4731
    %4736 = vst [vmem:[%s834 + $0x8] sm:$0xff] %v4732
    %4737 = vst [vmem:[%s834 + $0x10] sm:$0xff] %v4733
    %4738 = vst [vmem:[%s834 + $0x18] sm:$0xff] %v4734
    %v4739 = vmul.f32 %v4675, %v4687
    %v4740 = vmul.f32 %v4677, %v4689
    %v4741 = vmul.f32 %v4739, %v4694
    %v4742 = vmul.f32 %v4740, %v4694
    %v4743 = vsel %vm4697, %v4741, 0.0
    %4744 = vadd.xlane.f32.xlu0 %v4743
    %v4745 = vpop.xlane.xlu0 %4744
    %v4746 = vsel %vm4697, %v4742, 0.0
    %4747 = vadd.xlane.f32.xlu0 %v4746
    %v4748 = vpop.xlane.xlu0 %4747
    %v4749 = vld [vmem:[#allocation4 + $0x20] sm:$0xff]
    %v4750 = vld [vmem:[#allocation4 + $0x28] sm:$0xff]
    %v4751 = vld [vmem:[#allocation4 + $0x30] sm:$0xff]
    %v4752 = vld [vmem:[#allocation4 + $0x38] sm:$0xff]
    %v4753 = vmul.f32 %v4749, %v4745
    %v4754 = vmul.f32 %v4750, %v4745
    %v4755 = vmul.f32 %v4751, %v4748
    %v4756 = vmul.f32 %v4752, %v4748
    %4757 = vst [vmem:[#allocation4 + $0x20] sm:$0xff] %v4753
    %4758 = vst [vmem:[#allocation4 + $0x28] sm:$0xff] %v4754
    %4759 = vst [vmem:[#allocation4 + $0x30] sm:$0xff] %v4755
    %4760 = vst [vmem:[#allocation4 + $0x38] sm:$0xff] %v4756
    %v4761 = vmul.f32 %v4739, %v4718
    %v4762 = vmul.f32 %v4740, %v4718
    %v4763 = vsel %vm4697, %v4761, 0.0
    %4764 = vadd.xlane.f32.xlu0 %v4763
    %v4765 = vpop.xlane.xlu0 %4764
    %v4766 = vsel %vm4697, %v4762, 0.0
    %4767 = vadd.xlane.f32.xlu0 %v4766
    %v4768 = vpop.xlane.xlu0 %4767
    %v4769 = vld [vmem:[%s834 + $0x20] sm:$0xff]
    %v4770 = vld [vmem:[%s834 + $0x28] sm:$0xff]
    %v4771 = vld [vmem:[%s834 + $0x30] sm:$0xff]
    %v4772 = vld [vmem:[%s834 + $0x38] sm:$0xff]
    %v4773 = vmul.f32 %v4769, %v4765
    %v4774 = vmul.f32 %v4770, %v4765
    %v4775 = vmul.f32 %v4771, %v4768
    %v4776 = vmul.f32 %v4772, %v4768
    %4777 = vst [vmem:[%s834 + $0x20] sm:$0xff] %v4773
    %4778 = vst [vmem:[%s834 + $0x28] sm:$0xff] %v4774
    %4779 = vst [vmem:[%s834 + $0x30] sm:$0xff] %v4775
    %4780 = vst [vmem:[%s834 + $0x38] sm:$0xff] %v4776
    %v4781 = vmul.f32 %v4679, %v4687
    %v4782 = vmul.f32 %v4681, %v4689
    %v4783 = vmul.f32 %v4781, %v4694
    %v4784 = vmul.f32 %v4782, %v4694
    %v4785 = vsel %vm4697, %v4783, 0.0
    %4786 = vadd.xlane.f32.xlu0 %v4785
    %v4787 = vpop.xlane.xlu0 %4786
    %v4788 = vsel %vm4697, %v4784, 0.0
    %4789 = vadd.xlane.f32.xlu0 %v4788
    %v4790 = vpop.xlane.xlu0 %4789
    %v4791 = vld [vmem:[#allocation4 + $0x40] sm:$0xff]
    %v4792 = vld [vmem:[#allocation4 + $0x48] sm:$0xff]
    %v4793 = vld [vmem:[#allocation4 + $0x50] sm:$0xff]
    %v4794 = vld [vmem:[#allocation4 + $0x58] sm:$0xff]
    %v4795 = vmul.f32 %v4791, %v4787
    %v4796 = vmul.f32 %v4792, %v4787
    %v4797 = vmul.f32 %v4793, %v4790
    %v4798 = vmul.f32 %v4794, %v4790
    %4799 = vst [vmem:[#allocation4 + $0x40] sm:$0xff] %v4795
    %4800 = vst [vmem:[#allocation4 + $0x48] sm:$0xff] %v4796
    %4801 = vst [vmem:[#allocation4 + $0x50] sm:$0xff] %v4797
    %4802 = vst [vmem:[#allocation4 + $0x58] sm:$0xff] %v4798
    %v4803 = vmul.f32 %v4781, %v4718
    %v4804 = vmul.f32 %v4782, %v4718
    %v4805 = vsel %vm4697, %v4803, 0.0
    %4806 = vadd.xlane.f32.xlu0 %v4805
    %v4807 = vpop.xlane.xlu0 %4806
    %v4808 = vsel %vm4697, %v4804, 0.0
    %4809 = vadd.xlane.f32.xlu0 %v4808
    %v4810 = vpop.xlane.xlu0 %4809
    %v4811 = vld [vmem:[%s834 + $0x40] sm:$0xff]
    %v4812 = vld [vmem:[%s834 + $0x48] sm:$0xff]
    %v4813 = vld [vmem:[%s834 + $0x50] sm:$0xff]
    %v4814 = vld [vmem:[%s834 + $0x58] sm:$0xff]
    %v4815 = vmul.f32 %v4811, %v4807
    %v4816 = vmul.f32 %v4812, %v4807
    %v4817 = vmul.f32 %v4813, %v4810
    %v4818 = vmul.f32 %v4814, %v4810
    %4819 = vst [vmem:[%s834 + $0x40] sm:$0xff] %v4815
    %4820 = vst [vmem:[%s834 + $0x48] sm:$0xff] %v4816
    %4821 = vst [vmem:[%s834 + $0x50] sm:$0xff] %v4817
    %4822 = vst [vmem:[%s834 + $0x58] sm:$0xff] %v4818
    // Predicated region
    $region38: #{tpu_custom_call.1} parent=1 // pred_check
      _
    $region39: #{tpu_custom_call.1} parent=1 // pred_check_branch
      %4824 = sbr.rel (0) target = $region41
    $region40: #{tpu_custom_call.1} parent=1 // pred_region
      %s4826 = ssub.s32 3072, 3072
      %4827 = vsyncadd [#allocation5], %s4826
      %s4828 = sshll.u32 [#allocation4], 4
      %s4829 = int_to_ptr.vmem [resolvable:$true] %s4828
      %4834 = dma.vmem_to_hbm [thread:$0]  %s4829, 3072, %s9, [#allocation5], 256, 256, 16
    $region41: #{tpu_custom_call.1} parent=1 // pred_fallthru
      _
    // Predicated region
    $region42: #{tpu_custom_call.1} parent=1 // pred_check
      _
    $region43: #{tpu_custom_call.1} parent=1 // pred_check_branch
      %4836 = sbr.rel (0) target = $region45
    $region44: #{tpu_custom_call.1} parent=1 // pred_region
      %4837 = dma.done [#allocation5], 3072
    $region45: #{tpu_custom_call.1} parent=1 // pred_fallthru
      _
    %4838 = vsyncpa [#allocation5], 1

</llo_original>
